<compile_context>
chip_gen: v7x
topology: tpu7x:2x2x1
jax: 0.10.0
libtpu: 0.0.40
codegen_flags: <defaults>
</compile_context>

<pallas_src>
import functools

import jax
import jax.numpy as jnp
from jax import lax
from jax.experimental import pallas as pl
from jax.experimental.pallas import tpu as pltpu

NUM_LAYERS = 4
_WEIGHT_DTYPE = jnp.bfloat16      # MXU-native storage; f32 accumulation everywhere
_ACT_DTYPE = jnp.bfloat16         # inter-layer activations (halves HBM traffic)
_ROW_ALIGN = 16                   # 8-sublane tile x bf16 sublane packing


def _vmem_limit_bytes():
    """Generation-aware scoped-VMEM budget (fallback: 32 MiB)."""
    default = 32 * 1024 * 1024
    try:
        cap = getattr(pltpu.get_tpu_info(), "vmem_capacity_bytes", None)
        if not cap:
            return default
        # ~3/4 of physical, capped at 96 MiB: ~96 MiB on v5e/v6e (128 MiB),
        # ~48 MiB on v7x (64 MiB), leaving headroom for double-buffering.
        return int(max(default, min(cap * 3 // 4, 96 * 1024 * 1024)))
    except Exception:
        return default


_VMEM_LIMIT = _vmem_limit_bytes()


# ----------------------------------------------------------------------------
# Pallas kernels
# ----------------------------------------------------------------------------
def linear_kernel(x_ref, w_ref, b_ref, o_ref):
    # o = x @ w + b   (w stored transposed: (K, N)); f32 accumulate, cast out.
    acc = jnp.dot(x_ref[...], w_ref[...], preferred_element_type=jnp.float32)
    o_ref[...] = (acc + b_ref[...]).astype(o_ref.dtype)


def head_kernel(x_ref, w1_ref, b1_ref, scale_ref, shift_ref, w2_ref, b2_ref, o_ref):
    # Linear -> folded eval-mode BatchNorm1d -> ReLU -> Linear.
    # Class dim of w2/b2 is zero-padded to 128 lanes -> lane-dense output store.
    h = jnp.dot(x_ref[...], w1_ref[...], preferred_element_type=jnp.float32) + b1_ref[...]
    h = h * scale_ref[...] + shift_ref[...]
    h = jnp.maximum(h, 0.0)
    # TODO(synk): Dropout(0.5) is identity in inference mode (no RNG masking).
    o_ref[...] = (
        jnp.dot(h.astype(w2_ref.dtype), w2_ref[...], preferred_element_type=jnp.float32)
        + b2_ref[...]
    )


def bilstm_layer_kernel(
    x_ref,        # (S*Bp, D)   time-major rows (row = t*Bp + b), bf16
    wih_ref,      # (D, 8H)     [W_ih_fwd | W_ih_bwd]^T, bf16
    whh_ref,      # (2H, 8H)    blockdiag(W_hh_fwd^T, W_hh_bwd^T), bf16
    b_ref,        # (1, 8H)     combined b_ih+b_hh, fwd||bwd, f32
    y_ref,        # (S*Bp, 2H)  output: fwd hidden in lanes [:H], bwd in [H:], bf16
    xw_ref,       # (S*Bp, 8H)  resident input-gate slab (both directions), bf16
    h_ref,        # (Bp, 2H)    carried hidden [h_fwd | h_bwd], bf16
    c_ref,        # (Bp, 2H)    carried cell   [c_fwd | c_bwd], f32
):
    Bp, H2 = h_ref.shape
    H = H2 // 2
    G = 4 * H
    S = x_ref.shape[0] // Bp

    # One wide fused MXU pass: x @ [W_ih_fwd | W_ih_bwd] for every timestep of
    # both directions at once (instead of 2*S narrow passes).
    # TODO(synk): at production S*Bp chunk this over S and pipeline it against
    # the recurrence (pltpu.emit_pipeline) so only 2 chunks stay resident.
    xw = jnp.dot(x_ref[...], wih_ref[...], preferred_element_type=jnp.float32)
    xw_ref[...] = (xw + b_ref[...]).astype(xw_ref.dtype)

    h_ref[...] = jnp.zeros_like(h_ref)
    c_ref[...] = jnp.zeros_like(c_ref)

    whh = whh_ref[...]   # hoisted once; lives in vregs across the recurrence

    def cell(gates, c_prev):
        # PyTorch gate order: input, forget, cell(g), output. All f32 math.
        # TODO(synk): H is not a 128-lane multiple at demo size, so gate slices
        # are masked lane selects; production configs should keep H % 128 == 0.
        i_g = jax.nn.sigmoid(gates[:, 0 * H:1 * H])
        f_g = jax.nn.sigmoid(gates[:, 1 * H:2 * H])
        g_g = jnp.tanh(gates[:, 2 * H:3 * H])
        o_g = jax.nn.sigmoid(gates[:, 3 * H:4 * H])
        c_new = f_g * c_prev + i_g * g_g
        h_new = o_g * jnp.tanh(c_new)
        return h_new, c_new

    def step(t, carry):
        # fwd walks t = 0..S-1, bwd walks S-1..0; a single block-diagonal MXU
        # push covers both directions' h @ W_hh.
        row_f = pl.multiple_of(t * Bp, Bp)
        row_b = pl.multiple_of((S - 1 - t) * Bp, Bp)

        hh = jnp.dot(h_ref[...], whh, preferred_element_type=jnp.float32)   # (Bp, 8H)
        gates_f = xw_ref[pl.ds(row_f, Bp), pl.ds(0, G)].astype(jnp.float32) + hh[:, :G]
        gates_b = xw_ref[pl.ds(row_b, Bp), pl.ds(G, G)].astype(jnp.float32) + hh[:, G:]

        c_prev = c_ref[...]
        h_new_f, c_new_f = cell(gates_f, c_prev[:, :H])
        h_new_b, c_new_b = cell(gates_b, c_prev[:, H:])

        h_ref[...] = jnp.concatenate([h_new_f, h_new_b], axis=-1).astype(h_ref.dtype)
        c_ref[...] = jnp.concatenate([c_new_f, c_new_b], axis=-1)

        # Hidden states written straight into the fwd||bwd halves of the output:
        # no per-direction hidden-sequence scratch slabs, no trailing concat.
        y_ref[pl.ds(row_f, Bp), pl.ds(0, H)] = h_new_f.astype(y_ref.dtype)
        y_ref[pl.ds(row_b, Bp), pl.ds(H, H)] = h_new_b.astype(y_ref.dtype)
        return carry

    # Bounded unroll: full only for short sequences (vreg-pressure control).
    unroll = S if S <= 16 else 4
    lax.fori_loop(0, S, step, 0, unroll=unroll)


# ----------------------------------------------------------------------------
# Pallas wrappers
# ----------------------------------------------------------------------------
def pallas_linear(x, w_t, b, *, out_dtype=jnp.float32, tile_m=512):
    """x: (M, K), w_t: (K, N), b: (1, N) -> (M, N), tiled over rows."""
    M, K = x.shape
    N = w_t.shape[1]
    tm = min(tile_m, M)
    return pl.pallas_call(
        linear_kernel,
        out_shape=jax.ShapeDtypeStruct((M, N), out_dtype),
        grid=(pl.cdiv(M, tm),),
        in_specs=[
            pl.BlockSpec((tm, K), lambda i: (i, 0)),
            pl.BlockSpec((K, N), lambda i: (0, 0)),
            pl.BlockSpec((1, N), lambda i: (0, 0)),
        ],
        out_specs=pl.BlockSpec((tm, N), lambda i: (i, 0)),
        compiler_params=pltpu.CompilerParams(
            dimension_semantics=("parallel",),
            vmem_limit_bytes=_VMEM_LIMIT,
        ),
    )(x, w_t, b)


def pallas_head(x, hp, *, tile_m=512):
    """Fused Linear -> BN(folded) -> ReLU -> Linear, tiled over rows."""
    M, K = x.shape
    N = hp["w2_t"].shape[1]          # padded class dim (multiple of 128)
    tm = min(tile_m, M)
    return pl.pallas_call(
        head_kernel,
        out_shape=jax.ShapeDtypeStruct((M, N), jnp.float32),
        grid=(pl.cdiv(M, tm),),
        in_specs=[
            pl.BlockSpec((tm, K), lambda i: (i, 0)),
            pl.BlockSpec((K, K), lambda i: (0, 0)),
            pl.BlockSpec((1, K), lambda i: (0, 0)),
            pl.BlockSpec((1, K), lambda i: (0, 0)),
            pl.BlockSpec((1, K), lambda i: (0, 0)),
            pl.BlockSpec((K, N), lambda i: (0, 0)),
            pl.BlockSpec((1, N), lambda i: (0, 0)),
        ],
        out_specs=pl.BlockSpec((tm, N), lambda i: (i, 0)),
        compiler_params=pltpu.CompilerParams(
            dimension_semantics=("parallel",),
            vmem_limit_bytes=_VMEM_LIMIT,
        ),
    )(x, hp["w1_t"], hp["b1"], hp["bn_scale"], hp["bn_shift"], hp["w2_t"], hp["b2"])


def pallas_bilstm_layer(x_flat, layer, *, seq_len, batch_pad):
    """One bidirectional LSTM layer on time-major flat rows.

    x_flat: (S*Bp, D_in) with row index = t*Bp + b.  Returns (S*Bp, 2H) bf16
    with fwd hidden in lanes [0:H) and bwd hidden in lanes [H:2H).
    """
    M, _ = x_flat.shape
    assert M == seq_len * batch_pad
    G8 = layer["wih_t"].shape[1]          # 8H (fwd||bwd gates)
    H2 = G8 // 4                          # 2H
    return pl.pallas_call(
        bilstm_layer_kernel,
        out_shape=jax.ShapeDtypeStruct((M, H2), _ACT_DTYPE),
        scratch_shapes=[
            pltpu.VMEM((M, G8), _ACT_DTYPE),            # resident xw slab (both dirs)
            pltpu.VMEM((batch_pad, H2), _ACT_DTYPE),    # carried h  [fwd | bwd]
            pltpu.VMEM((batch_pad, H2), jnp.float32),   # carried c  [fwd | bwd]
        ],
        compiler_params=pltpu.CompilerParams(vmem_limit_bytes=_VMEM_LIMIT),
    )(x_flat, layer["wih_t"], layer["whh_blk"], layer["bias"])


# ----------------------------------------------------------------------------
# Model: parameter init + forward
# ----------------------------------------------------------------------------
def init_params(key, vocab_size, emb_dim, lstm_feature, num_classes):
    H = 2 * lstm_feature
    keys = iter(jax.random.split(key, 64))

    def rnd(shape, scale=0.1, dtype=jnp.float32):
        return (scale * jax.random.normal(next(keys), shape)).astype(dtype)

    params = {}
    # nn.Embedding(vocab, emb_dim) initialized from "wordVector" (bf16 storage)
    params["embedding"] = rnd((vocab_size, emb_dim), scale=1.0, dtype=_WEIGHT_DTYPE)
    # nn.Linear(emb_dim, lstm_feature); weights stored transposed (K, N)
    params["lin1_w_t"] = rnd((emb_dim, lstm_feature), dtype=_WEIGHT_DTYPE)
    params["lin1_b"] = rnd((1, lstm_feature))

    # nn.LSTM(input=F, hidden=2F, layers=4, bidirectional=True)
    lstm = []
    in_dim = lstm_feature
    for _ in range(NUM_LAYERS):
        wih_f = rnd((in_dim, 4 * H))
        wih_b = rnd((in_dim, 4 * H))
        whh_f = rnd((H, 4 * H))
        whh_b = rnd((H, 4 * H))
        b_f = rnd((1, 4 * H))            # b_ih + b_hh combined (fwd)
        b_b = rnd((1, 4 * H))            # b_ih + b_hh combined (bwd)
        # fused input-gate weight: one (D, 8H) pass for both directions
        wih_cat = jnp.concatenate([wih_f, wih_b], axis=1).astype(_WEIGHT_DTYPE)
        # block-diagonal recurrence weight: one (2H, 8H) MXU push per step
        whh_blk = jnp.zeros((2 * H, 8 * H), jnp.float32)
        whh_blk = whh_blk.at[:H, : 4 * H].set(whh_f).at[H:, 4 * H:].set(whh_b)
        lstm.append(dict(
            wih_t=wih_cat,
            whh_blk=whh_blk.astype(_WEIGHT_DTYPE),
            bias=jnp.concatenate([b_f, b_b], axis=1),           # f32 (1, 8H)
        ))
        in_dim = 2 * H                    # bidirectional concat feeds next layer
    params["lstm"] = lstm

    # linear_2 head: Linear(4F,4F) -> BN1d(4F) -> ReLU -> Dropout -> Linear(4F,C)
    hid = 4 * lstm_feature
    gamma = rnd((1, hid)) + 1.0
    beta = rnd((1, hid))
    running_mean = jnp.zeros((1, hid), jnp.float32)
    running_var = jnp.ones((1, hid), jnp.float32)
    eps = 1e-5
    bn_scale = gamma / jnp.sqrt(running_var + eps)
    bn_shift = beta - running_mean * bn_scale

    # Zero-pad the class dim to a 128-lane multiple (lane-dense head store);
    # the wrapper slices the real classes back out.
    c_pad = ((num_classes + 127) // 128) * 128
    w2 = rnd((hid, num_classes))
    b2 = rnd((1, num_classes))
    params["head"] = dict(
        w1_t=rnd((hid, hid), dtype=_WEIGHT_DTYPE),
        b1=rnd((1, hid)),
        bn_scale=bn_scale,
        bn_shift=bn_shift,
        w2_t=jnp.pad(w2, ((0, 0), (0, c_pad - num_classes))).astype(_WEIGHT_DTYPE),
        b2=jnp.pad(b2, ((0, 0), (0, c_pad - num_classes))),
    )
    return params


def slot_tags_forward(params, tokens, num_classes):
    B, S = tokens.shape
    # Pad the batch so every per-step row slice in the recurrence is aligned to
    # the (8-sublane x bf16-pair) tile; padded rows are sliced off at the end.
    B_pad = ((B + _ROW_ALIGN - 1) // _ROW_ALIGN) * _ROW_ALIGN
    tokens_p = jnp.pad(tokens, ((0, B_pad - B), (0, 0)))          # pad id 0

    # Time-major flat row layout (row = t*B_pad + b): no per-layer transposes
    # or sequence reversals are ever materialized in HBM.
    tok_tm = tokens_p.T.reshape(-1)                               # (S*B_pad,)

    # 1. embedding lookup (XLA gather glue; compute-free, bf16 table)
    # TODO(synk): could fuse into linear_1 with scalar-prefetch row gather.
    emb = jnp.take(params["embedding"], tok_tm, axis=0)           # (M, E) bf16

    # 2. linear_1 (tiled Pallas matmul, bf16 out for the LSTM stack)
    x = pallas_linear(emb, params["lin1_w_t"], params["lin1_b"],
                      out_dtype=_ACT_DTYPE)                       # (M, F)

    # 3. 4-layer bidirectional LSTM: one fused Pallas kernel per layer
    # TODO(synk): inter-layer LSTM dropout(0.3) is identity at inference.
    # TODO(synk): layers could be pair-fused when S*B*2H fits the VMEM budget.
    for layer in params["lstm"]:
        x = pallas_bilstm_layer(x, layer, seq_len=S, batch_pad=B_pad)  # (M, 2H)

    # 4. classification head (fused, classes padded to 128 lanes in-kernel)
    logits = pallas_head(x, params["head"])[:, :num_classes]      # (M, C) f32

    # 5. back to (B, S, C), dropping padded batch rows
    return logits.reshape(S, B_pad, num_classes)[:, :B].transpose(1, 0, 2)


# ----------------------------------------------------------------------------
# Main
# ----------------------------------------------------------------------------
if __name__ == "__main__":
    B, S = 2, 8
    VOCAB, EMB_DIM = 32, 32
    LSTM_FEATURE = 16            # hidden H = 32, gates 4H = 128, bidir out = 64
    NUM_CLASSES = 16

    key = jax.random.PRNGKey(0)
    k_params, k_tokens = jax.random.split(key)

    params = init_params(k_params, VOCAB, EMB_DIM, LSTM_FEATURE, NUM_CLASSES)
    tokens = jax.random.randint(k_tokens, (B, S), 0, VOCAB, dtype=jnp.int32)

    fwd = jax.jit(functools.partial(slot_tags_forward, num_classes=NUM_CLASSES))
    out = fwd(params, tokens)
    jax.block_until_ready(out)

    assert out.shape == (B, S, NUM_CLASSES), out.shape
    assert out.dtype == jnp.float32
    print("KERNEL_OK")
</pallas_src>

<mosaic_0001>
module attributes {stable_mosaic.version = 11 : i64} {
  func.func @linear_kernel(%arg0: i32, %arg1: memref<128x32xbf16, #tpu.memory_space<vmem>>, %arg2: memref<32x16xbf16, #tpu.memory_space<vmem>>, %arg3: memref<1x16xf32, #tpu.memory_space<vmem>>, %arg4: memref<128x16xbf16, #tpu.memory_space<vmem>>) attributes {dimension_semantics = [#tpu.dimension_semantics<parallel>], iteration_bounds = array<i64: 1>, scalar_prefetch = 0 : i64, scratch_operands = 0 : i64, tpu.core_type = #tpu.core_type<tc>, window_params = [{transform_indices = @transform_0, window_bounds = array<i64: 128, 32>}, {pipeline_mode = #tpu.pipeline_mode<synchronous>, transform_indices = @transform_1, window_bounds = array<i64: 32, 16>}, {pipeline_mode = #tpu.pipeline_mode<synchronous>, transform_indices = @transform_2, window_bounds = array<i64: 1, 16>}, {transform_indices = @transform_3, window_bounds = array<i64: 128, 16>}]} {
    %c0 = arith.constant 0 : index
    %c0_0 = arith.constant 0 : index
    %0 = vector.load %arg1[%c0, %c0_0] : memref<128x32xbf16, #tpu.memory_space<vmem>>, vector<128x32xbf16>
    %c0_1 = arith.constant 0 : index
    %c0_2 = arith.constant 0 : index
    %1 = vector.load %arg2[%c0_1, %c0_2] : memref<32x16xbf16, #tpu.memory_space<vmem>>, vector<32x16xbf16>
    %cst = arith.constant dense<0.000000e+00> : vector<128x16xf32>
    %2 = tpu.matmul %0, %1, %cst {dimension_numbers = #tpu.dot_dimension_numbers<[1], [0], [0], [1], [0, 0, 1, 1], [], []>} : vector<128x32xbf16>, vector<32x16xbf16>, vector<128x16xf32> -> vector<128x16xf32>
    %c0_3 = arith.constant 0 : index
    %c0_4 = arith.constant 0 : index
    %3 = vector.load %arg3[%c0_3, %c0_4] : memref<1x16xf32, #tpu.memory_space<vmem>>, vector<1x16xf32>
    %4 = vector.broadcast %3 : vector<1x16xf32> to vector<128x16xf32>
    %5 = arith.addf %2, %4 : vector<128x16xf32>
    %6 = arith.truncf %5 : vector<128x16xf32> to vector<128x16xbf16>
    %c0_5 = arith.constant 0 : index
    %c0_6 = arith.constant 0 : index
    %7 = vector.load %arg4[%c0_5, %c0_6] : memref<128x16xbf16, #tpu.memory_space<vmem>>, vector<128x16xbf16>
    tpu.vector_store %arg4[%c0_5, %c0_6], %6 {strides = array<i32>} : memref<128x16xbf16, #tpu.memory_space<vmem>>, vector<128x16xbf16>,
    return
  }
  func.func @transform_0(%arg0: i32) -> (i32, i32) {
    %c0_i32 = arith.constant 0 : i32
    %c0_i32_0 = arith.constant 0 : i32
    return %arg0, %c0_i32 : i32, i32
  }
  func.func @transform_1(%arg0: i32) -> (i32, i32) {
    %c0_i32 = arith.constant 0 : i32
    %c0_i32_0 = arith.constant 0 : i32
    %c0_i32_1 = arith.constant 0 : i32
    return %c0_i32, %c0_i32_0 : i32, i32
  }
  func.func @transform_2(%arg0: i32) -> (i32, i32) {
    %c0_i32 = arith.constant 0 : i32
    %c0_i32_0 = arith.constant 0 : i32
    %c0_i32_1 = arith.constant 0 : i32
    return %c0_i32, %c0_i32_0 : i32, i32
  }
  func.func @transform_3(%arg0: i32) -> (i32, i32) {
    %c0_i32 = arith.constant 0 : i32
    %c0_i32_0 = arith.constant 0 : i32
    return %arg0, %c0_i32 : i32, i32
  }
}

module attributes {stable_mosaic.version = 11 : i64} {
  func.func @bilstm_layer_kernel(%arg0: memref<128x16xbf16, #tpu.memory_space<vmem>>, %arg1: memref<16x256xbf16, #tpu.memory_space<vmem>>, %arg2: memref<64x256xbf16, #tpu.memory_space<vmem>>, %arg3: memref<1x256xf32, #tpu.memory_space<vmem>>, %arg4: memref<128x64xbf16, #tpu.memory_space<vmem>>, %arg5: memref<128x256xbf16, #tpu.memory_space<vmem>>, %arg6: memref<16x64xbf16, #tpu.memory_space<vmem>>, %arg7: memref<16x64xf32, #tpu.memory_space<vmem>>) attributes {dimension_semantics = [], scalar_prefetch = 0 : i64, scratch_operands = 3 : i64, tpu.core_type = #tpu.core_type<tc>} {
    %c0 = arith.constant 0 : index
    %c0_0 = arith.constant 0 : index
    %0 = vector.load %arg0[%c0, %c0_0] : memref<128x16xbf16, #tpu.memory_space<vmem>>, vector<128x16xbf16>
    %c0_1 = arith.constant 0 : index
    %c0_2 = arith.constant 0 : index
    %1 = vector.load %arg1[%c0_1, %c0_2] : memref<16x256xbf16, #tpu.memory_space<vmem>>, vector<16x256xbf16>
    %cst = arith.constant dense<0.000000e+00> : vector<128x256xf32>
    %2 = tpu.matmul %0, %1, %cst {dimension_numbers = #tpu.dot_dimension_numbers<[1], [0], [0], [1], [0, 0, 1, 1], [], []>} : vector<128x16xbf16>, vector<16x256xbf16>, vector<128x256xf32> -> vector<128x256xf32>
    %c0_3 = arith.constant 0 : index
    %c0_4 = arith.constant 0 : index
    %3 = vector.load %arg3[%c0_3, %c0_4] : memref<1x256xf32, #tpu.memory_space<vmem>>, vector<1x256xf32>
    %4 = vector.broadcast %3 : vector<1x256xf32> to vector<128x256xf32>
    %5 = arith.addf %2, %4 : vector<128x256xf32>
    %6 = arith.truncf %5 : vector<128x256xf32> to vector<128x256xbf16>
    %c0_5 = arith.constant 0 : index
    %c0_6 = arith.constant 0 : index
    %7 = vector.load %arg5[%c0_5, %c0_6] : memref<128x256xbf16, #tpu.memory_space<vmem>>, vector<128x256xbf16>
    tpu.vector_store %arg5[%c0_5, %c0_6], %6 {strides = array<i32>} : memref<128x256xbf16, #tpu.memory_space<vmem>>, vector<128x256xbf16>,
    %cst_7 = arith.constant 0.000000e+00 : bf16
    %8 = vector.broadcast %cst_7 : bf16 to vector<16x64xbf16>
    %c0_8 = arith.constant 0 : index
    %c0_9 = arith.constant 0 : index
    %9 = vector.load %arg6[%c0_8, %c0_9] : memref<16x64xbf16, #tpu.memory_space<vmem>>, vector<16x64xbf16>
    tpu.vector_store %arg6[%c0_8, %c0_9], %8 {strides = array<i32>} : memref<16x64xbf16, #tpu.memory_space<vmem>>, vector<16x64xbf16>,
    %cst_10 = arith.constant 0.000000e+00 : f32
    %10 = vector.broadcast %cst_10 : f32 to vector<16x64xf32>
    %c0_11 = arith.constant 0 : index
    %c0_12 = arith.constant 0 : index
    %11 = vector.load %arg7[%c0_11, %c0_12] : memref<16x64xf32, #tpu.memory_space<vmem>>, vector<16x64xf32>
    tpu.vector_store %arg7[%c0_11, %c0_12], %10 {strides = array<i32>} : memref<16x64xf32, #tpu.memory_space<vmem>>, vector<16x64xf32>,
    %c0_13 = arith.constant 0 : index
    %c0_14 = arith.constant 0 : index
    %12 = vector.load %arg2[%c0_13, %c0_14] : memref<64x256xbf16, #tpu.memory_space<vmem>>, vector<64x256xbf16>
    %c0_i32 = arith.constant 0 : i32
    %c16_i32 = arith.constant 16 : i32
    %13 = arith.muli %c0_i32, %c16_i32 : i32
    %14 = tpu.assume_multiple %13, 16 : i32
    %c7_i32 = arith.constant 7 : i32
    %15 = arith.subi %c7_i32, %c0_i32 : i32
    %c16_i32_15 = arith.constant 16 : i32
    %16 = arith.muli %15, %c16_i32_15 : i32
    %17 = tpu.assume_multiple %16, 16 : i32
    %c0_16 = arith.constant 0 : index
    %c0_17 = arith.constant 0 : index
    %18 = vector.load %arg6[%c0_16, %c0_17] : memref<16x64xbf16, #tpu.memory_space<vmem>>, vector<16x64xbf16>
    %cst_18 = arith.constant dense<0.000000e+00> : vector<16x256xf32>
    %19 = tpu.matmul %18, %12, %cst_18 {dimension_numbers = #tpu.dot_dimension_numbers<[1], [0], [0], [1], [0, 0, 1, 1], [], []>} : vector<16x64xbf16>, vector<64x256xbf16>, vector<16x256xf32> -> vector<16x256xf32>
    %20 = arith.index_cast %14 : i32 to index
    %c0_19 = arith.constant 0 : index
    %21 = vector.load %arg5[%20, %c0_19] : memref<128x256xbf16, #tpu.memory_space<vmem>>, vector<16x128xbf16>
    %22 = arith.extf %21 : vector<16x128xbf16> to vector<16x128xf32>
    %23 = vector.extract_strided_slice %19 {offsets = [0, 0], sizes = [16, 128], strides = [1, 1]} : vector<16x256xf32> to vector<16x128xf32>
    %24 = arith.addf %22, %23 : vector<16x128xf32>
    %25 = arith.index_cast %17 : i32 to index
    %c128 = arith.constant 128 : index
    %26 = vector.load %arg5[%25, %c128] : memref<128x256xbf16, #tpu.memory_space<vmem>>, vector<16x128xbf16>
    %27 = arith.extf %26 : vector<16x128xbf16> to vector<16x128xf32>
    %28 = vector.extract_strided_slice %19 {offsets = [0, 128], sizes = [16, 128], strides = [1, 1]} : vector<16x256xf32> to vector<16x128xf32>
    %29 = arith.addf %27, %28 : vector<16x128xf32>
    %c0_20 = arith.constant 0 : index
    %c0_21 = arith.constant 0 : index
    %30 = vector.load %arg7[%c0_20, %c0_21] : memref<16x64xf32, #tpu.memory_space<vmem>>, vector<16x64xf32>
    %31 = vector.extract_strided_slice %30 {offsets = [0, 0], sizes = [16, 32], strides = [1, 1]} : vector<16x64xf32> to vector<16x32xf32>
    %32 = vector.extract_strided_slice %24 {offsets = [0, 0], sizes = [16, 32], strides = [1, 1]} : vector<16x128xf32> to vector<16x32xf32>
    %33 = arith.negf %32 : vector<16x32xf32>
    %34 = math.exp %33 : vector<16x32xf32>
    %cst_22 = arith.constant 1.000000e+00 : f32
    %35 = vector.broadcast %cst_22 : f32 to vector<16x32xf32>
    %36 = arith.addf %35, %34 : vector<16x32xf32>
    %37 = arith.divf %35, %36 : vector<16x32xf32>
    %38 = vector.extract_strided_slice %24 {offsets = [0, 32], sizes = [16, 32], strides = [1, 1]} : vector<16x128xf32> to vector<16x32xf32>
    %39 = arith.negf %38 : vector<16x32xf32>
    %40 = math.exp %39 : vector<16x32xf32>
    %cst_23 = arith.constant 1.000000e+00 : f32
    %41 = vector.broadcast %cst_23 : f32 to vector<16x32xf32>
    %42 = arith.addf %41, %40 : vector<16x32xf32>
    %43 = arith.divf %41, %42 : vector<16x32xf32>
    %44 = vector.extract_strided_slice %24 {offsets = [0, 64], sizes = [16, 32], strides = [1, 1]} : vector<16x128xf32> to vector<16x32xf32>
    %45 = math.tanh %44 : vector<16x32xf32>
    %46 = vector.extract_strided_slice %24 {offsets = [0, 96], sizes = [16, 32], strides = [1, 1]} : vector<16x128xf32> to vector<16x32xf32>
    %47 = arith.negf %46 : vector<16x32xf32>
    %48 = math.exp %47 : vector<16x32xf32>
    %cst_24 = arith.constant 1.000000e+00 : f32
    %49 = vector.broadcast %cst_24 : f32 to vector<16x32xf32>
    %50 = arith.addf %49, %48 : vector<16x32xf32>
    %51 = arith.divf %49, %50 : vector<16x32xf32>
    %52 = arith.mulf %43, %31 : vector<16x32xf32>
    %53 = arith.mulf %37, %45 : vector<16x32xf32>
    %54 = arith.addf %52, %53 : vector<16x32xf32>
    %55 = math.tanh %54 : vector<16x32xf32>
    %56 = arith.mulf %51, %55 : vector<16x32xf32>
    %57 = vector.extract_strided_slice %30 {offsets = [0, 32], sizes = [16, 32], strides = [1, 1]} : vector<16x64xf32> to vector<16x32xf32>
    %58 = vector.extract_strided_slice %29 {offsets = [0, 0], sizes = [16, 32], strides = [1, 1]} : vector<16x128xf32> to vector<16x32xf32>
    %59 = arith.negf %58 : vector<16x32xf32>
    %60 = math.exp %59 : vector<16x32xf32>
    %cst_25 = arith.constant 1.000000e+00 : f32
    %61 = vector.broadcast %cst_25 : f32 to vector<16x32xf32>
    %62 = arith.addf %61, %60 : vector<16x32xf32>
    %63 = arith.divf %61, %62 : vector<16x32xf32>
    %64 = vector.extract_strided_slice %29 {offsets = [0, 32], sizes = [16, 32], strides = [1, 1]} : vector<16x128xf32> to vector<16x32xf32>
    %65 = arith.negf %64 : vector<16x32xf32>
    %66 = math.exp %65 : vector<16x32xf32>
    %cst_26 = arith.constant 1.000000e+00 : f32
    %67 = vector.broadcast %cst_26 : f32 to vector<16x32xf32>
    %68 = arith.addf %67, %66 : vector<16x32xf32>
    %69 = arith.divf %67, %68 : vector<16x32xf32>
    %70 = vector.extract_strided_slice %29 {offsets = [0, 64], sizes = [16, 32], strides = [1, 1]} : vector<16x128xf32> to vector<16x32xf32>
    %71 = math.tanh %70 : vector<16x32xf32>
    %72 = vector.extract_strided_slice %29 {offsets = [0, 96], sizes = [16, 32], strides = [1, 1]} : vector<16x128xf32> to vector<16x32xf32>
    %73 = arith.negf %72 : vector<16x32xf32>
    %74 = math.exp %73 : vector<16x32xf32>
    %cst_27 = arith.constant 1.000000e+00 : f32
    %75 = vector.broadcast %cst_27 : f32 to vector<16x32xf32>
    %76 = arith.addf %75, %74 : vector<16x32xf32>
    %77 = arith.divf %75, %76 : vector<16x32xf32>
    %78 = arith.mulf %69, %57 : vector<16x32xf32>
    %79 = arith.mulf %63, %71 : vector<16x32xf32>
    %80 = arith.addf %78, %79 : vector<16x32xf32>
    %81 = math.tanh %80 : vector<16x32xf32>
    %82 = arith.mulf %77, %81 : vector<16x32xf32>
    %83 = tpu.concatenate %56, %82 in 1 : vector<16x32xf32>, vector<16x32xf32> -> vector<16x64xf32>
    %84 = arith.truncf %83 : vector<16x64xf32> to vector<16x64xbf16>
    %c0_28 = arith.constant 0 : index
    %c0_29 = arith.constant 0 : index
    %85 = vector.load %arg6[%c0_28, %c0_29] : memref<16x64xbf16, #tpu.memory_space<vmem>>, vector<16x64xbf16>
    tpu.vector_store %arg6[%c0_28, %c0_29], %84 {strides = array<i32>} : memref<16x64xbf16, #tpu.memory_space<vmem>>, vector<16x64xbf16>,
    %86 = tpu.concatenate %54, %80 in 1 : vector<16x32xf32>, vector<16x32xf32> -> vector<16x64xf32>
    %c0_30 = arith.constant 0 : index
    %c0_31 = arith.constant 0 : index
    %87 = vector.load %arg7[%c0_30, %c0_31] : memref<16x64xf32, #tpu.memory_space<vmem>>, vector<16x64xf32>
    tpu.vector_store %arg7[%c0_30, %c0_31], %86 {strides = array<i32>} : memref<16x64xf32, #tpu.memory_space<vmem>>, vector<16x64xf32>,
    %88 = arith.truncf %56 : vector<16x32xf32> to vector<16x32xbf16>
    %89 = arith.index_cast %14 : i32 to index
    %c0_32 = arith.constant 0 : index
    %90 = vector.load %arg4[%89, %c0_32] : memref<128x64xbf16, #tpu.memory_space<vmem>>, vector<16x32xbf16>
    tpu.vector_store %arg4[%89, %c0_32], %88 {strides = array<i32>} : memref<128x64xbf16, #tpu.memory_space<vmem>>, vector<16x32xbf16>,
    %91 = arith.truncf %82 : vector<16x32xf32> to vector<16x32xbf16>
    %92 = arith.index_cast %17 : i32 to index
    %c32 = arith.constant 32 : index
    %93 = vector.load %arg4[%92, %c32] : memref<128x64xbf16, #tpu.memory_space<vmem>>, vector<16x32xbf16>
    tpu.vector_store %arg4[%92, %c32], %91 {strides = array<i32>} : memref<128x64xbf16, #tpu.memory_space<vmem>>, vector<16x32xbf16>,
    %c1_i32 = arith.constant 1 : i32
    %c16_i32_33 = arith.constant 16 : i32
    %94 = arith.muli %c1_i32, %c16_i32_33 : i32
    %95 = tpu.assume_multiple %94, 16 : i32
    %c7_i32_34 = arith.constant 7 : i32
    %96 = arith.subi %c7_i32_34, %c1_i32 : i32
    %c16_i32_35 = arith.constant 16 : i32
    %97 = arith.muli %96, %c16_i32_35 : i32
    %98 = tpu.assume_multiple %97, 16 : i32
    %c0_36 = arith.constant 0 : index
    %c0_37 = arith.constant 0 : index
    %99 = vector.load %arg6[%c0_36, %c0_37] : memref<16x64xbf16, #tpu.memory_space<vmem>>, vector<16x64xbf16>
    %cst_38 = arith.constant dense<0.000000e+00> : vector<16x256xf32>
    %100 = tpu.matmul %99, %12, %cst_38 {dimension_numbers = #tpu.dot_dimension_numbers<[1], [0], [0], [1], [0, 0, 1, 1], [], []>} : vector<16x64xbf16>, vector<64x256xbf16>, vector<16x256xf32> -> vector<16x256xf32>
    %101 = arith.index_cast %95 : i32 to index
    %c0_39 = arith.constant 0 : index
    %102 = vector.load %arg5[%101, %c0_39] : memref<128x256xbf16, #tpu.memory_space<vmem>>, vector<16x128xbf16>
    %103 = arith.extf %102 : vector<16x128xbf16> to vector<16x128xf32>
    %104 = vector.extract_strided_slice %100 {offsets = [0, 0], sizes = [16, 128], strides = [1, 1]} : vector<16x256xf32> to vector<16x128xf32>
    %105 = arith.addf %103, %104 : vector<16x128xf32>
    %106 = arith.index_cast %98 : i32 to index
    %c128_40 = arith.constant 128 : index
    %107 = vector.load %arg5[%106, %c128_40] : memref<128x256xbf16, #tpu.memory_space<vmem>>, vector<16x128xbf16>
    %108 = arith.extf %107 : vector<16x128xbf16> to vector<16x128xf32>
    %109 = vector.extract_strided_slice %100 {offsets = [0, 128], sizes = [16, 128], strides = [1, 1]} : vector<16x256xf32> to vector<16x128xf32>
    %110 = arith.addf %108, %109 : vector<16x128xf32>
    %c0_41 = arith.constant 0 : index
    %c0_42 = arith.constant 0 : index
    %111 = vector.load %arg7[%c0_41, %c0_42] : memref<16x64xf32, #tpu.memory_space<vmem>>, vector<16x64xf32>
    %112 = vector.extract_strided_slice %111 {offsets = [0, 0], sizes = [16, 32], strides = [1, 1]} : vector<16x64xf32> to vector<16x32xf32>
    %113 = vector.extract_strided_slice %105 {offsets = [0, 0], sizes = [16, 32], strides = [1, 1]} : vector<16x128xf32> to vector<16x32xf32>
    %114 = arith.negf %113 : vector<16x32xf32>
    %115 = math.exp %114 : vector<16x32xf32>
    %cst_43 = arith.constant 1.000000e+00 : f32
    %116 = vector.broadcast %cst_43 : f32 to vector<16x32xf32>
    %117 = arith.addf %116, %115 : vector<16x32xf32>
    %118 = arith.divf %116, %117 : vector<16x32xf32>
    %119 = vector.extract_strided_slice %105 {offsets = [0, 32], sizes = [16, 32], strides = [1, 1]} : vector<16x128xf32> to vector<16x32xf32>
    %120 = arith.negf %119 : vector<16x32xf32>
    %121 = math.exp %120 : vector<16x32xf32>
    %cst_44 = arith.constant 1.000000e+00 : f32
    %122 = vector.broadcast %cst_44 : f32 to vector<16x32xf32>
    %123 = arith.addf %122, %121 : vector<16x32xf32>
    %124 = arith.divf %122, %123 : vector<16x32xf32>
    %125 = vector.extract_strided_slice %105 {offsets = [0, 64], sizes = [16, 32], strides = [1, 1]} : vector<16x128xf32> to vector<16x32xf32>
    %126 = math.tanh %125 : vector<16x32xf32>
    %127 = vector.extract_strided_slice %105 {offsets = [0, 96], sizes = [16, 32], strides = [1, 1]} : vector<16x128xf32> to vector<16x32xf32>
    %128 = arith.negf %127 : vector<16x32xf32>
    %129 = math.exp %128 : vector<16x32xf32>
    %cst_45 = arith.constant 1.000000e+00 : f32
    %130 = vector.broadcast %cst_45 : f32 to vector<16x32xf32>
    %131 = arith.addf %130, %129 : vector<16x32xf32>
    %132 = arith.divf %130, %131 : vector<16x32xf32>
    %133 = arith.mulf %124, %112 : vector<16x32xf32>
    %134 = arith.mulf %118, %126 : vector<16x32xf32>
    %135 = arith.addf %133, %134 : vector<16x32xf32>
    %136 = math.tanh %135 : vector<16x32xf32>
    %137 = arith.mulf %132, %136 : vector<16x32xf32>
    %138 = vector.extract_strided_slice %111 {offsets = [0, 32], sizes = [16, 32], strides = [1, 1]} : vector<16x64xf32> to vector<16x32xf32>
    %139 = vector.extract_strided_slice %110 {offsets = [0, 0], sizes = [16, 32], strides = [1, 1]} : vector<16x128xf32> to vector<16x32xf32>
    %140 = arith.negf %139 : vector<16x32xf32>
    %141 = math.exp %140 : vector<16x32xf32>
    %cst_46 = arith.constant 1.000000e+00 : f32
    %142 = vector.broadcast %cst_46 : f32 to vector<16x32xf32>
    %143 = arith.addf %142, %141 : vector<16x32xf32>
    %144 = arith.divf %142, %143 : vector<16x32xf32>
    %145 = vector.extract_strided_slice %110 {offsets = [0, 32], sizes = [16, 32], strides = [1, 1]} : vector<16x128xf32> to vector<16x32xf32>
    %146 = arith.negf %145 : vector<16x32xf32>
    %147 = math.exp %146 : vector<16x32xf32>
    %cst_47 = arith.constant 1.000000e+00 : f32
    %148 = vector.broadcast %cst_47 : f32 to vector<16x32xf32>
    %149 = arith.addf %148, %147 : vector<16x32xf32>
    %150 = arith.divf %148, %149 : vector<16x32xf32>
    %151 = vector.extract_strided_slice %110 {offsets = [0, 64], sizes = [16, 32], strides = [1, 1]} : vector<16x128xf32> to vector<16x32xf32>
    %152 = math.tanh %151 : vector<16x32xf32>
    %153 = vector.extract_strided_slice %110 {offsets = [0, 96], sizes = [16, 32], strides = [1, 1]} : vector<16x128xf32> to vector<16x32xf32>
    %154 = arith.negf %153 : vector<16x32xf32>
    %155 = math.exp %154 : vector<16x32xf32>
    %cst_48 = arith.constant 1.000000e+00 : f32
    %156 = vector.broadcast %cst_48 : f32 to vector<16x32xf32>
    %157 = arith.addf %156, %155 : vector<16x32xf32>
    %158 = arith.divf %156, %157 : vector<16x32xf32>
    %159 = arith.mulf %150, %138 : vector<16x32xf32>
    %160 = arith.mulf %144, %152 : vector<16x32xf32>
    %161 = arith.addf %159, %160 : vector<16x32xf32>
    %162 = math.tanh %161 : vector<16x32xf32>
    %163 = arith.mulf %158, %162 : vector<16x32xf32>
    %164 = tpu.concatenate %137, %163 in 1 : vector<16x32xf32>, vector<16x32xf32> -> vector<16x64xf32>
    %165 = arith.truncf %164 : vector<16x64xf32> to vector<16x64xbf16>
    %c0_49 = arith.constant 0 : index
    %c0_50 = arith.constant 0 : index
    %166 = vector.load %arg6[%c0_49, %c0_50] : memref<16x64xbf16, #tpu.memory_space<vmem>>, vector<16x64xbf16>
    tpu.vector_store %arg6[%c0_49, %c0_50], %165 {strides = array<i32>} : memref<16x64xbf16, #tpu.memory_space<vmem>>, vector<16x64xbf16>,
    %167 = tpu.concatenate %135, %161 in 1 : vector<16x32xf32>, vector<16x32xf32> -> vector<16x64xf32>
    %c0_51 = arith.constant 0 : index
    %c0_52 = arith.constant 0 : index
    %168 = vector.load %arg7[%c0_51, %c0_52] : memref<16x64xf32, #tpu.memory_space<vmem>>, vector<16x64xf32>
    tpu.vector_store %arg7[%c0_51, %c0_52], %167 {strides = array<i32>} : memref<16x64xf32, #tpu.memory_space<vmem>>, vector<16x64xf32>,
    %169 = arith.truncf %137 : vector<16x32xf32> to vector<16x32xbf16>
    %170 = arith.index_cast %95 : i32 to index
    %c0_53 = arith.constant 0 : index
    %171 = vector.load %arg4[%170, %c0_53] : memref<128x64xbf16, #tpu.memory_space<vmem>>, vector<16x32xbf16>
    tpu.vector_store %arg4[%170, %c0_53], %169 {strides = array<i32>} : memref<128x64xbf16, #tpu.memory_space<vmem>>, vector<16x32xbf16>,
    %172 = arith.truncf %163 : vector<16x32xf32> to vector<16x32xbf16>
    %173 = arith.index_cast %98 : i32 to index
    %c32_54 = arith.constant 32 : index
    %174 = vector.load %arg4[%173, %c32_54] : memref<128x64xbf16, #tpu.memory_space<vmem>>, vector<16x32xbf16>
    tpu.vector_store %arg4[%173, %c32_54], %172 {strides = array<i32>} : memref<128x64xbf16, #tpu.memory_space<vmem>>, vector<16x32xbf16>,
    %c2_i32 = arith.constant 2 : i32
    %c16_i32_55 = arith.constant 16 : i32
    %175 = arith.muli %c2_i32, %c16_i32_55 : i32
    %176 = tpu.assume_multiple %175, 16 : i32
    %c7_i32_56 = arith.constant 7 : i32
    %177 = arith.subi %c7_i32_56, %c2_i32 : i32
    %c16_i32_57 = arith.constant 16 : i32
    %178 = arith.muli %177, %c16_i32_57 : i32
    %179 = tpu.assume_multiple %178, 16 : i32
    %c0_58 = arith.constant 0 : index
    %c0_59 = arith.constant 0 : index
    %180 = vector.load %arg6[%c0_58, %c0_59] : memref<16x64xbf16, #tpu.memory_space<vmem>>, vector<16x64xbf16>
    %cst_60 = arith.constant dense<0.000000e+00> : vector<16x256xf32>
    %181 = tpu.matmul %180, %12, %cst_60 {dimension_numbers = #tpu.dot_dimension_numbers<[1], [0], [0], [1], [0, 0, 1, 1], [], []>} : vector<16x64xbf16>, vector<64x256xbf16>, vector<16x256xf32> -> vector<16x256xf32>
    %182 = arith.index_cast %176 : i32 to index
    %c0_61 = arith.constant 0 : index
    %183 = vector.load %arg5[%182, %c0_61] : memref<128x256xbf16, #tpu.memory_space<vmem>>, vector<16x128xbf16>
    %184 = arith.extf %183 : vector<16x128xbf16> to vector<16x128xf32>
    %185 = vector.extract_strided_slice %181 {offsets = [0, 0], sizes = [16, 128], strides = [1, 1]} : vector<16x256xf32> to vector<16x128xf32>
    %186 = arith.addf %184, %185 : vector<16x128xf32>
    %187 = arith.index_cast %179 : i32 to index
    %c128_62 = arith.constant 128 : index
    %188 = vector.load %arg5[%187, %c128_62] : memref<128x256xbf16, #tpu.memory_space<vmem>>, vector<16x128xbf16>
    %189 = arith.extf %188 : vector<16x128xbf16> to vector<16x128xf32>
    %190 = vector.extract_strided_slice %181 {offsets = [0, 128], sizes = [16, 128], strides = [1, 1]} : vector<16x256xf32> to vector<16x128xf32>
    %191 = arith.addf %189, %190 : vector<16x128xf32>
    %c0_63 = arith.constant 0 : index
    %c0_64 = arith.constant 0 : index
    %192 = vector.load %arg7[%c0_63, %c0_64] : memref<16x64xf32, #tpu.memory_space<vmem>>, vector<16x64xf32>
    %193 = vector.extract_strided_slice %192 {offsets = [0, 0], sizes = [16, 32], strides = [1, 1]} : vector<16x64xf32> to vector<16x32xf32>
    %194 = vector.extract_strided_slice %186 {offsets = [0, 0], sizes = [16, 32], strides = [1, 1]} : vector<16x128xf32> to vector<16x32xf32>
    %195 = arith.negf %194 : vector<16x32xf32>
    %196 = math.exp %195 : vector<16x32xf32>
    %cst_65 = arith.constant 1.000000e+00 : f32
    %197 = vector.broadcast %cst_65 : f32 to vector<16x32xf32>
    %198 = arith.addf %197, %196 : vector<16x32xf32>
    %199 = arith.divf %197, %198 : vector<16x32xf32>
    %200 = vector.extract_strided_slice %186 {offsets = [0, 32], sizes = [16, 32], strides = [1, 1]} : vector<16x128xf32> to vector<16x32xf32>
    %201 = arith.negf %200 : vector<16x32xf32>
    %202 = math.exp %201 : vector<16x32xf32>
    %cst_66 = arith.constant 1.000000e+00 : f32
    %203 = vector.broadcast %cst_66 : f32 to vector<16x32xf32>
    %204 = arith.addf %203, %202 : vector<16x32xf32>
    %205 = arith.divf %203, %204 : vector<16x32xf32>
    %206 = vector.extract_strided_slice %186 {offsets = [0, 64], sizes = [16, 32], strides = [1, 1]} : vector<16x128xf32> to vector<16x32xf32>
    %207 = math.tanh %206 : vector<16x32xf32>
    %208 = vector.extract_strided_slice %186 {offsets = [0, 96], sizes = [16, 32], strides = [1, 1]} : vector<16x128xf32> to vector<16x32xf32>
    %209 = arith.negf %208 : vector<16x32xf32>
    %210 = math.exp %209 : vector<16x32xf32>
    %cst_67 = arith.constant 1.000000e+00 : f32
    %211 = vector.broadcast %cst_67 : f32 to vector<16x32xf32>
    %212 = arith.addf %211, %210 : vector<16x32xf32>
    %213 = arith.divf %211, %212 : vector<16x32xf32>
    %214 = arith.mulf %205, %193 : vector<16x32xf32>
    %215 = arith.mulf %199, %207 : vector<16x32xf32>
    %216 = arith.addf %214, %215 : vector<16x32xf32>
    %217 = math.tanh %216 : vector<16x32xf32>
    %218 = arith.mulf %213, %217 : vector<16x32xf32>
    %219 = vector.extract_strided_slice %192 {offsets = [0, 32], sizes = [16, 32], strides = [1, 1]} : vector<16x64xf32> to vector<16x32xf32>
    %220 = vector.extract_strided_slice %191 {offsets = [0, 0], sizes = [16, 32], strides = [1, 1]} : vector<16x128xf32> to vector<16x32xf32>
    %221 = arith.negf %220 : vector<16x32xf32>
    %222 = math.exp %221 : vector<16x32xf32>
    %cst_68 = arith.constant 1.000000e+00 : f32
    %223 = vector.broadcast %cst_68 : f32 to vector<16x32xf32>
    %224 = arith.addf %223, %222 : vector<16x32xf32>
    %225 = arith.divf %223, %224 : vector<16x32xf32>
    %226 = vector.extract_strided_slice %191 {offsets = [0, 32], sizes = [16, 32], strides = [1, 1]} : vector<16x128xf32> to vector<16x32xf32>
    %227 = arith.negf %226 : vector<16x32xf32>
    %228 = math.exp %227 : vector<16x32xf32>
    %cst_69 = arith.constant 1.000000e+00 : f32
    %229 = vector.broadcast %cst_69 : f32 to vector<16x32xf32>
    %230 = arith.addf %229, %228 : vector<16x32xf32>
    %231 = arith.divf %229, %230 : vector<16x32xf32>
    %232 = vector.extract_strided_slice %191 {offsets = [0, 64], sizes = [16, 32], strides = [1, 1]} : vector<16x128xf32> to vector<16x32xf32>
    %233 = math.tanh %232 : vector<16x32xf32>
    %234 = vector.extract_strided_slice %191 {offsets = [0, 96], sizes = [16, 32], strides = [1, 1]} : vector<16x128xf32> to vector<16x32xf32>
    %235 = arith.negf %234 : vector<16x32xf32>
    %236 = math.exp %235 : vector<16x32xf32>
    %cst_70 = arith.constant 1.000000e+00 : f32
    %237 = vector.broadcast %cst_70 : f32 to vector<16x32xf32>
    %238 = arith.addf %237, %236 : vector<16x32xf32>
    %239 = arith.divf %237, %238 : vector<16x32xf32>
    %240 = arith.mulf %231, %219 : vector<16x32xf32>
    %241 = arith.mulf %225, %233 : vector<16x32xf32>
    %242 = arith.addf %240, %241 : vector<16x32xf32>
    %243 = math.tanh %242 : vector<16x32xf32>
    %244 = arith.mulf %239, %243 : vector<16x32xf32>
    %245 = tpu.concatenate %218, %244 in 1 : vector<16x32xf32>, vector<16x32xf32> -> vector<16x64xf32>
    %246 = arith.truncf %245 : vector<16x64xf32> to vector<16x64xbf16>
    %c0_71 = arith.constant 0 : index
    %c0_72 = arith.constant 0 : index
    %247 = vector.load %arg6[%c0_71, %c0_72] : memref<16x64xbf16, #tpu.memory_space<vmem>>, vector<16x64xbf16>
    tpu.vector_store %arg6[%c0_71, %c0_72], %246 {strides = array<i32>} : memref<16x64xbf16, #tpu.memory_space<vmem>>, vector<16x64xbf16>,
    %248 = tpu.concatenate %216, %242 in 1 : vector<16x32xf32>, vector<16x32xf32> -> vector<16x64xf32>
    %c0_73 = arith.constant 0 : index
    %c0_74 = arith.constant 0 : index
    %249 = vector.load %arg7[%c0_73, %c0_74] : memref<16x64xf32, #tpu.memory_space<vmem>>, vector<16x64xf32>
    tpu.vector_store %arg7[%c0_73, %c0_74], %248 {strides = array<i32>} : memref<16x64xf32, #tpu.memory_space<vmem>>, vector<16x64xf32>,
    %250 = arith.truncf %218 : vector<16x32xf32> to vector<16x32xbf16>
    %251 = arith.index_cast %176 : i32 to index
    %c0_75 = arith.constant 0 : index
    %252 = vector.load %arg4[%251, %c0_75] : memref<128x64xbf16, #tpu.memory_space<vmem>>, vector<16x32xbf16>
    tpu.vector_store %arg4[%251, %c0_75], %250 {strides = array<i32>} : memref<128x64xbf16, #tpu.memory_space<vmem>>, vector<16x32xbf16>,
    %253 = arith.truncf %244 : vector<16x32xf32> to vector<16x32xbf16>
    %254 = arith.index_cast %179 : i32 to index
    %c32_76 = arith.constant 32 : index
    %255 = vector.load %arg4[%254, %c32_76] : memref<128x64xbf16, #tpu.memory_space<vmem>>, vector<16x32xbf16>
    tpu.vector_store %arg4[%254, %c32_76], %253 {strides = array<i32>} : memref<128x64xbf16, #tpu.memory_space<vmem>>, vector<16x32xbf16>,
    %c3_i32 = arith.constant 3 : i32
    %c16_i32_77 = arith.constant 16 : i32
    %256 = arith.muli %c3_i32, %c16_i32_77 : i32
    %257 = tpu.assume_multiple %256, 16 : i32
    %c7_i32_78 = arith.constant 7 : i32
    %258 = arith.subi %c7_i32_78, %c3_i32 : i32
    %c16_i32_79 = arith.constant 16 : i32
    %259 = arith.muli %258, %c16_i32_79 : i32
    %260 = tpu.assume_multiple %259, 16 : i32
    %c0_80 = arith.constant 0 : index
    %c0_81 = arith.constant 0 : index
    %261 = vector.load %arg6[%c0_80, %c0_81] : memref<16x64xbf16, #tpu.memory_space<vmem>>, vector<16x64xbf16>
    %cst_82 = arith.constant dense<0.000000e+00> : vector<16x256xf32>
    %262 = tpu.matmul %261, %12, %cst_82 {dimension_numbers = #tpu.dot_dimension_numbers<[1], [0], [0], [1], [0, 0, 1, 1], [], []>} : vector<16x64xbf16>, vector<64x256xbf16>, vector<16x256xf32> -> vector<16x256xf32>
    %263 = arith.index_cast %257 : i32 to index
    %c0_83 = arith.constant 0 : index
    %264 = vector.load %arg5[%263, %c0_83] : memref<128x256xbf16, #tpu.memory_space<vmem>>, vector<16x128xbf16>
    %265 = arith.extf %264 : vector<16x128xbf16> to vector<16x128xf32>
    %266 = vector.extract_strided_slice %262 {offsets = [0, 0], sizes = [16, 128], strides = [1, 1]} : vector<16x256xf32> to vector<16x128xf32>
    %267 = arith.addf %265, %266 : vector<16x128xf32>
    %268 = arith.index_cast %260 : i32 to index
    %c128_84 = arith.constant 128 : index
    %269 = vector.load %arg5[%268, %c128_84] : memref<128x256xbf16, #tpu.memory_space<vmem>>, vector<16x128xbf16>
    %270 = arith.extf %269 : vector<16x128xbf16> to vector<16x128xf32>
    %271 = vector.extract_strided_slice %262 {offsets = [0, 128], sizes = [16, 128], strides = [1, 1]} : vector<16x256xf32> to vector<16x128xf32>
    %272 = arith.addf %270, %271 : vector<16x128xf32>
    %c0_85 = arith.constant 0 : index
    %c0_86 = arith.constant 0 : index
    %273 = vector.load %arg7[%c0_85, %c0_86] : memref<16x64xf32, #tpu.memory_space<vmem>>, vector<16x64xf32>
    %274 = vector.extract_strided_slice %273 {offsets = [0, 0], sizes = [16, 32], strides = [1, 1]} : vector<16x64xf32> to vector<16x32xf32>
    %275 = vector.extract_strided_slice %267 {offsets = [0, 0], sizes = [16, 32], strides = [1, 1]} : vector<16x128xf32> to vector<16x32xf32>
    %276 = arith.negf %275 : vector<16x32xf32>
    %277 = math.exp %276 : vector<16x32xf32>
    %cst_87 = arith.constant 1.000000e+00 : f32
    %278 = vector.broadcast %cst_87 : f32 to vector<16x32xf32>
    %279 = arith.addf %278, %277 : vector<16x32xf32>
    %280 = arith.divf %278, %279 : vector<16x32xf32>
    %281 = vector.extract_strided_slice %267 {offsets = [0, 32], sizes = [16, 32], strides = [1, 1]} : vector<16x128xf32> to vector<16x32xf32>
    %282 = arith.negf %281 : vector<16x32xf32>
    %283 = math.exp %282 : vector<16x32xf32>
    %cst_88 = arith.constant 1.000000e+00 : f32
    %284 = vector.broadcast %cst_88 : f32 to vector<16x32xf32>
    %285 = arith.addf %284, %283 : vector<16x32xf32>
    %286 = arith.divf %284, %285 : vector<16x32xf32>
    %287 = vector.extract_strided_slice %267 {offsets = [0, 64], sizes = [16, 32], strides = [1, 1]} : vector<16x128xf32> to vector<16x32xf32>
    %288 = math.tanh %287 : vector<16x32xf32>
    %289 = vector.extract_strided_slice %267 {offsets = [0, 96], sizes = [16, 32], strides = [1, 1]} : vector<16x128xf32> to vector<16x32xf32>
    %290 = arith.negf %289 : vector<16x32xf32>
    %291 = math.exp %290 : vector<16x32xf32>
    %cst_89 = arith.constant 1.000000e+00 : f32
    %292 = vector.broadcast %cst_89 : f32 to vector<16x32xf32>
    %293 = arith.addf %292, %291 : vector<16x32xf32>
    %294 = arith.divf %292, %293 : vector<16x32xf32>
    %295 = arith.mulf %286, %274 : vector<16x32xf32>
    %296 = arith.mulf %280, %288 : vector<16x32xf32>
    %297 = arith.addf %295, %296 : vector<16x32xf32>
    %298 = math.tanh %297 : vector<16x32xf32>
    %299 = arith.mulf %294, %298 : vector<16x32xf32>
    %300 = vector.extract_strided_slice %273 {offsets = [0, 32], sizes = [16, 32], strides = [1, 1]} : vector<16x64xf32> to vector<16x32xf32>
    %301 = vector.extract_strided_slice %272 {offsets = [0, 0], sizes = [16, 32], strides = [1, 1]} : vector<16x128xf32> to vector<16x32xf32>
    %302 = arith.negf %301 : vector<16x32xf32>
    %303 = math.exp %302 : vector<16x32xf32>
    %cst_90 = arith.constant 1.000000e+00 : f32
    %304 = vector.broadcast %cst_90 : f32 to vector<16x32xf32>
    %305 = arith.addf %304, %303 : vector<16x32xf32>
    %306 = arith.divf %304, %305 : vector<16x32xf32>
    %307 = vector.extract_strided_slice %272 {offsets = [0, 32], sizes = [16, 32], strides = [1, 1]} : vector<16x128xf32> to vector<16x32xf32>
    %308 = arith.negf %307 : vector<16x32xf32>
    %309 = math.exp %308 : vector<16x32xf32>
    %cst_91 = arith.constant 1.000000e+00 : f32
    %310 = vector.broadcast %cst_91 : f32 to vector<16x32xf32>
    %311 = arith.addf %310, %309 : vector<16x32xf32>
    %312 = arith.divf %310, %311 : vector<16x32xf32>
    %313 = vector.extract_strided_slice %272 {offsets = [0, 64], sizes = [16, 32], strides = [1, 1]} : vector<16x128xf32> to vector<16x32xf32>
    %314 = math.tanh %313 : vector<16x32xf32>
    %315 = vector.extract_strided_slice %272 {offsets = [0, 96], sizes = [16, 32], strides = [1, 1]} : vector<16x128xf32> to vector<16x32xf32>
    %316 = arith.negf %315 : vector<16x32xf32>
    %317 = math.exp %316 : vector<16x32xf32>
    %cst_92 = arith.constant 1.000000e+00 : f32
    %318 = vector.broadcast %cst_92 : f32 to vector<16x32xf32>
    %319 = arith.addf %318, %317 : vector<16x32xf32>
    %320 = arith.divf %318, %319 : vector<16x32xf32>
    %321 = arith.mulf %312, %300 : vector<16x32xf32>
    %322 = arith.mulf %306, %314 : vector<16x32xf32>
    %323 = arith.addf %321, %322 : vector<16x32xf32>
    %324 = math.tanh %323 : vector<16x32xf32>
    %325 = arith.mulf %320, %324 : vector<16x32xf32>
    %326 = tpu.concatenate %299, %325 in 1 : vector<16x32xf32>, vector<16x32xf32> -> vector<16x64xf32>
    %327 = arith.truncf %326 : vector<16x64xf32> to vector<16x64xbf16>
    %c0_93 = arith.constant 0 : index
    %c0_94 = arith.constant 0 : index
    %328 = vector.load %arg6[%c0_93, %c0_94] : memref<16x64xbf16, #tpu.memory_space<vmem>>, vector<16x64xbf16>
    tpu.vector_store %arg6[%c0_93, %c0_94], %327 {strides = array<i32>} : memref<16x64xbf16, #tpu.memory_space<vmem>>, vector<16x64xbf16>,
    %329 = tpu.concatenate %297, %323 in 1 : vector<16x32xf32>, vector<16x32xf32> -> vector<16x64xf32>
    %c0_95 = arith.constant 0 : index
    %c0_96 = arith.constant 0 : index
    %330 = vector.load %arg7[%c0_95, %c0_96] : memref<16x64xf32, #tpu.memory_space<vmem>>, vector<16x64xf32>
    tpu.vector_store %arg7[%c0_95, %c0_96], %329 {strides = array<i32>} : memref<16x64xf32, #tpu.memory_space<vmem>>, vector<16x64xf32>,
    %331 = arith.truncf %299 : vector<16x32xf32> to vector<16x32xbf16>
    %332 = arith.index_cast %257 : i32 to index
    %c0_97 = arith.constant 0 : index
    %333 = vector.load %arg4[%332, %c0_97] : memref<128x64xbf16, #tpu.memory_space<vmem>>, vector<16x32xbf16>
    tpu.vector_store %arg4[%332, %c0_97], %331 {strides = array<i32>} : memref<128x64xbf16, #tpu.memory_space<vmem>>, vector<16x32xbf16>,
    %334 = arith.truncf %325 : vector<16x32xf32> to vector<16x32xbf16>
    %335 = arith.index_cast %260 : i32 to index
    %c32_98 = arith.constant 32 : index
    %336 = vector.load %arg4[%335, %c32_98] : memref<128x64xbf16, #tpu.memory_space<vmem>>, vector<16x32xbf16>
    tpu.vector_store %arg4[%335, %c32_98], %334 {strides = array<i32>} : memref<128x64xbf16, #tpu.memory_space<vmem>>, vector<16x32xbf16>,
    %c4_i32 = arith.constant 4 : i32
    %c16_i32_99 = arith.constant 16 : i32
    %337 = arith.muli %c4_i32, %c16_i32_99 : i32
    %338 = tpu.assume_multiple %337, 16 : i32
    %c7_i32_100 = arith.constant 7 : i32
    %339 = arith.subi %c7_i32_100, %c4_i32 : i32
    %c16_i32_101 = arith.constant 16 : i32
    %340 = arith.muli %339, %c16_i32_101 : i32
    %341 = tpu.assume_multiple %340, 16 : i32
    %c0_102 = arith.constant 0 : index
    %c0_103 = arith.constant 0 : index
    %342 = vector.load %arg6[%c0_102, %c0_103] : memref<16x64xbf16, #tpu.memory_space<vmem>>, vector<16x64xbf16>
    %cst_104 = arith.constant dense<0.000000e+00> : vector<16x256xf32>
    %343 = tpu.matmul %342, %12, %cst_104 {dimension_numbers = #tpu.dot_dimension_numbers<[1], [0], [0], [1], [0, 0, 1, 1], [], []>} : vector<16x64xbf16>, vector<64x256xbf16>, vector<16x256xf32> -> vector<16x256xf32>
    %344 = arith.index_cast %338 : i32 to index
    %c0_105 = arith.constant 0 : index
    %345 = vector.load %arg5[%344, %c0_105] : memref<128x256xbf16, #tpu.memory_space<vmem>>, vector<16x128xbf16>
    %346 = arith.extf %345 : vector<16x128xbf16> to vector<16x128xf32>
    %347 = vector.extract_strided_slice %343 {offsets = [0, 0], sizes = [16, 128], strides = [1, 1]} : vector<16x256xf32> to vector<16x128xf32>
    %348 = arith.addf %346, %347 : vector<16x128xf32>
    %349 = arith.index_cast %341 : i32 to index
    %c128_106 = arith.constant 128 : index
    %350 = vector.load %arg5[%349, %c128_106] : memref<128x256xbf16, #tpu.memory_space<vmem>>, vector<16x128xbf16>
    %351 = arith.extf %350 : vector<16x128xbf16> to vector<16x128xf32>
    %352 = vector.extract_strided_slice %343 {offsets = [0, 128], sizes = [16, 128], strides = [1, 1]} : vector<16x256xf32> to vector<16x128xf32>
    %353 = arith.addf %351, %352 : vector<16x128xf32>
    %c0_107 = arith.constant 0 : index
    %c0_108 = arith.constant 0 : index
    %354 = vector.load %arg7[%c0_107, %c0_108] : memref<16x64xf32, #tpu.memory_space<vmem>>, vector<16x64xf32>
    %355 = vector.extract_strided_slice %354 {offsets = [0, 0], sizes = [16, 32], strides = [1, 1]} : vector<16x64xf32> to vector<16x32xf32>
    %356 = vector.extract_strided_slice %348 {offsets = [0, 0], sizes = [16, 32], strides = [1, 1]} : vector<16x128xf32> to vector<16x32xf32>
    %357 = arith.negf %356 : vector<16x32xf32>
    %358 = math.exp %357 : vector<16x32xf32>
    %cst_109 = arith.constant 1.000000e+00 : f32
    %359 = vector.broadcast %cst_109 : f32 to vector<16x32xf32>
    %360 = arith.addf %359, %358 : vector<16x32xf32>
    %361 = arith.divf %359, %360 : vector<16x32xf32>
    %362 = vector.extract_strided_slice %348 {offsets = [0, 32], sizes = [16, 32], strides = [1, 1]} : vector<16x128xf32> to vector<16x32xf32>
    %363 = arith.negf %362 : vector<16x32xf32>
    %364 = math.exp %363 : vector<16x32xf32>
    %cst_110 = arith.constant 1.000000e+00 : f32
    %365 = vector.broadcast %cst_110 : f32 to vector<16x32xf32>
    %366 = arith.addf %365, %364 : vector<16x32xf32>
    %367 = arith.divf %365, %366 : vector<16x32xf32>
    %368 = vector.extract_strided_slice %348 {offsets = [0, 64], sizes = [16, 32], strides = [1, 1]} : vector<16x128xf32> to vector<16x32xf32>
    %369 = math.tanh %368 : vector<16x32xf32>
    %370 = vector.extract_strided_slice %348 {offsets = [0, 96], sizes = [16, 32], strides = [1, 1]} : vector<16x128xf32> to vector<16x32xf32>
    %371 = arith.negf %370 : vector<16x32xf32>
    %372 = math.exp %371 : vector<16x32xf32>
    %cst_111 = arith.constant 1.000000e+00 : f32
    %373 = vector.broadcast %cst_111 : f32 to vector<16x32xf32>
    %374 = arith.addf %373, %372 : vector<16x32xf32>
    %375 = arith.divf %373, %374 : vector<16x32xf32>
    %376 = arith.mulf %367, %355 : vector<16x32xf32>
    %377 = arith.mulf %361, %369 : vector<16x32xf32>
    %378 = arith.addf %376, %377 : vector<16x32xf32>
    %379 = math.tanh %378 : vector<16x32xf32>
    %380 = arith.mulf %375, %379 : vector<16x32xf32>
    %381 = vector.extract_strided_slice %354 {offsets = [0, 32], sizes = [16, 32], strides = [1, 1]} : vector<16x64xf32> to vector<16x32xf32>
    %382 = vector.extract_strided_slice %353 {offsets = [0, 0], sizes = [16, 32], strides = [1, 1]} : vector<16x128xf32> to vector<16x32xf32>
    %383 = arith.negf %382 : vector<16x32xf32>
    %384 = math.exp %383 : vector<16x32xf32>
    %cst_112 = arith.constant 1.000000e+00 : f32
    %385 = vector.broadcast %cst_112 : f32 to vector<16x32xf32>
    %386 = arith.addf %385, %384 : vector<16x32xf32>
    %387 = arith.divf %385, %386 : vector<16x32xf32>
    %388 = vector.extract_strided_slice %353 {offsets = [0, 32], sizes = [16, 32], strides = [1, 1]} : vector<16x128xf32> to vector<16x32xf32>
    %389 = arith.negf %388 : vector<16x32xf32>
    %390 = math.exp %389 : vector<16x32xf32>
    %cst_113 = arith.constant 1.000000e+00 : f32
    %391 = vector.broadcast %cst_113 : f32 to vector<16x32xf32>
    %392 = arith.addf %391, %390 : vector<16x32xf32>
    %393 = arith.divf %391, %392 : vector<16x32xf32>
    %394 = vector.extract_strided_slice %353 {offsets = [0, 64], sizes = [16, 32], strides = [1, 1]} : vector<16x128xf32> to vector<16x32xf32>
    %395 = math.tanh %394 : vector<16x32xf32>
    %396 = vector.extract_strided_slice %353 {offsets = [0, 96], sizes = [16, 32], strides = [1, 1]} : vector<16x128xf32> to vector<16x32xf32>
    %397 = arith.negf %396 : vector<16x32xf32>
    %398 = math.exp %397 : vector<16x32xf32>
    %cst_114 = arith.constant 1.000000e+00 : f32
    %399 = vector.broadcast %cst_114 : f32 to vector<16x32xf32>
    %400 = arith.addf %399, %398 : vector<16x32xf32>
    %401 = arith.divf %399, %400 : vector<16x32xf32>
    %402 = arith.mulf %393, %381 : vector<16x32xf32>
    %403 = arith.mulf %387, %395 : vector<16x32xf32>
    %404 = arith.addf %402, %403 : vector<16x32xf32>
    %405 = math.tanh %404 : vector<16x32xf32>
    %406 = arith.mulf %401, %405 : vector<16x32xf32>
    %407 = tpu.concatenate %380, %406 in 1 : vector<16x32xf32>, vector<16x32xf32> -> vector<16x64xf32>
    %408 = arith.truncf %407 : vector<16x64xf32> to vector<16x64xbf16>
    %c0_115 = arith.constant 0 : index
    %c0_116 = arith.constant 0 : index
    %409 = vector.load %arg6[%c0_115, %c0_116] : memref<16x64xbf16, #tpu.memory_space<vmem>>, vector<16x64xbf16>
    tpu.vector_store %arg6[%c0_115, %c0_116], %408 {strides = array<i32>} : memref<16x64xbf16, #tpu.memory_space<vmem>>, vector<16x64xbf16>,
    %410 = tpu.concatenate %378, %404 in 1 : vector<16x32xf32>, vector<16x32xf32> -> vector<16x64xf32>
    %c0_117 = arith.constant 0 : index
    %c0_118 = arith.constant 0 : index
    %411 = vector.load %arg7[%c0_117, %c0_118] : memref<16x64xf32, #tpu.memory_space<vmem>>, vector<16x64xf32>
    tpu.vector_store %arg7[%c0_117, %c0_118], %410 {strides = array<i32>} : memref<16x64xf32, #tpu.memory_space<vmem>>, vector<16x64xf32>,
    %412 = arith.truncf %380 : vector<16x32xf32> to vector<16x32xbf16>
    %413 = arith.index_cast %338 : i32 to index
    %c0_119 = arith.constant 0 : index
    %414 = vector.load %arg4[%413, %c0_119] : memref<128x64xbf16, #tpu.memory_space<vmem>>, vector<16x32xbf16>
    tpu.vector_store %arg4[%413, %c0_119], %412 {strides = array<i32>} : memref<128x64xbf16, #tpu.memory_space<vmem>>, vector<16x32xbf16>,
    %415 = arith.truncf %406 : vector<16x32xf32> to vector<16x32xbf16>
    %416 = arith.index_cast %341 : i32 to index
    %c32_120 = arith.constant 32 : index
    %417 = vector.load %arg4[%416, %c32_120] : memref<128x64xbf16, #tpu.memory_space<vmem>>, vector<16x32xbf16>
    tpu.vector_store %arg4[%416, %c32_120], %415 {strides = array<i32>} : memref<128x64xbf16, #tpu.memory_space<vmem>>, vector<16x32xbf16>,
    %c5_i32 = arith.constant 5 : i32
    %c16_i32_121 = arith.constant 16 : i32
    %418 = arith.muli %c5_i32, %c16_i32_121 : i32
    %419 = tpu.assume_multiple %418, 16 : i32
    %c7_i32_122 = arith.constant 7 : i32
    %420 = arith.subi %c7_i32_122, %c5_i32 : i32
    %c16_i32_123 = arith.constant 16 : i32
    %421 = arith.muli %420, %c16_i32_123 : i32
    %422 = tpu.assume_multiple %421, 16 : i32
    %c0_124 = arith.constant 0 : index
    %c0_125 = arith.constant 0 : index
    %423 = vector.load %arg6[%c0_124, %c0_125] : memref<16x64xbf16, #tpu.memory_space<vmem>>, vector<16x64xbf16>
    %cst_126 = arith.constant dense<0.000000e+00> : vector<16x256xf32>
    %424 = tpu.matmul %423, %12, %cst_126 {dimension_numbers = #tpu.dot_dimension_numbers<[1], [0], [0], [1], [0, 0, 1, 1], [], []>} : vector<16x64xbf16>, vector<64x256xbf16>, vector<16x256xf32> -> vector<16x256xf32>
    %425 = arith.index_cast %419 : i32 to index
    %c0_127 = arith.constant 0 : index
    %426 = vector.load %arg5[%425, %c0_127] : memref<128x256xbf16, #tpu.memory_space<vmem>>, vector<16x128xbf16>
    %427 = arith.extf %426 : vector<16x128xbf16> to vector<16x128xf32>
    %428 = vector.extract_strided_slice %424 {offsets = [0, 0], sizes = [16, 128], strides = [1, 1]} : vector<16x256xf32> to vector<16x128xf32>
    %429 = arith.addf %427, %428 : vector<16x128xf32>
    %430 = arith.index_cast %422 : i32 to index
    %c128_128 = arith.constant 128 : index
    %431 = vector.load %arg5[%430, %c128_128] : memref<128x256xbf16, #tpu.memory_space<vmem>>, vector<16x128xbf16>
    %432 = arith.extf %431 : vector<16x128xbf16> to vector<16x128xf32>
    %433 = vector.extract_strided_slice %424 {offsets = [0, 128], sizes = [16, 128], strides = [1, 1]} : vector<16x256xf32> to vector<16x128xf32>
    %434 = arith.addf %432, %433 : vector<16x128xf32>
    %c0_129 = arith.constant 0 : index
    %c0_130 = arith.constant 0 : index
    %435 = vector.load %arg7[%c0_129, %c0_130] : memref<16x64xf32, #tpu.memory_space<vmem>>, vector<16x64xf32>
    %436 = vector.extract_strided_slice %435 {offsets = [0, 0], sizes = [16, 32], strides = [1, 1]} : vector<16x64xf32> to vector<16x32xf32>
    %437 = vector.extract_strided_slice %429 {offsets = [0, 0], sizes = [16, 32], strides = [1, 1]} : vector<16x128xf32> to vector<16x32xf32>
    %438 = arith.negf %437 : vector<16x32xf32>
    %439 = math.exp %438 : vector<16x32xf32>
    %cst_131 = arith.constant 1.000000e+00 : f32
    %440 = vector.broadcast %cst_131 : f32 to vector<16x32xf32>
    %441 = arith.addf %440, %439 : vector<16x32xf32>
    %442 = arith.divf %440, %441 : vector<16x32xf32>
    %443 = vector.extract_strided_slice %429 {offsets = [0, 32], sizes = [16, 32], strides = [1, 1]} : vector<16x128xf32> to vector<16x32xf32>
    %444 = arith.negf %443 : vector<16x32xf32>
    %445 = math.exp %444 : vector<16x32xf32>
    %cst_132 = arith.constant 1.000000e+00 : f32
    %446 = vector.broadcast %cst_132 : f32 to vector<16x32xf32>
    %447 = arith.addf %446, %445 : vector<16x32xf32>
    %448 = arith.divf %446, %447 : vector<16x32xf32>
    %449 = vector.extract_strided_slice %429 {offsets = [0, 64], sizes = [16, 32], strides = [1, 1]} : vector<16x128xf32> to vector<16x32xf32>
    %450 = math.tanh %449 : vector<16x32xf32>
    %451 = vector.extract_strided_slice %429 {offsets = [0, 96], sizes = [16, 32], strides = [1, 1]} : vector<16x128xf32> to vector<16x32xf32>
    %452 = arith.negf %451 : vector<16x32xf32>
    %453 = math.exp %452 : vector<16x32xf32>
    %cst_133 = arith.constant 1.000000e+00 : f32
    %454 = vector.broadcast %cst_133 : f32 to vector<16x32xf32>
    %455 = arith.addf %454, %453 : vector<16x32xf32>
    %456 = arith.divf %454, %455 : vector<16x32xf32>
    %457 = arith.mulf %448, %436 : vector<16x32xf32>
    %458 = arith.mulf %442, %450 : vector<16x32xf32>
    %459 = arith.addf %457, %458 : vector<16x32xf32>
    %460 = math.tanh %459 : vector<16x32xf32>
    %461 = arith.mulf %456, %460 : vector<16x32xf32>
    %462 = vector.extract_strided_slice %435 {offsets = [0, 32], sizes = [16, 32], strides = [1, 1]} : vector<16x64xf32> to vector<16x32xf32>
    %463 = vector.extract_strided_slice %434 {offsets = [0, 0], sizes = [16, 32], strides = [1, 1]} : vector<16x128xf32> to vector<16x32xf32>
    %464 = arith.negf %463 : vector<16x32xf32>
    %465 = math.exp %464 : vector<16x32xf32>
    %cst_134 = arith.constant 1.000000e+00 : f32
    %466 = vector.broadcast %cst_134 : f32 to vector<16x32xf32>
    %467 = arith.addf %466, %465 : vector<16x32xf32>
    %468 = arith.divf %466, %467 : vector<16x32xf32>
    %469 = vector.extract_strided_slice %434 {offsets = [0, 32], sizes = [16, 32], strides = [1, 1]} : vector<16x128xf32> to vector<16x32xf32>
    %470 = arith.negf %469 : vector<16x32xf32>
    %471 = math.exp %470 : vector<16x32xf32>
    %cst_135 = arith.constant 1.000000e+00 : f32
    %472 = vector.broadcast %cst_135 : f32 to vector<16x32xf32>
    %473 = arith.addf %472, %471 : vector<16x32xf32>
    %474 = arith.divf %472, %473 : vector<16x32xf32>
    %475 = vector.extract_strided_slice %434 {offsets = [0, 64], sizes = [16, 32], strides = [1, 1]} : vector<16x128xf32> to vector<16x32xf32>
    %476 = math.tanh %475 : vector<16x32xf32>
    %477 = vector.extract_strided_slice %434 {offsets = [0, 96], sizes = [16, 32], strides = [1, 1]} : vector<16x128xf32> to vector<16x32xf32>
    %478 = arith.negf %477 : vector<16x32xf32>
    %479 = math.exp %478 : vector<16x32xf32>
    %cst_136 = arith.constant 1.000000e+00 : f32
    %480 = vector.broadcast %cst_136 : f32 to vector<16x32xf32>
    %481 = arith.addf %480, %479 : vector<16x32xf32>
    %482 = arith.divf %480, %481 : vector<16x32xf32>
    %483 = arith.mulf %474, %462 : vector<16x32xf32>
    %484 = arith.mulf %468, %476 : vector<16x32xf32>
    %485 = arith.addf %483, %484 : vector<16x32xf32>
    %486 = math.tanh %485 : vector<16x32xf32>
    %487 = arith.mulf %482, %486 : vector<16x32xf32>
    %488 = tpu.concatenate %461, %487 in 1 : vector<16x32xf32>, vector<16x32xf32> -> vector<16x64xf32>
    %489 = arith.truncf %488 : vector<16x64xf32> to vector<16x64xbf16>
    %c0_137 = arith.constant 0 : index
    %c0_138 = arith.constant 0 : index
    %490 = vector.load %arg6[%c0_137, %c0_138] : memref<16x64xbf16, #tpu.memory_space<vmem>>, vector<16x64xbf16>
    tpu.vector_store %arg6[%c0_137, %c0_138], %489 {strides = array<i32>} : memref<16x64xbf16, #tpu.memory_space<vmem>>, vector<16x64xbf16>,
    %491 = tpu.concatenate %459, %485 in 1 : vector<16x32xf32>, vector<16x32xf32> -> vector<16x64xf32>
    %c0_139 = arith.constant 0 : index
    %c0_140 = arith.constant 0 : index
    %492 = vector.load %arg7[%c0_139, %c0_140] : memref<16x64xf32, #tpu.memory_space<vmem>>, vector<16x64xf32>
    tpu.vector_store %arg7[%c0_139, %c0_140], %491 {strides = array<i32>} : memref<16x64xf32, #tpu.memory_space<vmem>>, vector<16x64xf32>,
    %493 = arith.truncf %461 : vector<16x32xf32> to vector<16x32xbf16>
    %494 = arith.index_cast %419 : i32 to index
    %c0_141 = arith.constant 0 : index
    %495 = vector.load %arg4[%494, %c0_141] : memref<128x64xbf16, #tpu.memory_space<vmem>>, vector<16x32xbf16>
    tpu.vector_store %arg4[%494, %c0_141], %493 {strides = array<i32>} : memref<128x64xbf16, #tpu.memory_space<vmem>>, vector<16x32xbf16>,
    %496 = arith.truncf %487 : vector<16x32xf32> to vector<16x32xbf16>
    %497 = arith.index_cast %422 : i32 to index
    %c32_142 = arith.constant 32 : index
    %498 = vector.load %arg4[%497, %c32_142] : memref<128x64xbf16, #tpu.memory_space<vmem>>, vector<16x32xbf16>
    tpu.vector_store %arg4[%497, %c32_142], %496 {strides = array<i32>} : memref<128x64xbf16, #tpu.memory_space<vmem>>, vector<16x32xbf16>,
    %c6_i32 = arith.constant 6 : i32
    %c16_i32_143 = arith.constant 16 : i32
    %499 = arith.muli %c6_i32, %c16_i32_143 : i32
    %500 = tpu.assume_multiple %499, 16 : i32
    %c7_i32_144 = arith.constant 7 : i32
    %501 = arith.subi %c7_i32_144, %c6_i32 : i32
    %c16_i32_145 = arith.constant 16 : i32
    %502 = arith.muli %501, %c16_i32_145 : i32
    %503 = tpu.assume_multiple %502, 16 : i32
    %c0_146 = arith.constant 0 : index
    %c0_147 = arith.constant 0 : index
    %504 = vector.load %arg6[%c0_146, %c0_147] : memref<16x64xbf16, #tpu.memory_space<vmem>>, vector<16x64xbf16>
    %cst_148 = arith.constant dense<0.000000e+00> : vector<16x256xf32>
    %505 = tpu.matmul %504, %12, %cst_148 {dimension_numbers = #tpu.dot_dimension_numbers<[1], [0], [0], [1], [0, 0, 1, 1], [], []>} : vector<16x64xbf16>, vector<64x256xbf16>, vector<16x256xf32> -> vector<16x256xf32>
    %506 = arith.index_cast %500 : i32 to index
    %c0_149 = arith.constant 0 : index
    %507 = vector.load %arg5[%506, %c0_149] : memref<128x256xbf16, #tpu.memory_space<vmem>>, vector<16x128xbf16>
    %508 = arith.extf %507 : vector<16x128xbf16> to vector<16x128xf32>
    %509 = vector.extract_strided_slice %505 {offsets = [0, 0], sizes = [16, 128], strides = [1, 1]} : vector<16x256xf32> to vector<16x128xf32>
    %510 = arith.addf %508, %509 : vector<16x128xf32>
    %511 = arith.index_cast %503 : i32 to index
    %c128_150 = arith.constant 128 : index
    %512 = vector.load %arg5[%511, %c128_150] : memref<128x256xbf16, #tpu.memory_space<vmem>>, vector<16x128xbf16>
    %513 = arith.extf %512 : vector<16x128xbf16> to vector<16x128xf32>
    %514 = vector.extract_strided_slice %505 {offsets = [0, 128], sizes = [16, 128], strides = [1, 1]} : vector<16x256xf32> to vector<16x128xf32>
    %515 = arith.addf %513, %514 : vector<16x128xf32>
    %c0_151 = arith.constant 0 : index
    %c0_152 = arith.constant 0 : index
    %516 = vector.load %arg7[%c0_151, %c0_152] : memref<16x64xf32, #tpu.memory_space<vmem>>, vector<16x64xf32>
    %517 = vector.extract_strided_slice %516 {offsets = [0, 0], sizes = [16, 32], strides = [1, 1]} : vector<16x64xf32> to vector<16x32xf32>
    %518 = vector.extract_strided_slice %510 {offsets = [0, 0], sizes = [16, 32], strides = [1, 1]} : vector<16x128xf32> to vector<16x32xf32>
    %519 = arith.negf %518 : vector<16x32xf32>
    %520 = math.exp %519 : vector<16x32xf32>
    %cst_153 = arith.constant 1.000000e+00 : f32
    %521 = vector.broadcast %cst_153 : f32 to vector<16x32xf32>
    %522 = arith.addf %521, %520 : vector<16x32xf32>
    %523 = arith.divf %521, %522 : vector<16x32xf32>
    %524 = vector.extract_strided_slice %510 {offsets = [0, 32], sizes = [16, 32], strides = [1, 1]} : vector<16x128xf32> to vector<16x32xf32>
    %525 = arith.negf %524 : vector<16x32xf32>
    %526 = math.exp %525 : vector<16x32xf32>
    %cst_154 = arith.constant 1.000000e+00 : f32
    %527 = vector.broadcast %cst_154 : f32 to vector<16x32xf32>
    %528 = arith.addf %527, %526 : vector<16x32xf32>
    %529 = arith.divf %527, %528 : vector<16x32xf32>
    %530 = vector.extract_strided_slice %510 {offsets = [0, 64], sizes = [16, 32], strides = [1, 1]} : vector<16x128xf32> to vector<16x32xf32>
    %531 = math.tanh %530 : vector<16x32xf32>
    %532 = vector.extract_strided_slice %510 {offsets = [0, 96], sizes = [16, 32], strides = [1, 1]} : vector<16x128xf32> to vector<16x32xf32>
    %533 = arith.negf %532 : vector<16x32xf32>
    %534 = math.exp %533 : vector<16x32xf32>
    %cst_155 = arith.constant 1.000000e+00 : f32
    %535 = vector.broadcast %cst_155 : f32 to vector<16x32xf32>
    %536 = arith.addf %535, %534 : vector<16x32xf32>
    %537 = arith.divf %535, %536 : vector<16x32xf32>
    %538 = arith.mulf %529, %517 : vector<16x32xf32>
    %539 = arith.mulf %523, %531 : vector<16x32xf32>
    %540 = arith.addf %538, %539 : vector<16x32xf32>
    %541 = math.tanh %540 : vector<16x32xf32>
    %542 = arith.mulf %537, %541 : vector<16x32xf32>
    %543 = vector.extract_strided_slice %516 {offsets = [0, 32], sizes = [16, 32], strides = [1, 1]} : vector<16x64xf32> to vector<16x32xf32>
    %544 = vector.extract_strided_slice %515 {offsets = [0, 0], sizes = [16, 32], strides = [1, 1]} : vector<16x128xf32> to vector<16x32xf32>
    %545 = arith.negf %544 : vector<16x32xf32>
    %546 = math.exp %545 : vector<16x32xf32>
    %cst_156 = arith.constant 1.000000e+00 : f32
    %547 = vector.broadcast %cst_156 : f32 to vector<16x32xf32>
    %548 = arith.addf %547, %546 : vector<16x32xf32>
    %549 = arith.divf %547, %548 : vector<16x32xf32>
    %550 = vector.extract_strided_slice %515 {offsets = [0, 32], sizes = [16, 32], strides = [1, 1]} : vector<16x128xf32> to vector<16x32xf32>
    %551 = arith.negf %550 : vector<16x32xf32>
    %552 = math.exp %551 : vector<16x32xf32>
    %cst_157 = arith.constant 1.000000e+00 : f32
    %553 = vector.broadcast %cst_157 : f32 to vector<16x32xf32>
    %554 = arith.addf %553, %552 : vector<16x32xf32>
    %555 = arith.divf %553, %554 : vector<16x32xf32>
    %556 = vector.extract_strided_slice %515 {offsets = [0, 64], sizes = [16, 32], strides = [1, 1]} : vector<16x128xf32> to vector<16x32xf32>
    %557 = math.tanh %556 : vector<16x32xf32>
    %558 = vector.extract_strided_slice %515 {offsets = [0, 96], sizes = [16, 32], strides = [1, 1]} : vector<16x128xf32> to vector<16x32xf32>
    %559 = arith.negf %558 : vector<16x32xf32>
    %560 = math.exp %559 : vector<16x32xf32>
    %cst_158 = arith.constant 1.000000e+00 : f32
    %561 = vector.broadcast %cst_158 : f32 to vector<16x32xf32>
    %562 = arith.addf %561, %560 : vector<16x32xf32>
    %563 = arith.divf %561, %562 : vector<16x32xf32>
    %564 = arith.mulf %555, %543 : vector<16x32xf32>
    %565 = arith.mulf %549, %557 : vector<16x32xf32>
    %566 = arith.addf %564, %565 : vector<16x32xf32>
    %567 = math.tanh %566 : vector<16x32xf32>
    %568 = arith.mulf %563, %567 : vector<16x32xf32>
    %569 = tpu.concatenate %542, %568 in 1 : vector<16x32xf32>, vector<16x32xf32> -> vector<16x64xf32>
    %570 = arith.truncf %569 : vector<16x64xf32> to vector<16x64xbf16>
    %c0_159 = arith.constant 0 : index
    %c0_160 = arith.constant 0 : index
    %571 = vector.load %arg6[%c0_159, %c0_160] : memref<16x64xbf16, #tpu.memory_space<vmem>>, vector<16x64xbf16>
    tpu.vector_store %arg6[%c0_159, %c0_160], %570 {strides = array<i32>} : memref<16x64xbf16, #tpu.memory_space<vmem>>, vector<16x64xbf16>,
    %572 = tpu.concatenate %540, %566 in 1 : vector<16x32xf32>, vector<16x32xf32> -> vector<16x64xf32>
    %c0_161 = arith.constant 0 : index
    %c0_162 = arith.constant 0 : index
    %573 = vector.load %arg7[%c0_161, %c0_162] : memref<16x64xf32, #tpu.memory_space<vmem>>, vector<16x64xf32>
    tpu.vector_store %arg7[%c0_161, %c0_162], %572 {strides = array<i32>} : memref<16x64xf32, #tpu.memory_space<vmem>>, vector<16x64xf32>,
    %574 = arith.truncf %542 : vector<16x32xf32> to vector<16x32xbf16>
    %575 = arith.index_cast %500 : i32 to index
    %c0_163 = arith.constant 0 : index
    %576 = vector.load %arg4[%575, %c0_163] : memref<128x64xbf16, #tpu.memory_space<vmem>>, vector<16x32xbf16>
    tpu.vector_store %arg4[%575, %c0_163], %574 {strides = array<i32>} : memref<128x64xbf16, #tpu.memory_space<vmem>>, vector<16x32xbf16>,
    %577 = arith.truncf %568 : vector<16x32xf32> to vector<16x32xbf16>
    %578 = arith.index_cast %503 : i32 to index
    %c32_164 = arith.constant 32 : index
    %579 = vector.load %arg4[%578, %c32_164] : memref<128x64xbf16, #tpu.memory_space<vmem>>, vector<16x32xbf16>
    tpu.vector_store %arg4[%578, %c32_164], %577 {strides = array<i32>} : memref<128x64xbf16, #tpu.memory_space<vmem>>, vector<16x32xbf16>,
    %c7_i32_165 = arith.constant 7 : i32
    %c16_i32_166 = arith.constant 16 : i32
    %580 = arith.muli %c7_i32_165, %c16_i32_166 : i32
    %581 = tpu.assume_multiple %580, 16 : i32
    %c7_i32_167 = arith.constant 7 : i32
    %582 = arith.subi %c7_i32_167, %c7_i32_165 : i32
    %c16_i32_168 = arith.constant 16 : i32
    %583 = arith.muli %582, %c16_i32_168 : i32
    %584 = tpu.assume_multiple %583, 16 : i32
    %c0_169 = arith.constant 0 : index
    %c0_170 = arith.constant 0 : index
    %585 = vector.load %arg6[%c0_169, %c0_170] : memref<16x64xbf16, #tpu.memory_space<vmem>>, vector<16x64xbf16>
    %cst_171 = arith.constant dense<0.000000e+00> : vector<16x256xf32>
    %586 = tpu.matmul %585, %12, %cst_171 {dimension_numbers = #tpu.dot_dimension_numbers<[1], [0], [0], [1], [0, 0, 1, 1], [], []>} : vector<16x64xbf16>, vector<64x256xbf16>, vector<16x256xf32> -> vector<16x256xf32>
    %587 = arith.index_cast %581 : i32 to index
    %c0_172 = arith.constant 0 : index
    %588 = vector.load %arg5[%587, %c0_172] : memref<128x256xbf16, #tpu.memory_space<vmem>>, vector<16x128xbf16>
    %589 = arith.extf %588 : vector<16x128xbf16> to vector<16x128xf32>
    %590 = vector.extract_strided_slice %586 {offsets = [0, 0], sizes = [16, 128], strides = [1, 1]} : vector<16x256xf32> to vector<16x128xf32>
    %591 = arith.addf %589, %590 : vector<16x128xf32>
    %592 = arith.index_cast %584 : i32 to index
    %c128_173 = arith.constant 128 : index
    %593 = vector.load %arg5[%592, %c128_173] : memref<128x256xbf16, #tpu.memory_space<vmem>>, vector<16x128xbf16>
    %594 = arith.extf %593 : vector<16x128xbf16> to vector<16x128xf32>
    %595 = vector.extract_strided_slice %586 {offsets = [0, 128], sizes = [16, 128], strides = [1, 1]} : vector<16x256xf32> to vector<16x128xf32>
    %596 = arith.addf %594, %595 : vector<16x128xf32>
    %c0_174 = arith.constant 0 : index
    %c0_175 = arith.constant 0 : index
    %597 = vector.load %arg7[%c0_174, %c0_175] : memref<16x64xf32, #tpu.memory_space<vmem>>, vector<16x64xf32>
    %598 = vector.extract_strided_slice %597 {offsets = [0, 0], sizes = [16, 32], strides = [1, 1]} : vector<16x64xf32> to vector<16x32xf32>
    %599 = vector.extract_strided_slice %591 {offsets = [0, 0], sizes = [16, 32], strides = [1, 1]} : vector<16x128xf32> to vector<16x32xf32>
    %600 = arith.negf %599 : vector<16x32xf32>
    %601 = math.exp %600 : vector<16x32xf32>
    %cst_176 = arith.constant 1.000000e+00 : f32
    %602 = vector.broadcast %cst_176 : f32 to vector<16x32xf32>
    %603 = arith.addf %602, %601 : vector<16x32xf32>
    %604 = arith.divf %602, %603 : vector<16x32xf32>
    %605 = vector.extract_strided_slice %591 {offsets = [0, 32], sizes = [16, 32], strides = [1, 1]} : vector<16x128xf32> to vector<16x32xf32>
    %606 = arith.negf %605 : vector<16x32xf32>
    %607 = math.exp %606 : vector<16x32xf32>
    %cst_177 = arith.constant 1.000000e+00 : f32
    %608 = vector.broadcast %cst_177 : f32 to vector<16x32xf32>
    %609 = arith.addf %608, %607 : vector<16x32xf32>
    %610 = arith.divf %608, %609 : vector<16x32xf32>
    %611 = vector.extract_strided_slice %591 {offsets = [0, 64], sizes = [16, 32], strides = [1, 1]} : vector<16x128xf32> to vector<16x32xf32>
    %612 = math.tanh %611 : vector<16x32xf32>
    %613 = vector.extract_strided_slice %591 {offsets = [0, 96], sizes = [16, 32], strides = [1, 1]} : vector<16x128xf32> to vector<16x32xf32>
    %614 = arith.negf %613 : vector<16x32xf32>
    %615 = math.exp %614 : vector<16x32xf32>
    %cst_178 = arith.constant 1.000000e+00 : f32
    %616 = vector.broadcast %cst_178 : f32 to vector<16x32xf32>
    %617 = arith.addf %616, %615 : vector<16x32xf32>
    %618 = arith.divf %616, %617 : vector<16x32xf32>
    %619 = arith.mulf %610, %598 : vector<16x32xf32>
    %620 = arith.mulf %604, %612 : vector<16x32xf32>
    %621 = arith.addf %619, %620 : vector<16x32xf32>
    %622 = math.tanh %621 : vector<16x32xf32>
    %623 = arith.mulf %618, %622 : vector<16x32xf32>
    %624 = vector.extract_strided_slice %597 {offsets = [0, 32], sizes = [16, 32], strides = [1, 1]} : vector<16x64xf32> to vector<16x32xf32>
    %625 = vector.extract_strided_slice %596 {offsets = [0, 0], sizes = [16, 32], strides = [1, 1]} : vector<16x128xf32> to vector<16x32xf32>
    %626 = arith.negf %625 : vector<16x32xf32>
    %627 = math.exp %626 : vector<16x32xf32>
    %cst_179 = arith.constant 1.000000e+00 : f32
    %628 = vector.broadcast %cst_179 : f32 to vector<16x32xf32>
    %629 = arith.addf %628, %627 : vector<16x32xf32>
    %630 = arith.divf %628, %629 : vector<16x32xf32>
    %631 = vector.extract_strided_slice %596 {offsets = [0, 32], sizes = [16, 32], strides = [1, 1]} : vector<16x128xf32> to vector<16x32xf32>
    %632 = arith.negf %631 : vector<16x32xf32>
    %633 = math.exp %632 : vector<16x32xf32>
    %cst_180 = arith.constant 1.000000e+00 : f32
    %634 = vector.broadcast %cst_180 : f32 to vector<16x32xf32>
    %635 = arith.addf %634, %633 : vector<16x32xf32>
    %636 = arith.divf %634, %635 : vector<16x32xf32>
    %637 = vector.extract_strided_slice %596 {offsets = [0, 64], sizes = [16, 32], strides = [1, 1]} : vector<16x128xf32> to vector<16x32xf32>
    %638 = math.tanh %637 : vector<16x32xf32>
    %639 = vector.extract_strided_slice %596 {offsets = [0, 96], sizes = [16, 32], strides = [1, 1]} : vector<16x128xf32> to vector<16x32xf32>
    %640 = arith.negf %639 : vector<16x32xf32>
    %641 = math.exp %640 : vector<16x32xf32>
    %cst_181 = arith.constant 1.000000e+00 : f32
    %642 = vector.broadcast %cst_181 : f32 to vector<16x32xf32>
    %643 = arith.addf %642, %641 : vector<16x32xf32>
    %644 = arith.divf %642, %643 : vector<16x32xf32>
    %645 = arith.mulf %636, %624 : vector<16x32xf32>
    %646 = arith.mulf %630, %638 : vector<16x32xf32>
    %647 = arith.addf %645, %646 : vector<16x32xf32>
    %648 = math.tanh %647 : vector<16x32xf32>
    %649 = arith.mulf %644, %648 : vector<16x32xf32>
    %650 = tpu.concatenate %623, %649 in 1 : vector<16x32xf32>, vector<16x32xf32> -> vector<16x64xf32>
    %651 = arith.truncf %650 : vector<16x64xf32> to vector<16x64xbf16>
    %c0_182 = arith.constant 0 : index
    %c0_183 = arith.constant 0 : index
    %652 = vector.load %arg6[%c0_182, %c0_183] : memref<16x64xbf16, #tpu.memory_space<vmem>>, vector<16x64xbf16>
    tpu.vector_store %arg6[%c0_182, %c0_183], %651 {strides = array<i32>} : memref<16x64xbf16, #tpu.memory_space<vmem>>, vector<16x64xbf16>,
    %653 = tpu.concatenate %621, %647 in 1 : vector<16x32xf32>, vector<16x32xf32> -> vector<16x64xf32>
    %c0_184 = arith.constant 0 : index
    %c0_185 = arith.constant 0 : index
    %654 = vector.load %arg7[%c0_184, %c0_185] : memref<16x64xf32, #tpu.memory_space<vmem>>, vector<16x64xf32>
    tpu.vector_store %arg7[%c0_184, %c0_185], %653 {strides = array<i32>} : memref<16x64xf32, #tpu.memory_space<vmem>>, vector<16x64xf32>,
    %655 = arith.truncf %623 : vector<16x32xf32> to vector<16x32xbf16>
    %656 = arith.index_cast %581 : i32 to index
    %c0_186 = arith.constant 0 : index
    %657 = vector.load %arg4[%656, %c0_186] : memref<128x64xbf16, #tpu.memory_space<vmem>>, vector<16x32xbf16>
    tpu.vector_store %arg4[%656, %c0_186], %655 {strides = array<i32>} : memref<128x64xbf16, #tpu.memory_space<vmem>>, vector<16x32xbf16>,
    %658 = arith.truncf %649 : vector<16x32xf32> to vector<16x32xbf16>
    %659 = arith.index_cast %584 : i32 to index
    %c32_187 = arith.constant 32 : index
    %660 = vector.load %arg4[%659, %c32_187] : memref<128x64xbf16, #tpu.memory_space<vmem>>, vector<16x32xbf16>
    tpu.vector_store %arg4[%659, %c32_187], %658 {strides = array<i32>} : memref<128x64xbf16, #tpu.memory_space<vmem>>, vector<16x32xbf16>,
    %c8_i32 = arith.constant 8 : i32
    return
  }
}

module attributes {stable_mosaic.version = 11 : i64} {
  func.func @head_kernel(%arg0: i32, %arg1: memref<128x64xbf16, #tpu.memory_space<vmem>>, %arg2: memref<64x64xbf16, #tpu.memory_space<vmem>>, %arg3: memref<1x64xf32, #tpu.memory_space<vmem>>, %arg4: memref<1x64xf32, #tpu.memory_space<vmem>>, %arg5: memref<1x64xf32, #tpu.memory_space<vmem>>, %arg6: memref<64x128xbf16, #tpu.memory_space<vmem>>, %arg7: memref<1x128xf32, #tpu.memory_space<vmem>>, %arg8: memref<128x128xf32, #tpu.memory_space<vmem>>) attributes {dimension_semantics = [#tpu.dimension_semantics<parallel>], iteration_bounds = array<i64: 1>, scalar_prefetch = 0 : i64, scratch_operands = 0 : i64, tpu.core_type = #tpu.core_type<tc>, window_params = [{transform_indices = @transform_0, window_bounds = array<i64: 128, 64>}, {pipeline_mode = #tpu.pipeline_mode<synchronous>, transform_indices = @transform_1, window_bounds = array<i64: 64, 64>}, {pipeline_mode = #tpu.pipeline_mode<synchronous>, transform_indices = @transform_2, window_bounds = array<i64: 1, 64>}, {pipeline_mode = #tpu.pipeline_mode<synchronous>, transform_indices = @transform_3, window_bounds = array<i64: 1, 64>}, {pipeline_mode = #tpu.pipeline_mode<synchronous>, transform_indices = @transform_4, window_bounds = array<i64: 1, 64>}, {pipeline_mode = #tpu.pipeline_mode<synchronous>, transform_indices = @transform_5, window_bounds = array<i64: 64, 128>}, {pipeline_mode = #tpu.pipeline_mode<synchronous>, transform_indices = @transform_6, window_bounds = array<i64: 1, 128>}, {transform_indices = @transform_7, window_bounds = array<i64: 128, 128>}]} {
    %c0 = arith.constant 0 : index
    %c0_0 = arith.constant 0 : index
    %0 = vector.load %arg1[%c0, %c0_0] : memref<128x64xbf16, #tpu.memory_space<vmem>>, vector<128x64xbf16>
    %c0_1 = arith.constant 0 : index
    %c0_2 = arith.constant 0 : index
    %1 = vector.load %arg2[%c0_1, %c0_2] : memref<64x64xbf16, #tpu.memory_space<vmem>>, vector<64x64xbf16>
    %cst = arith.constant dense<0.000000e+00> : vector<128x64xf32>
    %2 = tpu.matmul %0, %1, %cst {dimension_numbers = #tpu.dot_dimension_numbers<[1], [0], [0], [1], [0, 0, 1, 1], [], []>} : vector<128x64xbf16>, vector<64x64xbf16>, vector<128x64xf32> -> vector<128x64xf32>
    %c0_3 = arith.constant 0 : index
    %c0_4 = arith.constant 0 : index
    %3 = vector.load %arg3[%c0_3, %c0_4] : memref<1x64xf32, #tpu.memory_space<vmem>>, vector<1x64xf32>
    %4 = vector.broadcast %3 : vector<1x64xf32> to vector<128x64xf32>
    %5 = arith.addf %2, %4 : vector<128x64xf32>
    %c0_5 = arith.constant 0 : index
    %c0_6 = arith.constant 0 : index
    %6 = vector.load %arg4[%c0_5, %c0_6] : memref<1x64xf32, #tpu.memory_space<vmem>>, vector<1x64xf32>
    %7 = vector.broadcast %6 : vector<1x64xf32> to vector<128x64xf32>
    %8 = arith.mulf %5, %7 : vector<128x64xf32>
    %c0_7 = arith.constant 0 : index
    %c0_8 = arith.constant 0 : index
    %9 = vector.load %arg5[%c0_7, %c0_8] : memref<1x64xf32, #tpu.memory_space<vmem>>, vector<1x64xf32>
    %10 = vector.broadcast %9 : vector<1x64xf32> to vector<128x64xf32>
    %11 = arith.addf %8, %10 : vector<128x64xf32>
    %cst_9 = arith.constant 0.000000e+00 : f32
    %12 = vector.broadcast %cst_9 : f32 to vector<128x64xf32>
    %13 = arith.maximumf %11, %12 : vector<128x64xf32>
    %14 = arith.truncf %13 : vector<128x64xf32> to vector<128x64xbf16>
    %c0_10 = arith.constant 0 : index
    %c0_11 = arith.constant 0 : index
    %15 = vector.load %arg6[%c0_10, %c0_11] : memref<64x128xbf16, #tpu.memory_space<vmem>>, vector<64x128xbf16>
    %cst_12 = arith.constant dense<0.000000e+00> : vector<128x128xf32>
    %16 = tpu.matmul %14, %15, %cst_12 {dimension_numbers = #tpu.dot_dimension_numbers<[1], [0], [0], [1], [0, 0, 1, 1], [], []>} : vector<128x64xbf16>, vector<64x128xbf16>, vector<128x128xf32> -> vector<128x128xf32>
    %c0_13 = arith.constant 0 : index
    %c0_14 = arith.constant 0 : index
    %17 = vector.load %arg7[%c0_13, %c0_14] : memref<1x128xf32, #tpu.memory_space<vmem>>, vector<1x128xf32>
    %18 = vector.broadcast %17 : vector<1x128xf32> to vector<128x128xf32>
    %19 = arith.addf %16, %18 : vector<128x128xf32>
    %c0_15 = arith.constant 0 : index
    %c0_16 = arith.constant 0 : index
    %20 = vector.load %arg8[%c0_15, %c0_16] : memref<128x128xf32, #tpu.memory_space<vmem>>, vector<128x128xf32>
    tpu.vector_store %arg8[%c0_15, %c0_16], %19 {strides = array<i32>} : memref<128x128xf32, #tpu.memory_space<vmem>>, vector<128x128xf32>,
    return
  }
  func.func @transform_0(%arg0: i32) -> (i32, i32) {
    %c0_i32 = arith.constant 0 : i32
    %c0_i32_0 = arith.constant 0 : i32
    return %arg0, %c0_i32 : i32, i32
  }
  func.func @transform_1(%arg0: i32) -> (i32, i32) {
    %c0_i32 = arith.constant 0 : i32
    %c0_i32_0 = arith.constant 0 : i32
    %c0_i32_1 = arith.constant 0 : i32
    return %c0_i32, %c0_i32_0 : i32, i32
  }
  func.func @transform_2(%arg0: i32) -> (i32, i32) {
    %c0_i32 = arith.constant 0 : i32
    %c0_i32_0 = arith.constant 0 : i32
    %c0_i32_1 = arith.constant 0 : i32
    return %c0_i32, %c0_i32_0 : i32, i32
  }
  func.func @transform_3(%arg0: i32) -> (i32, i32) {
    %c0_i32 = arith.constant 0 : i32
    %c0_i32_0 = arith.constant 0 : i32
    %c0_i32_1 = arith.constant 0 : i32
    return %c0_i32, %c0_i32_0 : i32, i32
  }
  func.func @transform_4(%arg0: i32) -> (i32, i32) {
    %c0_i32 = arith.constant 0 : i32
    %c0_i32_0 = arith.constant 0 : i32
    %c0_i32_1 = arith.constant 0 : i32
    return %c0_i32, %c0_i32_0 : i32, i32
  }
  func.func @transform_5(%arg0: i32) -> (i32, i32) {
    %c0_i32 = arith.constant 0 : i32
    %c0_i32_0 = arith.constant 0 : i32
    %c0_i32_1 = arith.constant 0 : i32
    return %c0_i32, %c0_i32_0 : i32, i32
  }
  func.func @transform_6(%arg0: i32) -> (i32, i32) {
    %c0_i32 = arith.constant 0 : i32
    %c0_i32_0 = arith.constant 0 : i32
    %c0_i32_1 = arith.constant 0 : i32
    return %c0_i32, %c0_i32_0 : i32, i32
  }
  func.func @transform_7(%arg0: i32) -> (i32, i32) {
    %c0_i32 = arith.constant 0 : i32
    %c0_i32_0 = arith.constant 0 : i32
    return %arg0, %c0_i32 : i32, i32
  }
}

module attributes {stable_mosaic.version = 11 : i64} {
  func.func @bilstm_layer_kernel(%arg0: memref<128x64xbf16, #tpu.memory_space<vmem>>, %arg1: memref<64x256xbf16, #tpu.memory_space<vmem>>, %arg2: memref<64x256xbf16, #tpu.memory_space<vmem>>, %arg3: memref<1x256xf32, #tpu.memory_space<vmem>>, %arg4: memref<128x64xbf16, #tpu.memory_space<vmem>>, %arg5: memref<128x256xbf16, #tpu.memory_space<vmem>>, %arg6: memref<16x64xbf16, #tpu.memory_space<vmem>>, %arg7: memref<16x64xf32, #tpu.memory_space<vmem>>) attributes {dimension_semantics = [], scalar_prefetch = 0 : i64, scratch_operands = 3 : i64, tpu.core_type = #tpu.core_type<tc>} {
    %c0 = arith.constant 0 : index
    %c0_0 = arith.constant 0 : index
    %0 = vector.load %arg0[%c0, %c0_0] : memref<128x64xbf16, #tpu.memory_space<vmem>>, vector<128x64xbf16>
    %c0_1 = arith.constant 0 : index
    %c0_2 = arith.constant 0 : index
    %1 = vector.load %arg1[%c0_1, %c0_2] : memref<64x256xbf16, #tpu.memory_space<vmem>>, vector<64x256xbf16>
    %cst = arith.constant dense<0.000000e+00> : vector<128x256xf32>
    %2 = tpu.matmul %0, %1, %cst {dimension_numbers = #tpu.dot_dimension_numbers<[1], [0], [0], [1], [0, 0, 1, 1], [], []>} : vector<128x64xbf16>, vector<64x256xbf16>, vector<128x256xf32> -> vector<128x256xf32>
    %c0_3 = arith.constant 0 : index
    %c0_4 = arith.constant 0 : index
    %3 = vector.load %arg3[%c0_3, %c0_4] : memref<1x256xf32, #tpu.memory_space<vmem>>, vector<1x256xf32>
    %4 = vector.broadcast %3 : vector<1x256xf32> to vector<128x256xf32>
    %5 = arith.addf %2, %4 : vector<128x256xf32>
    %6 = arith.truncf %5 : vector<128x256xf32> to vector<128x256xbf16>
    %c0_5 = arith.constant 0 : index
    %c0_6 = arith.constant 0 : index
    %7 = vector.load %arg5[%c0_5, %c0_6] : memref<128x256xbf16, #tpu.memory_space<vmem>>, vector<128x256xbf16>
    tpu.vector_store %arg5[%c0_5, %c0_6], %6 {strides = array<i32>} : memref<128x256xbf16, #tpu.memory_space<vmem>>, vector<128x256xbf16>,
    %cst_7 = arith.constant 0.000000e+00 : bf16
    %8 = vector.broadcast %cst_7 : bf16 to vector<16x64xbf16>
    %c0_8 = arith.constant 0 : index
    %c0_9 = arith.constant 0 : index
    %9 = vector.load %arg6[%c0_8, %c0_9] : memref<16x64xbf16, #tpu.memory_space<vmem>>, vector<16x64xbf16>
    tpu.vector_store %arg6[%c0_8, %c0_9], %8 {strides = array<i32>} : memref<16x64xbf16, #tpu.memory_space<vmem>>, vector<16x64xbf16>,
    %cst_10 = arith.constant 0.000000e+00 : f32
    %10 = vector.broadcast %cst_10 : f32 to vector<16x64xf32>
    %c0_11 = arith.constant 0 : index
    %c0_12 = arith.constant 0 : index
    %11 = vector.load %arg7[%c0_11, %c0_12] : memref<16x64xf32, #tpu.memory_space<vmem>>, vector<16x64xf32>
    tpu.vector_store %arg7[%c0_11, %c0_12], %10 {strides = array<i32>} : memref<16x64xf32, #tpu.memory_space<vmem>>, vector<16x64xf32>,
    %c0_13 = arith.constant 0 : index
    %c0_14 = arith.constant 0 : index
    %12 = vector.load %arg2[%c0_13, %c0_14] : memref<64x256xbf16, #tpu.memory_space<vmem>>, vector<64x256xbf16>
    %c0_i32 = arith.constant 0 : i32
    %c16_i32 = arith.constant 16 : i32
    %13 = arith.muli %c0_i32, %c16_i32 : i32
    %14 = tpu.assume_multiple %13, 16 : i32
    %c7_i32 = arith.constant 7 : i32
    %15 = arith.subi %c7_i32, %c0_i32 : i32
    %c16_i32_15 = arith.constant 16 : i32
    %16 = arith.muli %15, %c16_i32_15 : i32
    %17 = tpu.assume_multiple %16, 16 : i32
    %c0_16 = arith.constant 0 : index
    %c0_17 = arith.constant 0 : index
    %18 = vector.load %arg6[%c0_16, %c0_17] : memref<16x64xbf16, #tpu.memory_space<vmem>>, vector<16x64xbf16>
    %cst_18 = arith.constant dense<0.000000e+00> : vector<16x256xf32>
    %19 = tpu.matmul %18, %12, %cst_18 {dimension_numbers = #tpu.dot_dimension_numbers<[1], [0], [0], [1], [0, 0, 1, 1], [], []>} : vector<16x64xbf16>, vector<64x256xbf16>, vector<16x256xf32> -> vector<16x256xf32>
    %20 = arith.index_cast %14 : i32 to index
    %c0_19 = arith.constant 0 : index
    %21 = vector.load %arg5[%20, %c0_19] : memref<128x256xbf16, #tpu.memory_space<vmem>>, vector<16x128xbf16>
    %22 = arith.extf %21 : vector<16x128xbf16> to vector<16x128xf32>
    %23 = vector.extract_strided_slice %19 {offsets = [0, 0], sizes = [16, 128], strides = [1, 1]} : vector<16x256xf32> to vector<16x128xf32>
    %24 = arith.addf %22, %23 : vector<16x128xf32>
    %25 = arith.index_cast %17 : i32 to index
    %c128 = arith.constant 128 : index
    %26 = vector.load %arg5[%25, %c128] : memref<128x256xbf16, #tpu.memory_space<vmem>>, vector<16x128xbf16>
    %27 = arith.extf %26 : vector<16x128xbf16> to vector<16x128xf32>
    %28 = vector.extract_strided_slice %19 {offsets = [0, 128], sizes = [16, 128], strides = [1, 1]} : vector<16x256xf32> to vector<16x128xf32>
    %29 = arith.addf %27, %28 : vector<16x128xf32>
    %c0_20 = arith.constant 0 : index
    %c0_21 = arith.constant 0 : index
    %30 = vector.load %arg7[%c0_20, %c0_21] : memref<16x64xf32, #tpu.memory_space<vmem>>, vector<16x64xf32>
    %31 = vector.extract_strided_slice %30 {offsets = [0, 0], sizes = [16, 32], strides = [1, 1]} : vector<16x64xf32> to vector<16x32xf32>
    %32 = vector.extract_strided_slice %24 {offsets = [0, 0], sizes = [16, 32], strides = [1, 1]} : vector<16x128xf32> to vector<16x32xf32>
    %33 = arith.negf %32 : vector<16x32xf32>
    %34 = math.exp %33 : vector<16x32xf32>
    %cst_22 = arith.constant 1.000000e+00 : f32
    %35 = vector.broadcast %cst_22 : f32 to vector<16x32xf32>
    %36 = arith.addf %35, %34 : vector<16x32xf32>
    %37 = arith.divf %35, %36 : vector<16x32xf32>
    %38 = vector.extract_strided_slice %24 {offsets = [0, 32], sizes = [16, 32], strides = [1, 1]} : vector<16x128xf32> to vector<16x32xf32>
    %39 = arith.negf %38 : vector<16x32xf32>
    %40 = math.exp %39 : vector<16x32xf32>
    %cst_23 = arith.constant 1.000000e+00 : f32
    %41 = vector.broadcast %cst_23 : f32 to vector<16x32xf32>
    %42 = arith.addf %41, %40 : vector<16x32xf32>
    %43 = arith.divf %41, %42 : vector<16x32xf32>
    %44 = vector.extract_strided_slice %24 {offsets = [0, 64], sizes = [16, 32], strides = [1, 1]} : vector<16x128xf32> to vector<16x32xf32>
    %45 = math.tanh %44 : vector<16x32xf32>
    %46 = vector.extract_strided_slice %24 {offsets = [0, 96], sizes = [16, 32], strides = [1, 1]} : vector<16x128xf32> to vector<16x32xf32>
    %47 = arith.negf %46 : vector<16x32xf32>
    %48 = math.exp %47 : vector<16x32xf32>
    %cst_24 = arith.constant 1.000000e+00 : f32
    %49 = vector.broadcast %cst_24 : f32 to vector<16x32xf32>
    %50 = arith.addf %49, %48 : vector<16x32xf32>
    %51 = arith.divf %49, %50 : vector<16x32xf32>
    %52 = arith.mulf %43, %31 : vector<16x32xf32>
    %53 = arith.mulf %37, %45 : vector<16x32xf32>
    %54 = arith.addf %52, %53 : vector<16x32xf32>
    %55 = math.tanh %54 : vector<16x32xf32>
    %56 = arith.mulf %51, %55 : vector<16x32xf32>
    %57 = vector.extract_strided_slice %30 {offsets = [0, 32], sizes = [16, 32], strides = [1, 1]} : vector<16x64xf32> to vector<16x32xf32>
    %58 = vector.extract_strided_slice %29 {offsets = [0, 0], sizes = [16, 32], strides = [1, 1]} : vector<16x128xf32> to vector<16x32xf32>
    %59 = arith.negf %58 : vector<16x32xf32>
    %60 = math.exp %59 : vector<16x32xf32>
    %cst_25 = arith.constant 1.000000e+00 : f32
    %61 = vector.broadcast %cst_25 : f32 to vector<16x32xf32>
    %62 = arith.addf %61, %60 : vector<16x32xf32>
    %63 = arith.divf %61, %62 : vector<16x32xf32>
    %64 = vector.extract_strided_slice %29 {offsets = [0, 32], sizes = [16, 32], strides = [1, 1]} : vector<16x128xf32> to vector<16x32xf32>
    %65 = arith.negf %64 : vector<16x32xf32>
    %66 = math.exp %65 : vector<16x32xf32>
    %cst_26 = arith.constant 1.000000e+00 : f32
    %67 = vector.broadcast %cst_26 : f32 to vector<16x32xf32>
    %68 = arith.addf %67, %66 : vector<16x32xf32>
    %69 = arith.divf %67, %68 : vector<16x32xf32>
    %70 = vector.extract_strided_slice %29 {offsets = [0, 64], sizes = [16, 32], strides = [1, 1]} : vector<16x128xf32> to vector<16x32xf32>
    %71 = math.tanh %70 : vector<16x32xf32>
    %72 = vector.extract_strided_slice %29 {offsets = [0, 96], sizes = [16, 32], strides = [1, 1]} : vector<16x128xf32> to vector<16x32xf32>
    %73 = arith.negf %72 : vector<16x32xf32>
    %74 = math.exp %73 : vector<16x32xf32>
    %cst_27 = arith.constant 1.000000e+00 : f32
    %75 = vector.broadcast %cst_27 : f32 to vector<16x32xf32>
    %76 = arith.addf %75, %74 : vector<16x32xf32>
    %77 = arith.divf %75, %76 : vector<16x32xf32>
    %78 = arith.mulf %69, %57 : vector<16x32xf32>
    %79 = arith.mulf %63, %71 : vector<16x32xf32>
    %80 = arith.addf %78, %79 : vector<16x32xf32>
    %81 = math.tanh %80 : vector<16x32xf32>
    %82 = arith.mulf %77, %81 : vector<16x32xf32>
    %83 = tpu.concatenate %56, %82 in 1 : vector<16x32xf32>, vector<16x32xf32> -> vector<16x64xf32>
    %84 = arith.truncf %83 : vector<16x64xf32> to vector<16x64xbf16>
    %c0_28 = arith.constant 0 : index
    %c0_29 = arith.constant 0 : index
    %85 = vector.load %arg6[%c0_28, %c0_29] : memref<16x64xbf16, #tpu.memory_space<vmem>>, vector<16x64xbf16>
    tpu.vector_store %arg6[%c0_28, %c0_29], %84 {strides = array<i32>} : memref<16x64xbf16, #tpu.memory_space<vmem>>, vector<16x64xbf16>,
    %86 = tpu.concatenate %54, %80 in 1 : vector<16x32xf32>, vector<16x32xf32> -> vector<16x64xf32>
    %c0_30 = arith.constant 0 : index
    %c0_31 = arith.constant 0 : index
    %87 = vector.load %arg7[%c0_30, %c0_31] : memref<16x64xf32, #tpu.memory_space<vmem>>, vector<16x64xf32>
    tpu.vector_store %arg7[%c0_30, %c0_31], %86 {strides = array<i32>} : memref<16x64xf32, #tpu.memory_space<vmem>>, vector<16x64xf32>,
    %88 = arith.truncf %56 : vector<16x32xf32> to vector<16x32xbf16>
    %89 = arith.index_cast %14 : i32 to index
    %c0_32 = arith.constant 0 : index
    %90 = vector.load %arg4[%89, %c0_32] : memref<128x64xbf16, #tpu.memory_space<vmem>>, vector<16x32xbf16>
    tpu.vector_store %arg4[%89, %c0_32], %88 {strides = array<i32>} : memref<128x64xbf16, #tpu.memory_space<vmem>>, vector<16x32xbf16>,
    %91 = arith.truncf %82 : vector<16x32xf32> to vector<16x32xbf16>
    %92 = arith.index_cast %17 : i32 to index
    %c32 = arith.constant 32 : index
    %93 = vector.load %arg4[%92, %c32] : memref<128x64xbf16, #tpu.memory_space<vmem>>, vector<16x32xbf16>
    tpu.vector_store %arg4[%92, %c32], %91 {strides = array<i32>} : memref<128x64xbf16, #tpu.memory_space<vmem>>, vector<16x32xbf16>,
    %c1_i32 = arith.constant 1 : i32
    %c16_i32_33 = arith.constant 16 : i32
    %94 = arith.muli %c1_i32, %c16_i32_33 : i32
    %95 = tpu.assume_multiple %94, 16 : i32
    %c7_i32_34 = arith.constant 7 : i32
    %96 = arith.subi %c7_i32_34, %c1_i32 : i32
    %c16_i32_35 = arith.constant 16 : i32
    %97 = arith.muli %96, %c16_i32_35 : i32
    %98 = tpu.assume_multiple %97, 16 : i32
    %c0_36 = arith.constant 0 : index
    %c0_37 = arith.constant 0 : index
    %99 = vector.load %arg6[%c0_36, %c0_37] : memref<16x64xbf16, #tpu.memory_space<vmem>>, vector<16x64xbf16>
    %cst_38 = arith.constant dense<0.000000e+00> : vector<16x256xf32>
    %100 = tpu.matmul %99, %12, %cst_38 {dimension_numbers = #tpu.dot_dimension_numbers<[1], [0], [0], [1], [0, 0, 1, 1], [], []>} : vector<16x64xbf16>, vector<64x256xbf16>, vector<16x256xf32> -> vector<16x256xf32>
    %101 = arith.index_cast %95 : i32 to index
    %c0_39 = arith.constant 0 : index
    %102 = vector.load %arg5[%101, %c0_39] : memref<128x256xbf16, #tpu.memory_space<vmem>>, vector<16x128xbf16>
    %103 = arith.extf %102 : vector<16x128xbf16> to vector<16x128xf32>
    %104 = vector.extract_strided_slice %100 {offsets = [0, 0], sizes = [16, 128], strides = [1, 1]} : vector<16x256xf32> to vector<16x128xf32>
    %105 = arith.addf %103, %104 : vector<16x128xf32>
    %106 = arith.index_cast %98 : i32 to index
    %c128_40 = arith.constant 128 : index
    %107 = vector.load %arg5[%106, %c128_40] : memref<128x256xbf16, #tpu.memory_space<vmem>>, vector<16x128xbf16>
    %108 = arith.extf %107 : vector<16x128xbf16> to vector<16x128xf32>
    %109 = vector.extract_strided_slice %100 {offsets = [0, 128], sizes = [16, 128], strides = [1, 1]} : vector<16x256xf32> to vector<16x128xf32>
    %110 = arith.addf %108, %109 : vector<16x128xf32>
    %c0_41 = arith.constant 0 : index
    %c0_42 = arith.constant 0 : index
    %111 = vector.load %arg7[%c0_41, %c0_42] : memref<16x64xf32, #tpu.memory_space<vmem>>, vector<16x64xf32>
    %112 = vector.extract_strided_slice %111 {offsets = [0, 0], sizes = [16, 32], strides = [1, 1]} : vector<16x64xf32> to vector<16x32xf32>
    %113 = vector.extract_strided_slice %105 {offsets = [0, 0], sizes = [16, 32], strides = [1, 1]} : vector<16x128xf32> to vector<16x32xf32>
    %114 = arith.negf %113 : vector<16x32xf32>
    %115 = math.exp %114 : vector<16x32xf32>
    %cst_43 = arith.constant 1.000000e+00 : f32
    %116 = vector.broadcast %cst_43 : f32 to vector<16x32xf32>
    %117 = arith.addf %116, %115 : vector<16x32xf32>
    %118 = arith.divf %116, %117 : vector<16x32xf32>
    %119 = vector.extract_strided_slice %105 {offsets = [0, 32], sizes = [16, 32], strides = [1, 1]} : vector<16x128xf32> to vector<16x32xf32>
    %120 = arith.negf %119 : vector<16x32xf32>
    %121 = math.exp %120 : vector<16x32xf32>
    %cst_44 = arith.constant 1.000000e+00 : f32
    %122 = vector.broadcast %cst_44 : f32 to vector<16x32xf32>
    %123 = arith.addf %122, %121 : vector<16x32xf32>
    %124 = arith.divf %122, %123 : vector<16x32xf32>
    %125 = vector.extract_strided_slice %105 {offsets = [0, 64], sizes = [16, 32], strides = [1, 1]} : vector<16x128xf32> to vector<16x32xf32>
    %126 = math.tanh %125 : vector<16x32xf32>
    %127 = vector.extract_strided_slice %105 {offsets = [0, 96], sizes = [16, 32], strides = [1, 1]} : vector<16x128xf32> to vector<16x32xf32>
    %128 = arith.negf %127 : vector<16x32xf32>
    %129 = math.exp %128 : vector<16x32xf32>
    %cst_45 = arith.constant 1.000000e+00 : f32
    %130 = vector.broadcast %cst_45 : f32 to vector<16x32xf32>
    %131 = arith.addf %130, %129 : vector<16x32xf32>
    %132 = arith.divf %130, %131 : vector<16x32xf32>
    %133 = arith.mulf %124, %112 : vector<16x32xf32>
    %134 = arith.mulf %118, %126 : vector<16x32xf32>
    %135 = arith.addf %133, %134 : vector<16x32xf32>
    %136 = math.tanh %135 : vector<16x32xf32>
    %137 = arith.mulf %132, %136 : vector<16x32xf32>
    %138 = vector.extract_strided_slice %111 {offsets = [0, 32], sizes = [16, 32], strides = [1, 1]} : vector<16x64xf32> to vector<16x32xf32>
    %139 = vector.extract_strided_slice %110 {offsets = [0, 0], sizes = [16, 32], strides = [1, 1]} : vector<16x128xf32> to vector<16x32xf32>
    %140 = arith.negf %139 : vector<16x32xf32>
    %141 = math.exp %140 : vector<16x32xf32>
    %cst_46 = arith.constant 1.000000e+00 : f32
    %142 = vector.broadcast %cst_46 : f32 to vector<16x32xf32>
    %143 = arith.addf %142, %141 : vector<16x32xf32>
    %144 = arith.divf %142, %143 : vector<16x32xf32>
    %145 = vector.extract_strided_slice %110 {offsets = [0, 32], sizes = [16, 32], strides = [1, 1]} : vector<16x128xf32> to vector<16x32xf32>
    %146 = arith.negf %145 : vector<16x32xf32>
    %147 = math.exp %146 : vector<16x32xf32>
    %cst_47 = arith.constant 1.000000e+00 : f32
    %148 = vector.broadcast %cst_47 : f32 to vector<16x32xf32>
    %149 = arith.addf %148, %147 : vector<16x32xf32>
    %150 = arith.divf %148, %149 : vector<16x32xf32>
    %151 = vector.extract_strided_slice %110 {offsets = [0, 64], sizes = [16, 32], strides = [1, 1]} : vector<16x128xf32> to vector<16x32xf32>
    %152 = math.tanh %151 : vector<16x32xf32>
    %153 = vector.extract_strided_slice %110 {offsets = [0, 96], sizes = [16, 32], strides = [1, 1]} : vector<16x128xf32> to vector<16x32xf32>
    %154 = arith.negf %153 : vector<16x32xf32>
    %155 = math.exp %154 : vector<16x32xf32>
    %cst_48 = arith.constant 1.000000e+00 : f32
    %156 = vector.broadcast %cst_48 : f32 to vector<16x32xf32>
    %157 = arith.addf %156, %155 : vector<16x32xf32>
    %158 = arith.divf %156, %157 : vector<16x32xf32>
    %159 = arith.mulf %150, %138 : vector<16x32xf32>
    %160 = arith.mulf %144, %152 : vector<16x32xf32>
    %161 = arith.addf %159, %160 : vector<16x32xf32>
    %162 = math.tanh %161 : vector<16x32xf32>
    %163 = arith.mulf %158, %162 : vector<16x32xf32>
    %164 = tpu.concatenate %137, %163 in 1 : vector<16x32xf32>, vector<16x32xf32> -> vector<16x64xf32>
    %165 = arith.truncf %164 : vector<16x64xf32> to vector<16x64xbf16>
    %c0_49 = arith.constant 0 : index
    %c0_50 = arith.constant 0 : index
    %166 = vector.load %arg6[%c0_49, %c0_50] : memref<16x64xbf16, #tpu.memory_space<vmem>>, vector<16x64xbf16>
    tpu.vector_store %arg6[%c0_49, %c0_50], %165 {strides = array<i32>} : memref<16x64xbf16, #tpu.memory_space<vmem>>, vector<16x64xbf16>,
    %167 = tpu.concatenate %135, %161 in 1 : vector<16x32xf32>, vector<16x32xf32> -> vector<16x64xf32>
    %c0_51 = arith.constant 0 : index
    %c0_52 = arith.constant 0 : index
    %168 = vector.load %arg7[%c0_51, %c0_52] : memref<16x64xf32, #tpu.memory_space<vmem>>, vector<16x64xf32>
    tpu.vector_store %arg7[%c0_51, %c0_52], %167 {strides = array<i32>} : memref<16x64xf32, #tpu.memory_space<vmem>>, vector<16x64xf32>,
    %169 = arith.truncf %137 : vector<16x32xf32> to vector<16x32xbf16>
    %170 = arith.index_cast %95 : i32 to index
    %c0_53 = arith.constant 0 : index
    %171 = vector.load %arg4[%170, %c0_53] : memref<128x64xbf16, #tpu.memory_space<vmem>>, vector<16x32xbf16>
    tpu.vector_store %arg4[%170, %c0_53], %169 {strides = array<i32>} : memref<128x64xbf16, #tpu.memory_space<vmem>>, vector<16x32xbf16>,
    %172 = arith.truncf %163 : vector<16x32xf32> to vector<16x32xbf16>
    %173 = arith.index_cast %98 : i32 to index
    %c32_54 = arith.constant 32 : index
    %174 = vector.load %arg4[%173, %c32_54] : memref<128x64xbf16, #tpu.memory_space<vmem>>, vector<16x32xbf16>
    tpu.vector_store %arg4[%173, %c32_54], %172 {strides = array<i32>} : memref<128x64xbf16, #tpu.memory_space<vmem>>, vector<16x32xbf16>,
    %c2_i32 = arith.constant 2 : i32
    %c16_i32_55 = arith.constant 16 : i32
    %175 = arith.muli %c2_i32, %c16_i32_55 : i32
    %176 = tpu.assume_multiple %175, 16 : i32
    %c7_i32_56 = arith.constant 7 : i32
    %177 = arith.subi %c7_i32_56, %c2_i32 : i32
    %c16_i32_57 = arith.constant 16 : i32
    %178 = arith.muli %177, %c16_i32_57 : i32
    %179 = tpu.assume_multiple %178, 16 : i32
    %c0_58 = arith.constant 0 : index
    %c0_59 = arith.constant 0 : index
    %180 = vector.load %arg6[%c0_58, %c0_59] : memref<16x64xbf16, #tpu.memory_space<vmem>>, vector<16x64xbf16>
    %cst_60 = arith.constant dense<0.000000e+00> : vector<16x256xf32>
    %181 = tpu.matmul %180, %12, %cst_60 {dimension_numbers = #tpu.dot_dimension_numbers<[1], [0], [0], [1], [0, 0, 1, 1], [], []>} : vector<16x64xbf16>, vector<64x256xbf16>, vector<16x256xf32> -> vector<16x256xf32>
    %182 = arith.index_cast %176 : i32 to index
    %c0_61 = arith.constant 0 : index
    %183 = vector.load %arg5[%182, %c0_61] : memref<128x256xbf16, #tpu.memory_space<vmem>>, vector<16x128xbf16>
    %184 = arith.extf %183 : vector<16x128xbf16> to vector<16x128xf32>
    %185 = vector.extract_strided_slice %181 {offsets = [0, 0], sizes = [16, 128], strides = [1, 1]} : vector<16x256xf32> to vector<16x128xf32>
    %186 = arith.addf %184, %185 : vector<16x128xf32>
    %187 = arith.index_cast %179 : i32 to index
    %c128_62 = arith.constant 128 : index
    %188 = vector.load %arg5[%187, %c128_62] : memref<128x256xbf16, #tpu.memory_space<vmem>>, vector<16x128xbf16>
    %189 = arith.extf %188 : vector<16x128xbf16> to vector<16x128xf32>
    %190 = vector.extract_strided_slice %181 {offsets = [0, 128], sizes = [16, 128], strides = [1, 1]} : vector<16x256xf32> to vector<16x128xf32>
    %191 = arith.addf %189, %190 : vector<16x128xf32>
    %c0_63 = arith.constant 0 : index
    %c0_64 = arith.constant 0 : index
    %192 = vector.load %arg7[%c0_63, %c0_64] : memref<16x64xf32, #tpu.memory_space<vmem>>, vector<16x64xf32>
    %193 = vector.extract_strided_slice %192 {offsets = [0, 0], sizes = [16, 32], strides = [1, 1]} : vector<16x64xf32> to vector<16x32xf32>
    %194 = vector.extract_strided_slice %186 {offsets = [0, 0], sizes = [16, 32], strides = [1, 1]} : vector<16x128xf32> to vector<16x32xf32>
    %195 = arith.negf %194 : vector<16x32xf32>
    %196 = math.exp %195 : vector<16x32xf32>
    %cst_65 = arith.constant 1.000000e+00 : f32
    %197 = vector.broadcast %cst_65 : f32 to vector<16x32xf32>
    %198 = arith.addf %197, %196 : vector<16x32xf32>
    %199 = arith.divf %197, %198 : vector<16x32xf32>
    %200 = vector.extract_strided_slice %186 {offsets = [0, 32], sizes = [16, 32], strides = [1, 1]} : vector<16x128xf32> to vector<16x32xf32>
    %201 = arith.negf %200 : vector<16x32xf32>
    %202 = math.exp %201 : vector<16x32xf32>
    %cst_66 = arith.constant 1.000000e+00 : f32
    %203 = vector.broadcast %cst_66 : f32 to vector<16x32xf32>
    %204 = arith.addf %203, %202 : vector<16x32xf32>
    %205 = arith.divf %203, %204 : vector<16x32xf32>
    %206 = vector.extract_strided_slice %186 {offsets = [0, 64], sizes = [16, 32], strides = [1, 1]} : vector<16x128xf32> to vector<16x32xf32>
    %207 = math.tanh %206 : vector<16x32xf32>
    %208 = vector.extract_strided_slice %186 {offsets = [0, 96], sizes = [16, 32], strides = [1, 1]} : vector<16x128xf32> to vector<16x32xf32>
    %209 = arith.negf %208 : vector<16x32xf32>
    %210 = math.exp %209 : vector<16x32xf32>
    %cst_67 = arith.constant 1.000000e+00 : f32
    %211 = vector.broadcast %cst_67 : f32 to vector<16x32xf32>
    %212 = arith.addf %211, %210 : vector<16x32xf32>
    %213 = arith.divf %211, %212 : vector<16x32xf32>
    %214 = arith.mulf %205, %193 : vector<16x32xf32>
    %215 = arith.mulf %199, %207 : vector<16x32xf32>
    %216 = arith.addf %214, %215 : vector<16x32xf32>
    %217 = math.tanh %216 : vector<16x32xf32>
    %218 = arith.mulf %213, %217 : vector<16x32xf32>
    %219 = vector.extract_strided_slice %192 {offsets = [0, 32], sizes = [16, 32], strides = [1, 1]} : vector<16x64xf32> to vector<16x32xf32>
    %220 = vector.extract_strided_slice %191 {offsets = [0, 0], sizes = [16, 32], strides = [1, 1]} : vector<16x128xf32> to vector<16x32xf32>
    %221 = arith.negf %220 : vector<16x32xf32>
    %222 = math.exp %221 : vector<16x32xf32>
    %cst_68 = arith.constant 1.000000e+00 : f32
    %223 = vector.broadcast %cst_68 : f32 to vector<16x32xf32>
    %224 = arith.addf %223, %222 : vector<16x32xf32>
    %225 = arith.divf %223, %224 : vector<16x32xf32>
    %226 = vector.extract_strided_slice %191 {offsets = [0, 32], sizes = [16, 32], strides = [1, 1]} : vector<16x128xf32> to vector<16x32xf32>
    %227 = arith.negf %226 : vector<16x32xf32>
    %228 = math.exp %227 : vector<16x32xf32>
    %cst_69 = arith.constant 1.000000e+00 : f32
    %229 = vector.broadcast %cst_69 : f32 to vector<16x32xf32>
    %230 = arith.addf %229, %228 : vector<16x32xf32>
    %231 = arith.divf %229, %230 : vector<16x32xf32>
    %232 = vector.extract_strided_slice %191 {offsets = [0, 64], sizes = [16, 32], strides = [1, 1]} : vector<16x128xf32> to vector<16x32xf32>
    %233 = math.tanh %232 : vector<16x32xf32>
    %234 = vector.extract_strided_slice %191 {offsets = [0, 96], sizes = [16, 32], strides = [1, 1]} : vector<16x128xf32> to vector<16x32xf32>
    %235 = arith.negf %234 : vector<16x32xf32>
    %236 = math.exp %235 : vector<16x32xf32>
    %cst_70 = arith.constant 1.000000e+00 : f32
    %237 = vector.broadcast %cst_70 : f32 to vector<16x32xf32>
    %238 = arith.addf %237, %236 : vector<16x32xf32>
    %239 = arith.divf %237, %238 : vector<16x32xf32>
    %240 = arith.mulf %231, %219 : vector<16x32xf32>
    %241 = arith.mulf %225, %233 : vector<16x32xf32>
    %242 = arith.addf %240, %241 : vector<16x32xf32>
    %243 = math.tanh %242 : vector<16x32xf32>
    %244 = arith.mulf %239, %243 : vector<16x32xf32>
    %245 = tpu.concatenate %218, %244 in 1 : vector<16x32xf32>, vector<16x32xf32> -> vector<16x64xf32>
    %246 = arith.truncf %245 : vector<16x64xf32> to vector<16x64xbf16>
    %c0_71 = arith.constant 0 : index
    %c0_72 = arith.constant 0 : index
    %247 = vector.load %arg6[%c0_71, %c0_72] : memref<16x64xbf16, #tpu.memory_space<vmem>>, vector<16x64xbf16>
    tpu.vector_store %arg6[%c0_71, %c0_72], %246 {strides = array<i32>} : memref<16x64xbf16, #tpu.memory_space<vmem>>, vector<16x64xbf16>,
    %248 = tpu.concatenate %216, %242 in 1 : vector<16x32xf32>, vector<16x32xf32> -> vector<16x64xf32>
    %c0_73 = arith.constant 0 : index
    %c0_74 = arith.constant 0 : index
    %249 = vector.load %arg7[%c0_73, %c0_74] : memref<16x64xf32, #tpu.memory_space<vmem>>, vector<16x64xf32>
    tpu.vector_store %arg7[%c0_73, %c0_74], %248 {strides = array<i32>} : memref<16x64xf32, #tpu.memory_space<vmem>>, vector<16x64xf32>,
    %250 = arith.truncf %218 : vector<16x32xf32> to vector<16x32xbf16>
    %251 = arith.index_cast %176 : i32 to index
    %c0_75 = arith.constant 0 : index
    %252 = vector.load %arg4[%251, %c0_75] : memref<128x64xbf16, #tpu.memory_space<vmem>>, vector<16x32xbf16>
    tpu.vector_store %arg4[%251, %c0_75], %250 {strides = array<i32>} : memref<128x64xbf16, #tpu.memory_space<vmem>>, vector<16x32xbf16>,
    %253 = arith.truncf %244 : vector<16x32xf32> to vector<16x32xbf16>
    %254 = arith.index_cast %179 : i32 to index
    %c32_76 = arith.constant 32 : index
    %255 = vector.load %arg4[%254, %c32_76] : memref<128x64xbf16, #tpu.memory_space<vmem>>, vector<16x32xbf16>
    tpu.vector_store %arg4[%254, %c32_76], %253 {strides = array<i32>} : memref<128x64xbf16, #tpu.memory_space<vmem>>, vector<16x32xbf16>,
    %c3_i32 = arith.constant 3 : i32
    %c16_i32_77 = arith.constant 16 : i32
    %256 = arith.muli %c3_i32, %c16_i32_77 : i32
    %257 = tpu.assume_multiple %256, 16 : i32
    %c7_i32_78 = arith.constant 7 : i32
    %258 = arith.subi %c7_i32_78, %c3_i32 : i32
    %c16_i32_79 = arith.constant 16 : i32
    %259 = arith.muli %258, %c16_i32_79 : i32
    %260 = tpu.assume_multiple %259, 16 : i32
    %c0_80 = arith.constant 0 : index
    %c0_81 = arith.constant 0 : index
    %261 = vector.load %arg6[%c0_80, %c0_81] : memref<16x64xbf16, #tpu.memory_space<vmem>>, vector<16x64xbf16>
    %cst_82 = arith.constant dense<0.000000e+00> : vector<16x256xf32>
    %262 = tpu.matmul %261, %12, %cst_82 {dimension_numbers = #tpu.dot_dimension_numbers<[1], [0], [0], [1], [0, 0, 1, 1], [], []>} : vector<16x64xbf16>, vector<64x256xbf16>, vector<16x256xf32> -> vector<16x256xf32>
    %263 = arith.index_cast %257 : i32 to index
    %c0_83 = arith.constant 0 : index
    %264 = vector.load %arg5[%263, %c0_83] : memref<128x256xbf16, #tpu.memory_space<vmem>>, vector<16x128xbf16>
    %265 = arith.extf %264 : vector<16x128xbf16> to vector<16x128xf32>
    %266 = vector.extract_strided_slice %262 {offsets = [0, 0], sizes = [16, 128], strides = [1, 1]} : vector<16x256xf32> to vector<16x128xf32>
    %267 = arith.addf %265, %266 : vector<16x128xf32>
    %268 = arith.index_cast %260 : i32 to index
    %c128_84 = arith.constant 128 : index
    %269 = vector.load %arg5[%268, %c128_84] : memref<128x256xbf16, #tpu.memory_space<vmem>>, vector<16x128xbf16>
    %270 = arith.extf %269 : vector<16x128xbf16> to vector<16x128xf32>
    %271 = vector.extract_strided_slice %262 {offsets = [0, 128], sizes = [16, 128], strides = [1, 1]} : vector<16x256xf32> to vector<16x128xf32>
    %272 = arith.addf %270, %271 : vector<16x128xf32>
    %c0_85 = arith.constant 0 : index
    %c0_86 = arith.constant 0 : index
    %273 = vector.load %arg7[%c0_85, %c0_86] : memref<16x64xf32, #tpu.memory_space<vmem>>, vector<16x64xf32>
    %274 = vector.extract_strided_slice %273 {offsets = [0, 0], sizes = [16, 32], strides = [1, 1]} : vector<16x64xf32> to vector<16x32xf32>
    %275 = vector.extract_strided_slice %267 {offsets = [0, 0], sizes = [16, 32], strides = [1, 1]} : vector<16x128xf32> to vector<16x32xf32>
    %276 = arith.negf %275 : vector<16x32xf32>
    %277 = math.exp %276 : vector<16x32xf32>
    %cst_87 = arith.constant 1.000000e+00 : f32
    %278 = vector.broadcast %cst_87 : f32 to vector<16x32xf32>
    %279 = arith.addf %278, %277 : vector<16x32xf32>
    %280 = arith.divf %278, %279 : vector<16x32xf32>
    %281 = vector.extract_strided_slice %267 {offsets = [0, 32], sizes = [16, 32], strides = [1, 1]} : vector<16x128xf32> to vector<16x32xf32>
    %282 = arith.negf %281 : vector<16x32xf32>
    %283 = math.exp %282 : vector<16x32xf32>
    %cst_88 = arith.constant 1.000000e+00 : f32
    %284 = vector.broadcast %cst_88 : f32 to vector<16x32xf32>
    %285 = arith.addf %284, %283 : vector<16x32xf32>
    %286 = arith.divf %284, %285 : vector<16x32xf32>
    %287 = vector.extract_strided_slice %267 {offsets = [0, 64], sizes = [16, 32], strides = [1, 1]} : vector<16x128xf32> to vector<16x32xf32>
    %288 = math.tanh %287 : vector<16x32xf32>
    %289 = vector.extract_strided_slice %267 {offsets = [0, 96], sizes = [16, 32], strides = [1, 1]} : vector<16x128xf32> to vector<16x32xf32>
    %290 = arith.negf %289 : vector<16x32xf32>
    %291 = math.exp %290 : vector<16x32xf32>
    %cst_89 = arith.constant 1.000000e+00 : f32
    %292 = vector.broadcast %cst_89 : f32 to vector<16x32xf32>
    %293 = arith.addf %292, %291 : vector<16x32xf32>
    %294 = arith.divf %292, %293 : vector<16x32xf32>
    %295 = arith.mulf %286, %274 : vector<16x32xf32>
    %296 = arith.mulf %280, %288 : vector<16x32xf32>
    %297 = arith.addf %295, %296 : vector<16x32xf32>
    %298 = math.tanh %297 : vector<16x32xf32>
    %299 = arith.mulf %294, %298 : vector<16x32xf32>
    %300 = vector.extract_strided_slice %273 {offsets = [0, 32], sizes = [16, 32], strides = [1, 1]} : vector<16x64xf32> to vector<16x32xf32>
    %301 = vector.extract_strided_slice %272 {offsets = [0, 0], sizes = [16, 32], strides = [1, 1]} : vector<16x128xf32> to vector<16x32xf32>
    %302 = arith.negf %301 : vector<16x32xf32>
    %303 = math.exp %302 : vector<16x32xf32>
    %cst_90 = arith.constant 1.000000e+00 : f32
    %304 = vector.broadcast %cst_90 : f32 to vector<16x32xf32>
    %305 = arith.addf %304, %303 : vector<16x32xf32>
    %306 = arith.divf %304, %305 : vector<16x32xf32>
    %307 = vector.extract_strided_slice %272 {offsets = [0, 32], sizes = [16, 32], strides = [1, 1]} : vector<16x128xf32> to vector<16x32xf32>
    %308 = arith.negf %307 : vector<16x32xf32>
    %309 = math.exp %308 : vector<16x32xf32>
    %cst_91 = arith.constant 1.000000e+00 : f32
    %310 = vector.broadcast %cst_91 : f32 to vector<16x32xf32>
    %311 = arith.addf %310, %309 : vector<16x32xf32>
    %312 = arith.divf %310, %311 : vector<16x32xf32>
    %313 = vector.extract_strided_slice %272 {offsets = [0, 64], sizes = [16, 32], strides = [1, 1]} : vector<16x128xf32> to vector<16x32xf32>
    %314 = math.tanh %313 : vector<16x32xf32>
    %315 = vector.extract_strided_slice %272 {offsets = [0, 96], sizes = [16, 32], strides = [1, 1]} : vector<16x128xf32> to vector<16x32xf32>
    %316 = arith.negf %315 : vector<16x32xf32>
    %317 = math.exp %316 : vector<16x32xf32>
    %cst_92 = arith.constant 1.000000e+00 : f32
    %318 = vector.broadcast %cst_92 : f32 to vector<16x32xf32>
    %319 = arith.addf %318, %317 : vector<16x32xf32>
    %320 = arith.divf %318, %319 : vector<16x32xf32>
    %321 = arith.mulf %312, %300 : vector<16x32xf32>
    %322 = arith.mulf %306, %314 : vector<16x32xf32>
    %323 = arith.addf %321, %322 : vector<16x32xf32>
    %324 = math.tanh %323 : vector<16x32xf32>
    %325 = arith.mulf %320, %324 : vector<16x32xf32>
    %326 = tpu.concatenate %299, %325 in 1 : vector<16x32xf32>, vector<16x32xf32> -> vector<16x64xf32>
    %327 = arith.truncf %326 : vector<16x64xf32> to vector<16x64xbf16>
    %c0_93 = arith.constant 0 : index
    %c0_94 = arith.constant 0 : index
    %328 = vector.load %arg6[%c0_93, %c0_94] : memref<16x64xbf16, #tpu.memory_space<vmem>>, vector<16x64xbf16>
    tpu.vector_store %arg6[%c0_93, %c0_94], %327 {strides = array<i32>} : memref<16x64xbf16, #tpu.memory_space<vmem>>, vector<16x64xbf16>,
    %329 = tpu.concatenate %297, %323 in 1 : vector<16x32xf32>, vector<16x32xf32> -> vector<16x64xf32>
    %c0_95 = arith.constant 0 : index
    %c0_96 = arith.constant 0 : index
    %330 = vector.load %arg7[%c0_95, %c0_96] : memref<16x64xf32, #tpu.memory_space<vmem>>, vector<16x64xf32>
    tpu.vector_store %arg7[%c0_95, %c0_96], %329 {strides = array<i32>} : memref<16x64xf32, #tpu.memory_space<vmem>>, vector<16x64xf32>,
    %331 = arith.truncf %299 : vector<16x32xf32> to vector<16x32xbf16>
    %332 = arith.index_cast %257 : i32 to index
    %c0_97 = arith.constant 0 : index
    %333 = vector.load %arg4[%332, %c0_97] : memref<128x64xbf16, #tpu.memory_space<vmem>>, vector<16x32xbf16>
    tpu.vector_store %arg4[%332, %c0_97], %331 {strides = array<i32>} : memref<128x64xbf16, #tpu.memory_space<vmem>>, vector<16x32xbf16>,
    %334 = arith.truncf %325 : vector<16x32xf32> to vector<16x32xbf16>
    %335 = arith.index_cast %260 : i32 to index
    %c32_98 = arith.constant 32 : index
    %336 = vector.load %arg4[%335, %c32_98] : memref<128x64xbf16, #tpu.memory_space<vmem>>, vector<16x32xbf16>
    tpu.vector_store %arg4[%335, %c32_98], %334 {strides = array<i32>} : memref<128x64xbf16, #tpu.memory_space<vmem>>, vector<16x32xbf16>,
    %c4_i32 = arith.constant 4 : i32
    %c16_i32_99 = arith.constant 16 : i32
    %337 = arith.muli %c4_i32, %c16_i32_99 : i32
    %338 = tpu.assume_multiple %337, 16 : i32
    %c7_i32_100 = arith.constant 7 : i32
    %339 = arith.subi %c7_i32_100, %c4_i32 : i32
    %c16_i32_101 = arith.constant 16 : i32
    %340 = arith.muli %339, %c16_i32_101 : i32
    %341 = tpu.assume_multiple %340, 16 : i32
    %c0_102 = arith.constant 0 : index
    %c0_103 = arith.constant 0 : index
    %342 = vector.load %arg6[%c0_102, %c0_103] : memref<16x64xbf16, #tpu.memory_space<vmem>>, vector<16x64xbf16>
    %cst_104 = arith.constant dense<0.000000e+00> : vector<16x256xf32>
    %343 = tpu.matmul %342, %12, %cst_104 {dimension_numbers = #tpu.dot_dimension_numbers<[1], [0], [0], [1], [0, 0, 1, 1], [], []>} : vector<16x64xbf16>, vector<64x256xbf16>, vector<16x256xf32> -> vector<16x256xf32>
    %344 = arith.index_cast %338 : i32 to index
    %c0_105 = arith.constant 0 : index
    %345 = vector.load %arg5[%344, %c0_105] : memref<128x256xbf16, #tpu.memory_space<vmem>>, vector<16x128xbf16>
    %346 = arith.extf %345 : vector<16x128xbf16> to vector<16x128xf32>
    %347 = vector.extract_strided_slice %343 {offsets = [0, 0], sizes = [16, 128], strides = [1, 1]} : vector<16x256xf32> to vector<16x128xf32>
    %348 = arith.addf %346, %347 : vector<16x128xf32>
    %349 = arith.index_cast %341 : i32 to index
    %c128_106 = arith.constant 128 : index
    %350 = vector.load %arg5[%349, %c128_106] : memref<128x256xbf16, #tpu.memory_space<vmem>>, vector<16x128xbf16>
    %351 = arith.extf %350 : vector<16x128xbf16> to vector<16x128xf32>
    %352 = vector.extract_strided_slice %343 {offsets = [0, 128], sizes = [16, 128], strides = [1, 1]} : vector<16x256xf32> to vector<16x128xf32>
    %353 = arith.addf %351, %352 : vector<16x128xf32>
    %c0_107 = arith.constant 0 : index
    %c0_108 = arith.constant 0 : index
    %354 = vector.load %arg7[%c0_107, %c0_108] : memref<16x64xf32, #tpu.memory_space<vmem>>, vector<16x64xf32>
    %355 = vector.extract_strided_slice %354 {offsets = [0, 0], sizes = [16, 32], strides = [1, 1]} : vector<16x64xf32> to vector<16x32xf32>
    %356 = vector.extract_strided_slice %348 {offsets = [0, 0], sizes = [16, 32], strides = [1, 1]} : vector<16x128xf32> to vector<16x32xf32>
    %357 = arith.negf %356 : vector<16x32xf32>
    %358 = math.exp %357 : vector<16x32xf32>
    %cst_109 = arith.constant 1.000000e+00 : f32
    %359 = vector.broadcast %cst_109 : f32 to vector<16x32xf32>
    %360 = arith.addf %359, %358 : vector<16x32xf32>
    %361 = arith.divf %359, %360 : vector<16x32xf32>
    %362 = vector.extract_strided_slice %348 {offsets = [0, 32], sizes = [16, 32], strides = [1, 1]} : vector<16x128xf32> to vector<16x32xf32>
    %363 = arith.negf %362 : vector<16x32xf32>
    %364 = math.exp %363 : vector<16x32xf32>
    %cst_110 = arith.constant 1.000000e+00 : f32
    %365 = vector.broadcast %cst_110 : f32 to vector<16x32xf32>
    %366 = arith.addf %365, %364 : vector<16x32xf32>
    %367 = arith.divf %365, %366 : vector<16x32xf32>
    %368 = vector.extract_strided_slice %348 {offsets = [0, 64], sizes = [16, 32], strides = [1, 1]} : vector<16x128xf32> to vector<16x32xf32>
    %369 = math.tanh %368 : vector<16x32xf32>
    %370 = vector.extract_strided_slice %348 {offsets = [0, 96], sizes = [16, 32], strides = [1, 1]} : vector<16x128xf32> to vector<16x32xf32>
    %371 = arith.negf %370 : vector<16x32xf32>
    %372 = math.exp %371 : vector<16x32xf32>
    %cst_111 = arith.constant 1.000000e+00 : f32
    %373 = vector.broadcast %cst_111 : f32 to vector<16x32xf32>
    %374 = arith.addf %373, %372 : vector<16x32xf32>
    %375 = arith.divf %373, %374 : vector<16x32xf32>
    %376 = arith.mulf %367, %355 : vector<16x32xf32>
    %377 = arith.mulf %361, %369 : vector<16x32xf32>
    %378 = arith.addf %376, %377 : vector<16x32xf32>
    %379 = math.tanh %378 : vector<16x32xf32>
    %380 = arith.mulf %375, %379 : vector<16x32xf32>
    %381 = vector.extract_strided_slice %354 {offsets = [0, 32], sizes = [16, 32], strides = [1, 1]} : vector<16x64xf32> to vector<16x32xf32>
    %382 = vector.extract_strided_slice %353 {offsets = [0, 0], sizes = [16, 32], strides = [1, 1]} : vector<16x128xf32> to vector<16x32xf32>
    %383 = arith.negf %382 : vector<16x32xf32>
    %384 = math.exp %383 : vector<16x32xf32>
    %cst_112 = arith.constant 1.000000e+00 : f32
    %385 = vector.broadcast %cst_112 : f32 to vector<16x32xf32>
    %386 = arith.addf %385, %384 : vector<16x32xf32>
    %387 = arith.divf %385, %386 : vector<16x32xf32>
    %388 = vector.extract_strided_slice %353 {offsets = [0, 32], sizes = [16, 32], strides = [1, 1]} : vector<16x128xf32> to vector<16x32xf32>
    %389 = arith.negf %388 : vector<16x32xf32>
    %390 = math.exp %389 : vector<16x32xf32>
    %cst_113 = arith.constant 1.000000e+00 : f32
    %391 = vector.broadcast %cst_113 : f32 to vector<16x32xf32>
    %392 = arith.addf %391, %390 : vector<16x32xf32>
    %393 = arith.divf %391, %392 : vector<16x32xf32>
    %394 = vector.extract_strided_slice %353 {offsets = [0, 64], sizes = [16, 32], strides = [1, 1]} : vector<16x128xf32> to vector<16x32xf32>
    %395 = math.tanh %394 : vector<16x32xf32>
    %396 = vector.extract_strided_slice %353 {offsets = [0, 96], sizes = [16, 32], strides = [1, 1]} : vector<16x128xf32> to vector<16x32xf32>
    %397 = arith.negf %396 : vector<16x32xf32>
    %398 = math.exp %397 : vector<16x32xf32>
    %cst_114 = arith.constant 1.000000e+00 : f32
    %399 = vector.broadcast %cst_114 : f32 to vector<16x32xf32>
    %400 = arith.addf %399, %398 : vector<16x32xf32>
    %401 = arith.divf %399, %400 : vector<16x32xf32>
    %402 = arith.mulf %393, %381 : vector<16x32xf32>
    %403 = arith.mulf %387, %395 : vector<16x32xf32>
    %404 = arith.addf %402, %403 : vector<16x32xf32>
    %405 = math.tanh %404 : vector<16x32xf32>
    %406 = arith.mulf %401, %405 : vector<16x32xf32>
    %407 = tpu.concatenate %380, %406 in 1 : vector<16x32xf32>, vector<16x32xf32> -> vector<16x64xf32>
    %408 = arith.truncf %407 : vector<16x64xf32> to vector<16x64xbf16>
    %c0_115 = arith.constant 0 : index
    %c0_116 = arith.constant 0 : index
    %409 = vector.load %arg6[%c0_115, %c0_116] : memref<16x64xbf16, #tpu.memory_space<vmem>>, vector<16x64xbf16>
    tpu.vector_store %arg6[%c0_115, %c0_116], %408 {strides = array<i32>} : memref<16x64xbf16, #tpu.memory_space<vmem>>, vector<16x64xbf16>,
    %410 = tpu.concatenate %378, %404 in 1 : vector<16x32xf32>, vector<16x32xf32> -> vector<16x64xf32>
    %c0_117 = arith.constant 0 : index
    %c0_118 = arith.constant 0 : index
    %411 = vector.load %arg7[%c0_117, %c0_118] : memref<16x64xf32, #tpu.memory_space<vmem>>, vector<16x64xf32>
    tpu.vector_store %arg7[%c0_117, %c0_118], %410 {strides = array<i32>} : memref<16x64xf32, #tpu.memory_space<vmem>>, vector<16x64xf32>,
    %412 = arith.truncf %380 : vector<16x32xf32> to vector<16x32xbf16>
    %413 = arith.index_cast %338 : i32 to index
    %c0_119 = arith.constant 0 : index
    %414 = vector.load %arg4[%413, %c0_119] : memref<128x64xbf16, #tpu.memory_space<vmem>>, vector<16x32xbf16>
    tpu.vector_store %arg4[%413, %c0_119], %412 {strides = array<i32>} : memref<128x64xbf16, #tpu.memory_space<vmem>>, vector<16x32xbf16>,
    %415 = arith.truncf %406 : vector<16x32xf32> to vector<16x32xbf16>
    %416 = arith.index_cast %341 : i32 to index
    %c32_120 = arith.constant 32 : index
    %417 = vector.load %arg4[%416, %c32_120] : memref<128x64xbf16, #tpu.memory_space<vmem>>, vector<16x32xbf16>
    tpu.vector_store %arg4[%416, %c32_120], %415 {strides = array<i32>} : memref<128x64xbf16, #tpu.memory_space<vmem>>, vector<16x32xbf16>,
    %c5_i32 = arith.constant 5 : i32
    %c16_i32_121 = arith.constant 16 : i32
    %418 = arith.muli %c5_i32, %c16_i32_121 : i32
    %419 = tpu.assume_multiple %418, 16 : i32
    %c7_i32_122 = arith.constant 7 : i32
    %420 = arith.subi %c7_i32_122, %c5_i32 : i32
    %c16_i32_123 = arith.constant 16 : i32
    %421 = arith.muli %420, %c16_i32_123 : i32
    %422 = tpu.assume_multiple %421, 16 : i32
    %c0_124 = arith.constant 0 : index
    %c0_125 = arith.constant 0 : index
    %423 = vector.load %arg6[%c0_124, %c0_125] : memref<16x64xbf16, #tpu.memory_space<vmem>>, vector<16x64xbf16>
    %cst_126 = arith.constant dense<0.000000e+00> : vector<16x256xf32>
    %424 = tpu.matmul %423, %12, %cst_126 {dimension_numbers = #tpu.dot_dimension_numbers<[1], [0], [0], [1], [0, 0, 1, 1], [], []>} : vector<16x64xbf16>, vector<64x256xbf16>, vector<16x256xf32> -> vector<16x256xf32>
    %425 = arith.index_cast %419 : i32 to index
    %c0_127 = arith.constant 0 : index
    %426 = vector.load %arg5[%425, %c0_127] : memref<128x256xbf16, #tpu.memory_space<vmem>>, vector<16x128xbf16>
    %427 = arith.extf %426 : vector<16x128xbf16> to vector<16x128xf32>
    %428 = vector.extract_strided_slice %424 {offsets = [0, 0], sizes = [16, 128], strides = [1, 1]} : vector<16x256xf32> to vector<16x128xf32>
    %429 = arith.addf %427, %428 : vector<16x128xf32>
    %430 = arith.index_cast %422 : i32 to index
    %c128_128 = arith.constant 128 : index
    %431 = vector.load %arg5[%430, %c128_128] : memref<128x256xbf16, #tpu.memory_space<vmem>>, vector<16x128xbf16>
    %432 = arith.extf %431 : vector<16x128xbf16> to vector<16x128xf32>
    %433 = vector.extract_strided_slice %424 {offsets = [0, 128], sizes = [16, 128], strides = [1, 1]} : vector<16x256xf32> to vector<16x128xf32>
    %434 = arith.addf %432, %433 : vector<16x128xf32>
    %c0_129 = arith.constant 0 : index
    %c0_130 = arith.constant 0 : index
    %435 = vector.load %arg7[%c0_129, %c0_130] : memref<16x64xf32, #tpu.memory_space<vmem>>, vector<16x64xf32>
    %436 = vector.extract_strided_slice %435 {offsets = [0, 0], sizes = [16, 32], strides = [1, 1]} : vector<16x64xf32> to vector<16x32xf32>
    %437 = vector.extract_strided_slice %429 {offsets = [0, 0], sizes = [16, 32], strides = [1, 1]} : vector<16x128xf32> to vector<16x32xf32>
    %438 = arith.negf %437 : vector<16x32xf32>
    %439 = math.exp %438 : vector<16x32xf32>
    %cst_131 = arith.constant 1.000000e+00 : f32
    %440 = vector.broadcast %cst_131 : f32 to vector<16x32xf32>
    %441 = arith.addf %440, %439 : vector<16x32xf32>
    %442 = arith.divf %440, %441 : vector<16x32xf32>
    %443 = vector.extract_strided_slice %429 {offsets = [0, 32], sizes = [16, 32], strides = [1, 1]} : vector<16x128xf32> to vector<16x32xf32>
    %444 = arith.negf %443 : vector<16x32xf32>
    %445 = math.exp %444 : vector<16x32xf32>
    %cst_132 = arith.constant 1.000000e+00 : f32
    %446 = vector.broadcast %cst_132 : f32 to vector<16x32xf32>
    %447 = arith.addf %446, %445 : vector<16x32xf32>
    %448 = arith.divf %446, %447 : vector<16x32xf32>
    %449 = vector.extract_strided_slice %429 {offsets = [0, 64], sizes = [16, 32], strides = [1, 1]} : vector<16x128xf32> to vector<16x32xf32>
    %450 = math.tanh %449 : vector<16x32xf32>
    %451 = vector.extract_strided_slice %429 {offsets = [0, 96], sizes = [16, 32], strides = [1, 1]} : vector<16x128xf32> to vector<16x32xf32>
    %452 = arith.negf %451 : vector<16x32xf32>
    %453 = math.exp %452 : vector<16x32xf32>
    %cst_133 = arith.constant 1.000000e+00 : f32
    %454 = vector.broadcast %cst_133 : f32 to vector<16x32xf32>
    %455 = arith.addf %454, %453 : vector<16x32xf32>
    %456 = arith.divf %454, %455 : vector<16x32xf32>
    %457 = arith.mulf %448, %436 : vector<16x32xf32>
    %458 = arith.mulf %442, %450 : vector<16x32xf32>
    %459 = arith.addf %457, %458 : vector<16x32xf32>
    %460 = math.tanh %459 : vector<16x32xf32>
    %461 = arith.mulf %456, %460 : vector<16x32xf32>
    %462 = vector.extract_strided_slice %435 {offsets = [0, 32], sizes = [16, 32], strides = [1, 1]} : vector<16x64xf32> to vector<16x32xf32>
    %463 = vector.extract_strided_slice %434 {offsets = [0, 0], sizes = [16, 32], strides = [1, 1]} : vector<16x128xf32> to vector<16x32xf32>
    %464 = arith.negf %463 : vector<16x32xf32>
    %465 = math.exp %464 : vector<16x32xf32>
    %cst_134 = arith.constant 1.000000e+00 : f32
    %466 = vector.broadcast %cst_134 : f32 to vector<16x32xf32>
    %467 = arith.addf %466, %465 : vector<16x32xf32>
    %468 = arith.divf %466, %467 : vector<16x32xf32>
    %469 = vector.extract_strided_slice %434 {offsets = [0, 32], sizes = [16, 32], strides = [1, 1]} : vector<16x128xf32> to vector<16x32xf32>
    %470 = arith.negf %469 : vector<16x32xf32>
    %471 = math.exp %470 : vector<16x32xf32>
    %cst_135 = arith.constant 1.000000e+00 : f32
    %472 = vector.broadcast %cst_135 : f32 to vector<16x32xf32>
    %473 = arith.addf %472, %471 : vector<16x32xf32>
    %474 = arith.divf %472, %473 : vector<16x32xf32>
    %475 = vector.extract_strided_slice %434 {offsets = [0, 64], sizes = [16, 32], strides = [1, 1]} : vector<16x128xf32> to vector<16x32xf32>
    %476 = math.tanh %475 : vector<16x32xf32>
    %477 = vector.extract_strided_slice %434 {offsets = [0, 96], sizes = [16, 32], strides = [1, 1]} : vector<16x128xf32> to vector<16x32xf32>
    %478 = arith.negf %477 : vector<16x32xf32>
    %479 = math.exp %478 : vector<16x32xf32>
    %cst_136 = arith.constant 1.000000e+00 : f32
    %480 = vector.broadcast %cst_136 : f32 to vector<16x32xf32>
    %481 = arith.addf %480, %479 : vector<16x32xf32>
    %482 = arith.divf %480, %481 : vector<16x32xf32>
    %483 = arith.mulf %474, %462 : vector<16x32xf32>
    %484 = arith.mulf %468, %476 : vector<16x32xf32>
    %485 = arith.addf %483, %484 : vector<16x32xf32>
    %486 = math.tanh %485 : vector<16x32xf32>
    %487 = arith.mulf %482, %486 : vector<16x32xf32>
    %488 = tpu.concatenate %461, %487 in 1 : vector<16x32xf32>, vector<16x32xf32> -> vector<16x64xf32>
    %489 = arith.truncf %488 : vector<16x64xf32> to vector<16x64xbf16>
    %c0_137 = arith.constant 0 : index
    %c0_138 = arith.constant 0 : index
    %490 = vector.load %arg6[%c0_137, %c0_138] : memref<16x64xbf16, #tpu.memory_space<vmem>>, vector<16x64xbf16>
    tpu.vector_store %arg6[%c0_137, %c0_138], %489 {strides = array<i32>} : memref<16x64xbf16, #tpu.memory_space<vmem>>, vector<16x64xbf16>,
    %491 = tpu.concatenate %459, %485 in 1 : vector<16x32xf32>, vector<16x32xf32> -> vector<16x64xf32>
    %c0_139 = arith.constant 0 : index
    %c0_140 = arith.constant 0 : index
    %492 = vector.load %arg7[%c0_139, %c0_140] : memref<16x64xf32, #tpu.memory_space<vmem>>, vector<16x64xf32>
    tpu.vector_store %arg7[%c0_139, %c0_140], %491 {strides = array<i32>} : memref<16x64xf32, #tpu.memory_space<vmem>>, vector<16x64xf32>,
    %493 = arith.truncf %461 : vector<16x32xf32> to vector<16x32xbf16>
    %494 = arith.index_cast %419 : i32 to index
    %c0_141 = arith.constant 0 : index
    %495 = vector.load %arg4[%494, %c0_141] : memref<128x64xbf16, #tpu.memory_space<vmem>>, vector<16x32xbf16>
    tpu.vector_store %arg4[%494, %c0_141], %493 {strides = array<i32>} : memref<128x64xbf16, #tpu.memory_space<vmem>>, vector<16x32xbf16>,
    %496 = arith.truncf %487 : vector<16x32xf32> to vector<16x32xbf16>
    %497 = arith.index_cast %422 : i32 to index
    %c32_142 = arith.constant 32 : index
    %498 = vector.load %arg4[%497, %c32_142] : memref<128x64xbf16, #tpu.memory_space<vmem>>, vector<16x32xbf16>
    tpu.vector_store %arg4[%497, %c32_142], %496 {strides = array<i32>} : memref<128x64xbf16, #tpu.memory_space<vmem>>, vector<16x32xbf16>,
    %c6_i32 = arith.constant 6 : i32
    %c16_i32_143 = arith.constant 16 : i32
    %499 = arith.muli %c6_i32, %c16_i32_143 : i32
    %500 = tpu.assume_multiple %499, 16 : i32
    %c7_i32_144 = arith.constant 7 : i32
    %501 = arith.subi %c7_i32_144, %c6_i32 : i32
    %c16_i32_145 = arith.constant 16 : i32
    %502 = arith.muli %501, %c16_i32_145 : i32
    %503 = tpu.assume_multiple %502, 16 : i32
    %c0_146 = arith.constant 0 : index
    %c0_147 = arith.constant 0 : index
    %504 = vector.load %arg6[%c0_146, %c0_147] : memref<16x64xbf16, #tpu.memory_space<vmem>>, vector<16x64xbf16>
    %cst_148 = arith.constant dense<0.000000e+00> : vector<16x256xf32>
    %505 = tpu.matmul %504, %12, %cst_148 {dimension_numbers = #tpu.dot_dimension_numbers<[1], [0], [0], [1], [0, 0, 1, 1], [], []>} : vector<16x64xbf16>, vector<64x256xbf16>, vector<16x256xf32> -> vector<16x256xf32>
    %506 = arith.index_cast %500 : i32 to index
    %c0_149 = arith.constant 0 : index
    %507 = vector.load %arg5[%506, %c0_149] : memref<128x256xbf16, #tpu.memory_space<vmem>>, vector<16x128xbf16>
    %508 = arith.extf %507 : vector<16x128xbf16> to vector<16x128xf32>
    %509 = vector.extract_strided_slice %505 {offsets = [0, 0], sizes = [16, 128], strides = [1, 1]} : vector<16x256xf32> to vector<16x128xf32>
    %510 = arith.addf %508, %509 : vector<16x128xf32>
    %511 = arith.index_cast %503 : i32 to index
    %c128_150 = arith.constant 128 : index
    %512 = vector.load %arg5[%511, %c128_150] : memref<128x256xbf16, #tpu.memory_space<vmem>>, vector<16x128xbf16>
    %513 = arith.extf %512 : vector<16x128xbf16> to vector<16x128xf32>
    %514 = vector.extract_strided_slice %505 {offsets = [0, 128], sizes = [16, 128], strides = [1, 1]} : vector<16x256xf32> to vector<16x128xf32>
    %515 = arith.addf %513, %514 : vector<16x128xf32>
    %c0_151 = arith.constant 0 : index
    %c0_152 = arith.constant 0 : index
    %516 = vector.load %arg7[%c0_151, %c0_152] : memref<16x64xf32, #tpu.memory_space<vmem>>, vector<16x64xf32>
    %517 = vector.extract_strided_slice %516 {offsets = [0, 0], sizes = [16, 32], strides = [1, 1]} : vector<16x64xf32> to vector<16x32xf32>
    %518 = vector.extract_strided_slice %510 {offsets = [0, 0], sizes = [16, 32], strides = [1, 1]} : vector<16x128xf32> to vector<16x32xf32>
    %519 = arith.negf %518 : vector<16x32xf32>
    %520 = math.exp %519 : vector<16x32xf32>
    %cst_153 = arith.constant 1.000000e+00 : f32
    %521 = vector.broadcast %cst_153 : f32 to vector<16x32xf32>
    %522 = arith.addf %521, %520 : vector<16x32xf32>
    %523 = arith.divf %521, %522 : vector<16x32xf32>
    %524 = vector.extract_strided_slice %510 {offsets = [0, 32], sizes = [16, 32], strides = [1, 1]} : vector<16x128xf32> to vector<16x32xf32>
    %525 = arith.negf %524 : vector<16x32xf32>
    %526 = math.exp %525 : vector<16x32xf32>
    %cst_154 = arith.constant 1.000000e+00 : f32
    %527 = vector.broadcast %cst_154 : f32 to vector<16x32xf32>
    %528 = arith.addf %527, %526 : vector<16x32xf32>
    %529 = arith.divf %527, %528 : vector<16x32xf32>
    %530 = vector.extract_strided_slice %510 {offsets = [0, 64], sizes = [16, 32], strides = [1, 1]} : vector<16x128xf32> to vector<16x32xf32>
    %531 = math.tanh %530 : vector<16x32xf32>
    %532 = vector.extract_strided_slice %510 {offsets = [0, 96], sizes = [16, 32], strides = [1, 1]} : vector<16x128xf32> to vector<16x32xf32>
    %533 = arith.negf %532 : vector<16x32xf32>
    %534 = math.exp %533 : vector<16x32xf32>
    %cst_155 = arith.constant 1.000000e+00 : f32
    %535 = vector.broadcast %cst_155 : f32 to vector<16x32xf32>
    %536 = arith.addf %535, %534 : vector<16x32xf32>
    %537 = arith.divf %535, %536 : vector<16x32xf32>
    %538 = arith.mulf %529, %517 : vector<16x32xf32>
    %539 = arith.mulf %523, %531 : vector<16x32xf32>
    %540 = arith.addf %538, %539 : vector<16x32xf32>
    %541 = math.tanh %540 : vector<16x32xf32>
    %542 = arith.mulf %537, %541 : vector<16x32xf32>
    %543 = vector.extract_strided_slice %516 {offsets = [0, 32], sizes = [16, 32], strides = [1, 1]} : vector<16x64xf32> to vector<16x32xf32>
    %544 = vector.extract_strided_slice %515 {offsets = [0, 0], sizes = [16, 32], strides = [1, 1]} : vector<16x128xf32> to vector<16x32xf32>
    %545 = arith.negf %544 : vector<16x32xf32>
    %546 = math.exp %545 : vector<16x32xf32>
    %cst_156 = arith.constant 1.000000e+00 : f32
    %547 = vector.broadcast %cst_156 : f32 to vector<16x32xf32>
    %548 = arith.addf %547, %546 : vector<16x32xf32>
    %549 = arith.divf %547, %548 : vector<16x32xf32>
    %550 = vector.extract_strided_slice %515 {offsets = [0, 32], sizes = [16, 32], strides = [1, 1]} : vector<16x128xf32> to vector<16x32xf32>
    %551 = arith.negf %550 : vector<16x32xf32>
    %552 = math.exp %551 : vector<16x32xf32>
    %cst_157 = arith.constant 1.000000e+00 : f32
    %553 = vector.broadcast %cst_157 : f32 to vector<16x32xf32>
    %554 = arith.addf %553, %552 : vector<16x32xf32>
    %555 = arith.divf %553, %554 : vector<16x32xf32>
    %556 = vector.extract_strided_slice %515 {offsets = [0, 64], sizes = [16, 32], strides = [1, 1]} : vector<16x128xf32> to vector<16x32xf32>
    %557 = math.tanh %556 : vector<16x32xf32>
    %558 = vector.extract_strided_slice %515 {offsets = [0, 96], sizes = [16, 32], strides = [1, 1]} : vector<16x128xf32> to vector<16x32xf32>
    %559 = arith.negf %558 : vector<16x32xf32>
    %560 = math.exp %559 : vector<16x32xf32>
    %cst_158 = arith.constant 1.000000e+00 : f32
    %561 = vector.broadcast %cst_158 : f32 to vector<16x32xf32>
    %562 = arith.addf %561, %560 : vector<16x32xf32>
    %563 = arith.divf %561, %562 : vector<16x32xf32>
    %564 = arith.mulf %555, %543 : vector<16x32xf32>
    %565 = arith.mulf %549, %557 : vector<16x32xf32>
    %566 = arith.addf %564, %565 : vector<16x32xf32>
    %567 = math.tanh %566 : vector<16x32xf32>
    %568 = arith.mulf %563, %567 : vector<16x32xf32>
    %569 = tpu.concatenate %542, %568 in 1 : vector<16x32xf32>, vector<16x32xf32> -> vector<16x64xf32>
    %570 = arith.truncf %569 : vector<16x64xf32> to vector<16x64xbf16>
    %c0_159 = arith.constant 0 : index
    %c0_160 = arith.constant 0 : index
    %571 = vector.load %arg6[%c0_159, %c0_160] : memref<16x64xbf16, #tpu.memory_space<vmem>>, vector<16x64xbf16>
    tpu.vector_store %arg6[%c0_159, %c0_160], %570 {strides = array<i32>} : memref<16x64xbf16, #tpu.memory_space<vmem>>, vector<16x64xbf16>,
    %572 = tpu.concatenate %540, %566 in 1 : vector<16x32xf32>, vector<16x32xf32> -> vector<16x64xf32>
    %c0_161 = arith.constant 0 : index
    %c0_162 = arith.constant 0 : index
    %573 = vector.load %arg7[%c0_161, %c0_162] : memref<16x64xf32, #tpu.memory_space<vmem>>, vector<16x64xf32>
    tpu.vector_store %arg7[%c0_161, %c0_162], %572 {strides = array<i32>} : memref<16x64xf32, #tpu.memory_space<vmem>>, vector<16x64xf32>,
    %574 = arith.truncf %542 : vector<16x32xf32> to vector<16x32xbf16>
    %575 = arith.index_cast %500 : i32 to index
    %c0_163 = arith.constant 0 : index
    %576 = vector.load %arg4[%575, %c0_163] : memref<128x64xbf16, #tpu.memory_space<vmem>>, vector<16x32xbf16>
    tpu.vector_store %arg4[%575, %c0_163], %574 {strides = array<i32>} : memref<128x64xbf16, #tpu.memory_space<vmem>>, vector<16x32xbf16>,
    %577 = arith.truncf %568 : vector<16x32xf32> to vector<16x32xbf16>
    %578 = arith.index_cast %503 : i32 to index
    %c32_164 = arith.constant 32 : index
    %579 = vector.load %arg4[%578, %c32_164] : memref<128x64xbf16, #tpu.memory_space<vmem>>, vector<16x32xbf16>
    tpu.vector_store %arg4[%578, %c32_164], %577 {strides = array<i32>} : memref<128x64xbf16, #tpu.memory_space<vmem>>, vector<16x32xbf16>,
    %c7_i32_165 = arith.constant 7 : i32
    %c16_i32_166 = arith.constant 16 : i32
    %580 = arith.muli %c7_i32_165, %c16_i32_166 : i32
    %581 = tpu.assume_multiple %580, 16 : i32
    %c7_i32_167 = arith.constant 7 : i32
    %582 = arith.subi %c7_i32_167, %c7_i32_165 : i32
    %c16_i32_168 = arith.constant 16 : i32
    %583 = arith.muli %582, %c16_i32_168 : i32
    %584 = tpu.assume_multiple %583, 16 : i32
    %c0_169 = arith.constant 0 : index
    %c0_170 = arith.constant 0 : index
    %585 = vector.load %arg6[%c0_169, %c0_170] : memref<16x64xbf16, #tpu.memory_space<vmem>>, vector<16x64xbf16>
    %cst_171 = arith.constant dense<0.000000e+00> : vector<16x256xf32>
    %586 = tpu.matmul %585, %12, %cst_171 {dimension_numbers = #tpu.dot_dimension_numbers<[1], [0], [0], [1], [0, 0, 1, 1], [], []>} : vector<16x64xbf16>, vector<64x256xbf16>, vector<16x256xf32> -> vector<16x256xf32>
    %587 = arith.index_cast %581 : i32 to index
    %c0_172 = arith.constant 0 : index
    %588 = vector.load %arg5[%587, %c0_172] : memref<128x256xbf16, #tpu.memory_space<vmem>>, vector<16x128xbf16>
    %589 = arith.extf %588 : vector<16x128xbf16> to vector<16x128xf32>
    %590 = vector.extract_strided_slice %586 {offsets = [0, 0], sizes = [16, 128], strides = [1, 1]} : vector<16x256xf32> to vector<16x128xf32>
    %591 = arith.addf %589, %590 : vector<16x128xf32>
    %592 = arith.index_cast %584 : i32 to index
    %c128_173 = arith.constant 128 : index
    %593 = vector.load %arg5[%592, %c128_173] : memref<128x256xbf16, #tpu.memory_space<vmem>>, vector<16x128xbf16>
    %594 = arith.extf %593 : vector<16x128xbf16> to vector<16x128xf32>
    %595 = vector.extract_strided_slice %586 {offsets = [0, 128], sizes = [16, 128], strides = [1, 1]} : vector<16x256xf32> to vector<16x128xf32>
    %596 = arith.addf %594, %595 : vector<16x128xf32>
    %c0_174 = arith.constant 0 : index
    %c0_175 = arith.constant 0 : index
    %597 = vector.load %arg7[%c0_174, %c0_175] : memref<16x64xf32, #tpu.memory_space<vmem>>, vector<16x64xf32>
    %598 = vector.extract_strided_slice %597 {offsets = [0, 0], sizes = [16, 32], strides = [1, 1]} : vector<16x64xf32> to vector<16x32xf32>
    %599 = vector.extract_strided_slice %591 {offsets = [0, 0], sizes = [16, 32], strides = [1, 1]} : vector<16x128xf32> to vector<16x32xf32>
    %600 = arith.negf %599 : vector<16x32xf32>
    %601 = math.exp %600 : vector<16x32xf32>
    %cst_176 = arith.constant 1.000000e+00 : f32
    %602 = vector.broadcast %cst_176 : f32 to vector<16x32xf32>
    %603 = arith.addf %602, %601 : vector<16x32xf32>
    %604 = arith.divf %602, %603 : vector<16x32xf32>
    %605 = vector.extract_strided_slice %591 {offsets = [0, 32], sizes = [16, 32], strides = [1, 1]} : vector<16x128xf32> to vector<16x32xf32>
    %606 = arith.negf %605 : vector<16x32xf32>
    %607 = math.exp %606 : vector<16x32xf32>
    %cst_177 = arith.constant 1.000000e+00 : f32
    %608 = vector.broadcast %cst_177 : f32 to vector<16x32xf32>
    %609 = arith.addf %608, %607 : vector<16x32xf32>
    %610 = arith.divf %608, %609 : vector<16x32xf32>
    %611 = vector.extract_strided_slice %591 {offsets = [0, 64], sizes = [16, 32], strides = [1, 1]} : vector<16x128xf32> to vector<16x32xf32>
    %612 = math.tanh %611 : vector<16x32xf32>
    %613 = vector.extract_strided_slice %591 {offsets = [0, 96], sizes = [16, 32], strides = [1, 1]} : vector<16x128xf32> to vector<16x32xf32>
    %614 = arith.negf %613 : vector<16x32xf32>
    %615 = math.exp %614 : vector<16x32xf32>
    %cst_178 = arith.constant 1.000000e+00 : f32
    %616 = vector.broadcast %cst_178 : f32 to vector<16x32xf32>
    %617 = arith.addf %616, %615 : vector<16x32xf32>
    %618 = arith.divf %616, %617 : vector<16x32xf32>
    %619 = arith.mulf %610, %598 : vector<16x32xf32>
    %620 = arith.mulf %604, %612 : vector<16x32xf32>
    %621 = arith.addf %619, %620 : vector<16x32xf32>
    %622 = math.tanh %621 : vector<16x32xf32>
    %623 = arith.mulf %618, %622 : vector<16x32xf32>
    %624 = vector.extract_strided_slice %597 {offsets = [0, 32], sizes = [16, 32], strides = [1, 1]} : vector<16x64xf32> to vector<16x32xf32>
    %625 = vector.extract_strided_slice %596 {offsets = [0, 0], sizes = [16, 32], strides = [1, 1]} : vector<16x128xf32> to vector<16x32xf32>
    %626 = arith.negf %625 : vector<16x32xf32>
    %627 = math.exp %626 : vector<16x32xf32>
    %cst_179 = arith.constant 1.000000e+00 : f32
    %628 = vector.broadcast %cst_179 : f32 to vector<16x32xf32>
    %629 = arith.addf %628, %627 : vector<16x32xf32>
    %630 = arith.divf %628, %629 : vector<16x32xf32>
    %631 = vector.extract_strided_slice %596 {offsets = [0, 32], sizes = [16, 32], strides = [1, 1]} : vector<16x128xf32> to vector<16x32xf32>
    %632 = arith.negf %631 : vector<16x32xf32>
    %633 = math.exp %632 : vector<16x32xf32>
    %cst_180 = arith.constant 1.000000e+00 : f32
    %634 = vector.broadcast %cst_180 : f32 to vector<16x32xf32>
    %635 = arith.addf %634, %633 : vector<16x32xf32>
    %636 = arith.divf %634, %635 : vector<16x32xf32>
    %637 = vector.extract_strided_slice %596 {offsets = [0, 64], sizes = [16, 32], strides = [1, 1]} : vector<16x128xf32> to vector<16x32xf32>
    %638 = math.tanh %637 : vector<16x32xf32>
    %639 = vector.extract_strided_slice %596 {offsets = [0, 96], sizes = [16, 32], strides = [1, 1]} : vector<16x128xf32> to vector<16x32xf32>
    %640 = arith.negf %639 : vector<16x32xf32>
    %641 = math.exp %640 : vector<16x32xf32>
    %cst_181 = arith.constant 1.000000e+00 : f32
    %642 = vector.broadcast %cst_181 : f32 to vector<16x32xf32>
    %643 = arith.addf %642, %641 : vector<16x32xf32>
    %644 = arith.divf %642, %643 : vector<16x32xf32>
    %645 = arith.mulf %636, %624 : vector<16x32xf32>
    %646 = arith.mulf %630, %638 : vector<16x32xf32>
    %647 = arith.addf %645, %646 : vector<16x32xf32>
    %648 = math.tanh %647 : vector<16x32xf32>
    %649 = arith.mulf %644, %648 : vector<16x32xf32>
    %650 = tpu.concatenate %623, %649 in 1 : vector<16x32xf32>, vector<16x32xf32> -> vector<16x64xf32>
    %651 = arith.truncf %650 : vector<16x64xf32> to vector<16x64xbf16>
    %c0_182 = arith.constant 0 : index
    %c0_183 = arith.constant 0 : index
    %652 = vector.load %arg6[%c0_182, %c0_183] : memref<16x64xbf16, #tpu.memory_space<vmem>>, vector<16x64xbf16>
    tpu.vector_store %arg6[%c0_182, %c0_183], %651 {strides = array<i32>} : memref<16x64xbf16, #tpu.memory_space<vmem>>, vector<16x64xbf16>,
    %653 = tpu.concatenate %621, %647 in 1 : vector<16x32xf32>, vector<16x32xf32> -> vector<16x64xf32>
    %c0_184 = arith.constant 0 : index
    %c0_185 = arith.constant 0 : index
    %654 = vector.load %arg7[%c0_184, %c0_185] : memref<16x64xf32, #tpu.memory_space<vmem>>, vector<16x64xf32>
    tpu.vector_store %arg7[%c0_184, %c0_185], %653 {strides = array<i32>} : memref<16x64xf32, #tpu.memory_space<vmem>>, vector<16x64xf32>,
    %655 = arith.truncf %623 : vector<16x32xf32> to vector<16x32xbf16>
    %656 = arith.index_cast %581 : i32 to index
    %c0_186 = arith.constant 0 : index
    %657 = vector.load %arg4[%656, %c0_186] : memref<128x64xbf16, #tpu.memory_space<vmem>>, vector<16x32xbf16>
    tpu.vector_store %arg4[%656, %c0_186], %655 {strides = array<i32>} : memref<128x64xbf16, #tpu.memory_space<vmem>>, vector<16x32xbf16>,
    %658 = arith.truncf %649 : vector<16x32xf32> to vector<16x32xbf16>
    %659 = arith.index_cast %584 : i32 to index
    %c32_187 = arith.constant 32 : index
    %660 = vector.load %arg4[%659, %c32_187] : memref<128x64xbf16, #tpu.memory_space<vmem>>, vector<16x32xbf16>
    tpu.vector_store %arg4[%659, %c32_187], %658 {strides = array<i32>} : memref<128x64xbf16, #tpu.memory_space<vmem>>, vector<16x32xbf16>,
    %c8_i32 = arith.constant 8 : i32
    return
  }
}

</mosaic_0001>

<llo_original>
// kernel: slot_tags_forward.6
$region0: #{slot_tags_forward.6}
  #allocation0 [shape = 'u32[]', space=smem, size = 0x4, offset = 0x4, fixed_abs, tag = 'smem constant byte address 0x4 - core index']
  #allocation1 [shape = 'u32[144,128]{1,0:T(1,128)}', space=vmem, size = 0x12000, scoped, tag = 'internal scratch']
  %s0 = inlined_call_operand.vmem [shape: bf16[128,32], index: 0, kind: input, shape index: {}]
  %s1 = inlined_call_operand.vmem [shape: bf16[32,16], index: 1, kind: input, shape index: {}]
  %s2 = inlined_call_operand.vmem [shape: f32[1,16], index: 2, kind: input, shape index: {}]
  %s3 = inlined_call_operand.vmem [shape: bf16[128,16], index: 3, kind: output, shape index: {}]
  %s4 = sld [smem:[#allocation0]]
  $region22: #{slot_tags_forward.6} parent=0
    _
  %s6 = ssub.s32 1, %s4
  %s7 = scalar_select 0, %s6, %s4
  // Predicated region
  $region2: #{slot_tags_forward.6} parent=0 // pred_check
    _
  $region3: #{slot_tags_forward.6} parent=0 // pred_check_branch
    %9 = sbr.rel (0) target = $region5
  $region4: #{slot_tags_forward.6} parent=0 // pred_region
    _
  $region5: #{slot_tags_forward.6} parent=0 // pred_fallthru
    _
  // Predicated region
  $region6: #{slot_tags_forward.6} parent=0 // pred_check
    _
  $region7: #{slot_tags_forward.6} parent=0 // pred_check_branch
    %11 = sbr.rel (0) target = $region9
  $region8: #{slot_tags_forward.6} parent=0 // pred_region
    _
  $region9: #{slot_tags_forward.6} parent=0 // pred_fallthru
    _
  // Predicated region
  $region10: #{slot_tags_forward.6} parent=0 // pred_check
    _
  $region11: #{slot_tags_forward.6} parent=0 // pred_check_branch
    %13 = sbr.rel (0) target = $region13
  $region12: #{slot_tags_forward.6} parent=0 // pred_region
    _
  $region13: #{slot_tags_forward.6} parent=0 // pred_fallthru
    _
  %v15 = vld [vmem:[%s0] sm:$0xf]
  %v16 = vld [vmem:[%s0 + $0x4] sm:$0xf]
  %v17 = vld [vmem:[%s0 + $0x8] sm:$0xf]
  %v18 = vld [vmem:[%s0 + $0xc] sm:$0xf]
  %v19 = vld [vmem:[%s0 + $0x10] sm:$0xf]
  %v20 = vld [vmem:[%s0 + $0x14] sm:$0xf]
  %v21 = vld [vmem:[%s0 + $0x18] sm:$0xf]
  %v22 = vld [vmem:[%s0 + $0x1c] sm:$0xf]
  %v23 = vld [vmem:[%s0 + $0x20] sm:$0xf]
  %v24 = vld [vmem:[%s0 + $0x24] sm:$0xf]
  %v25 = vld [vmem:[%s0 + $0x28] sm:$0xf]
  %v26 = vld [vmem:[%s0 + $0x2c] sm:$0xf]
  %v27 = vld [vmem:[%s0 + $0x30] sm:$0xf]
  %v28 = vld [vmem:[%s0 + $0x34] sm:$0xf]
  %v29 = vld [vmem:[%s0 + $0x38] sm:$0xf]
  %v30 = vld [vmem:[%s0 + $0x3c] sm:$0xf]
  %v31 = vld [vmem:[%s1] sm:$0xf]
  %v32 = vld [vmem:[%s1 + $0x4] sm:$0xf]
  %v33 = vld [vmem:[%s1 + $0x8] sm:$0xf]
  %v34 = vld [vmem:[%s1 + $0xc] sm:$0xf]
  %v35 = vld [vmem:[%s2] sm:$0x1]
  %v37 = vlaneseq
  %v38 = vshrl.u32 %v37, 7
  %v39 = vsub.s32 0, %v38
  %v40 = vrot.slane %v35, %v39
  %v58 = vunpack.c.l.b16 %v15
  %v59 = vunpack.c.l.b16 %v16
  %v60 = vunpack.c.l.b16 %v17
  %v61 = vunpack.c.l.b16 %v18
  %v62 = vunpack.c.l.b16 %v19
  %v63 = vunpack.c.l.b16 %v20
  %v64 = vunpack.c.l.b16 %v21
  %v65 = vunpack.c.l.b16 %v22
  %v66 = vunpack.c.l.b16 %v23
  %v67 = vunpack.c.l.b16 %v24
  %v68 = vunpack.c.l.b16 %v25
  %v69 = vunpack.c.l.b16 %v26
  %v70 = vunpack.c.l.b16 %v27
  %v71 = vunpack.c.l.b16 %v28
  %v72 = vunpack.c.l.b16 %v29
  %v73 = vunpack.c.l.b16 %v30
  %v74 = vpack.c.b16 %v59, %v58
  %v75 = vpack.c.b16 %v61, %v60
  %v76 = vpack.c.b16 %v63, %v62
  %v77 = vpack.c.b16 %v65, %v64
  %v78 = vpack.c.b16 %v67, %v66
  %v79 = vpack.c.b16 %v69, %v68
  %v80 = vpack.c.b16 %v71, %v70
  %v81 = vpack.c.b16 %v73, %v72
  %v86 = vunpack.c.l.b16 %v31
  %v87 = vunpack.c.l.b16 %v32
  %v88 = vunpack.c.l.b16 %v33
  %v89 = vunpack.c.l.b16 %v34
  %v90 = vpack.c.b16 %v87, %v86
  %v91 = vpack.c.b16 %v89, %v88
  %vm94 = vcmask 261120
  %v96 = vsel %vm94, %v74, 0
  %v99 = vsel %vm94, %v75, 0
  %v102 = vsel %vm94, %v76, 0
  %v105 = vsel %vm94, %v77, 0
  %v108 = vsel %vm94, %v78, 0
  %v111 = vsel %vm94, %v79, 0
  %v114 = vsel %vm94, %v80, 0
  %v117 = vsel %vm94, %v81, 0
  %119 = vmatprep.subr.bf16.mxu0 0
  %120 = vmatpush1.bf16.msra.mxu0 %v90
  %121 = vmatprep.subr.bf16.mxu0 0
  %122 = vmatpush1.bf16.msra.mxu0 %v91
  %123 = vmatprep.subr.bf16.mxu0 0
  %124 = vmatpush1.bf16.msra.mxu0 0
  %125 = vmatprep.subr.bf16.mxu0 0
  %126 = vmatpush1.bf16.msra.mxu0 0
  %127 = vmatprep.subr.bf16.mxu0 0
  %128 = vmatpush1.bf16.msra.mxu0 0
  %129 = vmatprep.subr.bf16.mxu0 0
  %130 = vmatpush1.bf16.msra.mxu0 0
  %131 = vmatprep.subr.bf16.mxu0 0
  %132 = vmatpush1.bf16.msra.mxu0 0
  %133 = vmatprep.subr.bf16.mxu0 0
  %134 = vmatpush1.bf16.msra.mxu0 0
  %135 = vmatprep.subr.bf16.mxu0 0
  %136 = vmatpush1.bf16.msra.mxu0 0
  %137 = vmatprep.subr.bf16.mxu0 0
  %138 = vmatpush1.bf16.msra.mxu0 0
  %139 = vmatprep.subr.bf16.mxu0 0
  %140 = vmatpush1.bf16.msra.mxu0 0
  %141 = vmatprep.subr.bf16.mxu0 0
  %142 = vmatpush1.bf16.msra.mxu0 0
  %143 = vmatprep.subr.bf16.mxu0 0
  %144 = vmatpush1.bf16.msra.mxu0 0
  %145 = vmatprep.subr.bf16.mxu0 0
  %146 = vmatpush1.bf16.msra.mxu0 0
  %147 = vmatprep.subr.bf16.mxu0 0
  %148 = vmatpush1.bf16.msra.mxu0 0
  %149 = vmatprep.subr.bf16.mxu0 0
  %150 = vmatpush1.bf16.msra.mxu0 0
  %151 = vmatprep.mubr.bf16.mxu0 0
  %152 = vmatmul.mubr.bf16.gmra.mrb[0].mxu0 %v96
  %v153 = vpop.f32.mrb[0].mxu0
  %v154 = vadd.f32 %v40, %v153
  %v155 = vpop.f32.mrb[0].mxu0
  %v156 = vpop.f32.mrb[0].mxu0
  %v157 = vadd.f32 %v40, %v156
  %v158 = vpop.f32.mrb[0].mxu0
  %159 = vmatprep.mubr.bf16.mxu0 0
  %160 = vmatmul.mubr.bf16.gmra.mrb[0].mxu0 %v99
  %v161 = vpop.f32.mrb[0].mxu0
  %v162 = vadd.f32 %v40, %v161
  %v163 = vpop.f32.mrb[0].mxu0
  %v164 = vpop.f32.mrb[0].mxu0
  %v165 = vadd.f32 %v40, %v164
  %v166 = vpop.f32.mrb[0].mxu0
  %167 = vmatprep.mubr.bf16.mxu0 0
  %168 = vmatmul.mubr.bf16.gmra.mrb[0].mxu0 %v102
  %v169 = vpop.f32.mrb[0].mxu0
  %v170 = vadd.f32 %v40, %v169
  %v171 = vpop.f32.mrb[0].mxu0
  %v172 = vpop.f32.mrb[0].mxu0
  %v173 = vadd.f32 %v40, %v172
  %v174 = vpop.f32.mrb[0].mxu0
  %175 = vmatprep.mubr.bf16.mxu0 0
  %176 = vmatmul.mubr.bf16.gmra.mrb[0].mxu0 %v105
  %v177 = vpop.f32.mrb[0].mxu0
  %v178 = vadd.f32 %v40, %v177
  %v179 = vpop.f32.mrb[0].mxu0
  %v180 = vpop.f32.mrb[0].mxu0
  %v181 = vadd.f32 %v40, %v180
  %v182 = vpop.f32.mrb[0].mxu0
  %183 = vmatprep.mubr.bf16.mxu0 0
  %184 = vmatmul.mubr.bf16.gmra.mrb[0].mxu0 %v108
  %v185 = vpop.f32.mrb[0].mxu0
  %v186 = vadd.f32 %v40, %v185
  %v187 = vpop.f32.mrb[0].mxu0
  %v188 = vpop.f32.mrb[0].mxu0
  %v189 = vadd.f32 %v40, %v188
  %v190 = vpop.f32.mrb[0].mxu0
  %191 = vmatprep.mubr.bf16.mxu0 0
  %192 = vmatmul.mubr.bf16.gmra.mrb[0].mxu0 %v111
  %v193 = vpop.f32.mrb[0].mxu0
  %v194 = vadd.f32 %v40, %v193
  %v195 = vpop.f32.mrb[0].mxu0
  %v196 = vpop.f32.mrb[0].mxu0
  %v197 = vadd.f32 %v40, %v196
  %v198 = vpop.f32.mrb[0].mxu0
  %199 = vmatprep.mubr.bf16.mxu0 0
  %200 = vmatmul.mubr.bf16.gmra.mrb[0].mxu0 %v114
  %v201 = vpop.f32.mrb[0].mxu0
  %v202 = vadd.f32 %v40, %v201
  %v203 = vpop.f32.mrb[0].mxu0
  %v204 = vpop.f32.mrb[0].mxu0
  %v205 = vadd.f32 %v40, %v204
  %v206 = vpop.f32.mrb[0].mxu0
  %207 = vmatprep.mubr.bf16.mxu0 0
  %208 = vmatmul.mubr.bf16.gmra.mrb[0].mxu0 %v117
  %v209 = vpop.f32.mrb[0].mxu0
  %v210 = vadd.f32 %v40, %v209
  %v211 = vpop.f32.mrb[0].mxu0
  %v212 = vpop.f32.mrb[0].mxu0
  %v213 = vadd.f32 %v40, %v212
  %v214 = vpop.f32.mrb[0].mxu0
  %215 = vdwg.mxu0
  %v216 = vpack.c.bf16 %v157, %v154
  %v217 = vpack.c.bf16 %v165, %v162
  %v218 = vpack.c.bf16 %v173, %v170
  %v219 = vpack.c.bf16 %v181, %v178
  %v220 = vpack.c.bf16 %v189, %v186
  %v221 = vpack.c.bf16 %v197, %v194
  %v222 = vpack.c.bf16 %v205, %v202
  %v223 = vpack.c.bf16 %v213, %v210
  %v232 = vunpack.c.l.b16 %v216
  %v233 = vunpack.c.h.b16 %v216
  %v234 = vunpack.c.l.b16 %v217
  %v235 = vunpack.c.h.b16 %v217
  %v236 = vunpack.c.l.b16 %v218
  %v237 = vunpack.c.h.b16 %v218
  %v238 = vunpack.c.l.b16 %v219
  %v239 = vunpack.c.h.b16 %v219
  %v240 = vunpack.c.l.b16 %v220
  %v241 = vunpack.c.h.b16 %v220
  %v242 = vunpack.c.l.b16 %v221
  %v243 = vunpack.c.h.b16 %v221
  %v244 = vunpack.c.l.b16 %v222
  %v245 = vunpack.c.h.b16 %v222
  %v246 = vunpack.c.l.b16 %v223
  %v247 = vunpack.c.h.b16 %v223
  %v248 = vpack.c.b16 %v232, %v232
  %v249 = vpack.c.b16 %v233, %v233
  %v250 = vpack.c.b16 %v234, %v234
  %v251 = vpack.c.b16 %v235, %v235
  %v252 = vpack.c.b16 %v236, %v236
  %v253 = vpack.c.b16 %v237, %v237
  %v254 = vpack.c.b16 %v238, %v238
  %v255 = vpack.c.b16 %v239, %v239
  %v256 = vpack.c.b16 %v240, %v240
  %v257 = vpack.c.b16 %v241, %v241
  %v258 = vpack.c.b16 %v242, %v242
  %v259 = vpack.c.b16 %v243, %v243
  %v260 = vpack.c.b16 %v244, %v244
  %v261 = vpack.c.b16 %v245, %v245
  %v262 = vpack.c.b16 %v246, %v246
  %v263 = vpack.c.b16 %v247, %v247
  %vm280 = vcmask 125952
  %281 = vst.msk [vmem:[%s3] sm:$0xf] %vm280, %v248
  %282 = vst.msk [vmem:[%s3 + $0x4] sm:$0xf] %vm280, %v249
  %283 = vst.msk [vmem:[%s3 + $0x8] sm:$0xf] %vm280, %v250
  %284 = vst.msk [vmem:[%s3 + $0xc] sm:$0xf] %vm280, %v251
  %285 = vst.msk [vmem:[%s3 + $0x10] sm:$0xf] %vm280, %v252
  %286 = vst.msk [vmem:[%s3 + $0x14] sm:$0xf] %vm280, %v253
  %287 = vst.msk [vmem:[%s3 + $0x18] sm:$0xf] %vm280, %v254
  %288 = vst.msk [vmem:[%s3 + $0x1c] sm:$0xf] %vm280, %v255
  %289 = vst.msk [vmem:[%s3 + $0x20] sm:$0xf] %vm280, %v256
  %290 = vst.msk [vmem:[%s3 + $0x24] sm:$0xf] %vm280, %v257
  %291 = vst.msk [vmem:[%s3 + $0x28] sm:$0xf] %vm280, %v258
  %292 = vst.msk [vmem:[%s3 + $0x2c] sm:$0xf] %vm280, %v259
  %293 = vst.msk [vmem:[%s3 + $0x30] sm:$0xf] %vm280, %v260
  %294 = vst.msk [vmem:[%s3 + $0x34] sm:$0xf] %vm280, %v261
  %295 = vst.msk [vmem:[%s3 + $0x38] sm:$0xf] %vm280, %v262
  %296 = vst.msk [vmem:[%s3 + $0x3c] sm:$0xf] %vm280, %v263
  // Predicated region
  $region14: #{slot_tags_forward.6} parent=0 // pred_check
    _
  $region15: #{slot_tags_forward.6} parent=0 // pred_check_branch
    %298 = sbr.rel (0) target = $region17
  $region16: #{slot_tags_forward.6} parent=0 // pred_region
    _
  $region17: #{slot_tags_forward.6} parent=0 // pred_fallthru
    _
  // Predicated region
  $region18: #{slot_tags_forward.6} parent=0 // pred_check
    _
  $region19: #{slot_tags_forward.6} parent=0 // pred_check_branch
    %300 = sbr.rel (0) target = $region21
  $region20: #{slot_tags_forward.6} parent=0 // pred_region
    _
  $region21: #{slot_tags_forward.6} parent=0 // pred_fallthru
    _

// kernel: slot_tags_forward.11
$region0: #{slot_tags_forward.11}
  #allocation0 [shape = 'u32[]', space=smem, size = 0x4, offset = 0x4, fixed_abs, tag = 'smem constant byte address 0x4 - core index']
  #allocation1 [shape = 'u32[144,128]{1,0:T(1,128)}', space=vmem, size = 0x12000, scoped, tag = 'internal scratch']
  %s0 = inlined_call_operand.vmem [shape: bf16[128,64], index: 0, kind: input, shape index: {}]
  %s1 = inlined_call_operand.vmem [shape: bf16[64,64], index: 1, kind: input, shape index: {}]
  %s2 = inlined_call_operand.vmem [shape: f32[1,64], index: 2, kind: input, shape index: {}]
  %s3 = inlined_call_operand.vmem [shape: f32[1,64], index: 3, kind: input, shape index: {}]
  %s4 = inlined_call_operand.vmem [shape: f32[1,64], index: 4, kind: input, shape index: {}]
  %s5 = inlined_call_operand.vmem [shape: bf16[64,128], index: 5, kind: input, shape index: {}]
  %s6 = inlined_call_operand.vmem [shape: f32[1,128], index: 6, kind: input, shape index: {}]
  %s7 = inlined_call_operand.vmem [shape: f32[128,128], index: 7, kind: output, shape index: {}]
  %s8 = sld [smem:[#allocation0]]
  $region38: #{slot_tags_forward.11} parent=0
    _
  %s10 = ssub.s32 1, %s8
  %s11 = scalar_select 0, %s10, %s8
  // Predicated region
  $region2: #{slot_tags_forward.11} parent=0 // pred_check
    _
  $region3: #{slot_tags_forward.11} parent=0 // pred_check_branch
    %13 = sbr.rel (0) target = $region5
  $region4: #{slot_tags_forward.11} parent=0 // pred_region
    _
  $region5: #{slot_tags_forward.11} parent=0 // pred_fallthru
    _
  // Predicated region
  $region6: #{slot_tags_forward.11} parent=0 // pred_check
    _
  $region7: #{slot_tags_forward.11} parent=0 // pred_check_branch
    %15 = sbr.rel (0) target = $region9
  $region8: #{slot_tags_forward.11} parent=0 // pred_region
    _
  $region9: #{slot_tags_forward.11} parent=0 // pred_fallthru
    _
  // Predicated region
  $region10: #{slot_tags_forward.11} parent=0 // pred_check
    _
  $region11: #{slot_tags_forward.11} parent=0 // pred_check_branch
    %17 = sbr.rel (0) target = $region13
  $region12: #{slot_tags_forward.11} parent=0 // pred_region
    _
  $region13: #{slot_tags_forward.11} parent=0 // pred_fallthru
    _
  // Predicated region
  $region14: #{slot_tags_forward.11} parent=0 // pred_check
    _
  $region15: #{slot_tags_forward.11} parent=0 // pred_check_branch
    %19 = sbr.rel (0) target = $region17
  $region16: #{slot_tags_forward.11} parent=0 // pred_region
    _
  $region17: #{slot_tags_forward.11} parent=0 // pred_fallthru
    _
  // Predicated region
  $region18: #{slot_tags_forward.11} parent=0 // pred_check
    _
  $region19: #{slot_tags_forward.11} parent=0 // pred_check_branch
    %21 = sbr.rel (0) target = $region21
  $region20: #{slot_tags_forward.11} parent=0 // pred_region
    _
  $region21: #{slot_tags_forward.11} parent=0 // pred_fallthru
    _
  // Predicated region
  $region22: #{slot_tags_forward.11} parent=0 // pred_check
    _
  $region23: #{slot_tags_forward.11} parent=0 // pred_check_branch
    %23 = sbr.rel (0) target = $region25
  $region24: #{slot_tags_forward.11} parent=0 // pred_region
    _
  $region25: #{slot_tags_forward.11} parent=0 // pred_fallthru
    _
  // Predicated region
  $region26: #{slot_tags_forward.11} parent=0 // pred_check
    _
  $region27: #{slot_tags_forward.11} parent=0 // pred_check_branch
    %25 = sbr.rel (0) target = $region29
  $region28: #{slot_tags_forward.11} parent=0 // pred_region
    _
  $region29: #{slot_tags_forward.11} parent=0 // pred_fallthru
    _
  %v27 = vld [vmem:[%s0] sm:$0xf]
  %v28 = vld [vmem:[%s0 + $0x4] sm:$0xf]
  %v29 = vld [vmem:[%s0 + $0x8] sm:$0xf]
  %v30 = vld [vmem:[%s0 + $0xc] sm:$0xf]
  %v31 = vld [vmem:[%s0 + $0x10] sm:$0xf]
  %v32 = vld [vmem:[%s0 + $0x14] sm:$0xf]
  %v33 = vld [vmem:[%s0 + $0x18] sm:$0xf]
  %v34 = vld [vmem:[%s0 + $0x1c] sm:$0xf]
  %v35 = vld [vmem:[%s0 + $0x20] sm:$0xf]
  %v36 = vld [vmem:[%s0 + $0x24] sm:$0xf]
  %v37 = vld [vmem:[%s0 + $0x28] sm:$0xf]
  %v38 = vld [vmem:[%s0 + $0x2c] sm:$0xf]
  %v39 = vld [vmem:[%s0 + $0x30] sm:$0xf]
  %v40 = vld [vmem:[%s0 + $0x34] sm:$0xf]
  %v41 = vld [vmem:[%s0 + $0x38] sm:$0xf]
  %v42 = vld [vmem:[%s0 + $0x3c] sm:$0xf]
  %v43 = vld [vmem:[%s1] sm:$0xf]
  %v44 = vld [vmem:[%s1 + $0x4] sm:$0xf]
  %v45 = vld [vmem:[%s1 + $0x8] sm:$0xf]
  %v46 = vld [vmem:[%s1 + $0xc] sm:$0xf]
  %v47 = vld [vmem:[%s1 + $0x10] sm:$0xf]
  %v48 = vld [vmem:[%s1 + $0x14] sm:$0xf]
  %v49 = vld [vmem:[%s1 + $0x18] sm:$0xf]
  %v50 = vld [vmem:[%s1 + $0x1c] sm:$0xf]
  %v51 = vld [vmem:[%s2] sm:$0x1]
  %v53 = vlaneseq
  %v54 = vshrl.u32 %v53, 7
  %v55 = vsub.s32 0, %v54
  %v56 = vrot.slane %v51, %v55
  %v74 = vunpack.c.l.b16 %v27
  %v75 = vunpack.c.l.b16 %v28
  %v76 = vunpack.c.l.b16 %v29
  %v77 = vunpack.c.l.b16 %v30
  %v78 = vunpack.c.l.b16 %v31
  %v79 = vunpack.c.l.b16 %v32
  %v80 = vunpack.c.l.b16 %v33
  %v81 = vunpack.c.l.b16 %v34
  %v82 = vunpack.c.l.b16 %v35
  %v83 = vunpack.c.l.b16 %v36
  %v84 = vunpack.c.l.b16 %v37
  %v85 = vunpack.c.l.b16 %v38
  %v86 = vunpack.c.l.b16 %v39
  %v87 = vunpack.c.l.b16 %v40
  %v88 = vunpack.c.l.b16 %v41
  %v89 = vunpack.c.l.b16 %v42
  %v90 = vpack.c.b16 %v75, %v74
  %v91 = vpack.c.b16 %v77, %v76
  %v92 = vpack.c.b16 %v79, %v78
  %v93 = vpack.c.b16 %v81, %v80
  %v94 = vpack.c.b16 %v83, %v82
  %v95 = vpack.c.b16 %v85, %v84
  %v96 = vpack.c.b16 %v87, %v86
  %v97 = vpack.c.b16 %v89, %v88
  %v106 = vunpack.c.l.b16 %v43
  %v107 = vunpack.c.l.b16 %v44
  %v108 = vunpack.c.l.b16 %v45
  %v109 = vunpack.c.l.b16 %v46
  %v110 = vunpack.c.l.b16 %v47
  %v111 = vunpack.c.l.b16 %v48
  %v112 = vunpack.c.l.b16 %v49
  %v113 = vunpack.c.l.b16 %v50
  %v114 = vpack.c.b16 %v107, %v106
  %v115 = vpack.c.b16 %v109, %v108
  %v116 = vpack.c.b16 %v111, %v110
  %v117 = vpack.c.b16 %v113, %v112
  %vm122 = vcmask 523264
  %v124 = vsel %vm122, %v90, 0
  %v127 = vsel %vm122, %v91, 0
  %v130 = vsel %vm122, %v92, 0
  %v133 = vsel %vm122, %v93, 0
  %v136 = vsel %vm122, %v94, 0
  %v139 = vsel %vm122, %v95, 0
  %v142 = vsel %vm122, %v96, 0
  %v145 = vsel %vm122, %v97, 0
  %147 = vmatprep.subr.bf16.mxu0 0
  %148 = vmatpush1.bf16.msra.mxu0 %v114
  %149 = vmatprep.subr.bf16.mxu0 0
  %150 = vmatpush1.bf16.msra.mxu0 %v115
  %151 = vmatprep.subr.bf16.mxu0 0
  %152 = vmatpush1.bf16.msra.mxu0 %v116
  %153 = vmatprep.subr.bf16.mxu0 0
  %154 = vmatpush1.bf16.msra.mxu0 %v117
  %155 = vmatprep.subr.bf16.mxu0 0
  %156 = vmatpush1.bf16.msra.mxu0 0
  %157 = vmatprep.subr.bf16.mxu0 0
  %158 = vmatpush1.bf16.msra.mxu0 0
  %159 = vmatprep.subr.bf16.mxu0 0
  %160 = vmatpush1.bf16.msra.mxu0 0
  %161 = vmatprep.subr.bf16.mxu0 0
  %162 = vmatpush1.bf16.msra.mxu0 0
  %163 = vmatprep.subr.bf16.mxu0 0
  %164 = vmatpush1.bf16.msra.mxu0 0
  %165 = vmatprep.subr.bf16.mxu0 0
  %166 = vmatpush1.bf16.msra.mxu0 0
  %167 = vmatprep.subr.bf16.mxu0 0
  %168 = vmatpush1.bf16.msra.mxu0 0
  %169 = vmatprep.subr.bf16.mxu0 0
  %170 = vmatpush1.bf16.msra.mxu0 0
  %171 = vmatprep.subr.bf16.mxu0 0
  %172 = vmatpush1.bf16.msra.mxu0 0
  %173 = vmatprep.subr.bf16.mxu0 0
  %174 = vmatpush1.bf16.msra.mxu0 0
  %175 = vmatprep.subr.bf16.mxu0 0
  %176 = vmatpush1.bf16.msra.mxu0 0
  %177 = vmatprep.subr.bf16.mxu0 0
  %178 = vmatpush1.bf16.msra.mxu0 0
  %179 = vmatprep.mubr.bf16.mxu0 0
  %180 = vmatmul.mubr.bf16.gmra.mrb[0].mxu0 %v124
  %v181 = vpop.f32.mrb[0].mxu0
  %v182 = vadd.f32 %v56, %v181
  %v183 = vpop.f32.mrb[0].mxu0
  %v184 = vpop.f32.mrb[0].mxu0
  %v185 = vadd.f32 %v56, %v184
  %v186 = vpop.f32.mrb[0].mxu0
  %187 = vmatprep.mubr.bf16.mxu0 0
  %188 = vmatmul.mubr.bf16.gmra.mrb[0].mxu0 %v127
  %v189 = vpop.f32.mrb[0].mxu0
  %v190 = vadd.f32 %v56, %v189
  %v191 = vpop.f32.mrb[0].mxu0
  %v192 = vpop.f32.mrb[0].mxu0
  %v193 = vadd.f32 %v56, %v192
  %v194 = vpop.f32.mrb[0].mxu0
  %195 = vmatprep.mubr.bf16.mxu0 0
  %196 = vmatmul.mubr.bf16.gmra.mrb[0].mxu0 %v130
  %v197 = vpop.f32.mrb[0].mxu0
  %v198 = vadd.f32 %v56, %v197
  %v199 = vpop.f32.mrb[0].mxu0
  %v200 = vpop.f32.mrb[0].mxu0
  %v201 = vadd.f32 %v56, %v200
  %v202 = vpop.f32.mrb[0].mxu0
  %203 = vmatprep.mubr.bf16.mxu0 0
  %204 = vmatmul.mubr.bf16.gmra.mrb[0].mxu0 %v133
  %v205 = vpop.f32.mrb[0].mxu0
  %v206 = vadd.f32 %v56, %v205
  %v207 = vpop.f32.mrb[0].mxu0
  %v208 = vpop.f32.mrb[0].mxu0
  %v209 = vadd.f32 %v56, %v208
  %v210 = vpop.f32.mrb[0].mxu0
  %211 = vmatprep.mubr.bf16.mxu0 0
  %212 = vmatmul.mubr.bf16.gmra.mrb[0].mxu0 %v136
  %v213 = vpop.f32.mrb[0].mxu0
  %v214 = vadd.f32 %v56, %v213
  %v215 = vpop.f32.mrb[0].mxu0
  %v216 = vpop.f32.mrb[0].mxu0
  %v217 = vadd.f32 %v56, %v216
  %v218 = vpop.f32.mrb[0].mxu0
  %219 = vmatprep.mubr.bf16.mxu0 0
  %220 = vmatmul.mubr.bf16.gmra.mrb[0].mxu0 %v139
  %v221 = vpop.f32.mrb[0].mxu0
  %v222 = vadd.f32 %v56, %v221
  %v223 = vpop.f32.mrb[0].mxu0
  %v224 = vpop.f32.mrb[0].mxu0
  %v225 = vadd.f32 %v56, %v224
  %v226 = vpop.f32.mrb[0].mxu0
  %227 = vmatprep.mubr.bf16.mxu0 0
  %228 = vmatmul.mubr.bf16.gmra.mrb[0].mxu0 %v142
  %v229 = vpop.f32.mrb[0].mxu0
  %v230 = vadd.f32 %v56, %v229
  %v231 = vpop.f32.mrb[0].mxu0
  %v232 = vpop.f32.mrb[0].mxu0
  %v233 = vadd.f32 %v56, %v232
  %v234 = vpop.f32.mrb[0].mxu0
  %235 = vmatprep.mubr.bf16.mxu0 0
  %236 = vmatmul.mubr.bf16.gmra.mrb[0].mxu0 %v145
  %v237 = vpop.f32.mrb[0].mxu0
  %v238 = vadd.f32 %v56, %v237
  %v239 = vpop.f32.mrb[0].mxu0
  %v240 = vpop.f32.mrb[0].mxu0
  %v241 = vadd.f32 %v56, %v240
  %v242 = vpop.f32.mrb[0].mxu0
  %243 = vdwg.mxu0
  %v244 = vld [vmem:[%s3] sm:$0x1]
  %v246 = vlaneseq
  %v247 = vshrl.u32 %v246, 7
  %v248 = vsub.s32 0, %v247
  %v249 = vrot.slane %v244, %v248
  %v251 = vmul.f32 %v182, %v249
  %v252 = vmul.f32 %v185, %v249
  %v253 = vmul.f32 %v190, %v249
  %v254 = vmul.f32 %v193, %v249
  %v255 = vmul.f32 %v198, %v249
  %v256 = vmul.f32 %v201, %v249
  %v257 = vmul.f32 %v206, %v249
  %v258 = vmul.f32 %v209, %v249
  %v259 = vmul.f32 %v214, %v249
  %v260 = vmul.f32 %v217, %v249
  %v261 = vmul.f32 %v222, %v249
  %v262 = vmul.f32 %v225, %v249
  %v263 = vmul.f32 %v230, %v249
  %v264 = vmul.f32 %v233, %v249
  %v265 = vmul.f32 %v238, %v249
  %v266 = vmul.f32 %v241, %v249
  %v267 = vld [vmem:[%s4] sm:$0x1]
  %v269 = vlaneseq
  %v270 = vshrl.u32 %v269, 7
  %v271 = vsub.s32 0, %v270
  %v272 = vrot.slane %v267, %v271
  %v274 = vadd.f32 %v251, %v272
  %v275 = vadd.f32 %v252, %v272
  %v276 = vadd.f32 %v253, %v272
  %v277 = vadd.f32 %v254, %v272
  %v278 = vadd.f32 %v255, %v272
  %v279 = vadd.f32 %v256, %v272
  %v280 = vadd.f32 %v257, %v272
  %v281 = vadd.f32 %v258, %v272
  %v282 = vadd.f32 %v259, %v272
  %v283 = vadd.f32 %v260, %v272
  %v284 = vadd.f32 %v261, %v272
  %v285 = vadd.f32 %v262, %v272
  %v286 = vadd.f32 %v263, %v272
  %v287 = vadd.f32 %v264, %v272
  %v288 = vadd.f32 %v265, %v272
  %v289 = vadd.f32 %v266, %v272
  %v290 = vmax.f32 %v274, 0.0
  %v291 = vmax.f32 %v275, 0.0
  %v292 = vmax.f32 %v276, 0.0
  %v293 = vmax.f32 %v277, 0.0
  %v294 = vmax.f32 %v278, 0.0
  %v295 = vmax.f32 %v279, 0.0
  %v296 = vmax.f32 %v280, 0.0
  %v297 = vmax.f32 %v281, 0.0
  %v298 = vmax.f32 %v282, 0.0
  %v299 = vmax.f32 %v283, 0.0
  %v300 = vmax.f32 %v284, 0.0
  %v301 = vmax.f32 %v285, 0.0
  %v302 = vmax.f32 %v286, 0.0
  %v303 = vmax.f32 %v287, 0.0
  %v304 = vmax.f32 %v288, 0.0
  %v305 = vmax.f32 %v289, 0.0
  %v306 = vpack.c.bf16 %v291, %v290
  %v307 = vpack.c.bf16 %v293, %v292
  %v308 = vpack.c.bf16 %v295, %v294
  %v309 = vpack.c.bf16 %v297, %v296
  %v310 = vpack.c.bf16 %v299, %v298
  %v311 = vpack.c.bf16 %v301, %v300
  %v312 = vpack.c.bf16 %v303, %v302
  %v313 = vpack.c.bf16 %v305, %v304
  %v314 = vld [vmem:[%s5] sm:$0xf]
  %v315 = vld [vmem:[%s5 + $0x4] sm:$0xf]
  %v316 = vld [vmem:[%s5 + $0x8] sm:$0xf]
  %v317 = vld [vmem:[%s5 + $0xc] sm:$0xf]
  %v318 = vld [vmem:[%s5 + $0x10] sm:$0xf]
  %v319 = vld [vmem:[%s5 + $0x14] sm:$0xf]
  %v320 = vld [vmem:[%s5 + $0x18] sm:$0xf]
  %v321 = vld [vmem:[%s5 + $0x1c] sm:$0xf]
  %v322 = vld [vmem:[%s6] sm:$0x1]
  %v324 = vlaneseq
  %v325 = vshrl.u32 %v324, 7
  %v326 = vsub.s32 0, %v325
  %v327 = vrot.slane %v322, %v326
  %v337 = vunpack.c.l.b16 %v314
  %v338 = vunpack.c.l.b16 %v315
  %v339 = vunpack.c.l.b16 %v316
  %v340 = vunpack.c.l.b16 %v317
  %v341 = vunpack.c.l.b16 %v318
  %v342 = vunpack.c.l.b16 %v319
  %v343 = vunpack.c.l.b16 %v320
  %v344 = vunpack.c.l.b16 %v321
  %v345 = vpack.c.b16 %v338, %v337
  %v346 = vpack.c.b16 %v340, %v339
  %v347 = vpack.c.b16 %v342, %v341
  %v348 = vpack.c.b16 %v344, %v343
  %v354 = vsel %vm122, %v306, 0
  %v357 = vsel %vm122, %v307, 0
  %v360 = vsel %vm122, %v308, 0
  %v363 = vsel %vm122, %v309, 0
  %v366 = vsel %vm122, %v310, 0
  %v369 = vsel %vm122, %v311, 0
  %v372 = vsel %vm122, %v312, 0
  %v375 = vsel %vm122, %v313, 0
  %377 = vmatprep.subr.bf16.mxu0 0
  %378 = vmatpush1.bf16.msra.mxu0 %v345
  %379 = vmatprep.subr.bf16.mxu0 0
  %380 = vmatpush1.bf16.msra.mxu0 %v346
  %381 = vmatprep.subr.bf16.mxu0 0
  %382 = vmatpush1.bf16.msra.mxu0 %v347
  %383 = vmatprep.subr.bf16.mxu0 0
  %384 = vmatpush1.bf16.msra.mxu0 %v348
  %385 = vmatprep.subr.bf16.mxu0 0
  %386 = vmatpush1.bf16.msra.mxu0 0
  %387 = vmatprep.subr.bf16.mxu0 0
  %388 = vmatpush1.bf16.msra.mxu0 0
  %389 = vmatprep.subr.bf16.mxu0 0
  %390 = vmatpush1.bf16.msra.mxu0 0
  %391 = vmatprep.subr.bf16.mxu0 0
  %392 = vmatpush1.bf16.msra.mxu0 0
  %393 = vmatprep.subr.bf16.mxu0 0
  %394 = vmatpush1.bf16.msra.mxu0 0
  %395 = vmatprep.subr.bf16.mxu0 0
  %396 = vmatpush1.bf16.msra.mxu0 0
  %397 = vmatprep.subr.bf16.mxu0 0
  %398 = vmatpush1.bf16.msra.mxu0 0
  %399 = vmatprep.subr.bf16.mxu0 0
  %400 = vmatpush1.bf16.msra.mxu0 0
  %401 = vmatprep.subr.bf16.mxu0 0
  %402 = vmatpush1.bf16.msra.mxu0 0
  %403 = vmatprep.subr.bf16.mxu0 0
  %404 = vmatpush1.bf16.msra.mxu0 0
  %405 = vmatprep.subr.bf16.mxu0 0
  %406 = vmatpush1.bf16.msra.mxu0 0
  %407 = vmatprep.subr.bf16.mxu0 0
  %408 = vmatpush1.bf16.msra.mxu0 0
  %409 = vmatprep.mubr.bf16.mxu0 0
  %410 = vmatmul.mubr.bf16.gmra.mrb[0].mxu0 %v354
  %v411 = vpop.f32.mrb[0].mxu0
  %v412 = vadd.f32 %v327, %v411
  %v413 = vpop.f32.mrb[0].mxu0
  %v414 = vpop.f32.mrb[0].mxu0
  %v415 = vadd.f32 %v327, %v414
  %v416 = vpop.f32.mrb[0].mxu0
  %417 = vmatprep.mubr.bf16.mxu0 0
  %418 = vmatmul.mubr.bf16.gmra.mrb[0].mxu0 %v357
  %v419 = vpop.f32.mrb[0].mxu0
  %v420 = vadd.f32 %v327, %v419
  %v421 = vpop.f32.mrb[0].mxu0
  %v422 = vpop.f32.mrb[0].mxu0
  %v423 = vadd.f32 %v327, %v422
  %v424 = vpop.f32.mrb[0].mxu0
  %425 = vmatprep.mubr.bf16.mxu0 0
  %426 = vmatmul.mubr.bf16.gmra.mrb[0].mxu0 %v360
  %v427 = vpop.f32.mrb[0].mxu0
  %v428 = vadd.f32 %v327, %v427
  %v429 = vpop.f32.mrb[0].mxu0
  %v430 = vpop.f32.mrb[0].mxu0
  %v431 = vadd.f32 %v327, %v430
  %v432 = vpop.f32.mrb[0].mxu0
  %433 = vmatprep.mubr.bf16.mxu0 0
  %434 = vmatmul.mubr.bf16.gmra.mrb[0].mxu0 %v363
  %v435 = vpop.f32.mrb[0].mxu0
  %v436 = vadd.f32 %v327, %v435
  %v437 = vpop.f32.mrb[0].mxu0
  %v438 = vpop.f32.mrb[0].mxu0
  %v439 = vadd.f32 %v327, %v438
  %v440 = vpop.f32.mrb[0].mxu0
  %441 = vmatprep.mubr.bf16.mxu0 0
  %442 = vmatmul.mubr.bf16.gmra.mrb[0].mxu0 %v366
  %v443 = vpop.f32.mrb[0].mxu0
  %v444 = vadd.f32 %v327, %v443
  %v445 = vpop.f32.mrb[0].mxu0
  %v446 = vpop.f32.mrb[0].mxu0
  %v447 = vadd.f32 %v327, %v446
  %v448 = vpop.f32.mrb[0].mxu0
  %449 = vmatprep.mubr.bf16.mxu0 0
  %450 = vmatmul.mubr.bf16.gmra.mrb[0].mxu0 %v369
  %v451 = vpop.f32.mrb[0].mxu0
  %v452 = vadd.f32 %v327, %v451
  %v453 = vpop.f32.mrb[0].mxu0
  %v454 = vpop.f32.mrb[0].mxu0
  %v455 = vadd.f32 %v327, %v454
  %v456 = vpop.f32.mrb[0].mxu0
  %457 = vmatprep.mubr.bf16.mxu0 0
  %458 = vmatmul.mubr.bf16.gmra.mrb[0].mxu0 %v372
  %v459 = vpop.f32.mrb[0].mxu0
  %v460 = vadd.f32 %v327, %v459
  %v461 = vpop.f32.mrb[0].mxu0
  %v462 = vpop.f32.mrb[0].mxu0
  %v463 = vadd.f32 %v327, %v462
  %v464 = vpop.f32.mrb[0].mxu0
  %465 = vmatprep.mubr.bf16.mxu0 0
  %466 = vmatmul.mubr.bf16.gmra.mrb[0].mxu0 %v375
  %v467 = vpop.f32.mrb[0].mxu0
  %v468 = vadd.f32 %v327, %v467
  %v469 = vpop.f32.mrb[0].mxu0
  %v470 = vpop.f32.mrb[0].mxu0
  %v471 = vadd.f32 %v327, %v470
  %v472 = vpop.f32.mrb[0].mxu0
  %473 = vdwg.mxu0
  %474 = vst [vmem:[%s7] sm:$0xff] %v412
  %475 = vst [vmem:[%s7 + $0x8] sm:$0xff] %v415
  %476 = vst [vmem:[%s7 + $0x10] sm:$0xff] %v420
  %477 = vst [vmem:[%s7 + $0x18] sm:$0xff] %v423
  %478 = vst [vmem:[%s7 + $0x20] sm:$0xff] %v428
  %479 = vst [vmem:[%s7 + $0x28] sm:$0xff] %v431
  %480 = vst [vmem:[%s7 + $0x30] sm:$0xff] %v436
  %481 = vst [vmem:[%s7 + $0x38] sm:$0xff] %v439
  %482 = vst [vmem:[%s7 + $0x40] sm:$0xff] %v444
  %483 = vst [vmem:[%s7 + $0x48] sm:$0xff] %v447
  %484 = vst [vmem:[%s7 + $0x50] sm:$0xff] %v452
  %485 = vst [vmem:[%s7 + $0x58] sm:$0xff] %v455
  %486 = vst [vmem:[%s7 + $0x60] sm:$0xff] %v460
  %487 = vst [vmem:[%s7 + $0x68] sm:$0xff] %v463
  %488 = vst [vmem:[%s7 + $0x70] sm:$0xff] %v468
  %489 = vst [vmem:[%s7 + $0x78] sm:$0xff] %v471
  // Predicated region
  $region30: #{slot_tags_forward.11} parent=0 // pred_check
    _
  $region31: #{slot_tags_forward.11} parent=0 // pred_check_branch
    %491 = sbr.rel (0) target = $region33
  $region32: #{slot_tags_forward.11} parent=0 // pred_region
    _
  $region33: #{slot_tags_forward.11} parent=0 // pred_fallthru
    _
  // Predicated region
  $region34: #{slot_tags_forward.11} parent=0 // pred_check
    _
  $region35: #{slot_tags_forward.11} parent=0 // pred_check_branch
    %493 = sbr.rel (0) target = $region37
  $region36: #{slot_tags_forward.11} parent=0 // pred_region
    _
  $region37: #{slot_tags_forward.11} parent=0 // pred_fallthru
    _

// kernel: slot_tags_forward.7
$region0: #{slot_tags_forward.7}
  #allocation0 [shape = 'u32[]', space=smem, size = 0x4, offset = 0x4, fixed_abs, tag = 'smem constant byte address 0x4 - core index']
  #allocation1 [shape = 'u32[144,128]{1,0:T(1,128)}', space=vmem, size = 0x12000, scoped, tag = 'internal scratch']
  #allocation2 [shape = 'bf16[128,256]{1,0:T(16,128)(2,1)}', space=vmem, size = 0x10000, scoped, tag = 'scratch operand']
  #allocation3 [shape = 'bf16[16,64]{1,0:T(16,128)(2,1)}', space=vmem, size = 0x1000, scoped, tag = 'scratch operand']
  #allocation4 [shape = 'f32[16,64]{1,0:T(8,128)}', space=vmem, size = 0x2000, scoped, tag = 'scratch operand']
  %s0 = inlined_call_operand.vmem [shape: bf16[128,16], index: 0, kind: input, shape index: {}]
  %s1 = inlined_call_operand.vmem [shape: bf16[16,256], index: 1, kind: input, shape index: {}]
  %s2 = inlined_call_operand.vmem [shape: bf16[64,256], index: 2, kind: input, shape index: {}]
  %s3 = inlined_call_operand.vmem [shape: f32[1,256], index: 3, kind: input, shape index: {}]
  %s4 = inlined_call_operand.vmem [shape: bf16[128,64], index: 4, kind: output, shape index: {}]
  %s5 = sld [smem:[#allocation0]]
  $region26: #{slot_tags_forward.7} parent=0
    _
  %s7 = ssub.s32 1, %s5
  %s8 = scalar_select 0, %s7, %s5
  // Predicated region
  $region2: #{slot_tags_forward.7} parent=0 // pred_check
    _
  $region3: #{slot_tags_forward.7} parent=0 // pred_check_branch
    %10 = sbr.rel (0) target = $region5
  $region4: #{slot_tags_forward.7} parent=0 // pred_region
    _
  $region5: #{slot_tags_forward.7} parent=0 // pred_fallthru
    _
  // Predicated region
  $region6: #{slot_tags_forward.7} parent=0 // pred_check
    _
  $region7: #{slot_tags_forward.7} parent=0 // pred_check_branch
    %12 = sbr.rel (0) target = $region9
  $region8: #{slot_tags_forward.7} parent=0 // pred_region
    _
  $region9: #{slot_tags_forward.7} parent=0 // pred_fallthru
    _
  // Predicated region
  $region10: #{slot_tags_forward.7} parent=0 // pred_check
    _
  $region11: #{slot_tags_forward.7} parent=0 // pred_check_branch
    %14 = sbr.rel (0) target = $region13
  $region12: #{slot_tags_forward.7} parent=0 // pred_region
    _
  $region13: #{slot_tags_forward.7} parent=0 // pred_fallthru
    _
  // Predicated region
  $region14: #{slot_tags_forward.7} parent=0 // pred_check
    _
  $region15: #{slot_tags_forward.7} parent=0 // pred_check_branch
    %16 = sbr.rel (0) target = $region17
  $region16: #{slot_tags_forward.7} parent=0 // pred_region
    _
  $region17: #{slot_tags_forward.7} parent=0 // pred_fallthru
    _
  %v18 = vld [vmem:[%s0] sm:$0xf]
  %v19 = vld [vmem:[%s0 + $0x4] sm:$0xf]
  %v20 = vld [vmem:[%s0 + $0x8] sm:$0xf]
  %v21 = vld [vmem:[%s0 + $0xc] sm:$0xf]
  %v22 = vld [vmem:[%s0 + $0x10] sm:$0xf]
  %v23 = vld [vmem:[%s0 + $0x14] sm:$0xf]
  %v24 = vld [vmem:[%s0 + $0x18] sm:$0xf]
  %v25 = vld [vmem:[%s0 + $0x1c] sm:$0xf]
  %v26 = vld [vmem:[%s0 + $0x20] sm:$0xf]
  %v27 = vld [vmem:[%s0 + $0x24] sm:$0xf]
  %v28 = vld [vmem:[%s0 + $0x28] sm:$0xf]
  %v29 = vld [vmem:[%s0 + $0x2c] sm:$0xf]
  %v30 = vld [vmem:[%s0 + $0x30] sm:$0xf]
  %v31 = vld [vmem:[%s0 + $0x34] sm:$0xf]
  %v32 = vld [vmem:[%s0 + $0x38] sm:$0xf]
  %v33 = vld [vmem:[%s0 + $0x3c] sm:$0xf]
  %v34 = vld [vmem:[%s1] sm:$0xff]
  %v35 = vld [vmem:[%s1 + $0x8] sm:$0xff]
  %v36 = vld [vmem:[%s3] sm:$0x3]
  %v38 = vlaneseq
  %v39 = vshrl.u32 %v38, 7
  %v40 = vsub.s32 0, %v39
  %v41 = vrot.slane %v36, %v40
  %v42 = vlaneseq
  %v43 = vshrl.u32 %v42, 7
  %v44 = vsub.s32 1, %v43
  %v45 = vrot.slane %v36, %v44
  %v64 = vunpack.c.l.b16 %v18
  %v65 = vunpack.c.l.b16 %v19
  %v66 = vunpack.c.l.b16 %v20
  %v67 = vunpack.c.l.b16 %v21
  %v68 = vunpack.c.l.b16 %v22
  %v69 = vunpack.c.l.b16 %v23
  %v70 = vunpack.c.l.b16 %v24
  %v71 = vunpack.c.l.b16 %v25
  %v72 = vunpack.c.l.b16 %v26
  %v73 = vunpack.c.l.b16 %v27
  %v74 = vunpack.c.l.b16 %v28
  %v75 = vunpack.c.l.b16 %v29
  %v76 = vunpack.c.l.b16 %v30
  %v77 = vunpack.c.l.b16 %v31
  %v78 = vunpack.c.l.b16 %v32
  %v79 = vunpack.c.l.b16 %v33
  %v80 = vpack.c.b16 %v65, %v64
  %v81 = vpack.c.b16 %v67, %v66
  %v82 = vpack.c.b16 %v69, %v68
  %v83 = vpack.c.b16 %v71, %v70
  %v84 = vpack.c.b16 %v73, %v72
  %v85 = vpack.c.b16 %v75, %v74
  %v86 = vpack.c.b16 %v77, %v76
  %v87 = vpack.c.b16 %v79, %v78
  %v90 = vunpack.c.l.b16 %v34
  %v91 = vunpack.c.h.b16 %v34
  %v92 = vunpack.c.l.b16 %v35
  %v93 = vunpack.c.h.b16 %v35
  %v94 = vpack.c.b16 %v92, %v90
  %v95 = vpack.c.b16 %v93, %v91
  %vm98 = vcmask 130048
  %v100 = vsel %vm98, %v80, 0
  %v103 = vsel %vm98, %v81, 0
  %v106 = vsel %vm98, %v82, 0
  %v109 = vsel %vm98, %v83, 0
  %v112 = vsel %vm98, %v84, 0
  %v115 = vsel %vm98, %v85, 0
  %v118 = vsel %vm98, %v86, 0
  %v121 = vsel %vm98, %v87, 0
  %123 = vmatprep.subr.bf16.mxu0 %v95
  %124 = vmatpush1.bf16.msra.mxu0 %v94
  %125 = vmatprep.subr.bf16.mxu0 0
  %126 = vmatpush1.bf16.msra.mxu0 0
  %127 = vmatprep.subr.bf16.mxu0 0
  %128 = vmatpush1.bf16.msra.mxu0 0
  %129 = vmatprep.subr.bf16.mxu0 0
  %130 = vmatpush1.bf16.msra.mxu0 0
  %131 = vmatprep.subr.bf16.mxu0 0
  %132 = vmatpush1.bf16.msra.mxu0 0
  %133 = vmatprep.subr.bf16.mxu0 0
  %134 = vmatpush1.bf16.msra.mxu0 0
  %135 = vmatprep.subr.bf16.mxu0 0
  %136 = vmatpush1.bf16.msra.mxu0 0
  %137 = vmatprep.subr.bf16.mxu0 0
  %138 = vmatpush1.bf16.msra.mxu0 0
  %139 = vmatprep.subr.bf16.mxu0 0
  %140 = vmatpush1.bf16.msra.mxu0 0
  %141 = vmatprep.subr.bf16.mxu0 0
  %142 = vmatpush1.bf16.msra.mxu0 0
  %143 = vmatprep.subr.bf16.mxu0 0
  %144 = vmatpush1.bf16.msra.mxu0 0
  %145 = vmatprep.subr.bf16.mxu0 0
  %146 = vmatpush1.bf16.msra.mxu0 0
  %147 = vmatprep.subr.bf16.mxu0 0
  %148 = vmatpush1.bf16.msra.mxu0 0
  %149 = vmatprep.subr.bf16.mxu0 0
  %150 = vmatpush1.bf16.msra.mxu0 0
  %151 = vmatprep.subr.bf16.mxu0 0
  %152 = vmatpush1.bf16.msra.mxu0 0
  %153 = vmatprep.subr.bf16.mxu0 0
  %154 = vmatpush1.bf16.msra.mxu0 0
  %155 = vmatprep.mubr.bf16.mxu0 0
  %156 = vmatmul.mubr.bf16.gmra.mrb[0].mxu0 %v100
  %v157 = vpop.f32.mrb[0].mxu0
  %v158 = vadd.f32 %v41, %v157
  %v159 = vpop.f32.mrb[0].mxu0
  %v160 = vadd.f32 %v45, %v159
  %v161 = vpop.f32.mrb[0].mxu0
  %v162 = vadd.f32 %v41, %v161
  %v163 = vpop.f32.mrb[0].mxu0
  %v164 = vadd.f32 %v45, %v163
  %165 = vmatprep.mubr.bf16.mxu0 0
  %166 = vmatmul.mubr.bf16.gmra.mrb[0].mxu0 %v103
  %v167 = vpop.f32.mrb[0].mxu0
  %v168 = vadd.f32 %v41, %v167
  %v169 = vpop.f32.mrb[0].mxu0
  %v170 = vadd.f32 %v45, %v169
  %v171 = vpop.f32.mrb[0].mxu0
  %v172 = vadd.f32 %v41, %v171
  %v173 = vpop.f32.mrb[0].mxu0
  %v174 = vadd.f32 %v45, %v173
  %175 = vmatprep.mubr.bf16.mxu0 0
  %176 = vmatmul.mubr.bf16.gmra.mrb[0].mxu0 %v106
  %v177 = vpop.f32.mrb[0].mxu0
  %v178 = vadd.f32 %v41, %v177
  %v179 = vpop.f32.mrb[0].mxu0
  %v180 = vadd.f32 %v45, %v179
  %v181 = vpop.f32.mrb[0].mxu0
  %v182 = vadd.f32 %v41, %v181
  %v183 = vpop.f32.mrb[0].mxu0
  %v184 = vadd.f32 %v45, %v183
  %185 = vmatprep.mubr.bf16.mxu0 0
  %186 = vmatmul.mubr.bf16.gmra.mrb[0].mxu0 %v109
  %v187 = vpop.f32.mrb[0].mxu0
  %v188 = vadd.f32 %v41, %v187
  %v189 = vpop.f32.mrb[0].mxu0
  %v190 = vadd.f32 %v45, %v189
  %v191 = vpop.f32.mrb[0].mxu0
  %v192 = vadd.f32 %v41, %v191
  %v193 = vpop.f32.mrb[0].mxu0
  %v194 = vadd.f32 %v45, %v193
  %195 = vmatprep.mubr.bf16.mxu0 0
  %196 = vmatmul.mubr.bf16.gmra.mrb[0].mxu0 %v112
  %v197 = vpop.f32.mrb[0].mxu0
  %v198 = vadd.f32 %v41, %v197
  %v199 = vpop.f32.mrb[0].mxu0
  %v200 = vadd.f32 %v45, %v199
  %v201 = vpop.f32.mrb[0].mxu0
  %v202 = vadd.f32 %v41, %v201
  %v203 = vpop.f32.mrb[0].mxu0
  %v204 = vadd.f32 %v45, %v203
  %205 = vmatprep.mubr.bf16.mxu0 0
  %206 = vmatmul.mubr.bf16.gmra.mrb[0].mxu0 %v115
  %v207 = vpop.f32.mrb[0].mxu0
  %v208 = vadd.f32 %v41, %v207
  %v209 = vpop.f32.mrb[0].mxu0
  %v210 = vadd.f32 %v45, %v209
  %v211 = vpop.f32.mrb[0].mxu0
  %v212 = vadd.f32 %v41, %v211
  %v213 = vpop.f32.mrb[0].mxu0
  %v214 = vadd.f32 %v45, %v213
  %215 = vmatprep.mubr.bf16.mxu0 0
  %216 = vmatmul.mubr.bf16.gmra.mrb[0].mxu0 %v118
  %v217 = vpop.f32.mrb[0].mxu0
  %v218 = vadd.f32 %v41, %v217
  %v219 = vpop.f32.mrb[0].mxu0
  %v220 = vadd.f32 %v45, %v219
  %v221 = vpop.f32.mrb[0].mxu0
  %v222 = vadd.f32 %v41, %v221
  %v223 = vpop.f32.mrb[0].mxu0
  %v224 = vadd.f32 %v45, %v223
  %225 = vmatprep.mubr.bf16.mxu0 0
  %226 = vmatmul.mubr.bf16.gmra.mrb[0].mxu0 %v121
  %v227 = vpop.f32.mrb[0].mxu0
  %v228 = vadd.f32 %v41, %v227
  %v229 = vpop.f32.mrb[0].mxu0
  %v230 = vadd.f32 %v45, %v229
  %v231 = vpop.f32.mrb[0].mxu0
  %v232 = vadd.f32 %v41, %v231
  %v233 = vpop.f32.mrb[0].mxu0
  %v234 = vadd.f32 %v45, %v233
  %235 = vdwg.mxu0
  %v236 = vpack.c.bf16 %v162, %v158
  %v237 = vpack.c.bf16 %v164, %v160
  %v238 = vpack.c.bf16 %v172, %v168
  %v239 = vpack.c.bf16 %v174, %v170
  %v240 = vpack.c.bf16 %v182, %v178
  %v241 = vpack.c.bf16 %v184, %v180
  %v242 = vpack.c.bf16 %v192, %v188
  %v243 = vpack.c.bf16 %v194, %v190
  %v244 = vpack.c.bf16 %v202, %v198
  %v245 = vpack.c.bf16 %v204, %v200
  %v246 = vpack.c.bf16 %v212, %v208
  %v247 = vpack.c.bf16 %v214, %v210
  %v248 = vpack.c.bf16 %v222, %v218
  %v249 = vpack.c.bf16 %v224, %v220
  %v250 = vpack.c.bf16 %v232, %v228
  %v251 = vpack.c.bf16 %v234, %v230
  %252 = vst [vmem:[#allocation2] sm:$0xff] %v236
  %253 = vst [vmem:[#allocation2 + $0x8] sm:$0xff] %v237
  %254 = vst [vmem:[#allocation2 + $0x10] sm:$0xff] %v238
  %255 = vst [vmem:[#allocation2 + $0x18] sm:$0xff] %v239
  %256 = vst [vmem:[#allocation2 + $0x20] sm:$0xff] %v240
  %257 = vst [vmem:[#allocation2 + $0x28] sm:$0xff] %v241
  %258 = vst [vmem:[#allocation2 + $0x30] sm:$0xff] %v242
  %259 = vst [vmem:[#allocation2 + $0x38] sm:$0xff] %v243
  %260 = vst [vmem:[#allocation2 + $0x40] sm:$0xff] %v244
  %261 = vst [vmem:[#allocation2 + $0x48] sm:$0xff] %v245
  %262 = vst [vmem:[#allocation2 + $0x50] sm:$0xff] %v246
  %263 = vst [vmem:[#allocation2 + $0x58] sm:$0xff] %v247
  %264 = vst [vmem:[#allocation2 + $0x60] sm:$0xff] %v248
  %265 = vst [vmem:[#allocation2 + $0x68] sm:$0xff] %v249
  %266 = vst [vmem:[#allocation2 + $0x70] sm:$0xff] %v250
  %267 = vst [vmem:[#allocation2 + $0x78] sm:$0xff] %v251
  %vm268 = vcmask 523264
  %269 = vst.msk [vmem:[#allocation3] sm:$0xff] %vm268, 0
  %270 = vst.msk [vmem:[#allocation4] sm:$0xff] %vm268, 0.0
  %271 = vst.msk [vmem:[#allocation4 + $0x8] sm:$0xff] %vm268, 0.0
  %v272 = vld [vmem:[%s2] sm:$0xff]
  %v273 = vld [vmem:[%s2 + $0x8] sm:$0xff]
  %v274 = vld [vmem:[%s2 + $0x10] sm:$0xff]
  %v275 = vld [vmem:[%s2 + $0x18] sm:$0xff]
  %v276 = vld [vmem:[%s2 + $0x20] sm:$0xff]
  %v277 = vld [vmem:[%s2 + $0x28] sm:$0xff]
  %v278 = vld [vmem:[%s2 + $0x30] sm:$0xff]
  %v279 = vld [vmem:[%s2 + $0x38] sm:$0xff]
  %v280 = vld [vmem:[#allocation3] sm:$0xff]
  %v289 = vunpack.c.l.b16 %v272
  %v290 = vunpack.c.h.b16 %v272
  %v291 = vunpack.c.l.b16 %v273
  %v292 = vunpack.c.h.b16 %v273
  %v293 = vunpack.c.l.b16 %v274
  %v294 = vunpack.c.h.b16 %v274
  %v295 = vunpack.c.l.b16 %v275
  %v296 = vunpack.c.h.b16 %v275
  %v297 = vunpack.c.l.b16 %v276
  %v298 = vunpack.c.h.b16 %v276
  %v299 = vunpack.c.l.b16 %v277
  %v300 = vunpack.c.h.b16 %v277
  %v301 = vunpack.c.l.b16 %v278
  %v302 = vunpack.c.h.b16 %v278
  %v303 = vunpack.c.l.b16 %v279
  %v304 = vunpack.c.h.b16 %v279
  %v305 = vpack.c.b16 %v291, %v289
  %v306 = vpack.c.b16 %v292, %v290
  %v307 = vpack.c.b16 %v295, %v293
  %v308 = vpack.c.b16 %v296, %v294
  %v309 = vpack.c.b16 %v299, %v297
  %v310 = vpack.c.b16 %v300, %v298
  %v311 = vpack.c.b16 %v303, %v301
  %v312 = vpack.c.b16 %v304, %v302
  %v322 = vsel %vm268, %v280, 0
  %324 = vmatprep.subr.bf16.mxu0 %v306
  %325 = vmatpush1.bf16.msra.mxu0 %v305
  %326 = vmatprep.subr.bf16.mxu0 %v308
  %327 = vmatpush1.bf16.msra.mxu0 %v307
  %328 = vmatprep.subr.bf16.mxu0 %v310
  %329 = vmatpush1.bf16.msra.mxu0 %v309
  %330 = vmatprep.subr.bf16.mxu0 %v312
  %331 = vmatpush1.bf16.msra.mxu0 %v311
  %332 = vmatprep.subr.bf16.mxu0 0
  %333 = vmatpush1.bf16.msra.mxu0 0
  %334 = vmatprep.subr.bf16.mxu0 0
  %335 = vmatpush1.bf16.msra.mxu0 0
  %336 = vmatprep.subr.bf16.mxu0 0
  %337 = vmatpush1.bf16.msra.mxu0 0
  %338 = vmatprep.subr.bf16.mxu0 0
  %339 = vmatpush1.bf16.msra.mxu0 0
  %340 = vmatprep.subr.bf16.mxu0 0
  %341 = vmatpush1.bf16.msra.mxu0 0
  %342 = vmatprep.subr.bf16.mxu0 0
  %343 = vmatpush1.bf16.msra.mxu0 0
  %344 = vmatprep.subr.bf16.mxu0 0
  %345 = vmatpush1.bf16.msra.mxu0 0
  %346 = vmatprep.subr.bf16.mxu0 0
  %347 = vmatpush1.bf16.msra.mxu0 0
  %348 = vmatprep.subr.bf16.mxu0 0
  %349 = vmatpush1.bf16.msra.mxu0 0
  %350 = vmatprep.subr.bf16.mxu0 0
  %351 = vmatpush1.bf16.msra.mxu0 0
  %352 = vmatprep.subr.bf16.mxu0 0
  %353 = vmatpush1.bf16.msra.mxu0 0
  %354 = vmatprep.subr.bf16.mxu0 0
  %355 = vmatpush1.bf16.msra.mxu0 0
  %356 = vmatprep.mubr.bf16.mxu0 0
  %357 = vmatmul.mubr.bf16.gmra.mrb[0].mxu0 %v322
  %v358 = vpop.f32.mrb[0].mxu0
  %v359 = vadd.f32 0.0, %v358
  %v360 = vpop.f32.mrb[0].mxu0
  %v361 = vadd.f32 0.0, %v360
  %v362 = vpop.f32.mrb[0].mxu0
  %v363 = vadd.f32 0.0, %v362
  %v364 = vpop.f32.mrb[0].mxu0
  %v365 = vadd.f32 0.0, %v364
  %366 = vdwg.mxu0
  %s367 = smul.u32 0, 2
  %s368 = smul.addr %s367, 8
  %s369 = scalar_lea.vmem [#allocation2], %s368
  %v370 = vld [vmem:[%s369] sm:$0xff]
  %v371 = vunpack.c.l.bf16 %v370
  %v372 = vunpack.c.h.bf16 %v370
  %v373 = vadd.f32 %v371, %v359
  %v374 = vadd.f32 %v372, %v363
  %s375 = smul.u32 7, 2
  %s376 = smul.addr %s375, 8
  %s377 = scalar_lea.vmem [#allocation2], %s376
  %v378 = vld [vmem:[%s377 + $0x8] sm:$0xff]
  %v379 = vunpack.c.l.bf16 %v378
  %v380 = vunpack.c.h.bf16 %v378
  %v381 = vadd.f32 %v379, %v361
  %v382 = vadd.f32 %v380, %v365
  %v383 = vld [vmem:[#allocation4] sm:$0xff]
  %v384 = vld [vmem:[#allocation4 + $0x8] sm:$0xff]
  %v385 = vxor.u32 %v373, 2147483648
  %v386 = vxor.u32 %v374, 2147483648
  %v387 = vmul.f32 %v385, 1.442695
  %v388 = vpow.pop %v387
  %v389 = vmul.f32 %v386, 1.442695
  %v390 = vpow.pop %v389
  %v391 = vadd.f32 %v388, 1.0
  %v392 = vadd.f32 %v390, 1.0
  %v393 = vrcp.pop %v391
  %v394 = vmul.f32 1.0, %v393
  %v395 = vrcp.pop %v392
  %v396 = vmul.f32 1.0, %v395
  %v397 = vtanh.pop %v373
  %v398 = vtanh.pop %v374
  %401 = vrot.lane.b32.xlu0 %v383, 32
  %v402 = vpop.permute.xlu0 %401
  %403 = vrot.lane.b32.xlu0 %v384, 32
  %v404 = vpop.permute.xlu0 %403
  %v407 = vmul.f32 %v394, %v402
  %v408 = vmul.f32 %v396, %v404
  %411 = vrot.lane.b32.xlu0 %v397, 64
  %v412 = vpop.permute.xlu0 %411
  %413 = vrot.lane.b32.xlu0 %v398, 64
  %v414 = vpop.permute.xlu0 %413
  %v417 = vmul.f32 %v394, %v412
  %v418 = vmul.f32 %v396, %v414
  %421 = vrot.lane.b32.xlu0 %v417, 32
  %v422 = vpop.permute.xlu0 %421
  %423 = vrot.lane.b32.xlu0 %v418, 32
  %v424 = vpop.permute.xlu0 %423
  %v427 = vadd.f32 %v407, %v422
  %v428 = vadd.f32 %v408, %v424
  %v429 = vtanh.pop %v427
  %v430 = vtanh.pop %v428
  %433 = vrot.lane.b32.xlu0 %v429, 64
  %v434 = vpop.permute.xlu0 %433
  %435 = vrot.lane.b32.xlu0 %v430, 64
  %v436 = vpop.permute.xlu0 %435
  %v439 = vmul.f32 %v394, %v434
  %v440 = vmul.f32 %v396, %v436
  %v441 = vxor.u32 %v381, 2147483648
  %v442 = vxor.u32 %v382, 2147483648
  %v443 = vmul.f32 %v441, 1.442695
  %v444 = vpow.pop %v443
  %v445 = vmul.f32 %v442, 1.442695
  %v446 = vpow.pop %v445
  %v447 = vadd.f32 %v444, 1.0
  %v448 = vadd.f32 %v446, 1.0
  %v449 = vrcp.pop %v447
  %v450 = vmul.f32 1.0, %v449
  %v451 = vrcp.pop %v448
  %v452 = vmul.f32 1.0, %v451
  %v453 = vtanh.pop %v381
  %v454 = vtanh.pop %v382
  %v455 = vmul.f32 %v450, %v383
  %v456 = vmul.f32 %v452, %v384
  %459 = vrot.lane.b32.xlu0 %v453, 64
  %v460 = vpop.permute.xlu0 %459
  %461 = vrot.lane.b32.xlu0 %v454, 64
  %v462 = vpop.permute.xlu0 %461
  %v465 = vmul.f32 %v450, %v460
  %v466 = vmul.f32 %v452, %v462
  %469 = vrot.lane.b32.xlu0 %v465, 32
  %v470 = vpop.permute.xlu0 %469
  %471 = vrot.lane.b32.xlu0 %v466, 32
  %v472 = vpop.permute.xlu0 %471
  %v475 = vadd.f32 %v455, %v470
  %v476 = vadd.f32 %v456, %v472
  %v477 = vtanh.pop %v475
  %v478 = vtanh.pop %v476
  %481 = vrot.lane.b32.xlu0 %v477, 64
  %v482 = vpop.permute.xlu0 %481
  %483 = vrot.lane.b32.xlu0 %v478, 64
  %v484 = vpop.permute.xlu0 %483
  %v487 = vmul.f32 %v450, %v482
  %v488 = vmul.f32 %v452, %v484
  %491 = vrot.lane.b32.xlu0 %v439, 32
  %v492 = vpop.permute.xlu0 %491
  %493 = vrot.lane.b32.xlu0 %v440, 32
  %v494 = vpop.permute.xlu0 %493
  %499 = vrot.lane.b32.xlu0 %v487, 64
  %v500 = vpop.permute.xlu0 %499
  %501 = vrot.lane.b32.xlu0 %v488, 64
  %v502 = vpop.permute.xlu0 %501
  %vm505 = vcmask 261120
  %v506 = vsel %vm505, %v492, %v500
  %v507 = vsel %vm505, %v494, %v502
  %v508 = vpack.c.bf16 %v507, %v506
  %509 = vst.msk [vmem:[#allocation3] sm:$0xff] %vm268, %v508
  %512 = vrot.lane.b32.xlu0 %v427, 96
  %v513 = vpop.permute.xlu0 %512
  %514 = vrot.lane.b32.xlu0 %v428, 96
  %v515 = vpop.permute.xlu0 %514
  %v518 = vsel %vm505, %v513, %v475
  %v519 = vsel %vm505, %v515, %v476
  %520 = vst.msk [vmem:[#allocation4] sm:$0xff] %vm268, %v518
  %521 = vst.msk [vmem:[#allocation4 + $0x8] sm:$0xff] %vm268, %v519
  %v522 = vpack.c.bf16 %v440, %v439
  %v524 = vunpack.c.l.b16 %v522
  %v525 = vunpack.c.h.b16 %v522
  %v526 = vpack.c.b16 %v524, %v524
  %v527 = vpack.c.b16 %v525, %v525
  %528 = vrot.lane.b32.xlu0 %v526, 32
  %v529 = vpop.permute.xlu0 %528
  %530 = vrot.lane.b32.xlu0 %v527, 32
  %v531 = vpop.permute.xlu0 %530
  %vm534 = vcmask 257024
  %535 = vst.msk [vmem:[%s4] sm:$0xf] %vm534, %v529
  %536 = vst.msk [vmem:[%s4 + $0x4] sm:$0xf] %vm534, %v531
  %v537 = vpack.c.bf16 %v488, %v487
  %v539 = vunpack.c.l.b16 %v537
  %v540 = vunpack.c.h.b16 %v537
  %v541 = vpack.c.b16 %v539, %v539
  %v542 = vpack.c.b16 %v540, %v540
  %543 = vrot.lane.b32.xlu0 %v541, 64
  %v544 = vpop.permute.xlu0 %543
  %545 = vrot.lane.b32.xlu0 %v542, 64
  %v546 = vpop.permute.xlu0 %545
  %s549 = scalar_lea.vmem %s4, 56
  %vm550 = vcmask 519424
  %551 = vst.msk [vmem:[%s549] sm:$0xf] %vm550, %v544
  %552 = vst.msk [vmem:[%s549 + $0x4] sm:$0xf] %vm550, %v546
  %v553 = vld [vmem:[#allocation3] sm:$0xff]
  %v555 = vsel %vm268, %v553, 0
  %557 = vmatprep.subr.bf16.mxu0 %v306
  %558 = vmatpush1.bf16.msra.mxu0 %v305
  %559 = vmatprep.subr.bf16.mxu0 %v308
  %560 = vmatpush1.bf16.msra.mxu0 %v307
  %561 = vmatprep.subr.bf16.mxu0 %v310
  %562 = vmatpush1.bf16.msra.mxu0 %v309
  %563 = vmatprep.subr.bf16.mxu0 %v312
  %564 = vmatpush1.bf16.msra.mxu0 %v311
  %565 = vmatprep.subr.bf16.mxu0 0
  %566 = vmatpush1.bf16.msra.mxu0 0
  %567 = vmatprep.subr.bf16.mxu0 0
  %568 = vmatpush1.bf16.msra.mxu0 0
  %569 = vmatprep.subr.bf16.mxu0 0
  %570 = vmatpush1.bf16.msra.mxu0 0
  %571 = vmatprep.subr.bf16.mxu0 0
  %572 = vmatpush1.bf16.msra.mxu0 0
  %573 = vmatprep.subr.bf16.mxu0 0
  %574 = vmatpush1.bf16.msra.mxu0 0
  %575 = vmatprep.subr.bf16.mxu0 0
  %576 = vmatpush1.bf16.msra.mxu0 0
  %577 = vmatprep.subr.bf16.mxu0 0
  %578 = vmatpush1.bf16.msra.mxu0 0
  %579 = vmatprep.subr.bf16.mxu0 0
  %580 = vmatpush1.bf16.msra.mxu0 0
  %581 = vmatprep.subr.bf16.mxu0 0
  %582 = vmatpush1.bf16.msra.mxu0 0
  %583 = vmatprep.subr.bf16.mxu0 0
  %584 = vmatpush1.bf16.msra.mxu0 0
  %585 = vmatprep.subr.bf16.mxu0 0
  %586 = vmatpush1.bf16.msra.mxu0 0
  %587 = vmatprep.subr.bf16.mxu0 0
  %588 = vmatpush1.bf16.msra.mxu0 0
  %589 = vmatprep.mubr.bf16.mxu0 0
  %590 = vmatmul.mubr.bf16.gmra.mrb[0].mxu0 %v555
  %v591 = vpop.f32.mrb[0].mxu0
  %v592 = vadd.f32 0.0, %v591
  %v593 = vpop.f32.mrb[0].mxu0
  %v594 = vadd.f32 0.0, %v593
  %v595 = vpop.f32.mrb[0].mxu0
  %v596 = vadd.f32 0.0, %v595
  %v597 = vpop.f32.mrb[0].mxu0
  %v598 = vadd.f32 0.0, %v597
  %599 = vdwg.mxu0
  %s600 = smul.u32 1, 2
  %s601 = smul.addr %s600, 8
  %s602 = scalar_lea.vmem [#allocation2], %s601
  %v603 = vld [vmem:[%s602] sm:$0xff]
  %v604 = vunpack.c.l.bf16 %v603
  %v605 = vunpack.c.h.bf16 %v603
  %v606 = vadd.f32 %v604, %v592
  %v607 = vadd.f32 %v605, %v596
  %s608 = smul.u32 6, 2
  %s609 = smul.addr %s608, 8
  %s610 = scalar_lea.vmem [#allocation2], %s609
  %v611 = vld [vmem:[%s610 + $0x8] sm:$0xff]
  %v612 = vunpack.c.l.bf16 %v611
  %v613 = vunpack.c.h.bf16 %v611
  %v614 = vadd.f32 %v612, %v594
  %v615 = vadd.f32 %v613, %v598
  %v616 = vld [vmem:[#allocation4] sm:$0xff]
  %v617 = vld [vmem:[#allocation4 + $0x8] sm:$0xff]
  %v618 = vxor.u32 %v606, 2147483648
  %v619 = vxor.u32 %v607, 2147483648
  %v620 = vmul.f32 %v618, 1.442695
  %v621 = vpow.pop %v620
  %v622 = vmul.f32 %v619, 1.442695
  %v623 = vpow.pop %v622
  %v624 = vadd.f32 %v621, 1.0
  %v625 = vadd.f32 %v623, 1.0
  %v626 = vrcp.pop %v624
  %v627 = vmul.f32 1.0, %v626
  %v628 = vrcp.pop %v625
  %v629 = vmul.f32 1.0, %v628
  %v630 = vtanh.pop %v606
  %v631 = vtanh.pop %v607
  %634 = vrot.lane.b32.xlu0 %v616, 32
  %v635 = vpop.permute.xlu0 %634
  %636 = vrot.lane.b32.xlu0 %v617, 32
  %v637 = vpop.permute.xlu0 %636
  %v640 = vmul.f32 %v627, %v635
  %v641 = vmul.f32 %v629, %v637
  %644 = vrot.lane.b32.xlu0 %v630, 64
  %v645 = vpop.permute.xlu0 %644
  %646 = vrot.lane.b32.xlu0 %v631, 64
  %v647 = vpop.permute.xlu0 %646
  %v650 = vmul.f32 %v627, %v645
  %v651 = vmul.f32 %v629, %v647
  %654 = vrot.lane.b32.xlu0 %v650, 32
  %v655 = vpop.permute.xlu0 %654
  %656 = vrot.lane.b32.xlu0 %v651, 32
  %v657 = vpop.permute.xlu0 %656
  %v660 = vadd.f32 %v640, %v655
  %v661 = vadd.f32 %v641, %v657
  %v662 = vtanh.pop %v660
  %v663 = vtanh.pop %v661
  %666 = vrot.lane.b32.xlu0 %v662, 64
  %v667 = vpop.permute.xlu0 %666
  %668 = vrot.lane.b32.xlu0 %v663, 64
  %v669 = vpop.permute.xlu0 %668
  %v672 = vmul.f32 %v627, %v667
  %v673 = vmul.f32 %v629, %v669
  %v674 = vxor.u32 %v614, 2147483648
  %v675 = vxor.u32 %v615, 2147483648
  %v676 = vmul.f32 %v674, 1.442695
  %v677 = vpow.pop %v676
  %v678 = vmul.f32 %v675, 1.442695
  %v679 = vpow.pop %v678
  %v680 = vadd.f32 %v677, 1.0
  %v681 = vadd.f32 %v679, 1.0
  %v682 = vrcp.pop %v680
  %v683 = vmul.f32 1.0, %v682
  %v684 = vrcp.pop %v681
  %v685 = vmul.f32 1.0, %v684
  %v686 = vtanh.pop %v614
  %v687 = vtanh.pop %v615
  %v688 = vmul.f32 %v683, %v616
  %v689 = vmul.f32 %v685, %v617
  %692 = vrot.lane.b32.xlu0 %v686, 64
  %v693 = vpop.permute.xlu0 %692
  %694 = vrot.lane.b32.xlu0 %v687, 64
  %v695 = vpop.permute.xlu0 %694
  %v698 = vmul.f32 %v683, %v693
  %v699 = vmul.f32 %v685, %v695
  %702 = vrot.lane.b32.xlu0 %v698, 32
  %v703 = vpop.permute.xlu0 %702
  %704 = vrot.lane.b32.xlu0 %v699, 32
  %v705 = vpop.permute.xlu0 %704
  %v708 = vadd.f32 %v688, %v703
  %v709 = vadd.f32 %v689, %v705
  %v710 = vtanh.pop %v708
  %v711 = vtanh.pop %v709
  %714 = vrot.lane.b32.xlu0 %v710, 64
  %v715 = vpop.permute.xlu0 %714
  %716 = vrot.lane.b32.xlu0 %v711, 64
  %v717 = vpop.permute.xlu0 %716
  %v720 = vmul.f32 %v683, %v715
  %v721 = vmul.f32 %v685, %v717
  %724 = vrot.lane.b32.xlu0 %v672, 32
  %v725 = vpop.permute.xlu0 %724
  %726 = vrot.lane.b32.xlu0 %v673, 32
  %v727 = vpop.permute.xlu0 %726
  %732 = vrot.lane.b32.xlu0 %v720, 64
  %v733 = vpop.permute.xlu0 %732
  %734 = vrot.lane.b32.xlu0 %v721, 64
  %v735 = vpop.permute.xlu0 %734
  %v738 = vsel %vm505, %v725, %v733
  %v739 = vsel %vm505, %v727, %v735
  %v740 = vpack.c.bf16 %v739, %v738
  %741 = vst.msk [vmem:[#allocation3] sm:$0xff] %vm268, %v740
  %744 = vrot.lane.b32.xlu0 %v660, 96
  %v745 = vpop.permute.xlu0 %744
  %746 = vrot.lane.b32.xlu0 %v661, 96
  %v747 = vpop.permute.xlu0 %746
  %v750 = vsel %vm505, %v745, %v708
  %v751 = vsel %vm505, %v747, %v709
  %752 = vst.msk [vmem:[#allocation4] sm:$0xff] %vm268, %v750
  %753 = vst.msk [vmem:[#allocation4 + $0x8] sm:$0xff] %vm268, %v751
  %v754 = vpack.c.bf16 %v673, %v672
  %v756 = vunpack.c.l.b16 %v754
  %v757 = vunpack.c.h.b16 %v754
  %v758 = vpack.c.b16 %v756, %v756
  %v759 = vpack.c.b16 %v757, %v757
  %760 = vrot.lane.b32.xlu0 %v758, 32
  %v761 = vpop.permute.xlu0 %760
  %762 = vrot.lane.b32.xlu0 %v759, 32
  %v763 = vpop.permute.xlu0 %762
  %s766 = scalar_lea.vmem %s4, 8
  %767 = vst.msk [vmem:[%s766] sm:$0xf] %vm534, %v761
  %768 = vst.msk [vmem:[%s766 + $0x4] sm:$0xf] %vm534, %v763
  %v769 = vpack.c.bf16 %v721, %v720
  %v771 = vunpack.c.l.b16 %v769
  %v772 = vunpack.c.h.b16 %v769
  %v773 = vpack.c.b16 %v771, %v771
  %v774 = vpack.c.b16 %v772, %v772
  %775 = vrot.lane.b32.xlu0 %v773, 64
  %v776 = vpop.permute.xlu0 %775
  %777 = vrot.lane.b32.xlu0 %v774, 64
  %v778 = vpop.permute.xlu0 %777
  %s781 = scalar_lea.vmem %s4, 48
  %782 = vst.msk [vmem:[%s781] sm:$0xf] %vm550, %v776
  %783 = vst.msk [vmem:[%s781 + $0x4] sm:$0xf] %vm550, %v778
  %v784 = vld [vmem:[#allocation3] sm:$0xff]
  %v786 = vsel %vm268, %v784, 0
  %788 = vmatprep.subr.bf16.mxu0 %v306
  %789 = vmatpush1.bf16.msra.mxu0 %v305
  %790 = vmatprep.subr.bf16.mxu0 %v308
  %791 = vmatpush1.bf16.msra.mxu0 %v307
  %792 = vmatprep.subr.bf16.mxu0 %v310
  %793 = vmatpush1.bf16.msra.mxu0 %v309
  %794 = vmatprep.subr.bf16.mxu0 %v312
  %795 = vmatpush1.bf16.msra.mxu0 %v311
  %796 = vmatprep.subr.bf16.mxu0 0
  %797 = vmatpush1.bf16.msra.mxu0 0
  %798 = vmatprep.subr.bf16.mxu0 0
  %799 = vmatpush1.bf16.msra.mxu0 0
  %800 = vmatprep.subr.bf16.mxu0 0
  %801 = vmatpush1.bf16.msra.mxu0 0
  %802 = vmatprep.subr.bf16.mxu0 0
  %803 = vmatpush1.bf16.msra.mxu0 0
  %804 = vmatprep.subr.bf16.mxu0 0
  %805 = vmatpush1.bf16.msra.mxu0 0
  %806 = vmatprep.subr.bf16.mxu0 0
  %807 = vmatpush1.bf16.msra.mxu0 0
  %808 = vmatprep.subr.bf16.mxu0 0
  %809 = vmatpush1.bf16.msra.mxu0 0
  %810 = vmatprep.subr.bf16.mxu0 0
  %811 = vmatpush1.bf16.msra.mxu0 0
  %812 = vmatprep.subr.bf16.mxu0 0
  %813 = vmatpush1.bf16.msra.mxu0 0
  %814 = vmatprep.subr.bf16.mxu0 0
  %815 = vmatpush1.bf16.msra.mxu0 0
  %816 = vmatprep.subr.bf16.mxu0 0
  %817 = vmatpush1.bf16.msra.mxu0 0
  %818 = vmatprep.subr.bf16.mxu0 0
  %819 = vmatpush1.bf16.msra.mxu0 0
  %820 = vmatprep.mubr.bf16.mxu0 0
  %821 = vmatmul.mubr.bf16.gmra.mrb[0].mxu0 %v786
  %v822 = vpop.f32.mrb[0].mxu0
  %v823 = vadd.f32 0.0, %v822
  %v824 = vpop.f32.mrb[0].mxu0
  %v825 = vadd.f32 0.0, %v824
  %v826 = vpop.f32.mrb[0].mxu0
  %v827 = vadd.f32 0.0, %v826
  %v828 = vpop.f32.mrb[0].mxu0
  %v829 = vadd.f32 0.0, %v828
  %830 = vdwg.mxu0
  %s831 = smul.u32 2, 2
  %s832 = smul.addr %s831, 8
  %s833 = scalar_lea.vmem [#allocation2], %s832
  %v834 = vld [vmem:[%s833] sm:$0xff]
  %v835 = vunpack.c.l.bf16 %v834
  %v836 = vunpack.c.h.bf16 %v834
  %v837 = vadd.f32 %v835, %v823
  %v838 = vadd.f32 %v836, %v827
  %s839 = smul.u32 5, 2
  %s840 = smul.addr %s839, 8
  %s841 = scalar_lea.vmem [#allocation2], %s840
  %v842 = vld [vmem:[%s841 + $0x8] sm:$0xff]
  %v843 = vunpack.c.l.bf16 %v842
  %v844 = vunpack.c.h.bf16 %v842
  %v845 = vadd.f32 %v843, %v825
  %v846 = vadd.f32 %v844, %v829
  %v847 = vld [vmem:[#allocation4] sm:$0xff]
  %v848 = vld [vmem:[#allocation4 + $0x8] sm:$0xff]
  %v849 = vxor.u32 %v837, 2147483648
  %v850 = vxor.u32 %v838, 2147483648
  %v851 = vmul.f32 %v849, 1.442695
  %v852 = vpow.pop %v851
  %v853 = vmul.f32 %v850, 1.442695
  %v854 = vpow.pop %v853
  %v855 = vadd.f32 %v852, 1.0
  %v856 = vadd.f32 %v854, 1.0
  %v857 = vrcp.pop %v855
  %v858 = vmul.f32 1.0, %v857
  %v859 = vrcp.pop %v856
  %v860 = vmul.f32 1.0, %v859
  %v861 = vtanh.pop %v837
  %v862 = vtanh.pop %v838
  %865 = vrot.lane.b32.xlu0 %v847, 32
  %v866 = vpop.permute.xlu0 %865
  %867 = vrot.lane.b32.xlu0 %v848, 32
  %v868 = vpop.permute.xlu0 %867
  %v871 = vmul.f32 %v858, %v866
  %v872 = vmul.f32 %v860, %v868
  %875 = vrot.lane.b32.xlu0 %v861, 64
  %v876 = vpop.permute.xlu0 %875
  %877 = vrot.lane.b32.xlu0 %v862, 64
  %v878 = vpop.permute.xlu0 %877
  %v881 = vmul.f32 %v858, %v876
  %v882 = vmul.f32 %v860, %v878
  %885 = vrot.lane.b32.xlu0 %v881, 32
  %v886 = vpop.permute.xlu0 %885
  %887 = vrot.lane.b32.xlu0 %v882, 32
  %v888 = vpop.permute.xlu0 %887
  %v891 = vadd.f32 %v871, %v886
  %v892 = vadd.f32 %v872, %v888
  %v893 = vtanh.pop %v891
  %v894 = vtanh.pop %v892
  %897 = vrot.lane.b32.xlu0 %v893, 64
  %v898 = vpop.permute.xlu0 %897
  %899 = vrot.lane.b32.xlu0 %v894, 64
  %v900 = vpop.permute.xlu0 %899
  %v903 = vmul.f32 %v858, %v898
  %v904 = vmul.f32 %v860, %v900
  %v905 = vxor.u32 %v845, 2147483648
  %v906 = vxor.u32 %v846, 2147483648
  %v907 = vmul.f32 %v905, 1.442695
  %v908 = vpow.pop %v907
  %v909 = vmul.f32 %v906, 1.442695
  %v910 = vpow.pop %v909
  %v911 = vadd.f32 %v908, 1.0
  %v912 = vadd.f32 %v910, 1.0
  %v913 = vrcp.pop %v911
  %v914 = vmul.f32 1.0, %v913
  %v915 = vrcp.pop %v912
  %v916 = vmul.f32 1.0, %v915
  %v917 = vtanh.pop %v845
  %v918 = vtanh.pop %v846
  %v919 = vmul.f32 %v914, %v847
  %v920 = vmul.f32 %v916, %v848
  %923 = vrot.lane.b32.xlu0 %v917, 64
  %v924 = vpop.permute.xlu0 %923
  %925 = vrot.lane.b32.xlu0 %v918, 64
  %v926 = vpop.permute.xlu0 %925
  %v929 = vmul.f32 %v914, %v924
  %v930 = vmul.f32 %v916, %v926
  %933 = vrot.lane.b32.xlu0 %v929, 32
  %v934 = vpop.permute.xlu0 %933
  %935 = vrot.lane.b32.xlu0 %v930, 32
  %v936 = vpop.permute.xlu0 %935
  %v939 = vadd.f32 %v919, %v934
  %v940 = vadd.f32 %v920, %v936
  %v941 = vtanh.pop %v939
  %v942 = vtanh.pop %v940
  %945 = vrot.lane.b32.xlu0 %v941, 64
  %v946 = vpop.permute.xlu0 %945
  %947 = vrot.lane.b32.xlu0 %v942, 64
  %v948 = vpop.permute.xlu0 %947
  %v951 = vmul.f32 %v914, %v946
  %v952 = vmul.f32 %v916, %v948
  %955 = vrot.lane.b32.xlu0 %v903, 32
  %v956 = vpop.permute.xlu0 %955
  %957 = vrot.lane.b32.xlu0 %v904, 32
  %v958 = vpop.permute.xlu0 %957
  %963 = vrot.lane.b32.xlu0 %v951, 64
  %v964 = vpop.permute.xlu0 %963
  %965 = vrot.lane.b32.xlu0 %v952, 64
  %v966 = vpop.permute.xlu0 %965
  %v969 = vsel %vm505, %v956, %v964
  %v970 = vsel %vm505, %v958, %v966
  %v971 = vpack.c.bf16 %v970, %v969
  %972 = vst.msk [vmem:[#allocation3] sm:$0xff] %vm268, %v971
  %975 = vrot.lane.b32.xlu0 %v891, 96
  %v976 = vpop.permute.xlu0 %975
  %977 = vrot.lane.b32.xlu0 %v892, 96
  %v978 = vpop.permute.xlu0 %977
  %v981 = vsel %vm505, %v976, %v939
  %v982 = vsel %vm505, %v978, %v940
  %983 = vst.msk [vmem:[#allocation4] sm:$0xff] %vm268, %v981
  %984 = vst.msk [vmem:[#allocation4 + $0x8] sm:$0xff] %vm268, %v982
  %v985 = vpack.c.bf16 %v904, %v903
  %v987 = vunpack.c.l.b16 %v985
  %v988 = vunpack.c.h.b16 %v985
  %v989 = vpack.c.b16 %v987, %v987
  %v990 = vpack.c.b16 %v988, %v988
  %991 = vrot.lane.b32.xlu0 %v989, 32
  %v992 = vpop.permute.xlu0 %991
  %993 = vrot.lane.b32.xlu0 %v990, 32
  %v994 = vpop.permute.xlu0 %993
  %s997 = scalar_lea.vmem %s4, 16
  %998 = vst.msk [vmem:[%s997] sm:$0xf] %vm534, %v992
  %999 = vst.msk [vmem:[%s997 + $0x4] sm:$0xf] %vm534, %v994
  %v1000 = vpack.c.bf16 %v952, %v951
  %v1002 = vunpack.c.l.b16 %v1000
  %v1003 = vunpack.c.h.b16 %v1000
  %v1004 = vpack.c.b16 %v1002, %v1002
  %v1005 = vpack.c.b16 %v1003, %v1003
  %1006 = vrot.lane.b32.xlu0 %v1004, 64
  %v1007 = vpop.permute.xlu0 %1006
  %1008 = vrot.lane.b32.xlu0 %v1005, 64
  %v1009 = vpop.permute.xlu0 %1008
  %s1012 = scalar_lea.vmem %s4, 40
  %1013 = vst.msk [vmem:[%s1012] sm:$0xf] %vm550, %v1007
  %1014 = vst.msk [vmem:[%s1012 + $0x4] sm:$0xf] %vm550, %v1009
  %v1015 = vld [vmem:[#allocation3] sm:$0xff]
  %v1017 = vsel %vm268, %v1015, 0
  %1019 = vmatprep.subr.bf16.mxu0 %v306
  %1020 = vmatpush1.bf16.msra.mxu0 %v305
  %1021 = vmatprep.subr.bf16.mxu0 %v308
  %1022 = vmatpush1.bf16.msra.mxu0 %v307
  %1023 = vmatprep.subr.bf16.mxu0 %v310
  %1024 = vmatpush1.bf16.msra.mxu0 %v309
  %1025 = vmatprep.subr.bf16.mxu0 %v312
  %1026 = vmatpush1.bf16.msra.mxu0 %v311
  %1027 = vmatprep.subr.bf16.mxu0 0
  %1028 = vmatpush1.bf16.msra.mxu0 0
  %1029 = vmatprep.subr.bf16.mxu0 0
  %1030 = vmatpush1.bf16.msra.mxu0 0
  %1031 = vmatprep.subr.bf16.mxu0 0
  %1032 = vmatpush1.bf16.msra.mxu0 0
  %1033 = vmatprep.subr.bf16.mxu0 0
  %1034 = vmatpush1.bf16.msra.mxu0 0
  %1035 = vmatprep.subr.bf16.mxu0 0
  %1036 = vmatpush1.bf16.msra.mxu0 0
  %1037 = vmatprep.subr.bf16.mxu0 0
  %1038 = vmatpush1.bf16.msra.mxu0 0
  %1039 = vmatprep.subr.bf16.mxu0 0
  %1040 = vmatpush1.bf16.msra.mxu0 0
  %1041 = vmatprep.subr.bf16.mxu0 0
  %1042 = vmatpush1.bf16.msra.mxu0 0
  %1043 = vmatprep.subr.bf16.mxu0 0
  %1044 = vmatpush1.bf16.msra.mxu0 0
  %1045 = vmatprep.subr.bf16.mxu0 0
  %1046 = vmatpush1.bf16.msra.mxu0 0
  %1047 = vmatprep.subr.bf16.mxu0 0
  %1048 = vmatpush1.bf16.msra.mxu0 0
  %1049 = vmatprep.subr.bf16.mxu0 0
  %1050 = vmatpush1.bf16.msra.mxu0 0
  %1051 = vmatprep.mubr.bf16.mxu0 0
  %1052 = vmatmul.mubr.bf16.gmra.mrb[0].mxu0 %v1017
  %v1053 = vpop.f32.mrb[0].mxu0
  %v1054 = vadd.f32 0.0, %v1053
  %v1055 = vpop.f32.mrb[0].mxu0
  %v1056 = vadd.f32 0.0, %v1055
  %v1057 = vpop.f32.mrb[0].mxu0
  %v1058 = vadd.f32 0.0, %v1057
  %v1059 = vpop.f32.mrb[0].mxu0
  %v1060 = vadd.f32 0.0, %v1059
  %1061 = vdwg.mxu0
  %s1062 = smul.u32 3, 2
  %s1063 = smul.addr %s1062, 8
  %s1064 = scalar_lea.vmem [#allocation2], %s1063
  %v1065 = vld [vmem:[%s1064] sm:$0xff]
  %v1066 = vunpack.c.l.bf16 %v1065
  %v1067 = vunpack.c.h.bf16 %v1065
  %v1068 = vadd.f32 %v1066, %v1054
  %v1069 = vadd.f32 %v1067, %v1058
  %s1070 = smul.u32 4, 2
  %s1071 = smul.addr %s1070, 8
  %s1072 = scalar_lea.vmem [#allocation2], %s1071
  %v1073 = vld [vmem:[%s1072 + $0x8] sm:$0xff]
  %v1074 = vunpack.c.l.bf16 %v1073
  %v1075 = vunpack.c.h.bf16 %v1073
  %v1076 = vadd.f32 %v1074, %v1056
  %v1077 = vadd.f32 %v1075, %v1060
  %v1078 = vld [vmem:[#allocation4] sm:$0xff]
  %v1079 = vld [vmem:[#allocation4 + $0x8] sm:$0xff]
  %v1080 = vxor.u32 %v1068, 2147483648
  %v1081 = vxor.u32 %v1069, 2147483648
  %v1082 = vmul.f32 %v1080, 1.442695
  %v1083 = vpow.pop %v1082
  %v1084 = vmul.f32 %v1081, 1.442695
  %v1085 = vpow.pop %v1084
  %v1086 = vadd.f32 %v1083, 1.0
  %v1087 = vadd.f32 %v1085, 1.0
  %v1088 = vrcp.pop %v1086
  %v1089 = vmul.f32 1.0, %v1088
  %v1090 = vrcp.pop %v1087
  %v1091 = vmul.f32 1.0, %v1090
  %v1092 = vtanh.pop %v1068
  %v1093 = vtanh.pop %v1069
  %1096 = vrot.lane.b32.xlu0 %v1078, 32
  %v1097 = vpop.permute.xlu0 %1096
  %1098 = vrot.lane.b32.xlu0 %v1079, 32
  %v1099 = vpop.permute.xlu0 %1098
  %v1102 = vmul.f32 %v1089, %v1097
  %v1103 = vmul.f32 %v1091, %v1099
  %1106 = vrot.lane.b32.xlu0 %v1092, 64
  %v1107 = vpop.permute.xlu0 %1106
  %1108 = vrot.lane.b32.xlu0 %v1093, 64
  %v1109 = vpop.permute.xlu0 %1108
  %v1112 = vmul.f32 %v1089, %v1107
  %v1113 = vmul.f32 %v1091, %v1109
  %1116 = vrot.lane.b32.xlu0 %v1112, 32
  %v1117 = vpop.permute.xlu0 %1116
  %1118 = vrot.lane.b32.xlu0 %v1113, 32
  %v1119 = vpop.permute.xlu0 %1118
  %v1122 = vadd.f32 %v1102, %v1117
  %v1123 = vadd.f32 %v1103, %v1119
  %v1124 = vtanh.pop %v1122
  %v1125 = vtanh.pop %v1123
  %1128 = vrot.lane.b32.xlu0 %v1124, 64
  %v1129 = vpop.permute.xlu0 %1128
  %1130 = vrot.lane.b32.xlu0 %v1125, 64
  %v1131 = vpop.permute.xlu0 %1130
  %v1134 = vmul.f32 %v1089, %v1129
  %v1135 = vmul.f32 %v1091, %v1131
  %v1136 = vxor.u32 %v1076, 2147483648
  %v1137 = vxor.u32 %v1077, 2147483648
  %v1138 = vmul.f32 %v1136, 1.442695
  %v1139 = vpow.pop %v1138
  %v1140 = vmul.f32 %v1137, 1.442695
  %v1141 = vpow.pop %v1140
  %v1142 = vadd.f32 %v1139, 1.0
  %v1143 = vadd.f32 %v1141, 1.0
  %v1144 = vrcp.pop %v1142
  %v1145 = vmul.f32 1.0, %v1144
  %v1146 = vrcp.pop %v1143
  %v1147 = vmul.f32 1.0, %v1146
  %v1148 = vtanh.pop %v1076
  %v1149 = vtanh.pop %v1077
  %v1150 = vmul.f32 %v1145, %v1078
  %v1151 = vmul.f32 %v1147, %v1079
  %1154 = vrot.lane.b32.xlu0 %v1148, 64
  %v1155 = vpop.permute.xlu0 %1154
  %1156 = vrot.lane.b32.xlu0 %v1149, 64
  %v1157 = vpop.permute.xlu0 %1156
  %v1160 = vmul.f32 %v1145, %v1155
  %v1161 = vmul.f32 %v1147, %v1157
  %1164 = vrot.lane.b32.xlu0 %v1160, 32
  %v1165 = vpop.permute.xlu0 %1164
  %1166 = vrot.lane.b32.xlu0 %v1161, 32
  %v1167 = vpop.permute.xlu0 %1166
  %v1170 = vadd.f32 %v1150, %v1165
  %v1171 = vadd.f32 %v1151, %v1167
  %v1172 = vtanh.pop %v1170
  %v1173 = vtanh.pop %v1171
  %1176 = vrot.lane.b32.xlu0 %v1172, 64
  %v1177 = vpop.permute.xlu0 %1176
  %1178 = vrot.lane.b32.xlu0 %v1173, 64
  %v1179 = vpop.permute.xlu0 %1178
  %v1182 = vmul.f32 %v1145, %v1177
  %v1183 = vmul.f32 %v1147, %v1179
  %1186 = vrot.lane.b32.xlu0 %v1134, 32
  %v1187 = vpop.permute.xlu0 %1186
  %1188 = vrot.lane.b32.xlu0 %v1135, 32
  %v1189 = vpop.permute.xlu0 %1188
  %1194 = vrot.lane.b32.xlu0 %v1182, 64
  %v1195 = vpop.permute.xlu0 %1194
  %1196 = vrot.lane.b32.xlu0 %v1183, 64
  %v1197 = vpop.permute.xlu0 %1196
  %v1200 = vsel %vm505, %v1187, %v1195
  %v1201 = vsel %vm505, %v1189, %v1197
  %v1202 = vpack.c.bf16 %v1201, %v1200
  %1203 = vst.msk [vmem:[#allocation3] sm:$0xff] %vm268, %v1202
  %1206 = vrot.lane.b32.xlu0 %v1122, 96
  %v1207 = vpop.permute.xlu0 %1206
  %1208 = vrot.lane.b32.xlu0 %v1123, 96
  %v1209 = vpop.permute.xlu0 %1208
  %v1212 = vsel %vm505, %v1207, %v1170
  %v1213 = vsel %vm505, %v1209, %v1171
  %1214 = vst.msk [vmem:[#allocation4] sm:$0xff] %vm268, %v1212
  %1215 = vst.msk [vmem:[#allocation4 + $0x8] sm:$0xff] %vm268, %v1213
  %v1216 = vpack.c.bf16 %v1135, %v1134
  %v1218 = vunpack.c.l.b16 %v1216
  %v1219 = vunpack.c.h.b16 %v1216
  %v1220 = vpack.c.b16 %v1218, %v1218
  %v1221 = vpack.c.b16 %v1219, %v1219
  %1222 = vrot.lane.b32.xlu0 %v1220, 32
  %v1223 = vpop.permute.xlu0 %1222
  %1224 = vrot.lane.b32.xlu0 %v1221, 32
  %v1225 = vpop.permute.xlu0 %1224
  %s1228 = scalar_lea.vmem %s4, 24
  %1229 = vst.msk [vmem:[%s1228] sm:$0xf] %vm534, %v1223
  %1230 = vst.msk [vmem:[%s1228 + $0x4] sm:$0xf] %vm534, %v1225
  %v1231 = vpack.c.bf16 %v1183, %v1182
  %v1233 = vunpack.c.l.b16 %v1231
  %v1234 = vunpack.c.h.b16 %v1231
  %v1235 = vpack.c.b16 %v1233, %v1233
  %v1236 = vpack.c.b16 %v1234, %v1234
  %1237 = vrot.lane.b32.xlu0 %v1235, 64
  %v1238 = vpop.permute.xlu0 %1237
  %1239 = vrot.lane.b32.xlu0 %v1236, 64
  %v1240 = vpop.permute.xlu0 %1239
  %s1243 = scalar_lea.vmem %s4, 32
  %1244 = vst.msk [vmem:[%s1243] sm:$0xf] %vm550, %v1238
  %1245 = vst.msk [vmem:[%s1243 + $0x4] sm:$0xf] %vm550, %v1240
  %v1246 = vld [vmem:[#allocation3] sm:$0xff]
  %v1248 = vsel %vm268, %v1246, 0
  %1250 = vmatprep.subr.bf16.mxu0 %v306
  %1251 = vmatpush1.bf16.msra.mxu0 %v305
  %1252 = vmatprep.subr.bf16.mxu0 %v308
  %1253 = vmatpush1.bf16.msra.mxu0 %v307
  %1254 = vmatprep.subr.bf16.mxu0 %v310
  %1255 = vmatpush1.bf16.msra.mxu0 %v309
  %1256 = vmatprep.subr.bf16.mxu0 %v312
  %1257 = vmatpush1.bf16.msra.mxu0 %v311
  %1258 = vmatprep.subr.bf16.mxu0 0
  %1259 = vmatpush1.bf16.msra.mxu0 0
  %1260 = vmatprep.subr.bf16.mxu0 0
  %1261 = vmatpush1.bf16.msra.mxu0 0
  %1262 = vmatprep.subr.bf16.mxu0 0
  %1263 = vmatpush1.bf16.msra.mxu0 0
  %1264 = vmatprep.subr.bf16.mxu0 0
  %1265 = vmatpush1.bf16.msra.mxu0 0
  %1266 = vmatprep.subr.bf16.mxu0 0
  %1267 = vmatpush1.bf16.msra.mxu0 0
  %1268 = vmatprep.subr.bf16.mxu0 0
  %1269 = vmatpush1.bf16.msra.mxu0 0
  %1270 = vmatprep.subr.bf16.mxu0 0
  %1271 = vmatpush1.bf16.msra.mxu0 0
  %1272 = vmatprep.subr.bf16.mxu0 0
  %1273 = vmatpush1.bf16.msra.mxu0 0
  %1274 = vmatprep.subr.bf16.mxu0 0
  %1275 = vmatpush1.bf16.msra.mxu0 0
  %1276 = vmatprep.subr.bf16.mxu0 0
  %1277 = vmatpush1.bf16.msra.mxu0 0
  %1278 = vmatprep.subr.bf16.mxu0 0
  %1279 = vmatpush1.bf16.msra.mxu0 0
  %1280 = vmatprep.subr.bf16.mxu0 0
  %1281 = vmatpush1.bf16.msra.mxu0 0
  %1282 = vmatprep.mubr.bf16.mxu0 0
  %1283 = vmatmul.mubr.bf16.gmra.mrb[0].mxu0 %v1248
  %v1284 = vpop.f32.mrb[0].mxu0
  %v1285 = vadd.f32 0.0, %v1284
  %v1286 = vpop.f32.mrb[0].mxu0
  %v1287 = vadd.f32 0.0, %v1286
  %v1288 = vpop.f32.mrb[0].mxu0
  %v1289 = vadd.f32 0.0, %v1288
  %v1290 = vpop.f32.mrb[0].mxu0
  %v1291 = vadd.f32 0.0, %v1290
  %1292 = vdwg.mxu0
  %v1293 = vld [vmem:[%s1072] sm:$0xff]
  %v1294 = vunpack.c.l.bf16 %v1293
  %v1295 = vunpack.c.h.bf16 %v1293
  %v1296 = vadd.f32 %v1294, %v1285
  %v1297 = vadd.f32 %v1295, %v1289
  %v1298 = vld [vmem:[%s1064 + $0x8] sm:$0xff]
  %v1299 = vunpack.c.l.bf16 %v1298
  %v1300 = vunpack.c.h.bf16 %v1298
  %v1301 = vadd.f32 %v1299, %v1287
  %v1302 = vadd.f32 %v1300, %v1291
  %v1303 = vld [vmem:[#allocation4] sm:$0xff]
  %v1304 = vld [vmem:[#allocation4 + $0x8] sm:$0xff]
  %v1305 = vxor.u32 %v1296, 2147483648
  %v1306 = vxor.u32 %v1297, 2147483648
  %v1307 = vmul.f32 %v1305, 1.442695
  %v1308 = vpow.pop %v1307
  %v1309 = vmul.f32 %v1306, 1.442695
  %v1310 = vpow.pop %v1309
  %v1311 = vadd.f32 %v1308, 1.0
  %v1312 = vadd.f32 %v1310, 1.0
  %v1313 = vrcp.pop %v1311
  %v1314 = vmul.f32 1.0, %v1313
  %v1315 = vrcp.pop %v1312
  %v1316 = vmul.f32 1.0, %v1315
  %v1317 = vtanh.pop %v1296
  %v1318 = vtanh.pop %v1297
  %1321 = vrot.lane.b32.xlu0 %v1303, 32
  %v1322 = vpop.permute.xlu0 %1321
  %1323 = vrot.lane.b32.xlu0 %v1304, 32
  %v1324 = vpop.permute.xlu0 %1323
  %v1327 = vmul.f32 %v1314, %v1322
  %v1328 = vmul.f32 %v1316, %v1324
  %1331 = vrot.lane.b32.xlu0 %v1317, 64
  %v1332 = vpop.permute.xlu0 %1331
  %1333 = vrot.lane.b32.xlu0 %v1318, 64
  %v1334 = vpop.permute.xlu0 %1333
  %v1337 = vmul.f32 %v1314, %v1332
  %v1338 = vmul.f32 %v1316, %v1334
  %1341 = vrot.lane.b32.xlu0 %v1337, 32
  %v1342 = vpop.permute.xlu0 %1341
  %1343 = vrot.lane.b32.xlu0 %v1338, 32
  %v1344 = vpop.permute.xlu0 %1343
  %v1347 = vadd.f32 %v1327, %v1342
  %v1348 = vadd.f32 %v1328, %v1344
  %v1349 = vtanh.pop %v1347
  %v1350 = vtanh.pop %v1348
  %1353 = vrot.lane.b32.xlu0 %v1349, 64
  %v1354 = vpop.permute.xlu0 %1353
  %1355 = vrot.lane.b32.xlu0 %v1350, 64
  %v1356 = vpop.permute.xlu0 %1355
  %v1359 = vmul.f32 %v1314, %v1354
  %v1360 = vmul.f32 %v1316, %v1356
  %v1361 = vxor.u32 %v1301, 2147483648
  %v1362 = vxor.u32 %v1302, 2147483648
  %v1363 = vmul.f32 %v1361, 1.442695
  %v1364 = vpow.pop %v1363
  %v1365 = vmul.f32 %v1362, 1.442695
  %v1366 = vpow.pop %v1365
  %v1367 = vadd.f32 %v1364, 1.0
  %v1368 = vadd.f32 %v1366, 1.0
  %v1369 = vrcp.pop %v1367
  %v1370 = vmul.f32 1.0, %v1369
  %v1371 = vrcp.pop %v1368
  %v1372 = vmul.f32 1.0, %v1371
  %v1373 = vtanh.pop %v1301
  %v1374 = vtanh.pop %v1302
  %v1375 = vmul.f32 %v1370, %v1303
  %v1376 = vmul.f32 %v1372, %v1304
  %1379 = vrot.lane.b32.xlu0 %v1373, 64
  %v1380 = vpop.permute.xlu0 %1379
  %1381 = vrot.lane.b32.xlu0 %v1374, 64
  %v1382 = vpop.permute.xlu0 %1381
  %v1385 = vmul.f32 %v1370, %v1380
  %v1386 = vmul.f32 %v1372, %v1382
  %1389 = vrot.lane.b32.xlu0 %v1385, 32
  %v1390 = vpop.permute.xlu0 %1389
  %1391 = vrot.lane.b32.xlu0 %v1386, 32
  %v1392 = vpop.permute.xlu0 %1391
  %v1395 = vadd.f32 %v1375, %v1390
  %v1396 = vadd.f32 %v1376, %v1392
  %v1397 = vtanh.pop %v1395
  %v1398 = vtanh.pop %v1396
  %1401 = vrot.lane.b32.xlu0 %v1397, 64
  %v1402 = vpop.permute.xlu0 %1401
  %1403 = vrot.lane.b32.xlu0 %v1398, 64
  %v1404 = vpop.permute.xlu0 %1403
  %v1407 = vmul.f32 %v1370, %v1402
  %v1408 = vmul.f32 %v1372, %v1404
  %1411 = vrot.lane.b32.xlu0 %v1359, 32
  %v1412 = vpop.permute.xlu0 %1411
  %1413 = vrot.lane.b32.xlu0 %v1360, 32
  %v1414 = vpop.permute.xlu0 %1413
  %1419 = vrot.lane.b32.xlu0 %v1407, 64
  %v1420 = vpop.permute.xlu0 %1419
  %1421 = vrot.lane.b32.xlu0 %v1408, 64
  %v1422 = vpop.permute.xlu0 %1421
  %v1425 = vsel %vm505, %v1412, %v1420
  %v1426 = vsel %vm505, %v1414, %v1422
  %v1427 = vpack.c.bf16 %v1426, %v1425
  %1428 = vst.msk [vmem:[#allocation3] sm:$0xff] %vm268, %v1427
  %1431 = vrot.lane.b32.xlu0 %v1347, 96
  %v1432 = vpop.permute.xlu0 %1431
  %1433 = vrot.lane.b32.xlu0 %v1348, 96
  %v1434 = vpop.permute.xlu0 %1433
  %v1437 = vsel %vm505, %v1432, %v1395
  %v1438 = vsel %vm505, %v1434, %v1396
  %1439 = vst.msk [vmem:[#allocation4] sm:$0xff] %vm268, %v1437
  %1440 = vst.msk [vmem:[#allocation4 + $0x8] sm:$0xff] %vm268, %v1438
  %v1441 = vpack.c.bf16 %v1360, %v1359
  %v1443 = vunpack.c.l.b16 %v1441
  %v1444 = vunpack.c.h.b16 %v1441
  %v1445 = vpack.c.b16 %v1443, %v1443
  %v1446 = vpack.c.b16 %v1444, %v1444
  %1447 = vrot.lane.b32.xlu0 %v1445, 32
  %v1448 = vpop.permute.xlu0 %1447
  %1449 = vrot.lane.b32.xlu0 %v1446, 32
  %v1450 = vpop.permute.xlu0 %1449
  %1453 = vst.msk [vmem:[%s1243] sm:$0xf] %vm534, %v1448
  %1454 = vst.msk [vmem:[%s1243 + $0x4] sm:$0xf] %vm534, %v1450
  %v1455 = vpack.c.bf16 %v1408, %v1407
  %v1457 = vunpack.c.l.b16 %v1455
  %v1458 = vunpack.c.h.b16 %v1455
  %v1459 = vpack.c.b16 %v1457, %v1457
  %v1460 = vpack.c.b16 %v1458, %v1458
  %1461 = vrot.lane.b32.xlu0 %v1459, 64
  %v1462 = vpop.permute.xlu0 %1461
  %1463 = vrot.lane.b32.xlu0 %v1460, 64
  %v1464 = vpop.permute.xlu0 %1463
  %1467 = vst.msk [vmem:[%s1228] sm:$0xf] %vm550, %v1462
  %1468 = vst.msk [vmem:[%s1228 + $0x4] sm:$0xf] %vm550, %v1464
  %v1469 = vld [vmem:[#allocation3] sm:$0xff]
  %v1471 = vsel %vm268, %v1469, 0
  %1473 = vmatprep.subr.bf16.mxu0 %v306
  %1474 = vmatpush1.bf16.msra.mxu0 %v305
  %1475 = vmatprep.subr.bf16.mxu0 %v308
  %1476 = vmatpush1.bf16.msra.mxu0 %v307
  %1477 = vmatprep.subr.bf16.mxu0 %v310
  %1478 = vmatpush1.bf16.msra.mxu0 %v309
  %1479 = vmatprep.subr.bf16.mxu0 %v312
  %1480 = vmatpush1.bf16.msra.mxu0 %v311
  %1481 = vmatprep.subr.bf16.mxu0 0
  %1482 = vmatpush1.bf16.msra.mxu0 0
  %1483 = vmatprep.subr.bf16.mxu0 0
  %1484 = vmatpush1.bf16.msra.mxu0 0
  %1485 = vmatprep.subr.bf16.mxu0 0
  %1486 = vmatpush1.bf16.msra.mxu0 0
  %1487 = vmatprep.subr.bf16.mxu0 0
  %1488 = vmatpush1.bf16.msra.mxu0 0
  %1489 = vmatprep.subr.bf16.mxu0 0
  %1490 = vmatpush1.bf16.msra.mxu0 0
  %1491 = vmatprep.subr.bf16.mxu0 0
  %1492 = vmatpush1.bf16.msra.mxu0 0
  %1493 = vmatprep.subr.bf16.mxu0 0
  %1494 = vmatpush1.bf16.msra.mxu0 0
  %1495 = vmatprep.subr.bf16.mxu0 0
  %1496 = vmatpush1.bf16.msra.mxu0 0
  %1497 = vmatprep.subr.bf16.mxu0 0
  %1498 = vmatpush1.bf16.msra.mxu0 0
  %1499 = vmatprep.subr.bf16.mxu0 0
  %1500 = vmatpush1.bf16.msra.mxu0 0
  %1501 = vmatprep.subr.bf16.mxu0 0
  %1502 = vmatpush1.bf16.msra.mxu0 0
  %1503 = vmatprep.subr.bf16.mxu0 0
  %1504 = vmatpush1.bf16.msra.mxu0 0
  %1505 = vmatprep.mubr.bf16.mxu0 0
  %1506 = vmatmul.mubr.bf16.gmra.mrb[0].mxu0 %v1471
  %v1507 = vpop.f32.mrb[0].mxu0
  %v1508 = vadd.f32 0.0, %v1507
  %v1509 = vpop.f32.mrb[0].mxu0
  %v1510 = vadd.f32 0.0, %v1509
  %v1511 = vpop.f32.mrb[0].mxu0
  %v1512 = vadd.f32 0.0, %v1511
  %v1513 = vpop.f32.mrb[0].mxu0
  %v1514 = vadd.f32 0.0, %v1513
  %1515 = vdwg.mxu0
  %v1516 = vld [vmem:[%s841] sm:$0xff]
  %v1517 = vunpack.c.l.bf16 %v1516
  %v1518 = vunpack.c.h.bf16 %v1516
  %v1519 = vadd.f32 %v1517, %v1508
  %v1520 = vadd.f32 %v1518, %v1512
  %v1521 = vld [vmem:[%s833 + $0x8] sm:$0xff]
  %v1522 = vunpack.c.l.bf16 %v1521
  %v1523 = vunpack.c.h.bf16 %v1521
  %v1524 = vadd.f32 %v1522, %v1510
  %v1525 = vadd.f32 %v1523, %v1514
  %v1526 = vld [vmem:[#allocation4] sm:$0xff]
  %v1527 = vld [vmem:[#allocation4 + $0x8] sm:$0xff]
  %v1528 = vxor.u32 %v1519, 2147483648
  %v1529 = vxor.u32 %v1520, 2147483648
  %v1530 = vmul.f32 %v1528, 1.442695
  %v1531 = vpow.pop %v1530
  %v1532 = vmul.f32 %v1529, 1.442695
  %v1533 = vpow.pop %v1532
  %v1534 = vadd.f32 %v1531, 1.0
  %v1535 = vadd.f32 %v1533, 1.0
  %v1536 = vrcp.pop %v1534
  %v1537 = vmul.f32 1.0, %v1536
  %v1538 = vrcp.pop %v1535
  %v1539 = vmul.f32 1.0, %v1538
  %v1540 = vtanh.pop %v1519
  %v1541 = vtanh.pop %v1520
  %1544 = vrot.lane.b32.xlu0 %v1526, 32
  %v1545 = vpop.permute.xlu0 %1544
  %1546 = vrot.lane.b32.xlu0 %v1527, 32
  %v1547 = vpop.permute.xlu0 %1546
  %v1550 = vmul.f32 %v1537, %v1545
  %v1551 = vmul.f32 %v1539, %v1547
  %1554 = vrot.lane.b32.xlu0 %v1540, 64
  %v1555 = vpop.permute.xlu0 %1554
  %1556 = vrot.lane.b32.xlu0 %v1541, 64
  %v1557 = vpop.permute.xlu0 %1556
  %v1560 = vmul.f32 %v1537, %v1555
  %v1561 = vmul.f32 %v1539, %v1557
  %1564 = vrot.lane.b32.xlu0 %v1560, 32
  %v1565 = vpop.permute.xlu0 %1564
  %1566 = vrot.lane.b32.xlu0 %v1561, 32
  %v1567 = vpop.permute.xlu0 %1566
  %v1570 = vadd.f32 %v1550, %v1565
  %v1571 = vadd.f32 %v1551, %v1567
  %v1572 = vtanh.pop %v1570
  %v1573 = vtanh.pop %v1571
  %1576 = vrot.lane.b32.xlu0 %v1572, 64
  %v1577 = vpop.permute.xlu0 %1576
  %1578 = vrot.lane.b32.xlu0 %v1573, 64
  %v1579 = vpop.permute.xlu0 %1578
  %v1582 = vmul.f32 %v1537, %v1577
  %v1583 = vmul.f32 %v1539, %v1579
  %v1584 = vxor.u32 %v1524, 2147483648
  %v1585 = vxor.u32 %v1525, 2147483648
  %v1586 = vmul.f32 %v1584, 1.442695
  %v1587 = vpow.pop %v1586
  %v1588 = vmul.f32 %v1585, 1.442695
  %v1589 = vpow.pop %v1588
  %v1590 = vadd.f32 %v1587, 1.0
  %v1591 = vadd.f32 %v1589, 1.0
  %v1592 = vrcp.pop %v1590
  %v1593 = vmul.f32 1.0, %v1592
  %v1594 = vrcp.pop %v1591
  %v1595 = vmul.f32 1.0, %v1594
  %v1596 = vtanh.pop %v1524
  %v1597 = vtanh.pop %v1525
  %v1598 = vmul.f32 %v1593, %v1526
  %v1599 = vmul.f32 %v1595, %v1527
  %1602 = vrot.lane.b32.xlu0 %v1596, 64
  %v1603 = vpop.permute.xlu0 %1602
  %1604 = vrot.lane.b32.xlu0 %v1597, 64
  %v1605 = vpop.permute.xlu0 %1604
  %v1608 = vmul.f32 %v1593, %v1603
  %v1609 = vmul.f32 %v1595, %v1605
  %1612 = vrot.lane.b32.xlu0 %v1608, 32
  %v1613 = vpop.permute.xlu0 %1612
  %1614 = vrot.lane.b32.xlu0 %v1609, 32
  %v1615 = vpop.permute.xlu0 %1614
  %v1618 = vadd.f32 %v1598, %v1613
  %v1619 = vadd.f32 %v1599, %v1615
  %v1620 = vtanh.pop %v1618
  %v1621 = vtanh.pop %v1619
  %1624 = vrot.lane.b32.xlu0 %v1620, 64
  %v1625 = vpop.permute.xlu0 %1624
  %1626 = vrot.lane.b32.xlu0 %v1621, 64
  %v1627 = vpop.permute.xlu0 %1626
  %v1630 = vmul.f32 %v1593, %v1625
  %v1631 = vmul.f32 %v1595, %v1627
  %1634 = vrot.lane.b32.xlu0 %v1582, 32
  %v1635 = vpop.permute.xlu0 %1634
  %1636 = vrot.lane.b32.xlu0 %v1583, 32
  %v1637 = vpop.permute.xlu0 %1636
  %1642 = vrot.lane.b32.xlu0 %v1630, 64
  %v1643 = vpop.permute.xlu0 %1642
  %1644 = vrot.lane.b32.xlu0 %v1631, 64
  %v1645 = vpop.permute.xlu0 %1644
  %v1648 = vsel %vm505, %v1635, %v1643
  %v1649 = vsel %vm505, %v1637, %v1645
  %v1650 = vpack.c.bf16 %v1649, %v1648
  %1651 = vst.msk [vmem:[#allocation3] sm:$0xff] %vm268, %v1650
  %1654 = vrot.lane.b32.xlu0 %v1570, 96
  %v1655 = vpop.permute.xlu0 %1654
  %1656 = vrot.lane.b32.xlu0 %v1571, 96
  %v1657 = vpop.permute.xlu0 %1656
  %v1660 = vsel %vm505, %v1655, %v1618
  %v1661 = vsel %vm505, %v1657, %v1619
  %1662 = vst.msk [vmem:[#allocation4] sm:$0xff] %vm268, %v1660
  %1663 = vst.msk [vmem:[#allocation4 + $0x8] sm:$0xff] %vm268, %v1661
  %v1664 = vpack.c.bf16 %v1583, %v1582
  %v1666 = vunpack.c.l.b16 %v1664
  %v1667 = vunpack.c.h.b16 %v1664
  %v1668 = vpack.c.b16 %v1666, %v1666
  %v1669 = vpack.c.b16 %v1667, %v1667
  %1670 = vrot.lane.b32.xlu0 %v1668, 32
  %v1671 = vpop.permute.xlu0 %1670
  %1672 = vrot.lane.b32.xlu0 %v1669, 32
  %v1673 = vpop.permute.xlu0 %1672
  %1676 = vst.msk [vmem:[%s1012] sm:$0xf] %vm534, %v1671
  %1677 = vst.msk [vmem:[%s1012 + $0x4] sm:$0xf] %vm534, %v1673
  %v1678 = vpack.c.bf16 %v1631, %v1630
  %v1680 = vunpack.c.l.b16 %v1678
  %v1681 = vunpack.c.h.b16 %v1678
  %v1682 = vpack.c.b16 %v1680, %v1680
  %v1683 = vpack.c.b16 %v1681, %v1681
  %1684 = vrot.lane.b32.xlu0 %v1682, 64
  %v1685 = vpop.permute.xlu0 %1684
  %1686 = vrot.lane.b32.xlu0 %v1683, 64
  %v1687 = vpop.permute.xlu0 %1686
  %1690 = vst.msk [vmem:[%s997] sm:$0xf] %vm550, %v1685
  %1691 = vst.msk [vmem:[%s997 + $0x4] sm:$0xf] %vm550, %v1687
  %v1692 = vld [vmem:[#allocation3] sm:$0xff]
  %v1694 = vsel %vm268, %v1692, 0
  %1696 = vmatprep.subr.bf16.mxu0 %v306
  %1697 = vmatpush1.bf16.msra.mxu0 %v305
  %1698 = vmatprep.subr.bf16.mxu0 %v308
  %1699 = vmatpush1.bf16.msra.mxu0 %v307
  %1700 = vmatprep.subr.bf16.mxu0 %v310
  %1701 = vmatpush1.bf16.msra.mxu0 %v309
  %1702 = vmatprep.subr.bf16.mxu0 %v312
  %1703 = vmatpush1.bf16.msra.mxu0 %v311
  %1704 = vmatprep.subr.bf16.mxu0 0
  %1705 = vmatpush1.bf16.msra.mxu0 0
  %1706 = vmatprep.subr.bf16.mxu0 0
  %1707 = vmatpush1.bf16.msra.mxu0 0
  %1708 = vmatprep.subr.bf16.mxu0 0
  %1709 = vmatpush1.bf16.msra.mxu0 0
  %1710 = vmatprep.subr.bf16.mxu0 0
  %1711 = vmatpush1.bf16.msra.mxu0 0
  %1712 = vmatprep.subr.bf16.mxu0 0
  %1713 = vmatpush1.bf16.msra.mxu0 0
  %1714 = vmatprep.subr.bf16.mxu0 0
  %1715 = vmatpush1.bf16.msra.mxu0 0
  %1716 = vmatprep.subr.bf16.mxu0 0
  %1717 = vmatpush1.bf16.msra.mxu0 0
  %1718 = vmatprep.subr.bf16.mxu0 0
  %1719 = vmatpush1.bf16.msra.mxu0 0
  %1720 = vmatprep.subr.bf16.mxu0 0
  %1721 = vmatpush1.bf16.msra.mxu0 0
  %1722 = vmatprep.subr.bf16.mxu0 0
  %1723 = vmatpush1.bf16.msra.mxu0 0
  %1724 = vmatprep.subr.bf16.mxu0 0
  %1725 = vmatpush1.bf16.msra.mxu0 0
  %1726 = vmatprep.subr.bf16.mxu0 0
  %1727 = vmatpush1.bf16.msra.mxu0 0
  %1728 = vmatprep.mubr.bf16.mxu0 0
  %1729 = vmatmul.mubr.bf16.gmra.mrb[0].mxu0 %v1694
  %v1730 = vpop.f32.mrb[0].mxu0
  %v1731 = vadd.f32 0.0, %v1730
  %v1732 = vpop.f32.mrb[0].mxu0
  %v1733 = vadd.f32 0.0, %v1732
  %v1734 = vpop.f32.mrb[0].mxu0
  %v1735 = vadd.f32 0.0, %v1734
  %v1736 = vpop.f32.mrb[0].mxu0
  %v1737 = vadd.f32 0.0, %v1736
  %1738 = vdwg.mxu0
  %v1739 = vld [vmem:[%s610] sm:$0xff]
  %v1740 = vunpack.c.l.bf16 %v1739
  %v1741 = vunpack.c.h.bf16 %v1739
  %v1742 = vadd.f32 %v1740, %v1731
  %v1743 = vadd.f32 %v1741, %v1735
  %v1744 = vld [vmem:[%s602 + $0x8] sm:$0xff]
  %v1745 = vunpack.c.l.bf16 %v1744
  %v1746 = vunpack.c.h.bf16 %v1744
  %v1747 = vadd.f32 %v1745, %v1733
  %v1748 = vadd.f32 %v1746, %v1737
  %v1749 = vld [vmem:[#allocation4] sm:$0xff]
  %v1750 = vld [vmem:[#allocation4 + $0x8] sm:$0xff]
  %v1751 = vxor.u32 %v1742, 2147483648
  %v1752 = vxor.u32 %v1743, 2147483648
  %v1753 = vmul.f32 %v1751, 1.442695
  %v1754 = vpow.pop %v1753
  %v1755 = vmul.f32 %v1752, 1.442695
  %v1756 = vpow.pop %v1755
  %v1757 = vadd.f32 %v1754, 1.0
  %v1758 = vadd.f32 %v1756, 1.0
  %v1759 = vrcp.pop %v1757
  %v1760 = vmul.f32 1.0, %v1759
  %v1761 = vrcp.pop %v1758
  %v1762 = vmul.f32 1.0, %v1761
  %v1763 = vtanh.pop %v1742
  %v1764 = vtanh.pop %v1743
  %1767 = vrot.lane.b32.xlu0 %v1749, 32
  %v1768 = vpop.permute.xlu0 %1767
  %1769 = vrot.lane.b32.xlu0 %v1750, 32
  %v1770 = vpop.permute.xlu0 %1769
  %v1773 = vmul.f32 %v1760, %v1768
  %v1774 = vmul.f32 %v1762, %v1770
  %1777 = vrot.lane.b32.xlu0 %v1763, 64
  %v1778 = vpop.permute.xlu0 %1777
  %1779 = vrot.lane.b32.xlu0 %v1764, 64
  %v1780 = vpop.permute.xlu0 %1779
  %v1783 = vmul.f32 %v1760, %v1778
  %v1784 = vmul.f32 %v1762, %v1780
  %1787 = vrot.lane.b32.xlu0 %v1783, 32
  %v1788 = vpop.permute.xlu0 %1787
  %1789 = vrot.lane.b32.xlu0 %v1784, 32
  %v1790 = vpop.permute.xlu0 %1789
  %v1793 = vadd.f32 %v1773, %v1788
  %v1794 = vadd.f32 %v1774, %v1790
  %v1795 = vtanh.pop %v1793
  %v1796 = vtanh.pop %v1794
  %1799 = vrot.lane.b32.xlu0 %v1795, 64
  %v1800 = vpop.permute.xlu0 %1799
  %1801 = vrot.lane.b32.xlu0 %v1796, 64
  %v1802 = vpop.permute.xlu0 %1801
  %v1805 = vmul.f32 %v1760, %v1800
  %v1806 = vmul.f32 %v1762, %v1802
  %v1807 = vxor.u32 %v1747, 2147483648
  %v1808 = vxor.u32 %v1748, 2147483648
  %v1809 = vmul.f32 %v1807, 1.442695
  %v1810 = vpow.pop %v1809
  %v1811 = vmul.f32 %v1808, 1.442695
  %v1812 = vpow.pop %v1811
  %v1813 = vadd.f32 %v1810, 1.0
  %v1814 = vadd.f32 %v1812, 1.0
  %v1815 = vrcp.pop %v1813
  %v1816 = vmul.f32 1.0, %v1815
  %v1817 = vrcp.pop %v1814
  %v1818 = vmul.f32 1.0, %v1817
  %v1819 = vtanh.pop %v1747
  %v1820 = vtanh.pop %v1748
  %v1821 = vmul.f32 %v1816, %v1749
  %v1822 = vmul.f32 %v1818, %v1750
  %1825 = vrot.lane.b32.xlu0 %v1819, 64
  %v1826 = vpop.permute.xlu0 %1825
  %1827 = vrot.lane.b32.xlu0 %v1820, 64
  %v1828 = vpop.permute.xlu0 %1827
  %v1831 = vmul.f32 %v1816, %v1826
  %v1832 = vmul.f32 %v1818, %v1828
  %1835 = vrot.lane.b32.xlu0 %v1831, 32
  %v1836 = vpop.permute.xlu0 %1835
  %1837 = vrot.lane.b32.xlu0 %v1832, 32
  %v1838 = vpop.permute.xlu0 %1837
  %v1841 = vadd.f32 %v1821, %v1836
  %v1842 = vadd.f32 %v1822, %v1838
  %v1843 = vtanh.pop %v1841
  %v1844 = vtanh.pop %v1842
  %1847 = vrot.lane.b32.xlu0 %v1843, 64
  %v1848 = vpop.permute.xlu0 %1847
  %1849 = vrot.lane.b32.xlu0 %v1844, 64
  %v1850 = vpop.permute.xlu0 %1849
  %v1853 = vmul.f32 %v1816, %v1848
  %v1854 = vmul.f32 %v1818, %v1850
  %1857 = vrot.lane.b32.xlu0 %v1805, 32
  %v1858 = vpop.permute.xlu0 %1857
  %1859 = vrot.lane.b32.xlu0 %v1806, 32
  %v1860 = vpop.permute.xlu0 %1859
  %1865 = vrot.lane.b32.xlu0 %v1853, 64
  %v1866 = vpop.permute.xlu0 %1865
  %1867 = vrot.lane.b32.xlu0 %v1854, 64
  %v1868 = vpop.permute.xlu0 %1867
  %v1871 = vsel %vm505, %v1858, %v1866
  %v1872 = vsel %vm505, %v1860, %v1868
  %v1873 = vpack.c.bf16 %v1872, %v1871
  %1874 = vst.msk [vmem:[#allocation3] sm:$0xff] %vm268, %v1873
  %1877 = vrot.lane.b32.xlu0 %v1793, 96
  %v1878 = vpop.permute.xlu0 %1877
  %1879 = vrot.lane.b32.xlu0 %v1794, 96
  %v1880 = vpop.permute.xlu0 %1879
  %v1883 = vsel %vm505, %v1878, %v1841
  %v1884 = vsel %vm505, %v1880, %v1842
  %1885 = vst.msk [vmem:[#allocation4] sm:$0xff] %vm268, %v1883
  %1886 = vst.msk [vmem:[#allocation4 + $0x8] sm:$0xff] %vm268, %v1884
  %v1887 = vpack.c.bf16 %v1806, %v1805
  %v1889 = vunpack.c.l.b16 %v1887
  %v1890 = vunpack.c.h.b16 %v1887
  %v1891 = vpack.c.b16 %v1889, %v1889
  %v1892 = vpack.c.b16 %v1890, %v1890
  %1893 = vrot.lane.b32.xlu0 %v1891, 32
  %v1894 = vpop.permute.xlu0 %1893
  %1895 = vrot.lane.b32.xlu0 %v1892, 32
  %v1896 = vpop.permute.xlu0 %1895
  %1899 = vst.msk [vmem:[%s781] sm:$0xf] %vm534, %v1894
  %1900 = vst.msk [vmem:[%s781 + $0x4] sm:$0xf] %vm534, %v1896
  %v1901 = vpack.c.bf16 %v1854, %v1853
  %v1903 = vunpack.c.l.b16 %v1901
  %v1904 = vunpack.c.h.b16 %v1901
  %v1905 = vpack.c.b16 %v1903, %v1903
  %v1906 = vpack.c.b16 %v1904, %v1904
  %1907 = vrot.lane.b32.xlu0 %v1905, 64
  %v1908 = vpop.permute.xlu0 %1907
  %1909 = vrot.lane.b32.xlu0 %v1906, 64
  %v1910 = vpop.permute.xlu0 %1909
  %1913 = vst.msk [vmem:[%s766] sm:$0xf] %vm550, %v1908
  %1914 = vst.msk [vmem:[%s766 + $0x4] sm:$0xf] %vm550, %v1910
  %v1915 = vld [vmem:[#allocation3] sm:$0xff]
  %v1917 = vsel %vm268, %v1915, 0
  %1919 = vmatprep.subr.bf16.mxu0 %v306
  %1920 = vmatpush1.bf16.msra.mxu0 %v305
  %1921 = vmatprep.subr.bf16.mxu0 %v308
  %1922 = vmatpush1.bf16.msra.mxu0 %v307
  %1923 = vmatprep.subr.bf16.mxu0 %v310
  %1924 = vmatpush1.bf16.msra.mxu0 %v309
  %1925 = vmatprep.subr.bf16.mxu0 %v312
  %1926 = vmatpush1.bf16.msra.mxu0 %v311
  %1927 = vmatprep.subr.bf16.mxu0 0
  %1928 = vmatpush1.bf16.msra.mxu0 0
  %1929 = vmatprep.subr.bf16.mxu0 0
  %1930 = vmatpush1.bf16.msra.mxu0 0
  %1931 = vmatprep.subr.bf16.mxu0 0
  %1932 = vmatpush1.bf16.msra.mxu0 0
  %1933 = vmatprep.subr.bf16.mxu0 0
  %1934 = vmatpush1.bf16.msra.mxu0 0
  %1935 = vmatprep.subr.bf16.mxu0 0
  %1936 = vmatpush1.bf16.msra.mxu0 0
  %1937 = vmatprep.subr.bf16.mxu0 0
  %1938 = vmatpush1.bf16.msra.mxu0 0
  %1939 = vmatprep.subr.bf16.mxu0 0
  %1940 = vmatpush1.bf16.msra.mxu0 0
  %1941 = vmatprep.subr.bf16.mxu0 0
  %1942 = vmatpush1.bf16.msra.mxu0 0
  %1943 = vmatprep.subr.bf16.mxu0 0
  %1944 = vmatpush1.bf16.msra.mxu0 0
  %1945 = vmatprep.subr.bf16.mxu0 0
  %1946 = vmatpush1.bf16.msra.mxu0 0
  %1947 = vmatprep.subr.bf16.mxu0 0
  %1948 = vmatpush1.bf16.msra.mxu0 0
  %1949 = vmatprep.subr.bf16.mxu0 0
  %1950 = vmatpush1.bf16.msra.mxu0 0
  %1951 = vmatprep.mubr.bf16.mxu0 0
  %1952 = vmatmul.mubr.bf16.gmra.mrb[0].mxu0 %v1917
  %v1953 = vpop.f32.mrb[0].mxu0
  %v1954 = vadd.f32 0.0, %v1953
  %v1955 = vpop.f32.mrb[0].mxu0
  %v1956 = vadd.f32 0.0, %v1955
  %v1957 = vpop.f32.mrb[0].mxu0
  %v1958 = vadd.f32 0.0, %v1957
  %v1959 = vpop.f32.mrb[0].mxu0
  %v1960 = vadd.f32 0.0, %v1959
  %1961 = vdwg.mxu0
  %v1962 = vld [vmem:[%s377] sm:$0xff]
  %v1963 = vunpack.c.l.bf16 %v1962
  %v1964 = vunpack.c.h.bf16 %v1962
  %v1965 = vadd.f32 %v1963, %v1954
  %v1966 = vadd.f32 %v1964, %v1958
  %v1967 = vld [vmem:[%s369 + $0x8] sm:$0xff]
  %v1968 = vunpack.c.l.bf16 %v1967
  %v1969 = vunpack.c.h.bf16 %v1967
  %v1970 = vadd.f32 %v1968, %v1956
  %v1971 = vadd.f32 %v1969, %v1960
  %v1972 = vld [vmem:[#allocation4] sm:$0xff]
  %v1973 = vld [vmem:[#allocation4 + $0x8] sm:$0xff]
  %v1974 = vxor.u32 %v1965, 2147483648
  %v1975 = vxor.u32 %v1966, 2147483648
  %v1976 = vmul.f32 %v1974, 1.442695
  %v1977 = vpow.pop %v1976
  %v1978 = vmul.f32 %v1975, 1.442695
  %v1979 = vpow.pop %v1978
  %v1980 = vadd.f32 %v1977, 1.0
  %v1981 = vadd.f32 %v1979, 1.0
  %v1982 = vrcp.pop %v1980
  %v1983 = vmul.f32 1.0, %v1982
  %v1984 = vrcp.pop %v1981
  %v1985 = vmul.f32 1.0, %v1984
  %v1986 = vtanh.pop %v1965
  %v1987 = vtanh.pop %v1966
  %1990 = vrot.lane.b32.xlu0 %v1972, 32
  %v1991 = vpop.permute.xlu0 %1990
  %1992 = vrot.lane.b32.xlu0 %v1973, 32
  %v1993 = vpop.permute.xlu0 %1992
  %v1996 = vmul.f32 %v1983, %v1991
  %v1997 = vmul.f32 %v1985, %v1993
  %2000 = vrot.lane.b32.xlu0 %v1986, 64
  %v2001 = vpop.permute.xlu0 %2000
  %2002 = vrot.lane.b32.xlu0 %v1987, 64
  %v2003 = vpop.permute.xlu0 %2002
  %v2006 = vmul.f32 %v1983, %v2001
  %v2007 = vmul.f32 %v1985, %v2003
  %2010 = vrot.lane.b32.xlu0 %v2006, 32
  %v2011 = vpop.permute.xlu0 %2010
  %2012 = vrot.lane.b32.xlu0 %v2007, 32
  %v2013 = vpop.permute.xlu0 %2012
  %v2016 = vadd.f32 %v1996, %v2011
  %v2017 = vadd.f32 %v1997, %v2013
  %v2018 = vtanh.pop %v2016
  %v2019 = vtanh.pop %v2017
  %2022 = vrot.lane.b32.xlu0 %v2018, 64
  %v2023 = vpop.permute.xlu0 %2022
  %2024 = vrot.lane.b32.xlu0 %v2019, 64
  %v2025 = vpop.permute.xlu0 %2024
  %v2028 = vmul.f32 %v1983, %v2023
  %v2029 = vmul.f32 %v1985, %v2025
  %v2030 = vxor.u32 %v1970, 2147483648
  %v2031 = vxor.u32 %v1971, 2147483648
  %v2032 = vmul.f32 %v2030, 1.442695
  %v2033 = vpow.pop %v2032
  %v2034 = vmul.f32 %v2031, 1.442695
  %v2035 = vpow.pop %v2034
  %v2036 = vadd.f32 %v2033, 1.0
  %v2037 = vadd.f32 %v2035, 1.0
  %v2038 = vrcp.pop %v2036
  %v2039 = vmul.f32 1.0, %v2038
  %v2040 = vrcp.pop %v2037
  %v2041 = vmul.f32 1.0, %v2040
  %v2042 = vtanh.pop %v1970
  %v2043 = vtanh.pop %v1971
  %v2044 = vmul.f32 %v2039, %v1972
  %v2045 = vmul.f32 %v2041, %v1973
  %2048 = vrot.lane.b32.xlu0 %v2042, 64
  %v2049 = vpop.permute.xlu0 %2048
  %2050 = vrot.lane.b32.xlu0 %v2043, 64
  %v2051 = vpop.permute.xlu0 %2050
  %v2054 = vmul.f32 %v2039, %v2049
  %v2055 = vmul.f32 %v2041, %v2051
  %2058 = vrot.lane.b32.xlu0 %v2054, 32
  %v2059 = vpop.permute.xlu0 %2058
  %2060 = vrot.lane.b32.xlu0 %v2055, 32
  %v2061 = vpop.permute.xlu0 %2060
  %v2064 = vadd.f32 %v2044, %v2059
  %v2065 = vadd.f32 %v2045, %v2061
  %v2066 = vtanh.pop %v2064
  %v2067 = vtanh.pop %v2065
  %2070 = vrot.lane.b32.xlu0 %v2066, 64
  %v2071 = vpop.permute.xlu0 %2070
  %2072 = vrot.lane.b32.xlu0 %v2067, 64
  %v2073 = vpop.permute.xlu0 %2072
  %v2076 = vmul.f32 %v2039, %v2071
  %v2077 = vmul.f32 %v2041, %v2073
  %2080 = vrot.lane.b32.xlu0 %v2028, 32
  %v2081 = vpop.permute.xlu0 %2080
  %2082 = vrot.lane.b32.xlu0 %v2029, 32
  %v2083 = vpop.permute.xlu0 %2082
  %2088 = vrot.lane.b32.xlu0 %v2076, 64
  %v2089 = vpop.permute.xlu0 %2088
  %2090 = vrot.lane.b32.xlu0 %v2077, 64
  %v2091 = vpop.permute.xlu0 %2090
  %v2094 = vsel %vm505, %v2081, %v2089
  %v2095 = vsel %vm505, %v2083, %v2091
  %v2096 = vpack.c.bf16 %v2095, %v2094
  %2097 = vst.msk [vmem:[#allocation3] sm:$0xff] %vm268, %v2096
  %2100 = vrot.lane.b32.xlu0 %v2016, 96
  %v2101 = vpop.permute.xlu0 %2100
  %2102 = vrot.lane.b32.xlu0 %v2017, 96
  %v2103 = vpop.permute.xlu0 %2102
  %v2106 = vsel %vm505, %v2101, %v2064
  %v2107 = vsel %vm505, %v2103, %v2065
  %2108 = vst.msk [vmem:[#allocation4] sm:$0xff] %vm268, %v2106
  %2109 = vst.msk [vmem:[#allocation4 + $0x8] sm:$0xff] %vm268, %v2107
  %v2110 = vpack.c.bf16 %v2029, %v2028
  %v2112 = vunpack.c.l.b16 %v2110
  %v2113 = vunpack.c.h.b16 %v2110
  %v2114 = vpack.c.b16 %v2112, %v2112
  %v2115 = vpack.c.b16 %v2113, %v2113
  %2116 = vrot.lane.b32.xlu0 %v2114, 32
  %v2117 = vpop.permute.xlu0 %2116
  %2118 = vrot.lane.b32.xlu0 %v2115, 32
  %v2119 = vpop.permute.xlu0 %2118
  %2122 = vst.msk [vmem:[%s549] sm:$0xf] %vm534, %v2117
  %2123 = vst.msk [vmem:[%s549 + $0x4] sm:$0xf] %vm534, %v2119
  %v2124 = vpack.c.bf16 %v2077, %v2076
  %v2126 = vunpack.c.l.b16 %v2124
  %v2127 = vunpack.c.h.b16 %v2124
  %v2128 = vpack.c.b16 %v2126, %v2126
  %v2129 = vpack.c.b16 %v2127, %v2127
  %2130 = vrot.lane.b32.xlu0 %v2128, 64
  %v2131 = vpop.permute.xlu0 %2130
  %2132 = vrot.lane.b32.xlu0 %v2129, 64
  %v2133 = vpop.permute.xlu0 %2132
  %2136 = vst.msk [vmem:[%s4] sm:$0xf] %vm550, %v2131
  %2137 = vst.msk [vmem:[%s4 + $0x4] sm:$0xf] %vm550, %v2133
  // Predicated region
  $region18: #{slot_tags_forward.7} parent=0 // pred_check
    _
  $region19: #{slot_tags_forward.7} parent=0 // pred_check_branch
    %2139 = sbr.rel (0) target = $region21
  $region20: #{slot_tags_forward.7} parent=0 // pred_region
    _
  $region21: #{slot_tags_forward.7} parent=0 // pred_fallthru
    _
  // Predicated region
  $region22: #{slot_tags_forward.7} parent=0 // pred_check
    _
  $region23: #{slot_tags_forward.7} parent=0 // pred_check_branch
    %2141 = sbr.rel (0) target = $region25
  $region24: #{slot_tags_forward.7} parent=0 // pred_region
    _
  $region25: #{slot_tags_forward.7} parent=0 // pred_fallthru
    _

// kernel: slot_tags_forward.8
$region0: #{slot_tags_forward.8}
  #allocation0 [shape = 'u32[]', space=smem, size = 0x4, offset = 0x4, fixed_abs, tag = 'smem constant byte address 0x4 - core index']
  #allocation1 [shape = 'u32[144,128]{1,0:T(1,128)}', space=vmem, size = 0x12000, scoped, tag = 'internal scratch']
  #allocation2 [shape = 'bf16[128,256]{1,0:T(16,128)(2,1)}', space=vmem, size = 0x10000, scoped, tag = 'scratch operand']
  #allocation3 [shape = 'bf16[16,64]{1,0:T(16,128)(2,1)}', space=vmem, size = 0x1000, scoped, tag = 'scratch operand']
  #allocation4 [shape = 'f32[16,64]{1,0:T(8,128)}', space=vmem, size = 0x2000, scoped, tag = 'scratch operand']
  %s0 = inlined_call_operand.vmem [shape: bf16[128,64], index: 0, kind: input, shape index: {}]
  %s1 = inlined_call_operand.vmem [shape: bf16[64,256], index: 1, kind: input, shape index: {}]
  %s2 = inlined_call_operand.vmem [shape: bf16[64,256], index: 2, kind: input, shape index: {}]
  %s3 = inlined_call_operand.vmem [shape: f32[1,256], index: 3, kind: input, shape index: {}]
  %s4 = inlined_call_operand.vmem [shape: bf16[128,64], index: 4, kind: output, shape index: {}]
  %s5 = sld [smem:[#allocation0]]
  $region26: #{slot_tags_forward.8} parent=0
    _
  %s7 = ssub.s32 1, %s5
  %s8 = scalar_select 0, %s7, %s5
  // Predicated region
  $region2: #{slot_tags_forward.8} parent=0 // pred_check
    _
  $region3: #{slot_tags_forward.8} parent=0 // pred_check_branch
    %10 = sbr.rel (0) target = $region5
  $region4: #{slot_tags_forward.8} parent=0 // pred_region
    _
  $region5: #{slot_tags_forward.8} parent=0 // pred_fallthru
    _
  // Predicated region
  $region6: #{slot_tags_forward.8} parent=0 // pred_check
    _
  $region7: #{slot_tags_forward.8} parent=0 // pred_check_branch
    %12 = sbr.rel (0) target = $region9
  $region8: #{slot_tags_forward.8} parent=0 // pred_region
    _
  $region9: #{slot_tags_forward.8} parent=0 // pred_fallthru
    _
  // Predicated region
  $region10: #{slot_tags_forward.8} parent=0 // pred_check
    _
  $region11: #{slot_tags_forward.8} parent=0 // pred_check_branch
    %14 = sbr.rel (0) target = $region13
  $region12: #{slot_tags_forward.8} parent=0 // pred_region
    _
  $region13: #{slot_tags_forward.8} parent=0 // pred_fallthru
    _
  // Predicated region
  $region14: #{slot_tags_forward.8} parent=0 // pred_check
    _
  $region15: #{slot_tags_forward.8} parent=0 // pred_check_branch
    %16 = sbr.rel (0) target = $region17
  $region16: #{slot_tags_forward.8} parent=0 // pred_region
    _
  $region17: #{slot_tags_forward.8} parent=0 // pred_fallthru
    _
  %v18 = vld [vmem:[%s0] sm:$0xf]
  %v19 = vld [vmem:[%s0 + $0x4] sm:$0xf]
  %v20 = vld [vmem:[%s0 + $0x8] sm:$0xf]
  %v21 = vld [vmem:[%s0 + $0xc] sm:$0xf]
  %v22 = vld [vmem:[%s0 + $0x10] sm:$0xf]
  %v23 = vld [vmem:[%s0 + $0x14] sm:$0xf]
  %v24 = vld [vmem:[%s0 + $0x18] sm:$0xf]
  %v25 = vld [vmem:[%s0 + $0x1c] sm:$0xf]
  %v26 = vld [vmem:[%s0 + $0x20] sm:$0xf]
  %v27 = vld [vmem:[%s0 + $0x24] sm:$0xf]
  %v28 = vld [vmem:[%s0 + $0x28] sm:$0xf]
  %v29 = vld [vmem:[%s0 + $0x2c] sm:$0xf]
  %v30 = vld [vmem:[%s0 + $0x30] sm:$0xf]
  %v31 = vld [vmem:[%s0 + $0x34] sm:$0xf]
  %v32 = vld [vmem:[%s0 + $0x38] sm:$0xf]
  %v33 = vld [vmem:[%s0 + $0x3c] sm:$0xf]
  %v34 = vld [vmem:[%s1] sm:$0xff]
  %v35 = vld [vmem:[%s1 + $0x8] sm:$0xff]
  %v36 = vld [vmem:[%s1 + $0x10] sm:$0xff]
  %v37 = vld [vmem:[%s1 + $0x18] sm:$0xff]
  %v38 = vld [vmem:[%s1 + $0x20] sm:$0xff]
  %v39 = vld [vmem:[%s1 + $0x28] sm:$0xff]
  %v40 = vld [vmem:[%s1 + $0x30] sm:$0xff]
  %v41 = vld [vmem:[%s1 + $0x38] sm:$0xff]
  %v42 = vld [vmem:[%s3] sm:$0x3]
  %v44 = vlaneseq
  %v45 = vshrl.u32 %v44, 7
  %v46 = vsub.s32 0, %v45
  %v47 = vrot.slane %v42, %v46
  %v48 = vlaneseq
  %v49 = vshrl.u32 %v48, 7
  %v50 = vsub.s32 1, %v49
  %v51 = vrot.slane %v42, %v50
  %v70 = vunpack.c.l.b16 %v18
  %v71 = vunpack.c.l.b16 %v19
  %v72 = vunpack.c.l.b16 %v20
  %v73 = vunpack.c.l.b16 %v21
  %v74 = vunpack.c.l.b16 %v22
  %v75 = vunpack.c.l.b16 %v23
  %v76 = vunpack.c.l.b16 %v24
  %v77 = vunpack.c.l.b16 %v25
  %v78 = vunpack.c.l.b16 %v26
  %v79 = vunpack.c.l.b16 %v27
  %v80 = vunpack.c.l.b16 %v28
  %v81 = vunpack.c.l.b16 %v29
  %v82 = vunpack.c.l.b16 %v30
  %v83 = vunpack.c.l.b16 %v31
  %v84 = vunpack.c.l.b16 %v32
  %v85 = vunpack.c.l.b16 %v33
  %v86 = vpack.c.b16 %v71, %v70
  %v87 = vpack.c.b16 %v73, %v72
  %v88 = vpack.c.b16 %v75, %v74
  %v89 = vpack.c.b16 %v77, %v76
  %v90 = vpack.c.b16 %v79, %v78
  %v91 = vpack.c.b16 %v81, %v80
  %v92 = vpack.c.b16 %v83, %v82
  %v93 = vpack.c.b16 %v85, %v84
  %v102 = vunpack.c.l.b16 %v34
  %v103 = vunpack.c.h.b16 %v34
  %v104 = vunpack.c.l.b16 %v35
  %v105 = vunpack.c.h.b16 %v35
  %v106 = vunpack.c.l.b16 %v36
  %v107 = vunpack.c.h.b16 %v36
  %v108 = vunpack.c.l.b16 %v37
  %v109 = vunpack.c.h.b16 %v37
  %v110 = vunpack.c.l.b16 %v38
  %v111 = vunpack.c.h.b16 %v38
  %v112 = vunpack.c.l.b16 %v39
  %v113 = vunpack.c.h.b16 %v39
  %v114 = vunpack.c.l.b16 %v40
  %v115 = vunpack.c.h.b16 %v40
  %v116 = vunpack.c.l.b16 %v41
  %v117 = vunpack.c.h.b16 %v41
  %v118 = vpack.c.b16 %v104, %v102
  %v119 = vpack.c.b16 %v105, %v103
  %v120 = vpack.c.b16 %v108, %v106
  %v121 = vpack.c.b16 %v109, %v107
  %v122 = vpack.c.b16 %v112, %v110
  %v123 = vpack.c.b16 %v113, %v111
  %v124 = vpack.c.b16 %v116, %v114
  %v125 = vpack.c.b16 %v117, %v115
  %vm134 = vcmask 523264
  %v136 = vsel %vm134, %v86, 0
  %v139 = vsel %vm134, %v87, 0
  %v142 = vsel %vm134, %v88, 0
  %v145 = vsel %vm134, %v89, 0
  %v148 = vsel %vm134, %v90, 0
  %v151 = vsel %vm134, %v91, 0
  %v154 = vsel %vm134, %v92, 0
  %v157 = vsel %vm134, %v93, 0
  %159 = vmatprep.subr.bf16.mxu0 %v119
  %160 = vmatpush1.bf16.msra.mxu0 %v118
  %161 = vmatprep.subr.bf16.mxu0 %v121
  %162 = vmatpush1.bf16.msra.mxu0 %v120
  %163 = vmatprep.subr.bf16.mxu0 %v123
  %164 = vmatpush1.bf16.msra.mxu0 %v122
  %165 = vmatprep.subr.bf16.mxu0 %v125
  %166 = vmatpush1.bf16.msra.mxu0 %v124
  %167 = vmatprep.subr.bf16.mxu0 0
  %168 = vmatpush1.bf16.msra.mxu0 0
  %169 = vmatprep.subr.bf16.mxu0 0
  %170 = vmatpush1.bf16.msra.mxu0 0
  %171 = vmatprep.subr.bf16.mxu0 0
  %172 = vmatpush1.bf16.msra.mxu0 0
  %173 = vmatprep.subr.bf16.mxu0 0
  %174 = vmatpush1.bf16.msra.mxu0 0
  %175 = vmatprep.subr.bf16.mxu0 0
  %176 = vmatpush1.bf16.msra.mxu0 0
  %177 = vmatprep.subr.bf16.mxu0 0
  %178 = vmatpush1.bf16.msra.mxu0 0
  %179 = vmatprep.subr.bf16.mxu0 0
  %180 = vmatpush1.bf16.msra.mxu0 0
  %181 = vmatprep.subr.bf16.mxu0 0
  %182 = vmatpush1.bf16.msra.mxu0 0
  %183 = vmatprep.subr.bf16.mxu0 0
  %184 = vmatpush1.bf16.msra.mxu0 0
  %185 = vmatprep.subr.bf16.mxu0 0
  %186 = vmatpush1.bf16.msra.mxu0 0
  %187 = vmatprep.subr.bf16.mxu0 0
  %188 = vmatpush1.bf16.msra.mxu0 0
  %189 = vmatprep.subr.bf16.mxu0 0
  %190 = vmatpush1.bf16.msra.mxu0 0
  %191 = vmatprep.mubr.bf16.mxu0 0
  %192 = vmatmul.mubr.bf16.gmra.mrb[0].mxu0 %v136
  %v193 = vpop.f32.mrb[0].mxu0
  %v194 = vadd.f32 %v47, %v193
  %v195 = vpop.f32.mrb[0].mxu0
  %v196 = vadd.f32 %v51, %v195
  %v197 = vpop.f32.mrb[0].mxu0
  %v198 = vadd.f32 %v47, %v197
  %v199 = vpop.f32.mrb[0].mxu0
  %v200 = vadd.f32 %v51, %v199
  %201 = vmatprep.mubr.bf16.mxu0 0
  %202 = vmatmul.mubr.bf16.gmra.mrb[0].mxu0 %v139
  %v203 = vpop.f32.mrb[0].mxu0
  %v204 = vadd.f32 %v47, %v203
  %v205 = vpop.f32.mrb[0].mxu0
  %v206 = vadd.f32 %v51, %v205
  %v207 = vpop.f32.mrb[0].mxu0
  %v208 = vadd.f32 %v47, %v207
  %v209 = vpop.f32.mrb[0].mxu0
  %v210 = vadd.f32 %v51, %v209
  %211 = vmatprep.mubr.bf16.mxu0 0
  %212 = vmatmul.mubr.bf16.gmra.mrb[0].mxu0 %v142
  %v213 = vpop.f32.mrb[0].mxu0
  %v214 = vadd.f32 %v47, %v213
  %v215 = vpop.f32.mrb[0].mxu0
  %v216 = vadd.f32 %v51, %v215
  %v217 = vpop.f32.mrb[0].mxu0
  %v218 = vadd.f32 %v47, %v217
  %v219 = vpop.f32.mrb[0].mxu0
  %v220 = vadd.f32 %v51, %v219
  %221 = vmatprep.mubr.bf16.mxu0 0
  %222 = vmatmul.mubr.bf16.gmra.mrb[0].mxu0 %v145
  %v223 = vpop.f32.mrb[0].mxu0
  %v224 = vadd.f32 %v47, %v223
  %v225 = vpop.f32.mrb[0].mxu0
  %v226 = vadd.f32 %v51, %v225
  %v227 = vpop.f32.mrb[0].mxu0
  %v228 = vadd.f32 %v47, %v227
  %v229 = vpop.f32.mrb[0].mxu0
  %v230 = vadd.f32 %v51, %v229
  %231 = vmatprep.mubr.bf16.mxu0 0
  %232 = vmatmul.mubr.bf16.gmra.mrb[0].mxu0 %v148
  %v233 = vpop.f32.mrb[0].mxu0
  %v234 = vadd.f32 %v47, %v233
  %v235 = vpop.f32.mrb[0].mxu0
  %v236 = vadd.f32 %v51, %v235
  %v237 = vpop.f32.mrb[0].mxu0
  %v238 = vadd.f32 %v47, %v237
  %v239 = vpop.f32.mrb[0].mxu0
  %v240 = vadd.f32 %v51, %v239
  %241 = vmatprep.mubr.bf16.mxu0 0
  %242 = vmatmul.mubr.bf16.gmra.mrb[0].mxu0 %v151
  %v243 = vpop.f32.mrb[0].mxu0
  %v244 = vadd.f32 %v47, %v243
  %v245 = vpop.f32.mrb[0].mxu0
  %v246 = vadd.f32 %v51, %v245
  %v247 = vpop.f32.mrb[0].mxu0
  %v248 = vadd.f32 %v47, %v247
  %v249 = vpop.f32.mrb[0].mxu0
  %v250 = vadd.f32 %v51, %v249
  %251 = vmatprep.mubr.bf16.mxu0 0
  %252 = vmatmul.mubr.bf16.gmra.mrb[0].mxu0 %v154
  %v253 = vpop.f32.mrb[0].mxu0
  %v254 = vadd.f32 %v47, %v253
  %v255 = vpop.f32.mrb[0].mxu0
  %v256 = vadd.f32 %v51, %v255
  %v257 = vpop.f32.mrb[0].mxu0
  %v258 = vadd.f32 %v47, %v257
  %v259 = vpop.f32.mrb[0].mxu0
  %v260 = vadd.f32 %v51, %v259
  %261 = vmatprep.mubr.bf16.mxu0 0
  %262 = vmatmul.mubr.bf16.gmra.mrb[0].mxu0 %v157
  %v263 = vpop.f32.mrb[0].mxu0
  %v264 = vadd.f32 %v47, %v263
  %v265 = vpop.f32.mrb[0].mxu0
  %v266 = vadd.f32 %v51, %v265
  %v267 = vpop.f32.mrb[0].mxu0
  %v268 = vadd.f32 %v47, %v267
  %v269 = vpop.f32.mrb[0].mxu0
  %v270 = vadd.f32 %v51, %v269
  %271 = vdwg.mxu0
  %v272 = vpack.c.bf16 %v198, %v194
  %v273 = vpack.c.bf16 %v200, %v196
  %v274 = vpack.c.bf16 %v208, %v204
  %v275 = vpack.c.bf16 %v210, %v206
  %v276 = vpack.c.bf16 %v218, %v214
  %v277 = vpack.c.bf16 %v220, %v216
  %v278 = vpack.c.bf16 %v228, %v224
  %v279 = vpack.c.bf16 %v230, %v226
  %v280 = vpack.c.bf16 %v238, %v234
  %v281 = vpack.c.bf16 %v240, %v236
  %v282 = vpack.c.bf16 %v248, %v244
  %v283 = vpack.c.bf16 %v250, %v246
  %v284 = vpack.c.bf16 %v258, %v254
  %v285 = vpack.c.bf16 %v260, %v256
  %v286 = vpack.c.bf16 %v268, %v264
  %v287 = vpack.c.bf16 %v270, %v266
  %288 = vst [vmem:[#allocation2] sm:$0xff] %v272
  %289 = vst [vmem:[#allocation2 + $0x8] sm:$0xff] %v273
  %290 = vst [vmem:[#allocation2 + $0x10] sm:$0xff] %v274
  %291 = vst [vmem:[#allocation2 + $0x18] sm:$0xff] %v275
  %292 = vst [vmem:[#allocation2 + $0x20] sm:$0xff] %v276
  %293 = vst [vmem:[#allocation2 + $0x28] sm:$0xff] %v277
  %294 = vst [vmem:[#allocation2 + $0x30] sm:$0xff] %v278
  %295 = vst [vmem:[#allocation2 + $0x38] sm:$0xff] %v279
  %296 = vst [vmem:[#allocation2 + $0x40] sm:$0xff] %v280
  %297 = vst [vmem:[#allocation2 + $0x48] sm:$0xff] %v281
  %298 = vst [vmem:[#allocation2 + $0x50] sm:$0xff] %v282
  %299 = vst [vmem:[#allocation2 + $0x58] sm:$0xff] %v283
  %300 = vst [vmem:[#allocation2 + $0x60] sm:$0xff] %v284
  %301 = vst [vmem:[#allocation2 + $0x68] sm:$0xff] %v285
  %302 = vst [vmem:[#allocation2 + $0x70] sm:$0xff] %v286
  %303 = vst [vmem:[#allocation2 + $0x78] sm:$0xff] %v287
  %304 = vst.msk [vmem:[#allocation3] sm:$0xff] %vm134, 0
  %305 = vst.msk [vmem:[#allocation4] sm:$0xff] %vm134, 0.0
  %306 = vst.msk [vmem:[#allocation4 + $0x8] sm:$0xff] %vm134, 0.0
  %v307 = vld [vmem:[%s2] sm:$0xff]
  %v308 = vld [vmem:[%s2 + $0x8] sm:$0xff]
  %v309 = vld [vmem:[%s2 + $0x10] sm:$0xff]
  %v310 = vld [vmem:[%s2 + $0x18] sm:$0xff]
  %v311 = vld [vmem:[%s2 + $0x20] sm:$0xff]
  %v312 = vld [vmem:[%s2 + $0x28] sm:$0xff]
  %v313 = vld [vmem:[%s2 + $0x30] sm:$0xff]
  %v314 = vld [vmem:[%s2 + $0x38] sm:$0xff]
  %v315 = vld [vmem:[#allocation3] sm:$0xff]
  %v324 = vunpack.c.l.b16 %v307
  %v325 = vunpack.c.h.b16 %v307
  %v326 = vunpack.c.l.b16 %v308
  %v327 = vunpack.c.h.b16 %v308
  %v328 = vunpack.c.l.b16 %v309
  %v329 = vunpack.c.h.b16 %v309
  %v330 = vunpack.c.l.b16 %v310
  %v331 = vunpack.c.h.b16 %v310
  %v332 = vunpack.c.l.b16 %v311
  %v333 = vunpack.c.h.b16 %v311
  %v334 = vunpack.c.l.b16 %v312
  %v335 = vunpack.c.h.b16 %v312
  %v336 = vunpack.c.l.b16 %v313
  %v337 = vunpack.c.h.b16 %v313
  %v338 = vunpack.c.l.b16 %v314
  %v339 = vunpack.c.h.b16 %v314
  %v340 = vpack.c.b16 %v326, %v324
  %v341 = vpack.c.b16 %v327, %v325
  %v342 = vpack.c.b16 %v330, %v328
  %v343 = vpack.c.b16 %v331, %v329
  %v344 = vpack.c.b16 %v334, %v332
  %v345 = vpack.c.b16 %v335, %v333
  %v346 = vpack.c.b16 %v338, %v336
  %v347 = vpack.c.b16 %v339, %v337
  %v357 = vsel %vm134, %v315, 0
  %359 = vmatprep.subr.bf16.mxu0 %v341
  %360 = vmatpush1.bf16.msra.mxu0 %v340
  %361 = vmatprep.subr.bf16.mxu0 %v343
  %362 = vmatpush1.bf16.msra.mxu0 %v342
  %363 = vmatprep.subr.bf16.mxu0 %v345
  %364 = vmatpush1.bf16.msra.mxu0 %v344
  %365 = vmatprep.subr.bf16.mxu0 %v347
  %366 = vmatpush1.bf16.msra.mxu0 %v346
  %367 = vmatprep.subr.bf16.mxu0 0
  %368 = vmatpush1.bf16.msra.mxu0 0
  %369 = vmatprep.subr.bf16.mxu0 0
  %370 = vmatpush1.bf16.msra.mxu0 0
  %371 = vmatprep.subr.bf16.mxu0 0
  %372 = vmatpush1.bf16.msra.mxu0 0
  %373 = vmatprep.subr.bf16.mxu0 0
  %374 = vmatpush1.bf16.msra.mxu0 0
  %375 = vmatprep.subr.bf16.mxu0 0
  %376 = vmatpush1.bf16.msra.mxu0 0
  %377 = vmatprep.subr.bf16.mxu0 0
  %378 = vmatpush1.bf16.msra.mxu0 0
  %379 = vmatprep.subr.bf16.mxu0 0
  %380 = vmatpush1.bf16.msra.mxu0 0
  %381 = vmatprep.subr.bf16.mxu0 0
  %382 = vmatpush1.bf16.msra.mxu0 0
  %383 = vmatprep.subr.bf16.mxu0 0
  %384 = vmatpush1.bf16.msra.mxu0 0
  %385 = vmatprep.subr.bf16.mxu0 0
  %386 = vmatpush1.bf16.msra.mxu0 0
  %387 = vmatprep.subr.bf16.mxu0 0
  %388 = vmatpush1.bf16.msra.mxu0 0
  %389 = vmatprep.subr.bf16.mxu0 0
  %390 = vmatpush1.bf16.msra.mxu0 0
  %391 = vmatprep.mubr.bf16.mxu0 0
  %392 = vmatmul.mubr.bf16.gmra.mrb[0].mxu0 %v357
  %v393 = vpop.f32.mrb[0].mxu0
  %v394 = vadd.f32 0.0, %v393
  %v395 = vpop.f32.mrb[0].mxu0
  %v396 = vadd.f32 0.0, %v395
  %v397 = vpop.f32.mrb[0].mxu0
  %v398 = vadd.f32 0.0, %v397
  %v399 = vpop.f32.mrb[0].mxu0
  %v400 = vadd.f32 0.0, %v399
  %401 = vdwg.mxu0
  %s402 = smul.u32 0, 2
  %s403 = smul.addr %s402, 8
  %s404 = scalar_lea.vmem [#allocation2], %s403
  %v405 = vld [vmem:[%s404] sm:$0xff]
  %v406 = vunpack.c.l.bf16 %v405
  %v407 = vunpack.c.h.bf16 %v405
  %v408 = vadd.f32 %v406, %v394
  %v409 = vadd.f32 %v407, %v398
  %s410 = smul.u32 7, 2
  %s411 = smul.addr %s410, 8
  %s412 = scalar_lea.vmem [#allocation2], %s411
  %v413 = vld [vmem:[%s412 + $0x8] sm:$0xff]
  %v414 = vunpack.c.l.bf16 %v413
  %v415 = vunpack.c.h.bf16 %v413
  %v416 = vadd.f32 %v414, %v396
  %v417 = vadd.f32 %v415, %v400
  %v418 = vld [vmem:[#allocation4] sm:$0xff]
  %v419 = vld [vmem:[#allocation4 + $0x8] sm:$0xff]
  %v420 = vxor.u32 %v408, 2147483648
  %v421 = vxor.u32 %v409, 2147483648
  %v422 = vmul.f32 %v420, 1.442695
  %v423 = vpow.pop %v422
  %v424 = vmul.f32 %v421, 1.442695
  %v425 = vpow.pop %v424
  %v426 = vadd.f32 %v423, 1.0
  %v427 = vadd.f32 %v425, 1.0
  %v428 = vrcp.pop %v426
  %v429 = vmul.f32 1.0, %v428
  %v430 = vrcp.pop %v427
  %v431 = vmul.f32 1.0, %v430
  %v432 = vtanh.pop %v408
  %v433 = vtanh.pop %v409
  %436 = vrot.lane.b32.xlu0 %v418, 32
  %v437 = vpop.permute.xlu0 %436
  %438 = vrot.lane.b32.xlu0 %v419, 32
  %v439 = vpop.permute.xlu0 %438
  %v442 = vmul.f32 %v429, %v437
  %v443 = vmul.f32 %v431, %v439
  %446 = vrot.lane.b32.xlu0 %v432, 64
  %v447 = vpop.permute.xlu0 %446
  %448 = vrot.lane.b32.xlu0 %v433, 64
  %v449 = vpop.permute.xlu0 %448
  %v452 = vmul.f32 %v429, %v447
  %v453 = vmul.f32 %v431, %v449
  %456 = vrot.lane.b32.xlu0 %v452, 32
  %v457 = vpop.permute.xlu0 %456
  %458 = vrot.lane.b32.xlu0 %v453, 32
  %v459 = vpop.permute.xlu0 %458
  %v462 = vadd.f32 %v442, %v457
  %v463 = vadd.f32 %v443, %v459
  %v464 = vtanh.pop %v462
  %v465 = vtanh.pop %v463
  %468 = vrot.lane.b32.xlu0 %v464, 64
  %v469 = vpop.permute.xlu0 %468
  %470 = vrot.lane.b32.xlu0 %v465, 64
  %v471 = vpop.permute.xlu0 %470
  %v474 = vmul.f32 %v429, %v469
  %v475 = vmul.f32 %v431, %v471
  %v476 = vxor.u32 %v416, 2147483648
  %v477 = vxor.u32 %v417, 2147483648
  %v478 = vmul.f32 %v476, 1.442695
  %v479 = vpow.pop %v478
  %v480 = vmul.f32 %v477, 1.442695
  %v481 = vpow.pop %v480
  %v482 = vadd.f32 %v479, 1.0
  %v483 = vadd.f32 %v481, 1.0
  %v484 = vrcp.pop %v482
  %v485 = vmul.f32 1.0, %v484
  %v486 = vrcp.pop %v483
  %v487 = vmul.f32 1.0, %v486
  %v488 = vtanh.pop %v416
  %v489 = vtanh.pop %v417
  %v490 = vmul.f32 %v485, %v418
  %v491 = vmul.f32 %v487, %v419
  %494 = vrot.lane.b32.xlu0 %v488, 64
  %v495 = vpop.permute.xlu0 %494
  %496 = vrot.lane.b32.xlu0 %v489, 64
  %v497 = vpop.permute.xlu0 %496
  %v500 = vmul.f32 %v485, %v495
  %v501 = vmul.f32 %v487, %v497
  %504 = vrot.lane.b32.xlu0 %v500, 32
  %v505 = vpop.permute.xlu0 %504
  %506 = vrot.lane.b32.xlu0 %v501, 32
  %v507 = vpop.permute.xlu0 %506
  %v510 = vadd.f32 %v490, %v505
  %v511 = vadd.f32 %v491, %v507
  %v512 = vtanh.pop %v510
  %v513 = vtanh.pop %v511
  %516 = vrot.lane.b32.xlu0 %v512, 64
  %v517 = vpop.permute.xlu0 %516
  %518 = vrot.lane.b32.xlu0 %v513, 64
  %v519 = vpop.permute.xlu0 %518
  %v522 = vmul.f32 %v485, %v517
  %v523 = vmul.f32 %v487, %v519
  %526 = vrot.lane.b32.xlu0 %v474, 32
  %v527 = vpop.permute.xlu0 %526
  %528 = vrot.lane.b32.xlu0 %v475, 32
  %v529 = vpop.permute.xlu0 %528
  %534 = vrot.lane.b32.xlu0 %v522, 64
  %v535 = vpop.permute.xlu0 %534
  %536 = vrot.lane.b32.xlu0 %v523, 64
  %v537 = vpop.permute.xlu0 %536
  %vm540 = vcmask 261120
  %v541 = vsel %vm540, %v527, %v535
  %v542 = vsel %vm540, %v529, %v537
  %v543 = vpack.c.bf16 %v542, %v541
  %544 = vst.msk [vmem:[#allocation3] sm:$0xff] %vm134, %v543
  %547 = vrot.lane.b32.xlu0 %v462, 96
  %v548 = vpop.permute.xlu0 %547
  %549 = vrot.lane.b32.xlu0 %v463, 96
  %v550 = vpop.permute.xlu0 %549
  %v553 = vsel %vm540, %v548, %v510
  %v554 = vsel %vm540, %v550, %v511
  %555 = vst.msk [vmem:[#allocation4] sm:$0xff] %vm134, %v553
  %556 = vst.msk [vmem:[#allocation4 + $0x8] sm:$0xff] %vm134, %v554
  %v557 = vpack.c.bf16 %v475, %v474
  %v559 = vunpack.c.l.b16 %v557
  %v560 = vunpack.c.h.b16 %v557
  %v561 = vpack.c.b16 %v559, %v559
  %v562 = vpack.c.b16 %v560, %v560
  %563 = vrot.lane.b32.xlu0 %v561, 32
  %v564 = vpop.permute.xlu0 %563
  %565 = vrot.lane.b32.xlu0 %v562, 32
  %v566 = vpop.permute.xlu0 %565
  %vm569 = vcmask 257024
  %570 = vst.msk [vmem:[%s4] sm:$0xf] %vm569, %v564
  %571 = vst.msk [vmem:[%s4 + $0x4] sm:$0xf] %vm569, %v566
  %v572 = vpack.c.bf16 %v523, %v522
  %v574 = vunpack.c.l.b16 %v572
  %v575 = vunpack.c.h.b16 %v572
  %v576 = vpack.c.b16 %v574, %v574
  %v577 = vpack.c.b16 %v575, %v575
  %578 = vrot.lane.b32.xlu0 %v576, 64
  %v579 = vpop.permute.xlu0 %578
  %580 = vrot.lane.b32.xlu0 %v577, 64
  %v581 = vpop.permute.xlu0 %580
  %s584 = scalar_lea.vmem %s4, 56
  %vm585 = vcmask 519424
  %586 = vst.msk [vmem:[%s584] sm:$0xf] %vm585, %v579
  %587 = vst.msk [vmem:[%s584 + $0x4] sm:$0xf] %vm585, %v581
  %v588 = vld [vmem:[#allocation3] sm:$0xff]
  %v590 = vsel %vm134, %v588, 0
  %592 = vmatprep.subr.bf16.mxu0 %v341
  %593 = vmatpush1.bf16.msra.mxu0 %v340
  %594 = vmatprep.subr.bf16.mxu0 %v343
  %595 = vmatpush1.bf16.msra.mxu0 %v342
  %596 = vmatprep.subr.bf16.mxu0 %v345
  %597 = vmatpush1.bf16.msra.mxu0 %v344
  %598 = vmatprep.subr.bf16.mxu0 %v347
  %599 = vmatpush1.bf16.msra.mxu0 %v346
  %600 = vmatprep.subr.bf16.mxu0 0
  %601 = vmatpush1.bf16.msra.mxu0 0
  %602 = vmatprep.subr.bf16.mxu0 0
  %603 = vmatpush1.bf16.msra.mxu0 0
  %604 = vmatprep.subr.bf16.mxu0 0
  %605 = vmatpush1.bf16.msra.mxu0 0
  %606 = vmatprep.subr.bf16.mxu0 0
  %607 = vmatpush1.bf16.msra.mxu0 0
  %608 = vmatprep.subr.bf16.mxu0 0
  %609 = vmatpush1.bf16.msra.mxu0 0
  %610 = vmatprep.subr.bf16.mxu0 0
  %611 = vmatpush1.bf16.msra.mxu0 0
  %612 = vmatprep.subr.bf16.mxu0 0
  %613 = vmatpush1.bf16.msra.mxu0 0
  %614 = vmatprep.subr.bf16.mxu0 0
  %615 = vmatpush1.bf16.msra.mxu0 0
  %616 = vmatprep.subr.bf16.mxu0 0
  %617 = vmatpush1.bf16.msra.mxu0 0
  %618 = vmatprep.subr.bf16.mxu0 0
  %619 = vmatpush1.bf16.msra.mxu0 0
  %620 = vmatprep.subr.bf16.mxu0 0
  %621 = vmatpush1.bf16.msra.mxu0 0
  %622 = vmatprep.subr.bf16.mxu0 0
  %623 = vmatpush1.bf16.msra.mxu0 0
  %624 = vmatprep.mubr.bf16.mxu0 0
  %625 = vmatmul.mubr.bf16.gmra.mrb[0].mxu0 %v590
  %v626 = vpop.f32.mrb[0].mxu0
  %v627 = vadd.f32 0.0, %v626
  %v628 = vpop.f32.mrb[0].mxu0
  %v629 = vadd.f32 0.0, %v628
  %v630 = vpop.f32.mrb[0].mxu0
  %v631 = vadd.f32 0.0, %v630
  %v632 = vpop.f32.mrb[0].mxu0
  %v633 = vadd.f32 0.0, %v632
  %634 = vdwg.mxu0
  %s635 = smul.u32 1, 2
  %s636 = smul.addr %s635, 8
  %s637 = scalar_lea.vmem [#allocation2], %s636
  %v638 = vld [vmem:[%s637] sm:$0xff]
  %v639 = vunpack.c.l.bf16 %v638
  %v640 = vunpack.c.h.bf16 %v638
  %v641 = vadd.f32 %v639, %v627
  %v642 = vadd.f32 %v640, %v631
  %s643 = smul.u32 6, 2
  %s644 = smul.addr %s643, 8
  %s645 = scalar_lea.vmem [#allocation2], %s644
  %v646 = vld [vmem:[%s645 + $0x8] sm:$0xff]
  %v647 = vunpack.c.l.bf16 %v646
  %v648 = vunpack.c.h.bf16 %v646
  %v649 = vadd.f32 %v647, %v629
  %v650 = vadd.f32 %v648, %v633
  %v651 = vld [vmem:[#allocation4] sm:$0xff]
  %v652 = vld [vmem:[#allocation4 + $0x8] sm:$0xff]
  %v653 = vxor.u32 %v641, 2147483648
  %v654 = vxor.u32 %v642, 2147483648
  %v655 = vmul.f32 %v653, 1.442695
  %v656 = vpow.pop %v655
  %v657 = vmul.f32 %v654, 1.442695
  %v658 = vpow.pop %v657
  %v659 = vadd.f32 %v656, 1.0
  %v660 = vadd.f32 %v658, 1.0
  %v661 = vrcp.pop %v659
  %v662 = vmul.f32 1.0, %v661
  %v663 = vrcp.pop %v660
  %v664 = vmul.f32 1.0, %v663
  %v665 = vtanh.pop %v641
  %v666 = vtanh.pop %v642
  %669 = vrot.lane.b32.xlu0 %v651, 32
  %v670 = vpop.permute.xlu0 %669
  %671 = vrot.lane.b32.xlu0 %v652, 32
  %v672 = vpop.permute.xlu0 %671
  %v675 = vmul.f32 %v662, %v670
  %v676 = vmul.f32 %v664, %v672
  %679 = vrot.lane.b32.xlu0 %v665, 64
  %v680 = vpop.permute.xlu0 %679
  %681 = vrot.lane.b32.xlu0 %v666, 64
  %v682 = vpop.permute.xlu0 %681
  %v685 = vmul.f32 %v662, %v680
  %v686 = vmul.f32 %v664, %v682
  %689 = vrot.lane.b32.xlu0 %v685, 32
  %v690 = vpop.permute.xlu0 %689
  %691 = vrot.lane.b32.xlu0 %v686, 32
  %v692 = vpop.permute.xlu0 %691
  %v695 = vadd.f32 %v675, %v690
  %v696 = vadd.f32 %v676, %v692
  %v697 = vtanh.pop %v695
  %v698 = vtanh.pop %v696
  %701 = vrot.lane.b32.xlu0 %v697, 64
  %v702 = vpop.permute.xlu0 %701
  %703 = vrot.lane.b32.xlu0 %v698, 64
  %v704 = vpop.permute.xlu0 %703
  %v707 = vmul.f32 %v662, %v702
  %v708 = vmul.f32 %v664, %v704
  %v709 = vxor.u32 %v649, 2147483648
  %v710 = vxor.u32 %v650, 2147483648
  %v711 = vmul.f32 %v709, 1.442695
  %v712 = vpow.pop %v711
  %v713 = vmul.f32 %v710, 1.442695
  %v714 = vpow.pop %v713
  %v715 = vadd.f32 %v712, 1.0
  %v716 = vadd.f32 %v714, 1.0
  %v717 = vrcp.pop %v715
  %v718 = vmul.f32 1.0, %v717
  %v719 = vrcp.pop %v716
  %v720 = vmul.f32 1.0, %v719
  %v721 = vtanh.pop %v649
  %v722 = vtanh.pop %v650
  %v723 = vmul.f32 %v718, %v651
  %v724 = vmul.f32 %v720, %v652
  %727 = vrot.lane.b32.xlu0 %v721, 64
  %v728 = vpop.permute.xlu0 %727
  %729 = vrot.lane.b32.xlu0 %v722, 64
  %v730 = vpop.permute.xlu0 %729
  %v733 = vmul.f32 %v718, %v728
  %v734 = vmul.f32 %v720, %v730
  %737 = vrot.lane.b32.xlu0 %v733, 32
  %v738 = vpop.permute.xlu0 %737
  %739 = vrot.lane.b32.xlu0 %v734, 32
  %v740 = vpop.permute.xlu0 %739
  %v743 = vadd.f32 %v723, %v738
  %v744 = vadd.f32 %v724, %v740
  %v745 = vtanh.pop %v743
  %v746 = vtanh.pop %v744
  %749 = vrot.lane.b32.xlu0 %v745, 64
  %v750 = vpop.permute.xlu0 %749
  %751 = vrot.lane.b32.xlu0 %v746, 64
  %v752 = vpop.permute.xlu0 %751
  %v755 = vmul.f32 %v718, %v750
  %v756 = vmul.f32 %v720, %v752
  %759 = vrot.lane.b32.xlu0 %v707, 32
  %v760 = vpop.permute.xlu0 %759
  %761 = vrot.lane.b32.xlu0 %v708, 32
  %v762 = vpop.permute.xlu0 %761
  %767 = vrot.lane.b32.xlu0 %v755, 64
  %v768 = vpop.permute.xlu0 %767
  %769 = vrot.lane.b32.xlu0 %v756, 64
  %v770 = vpop.permute.xlu0 %769
  %v773 = vsel %vm540, %v760, %v768
  %v774 = vsel %vm540, %v762, %v770
  %v775 = vpack.c.bf16 %v774, %v773
  %776 = vst.msk [vmem:[#allocation3] sm:$0xff] %vm134, %v775
  %779 = vrot.lane.b32.xlu0 %v695, 96
  %v780 = vpop.permute.xlu0 %779
  %781 = vrot.lane.b32.xlu0 %v696, 96
  %v782 = vpop.permute.xlu0 %781
  %v785 = vsel %vm540, %v780, %v743
  %v786 = vsel %vm540, %v782, %v744
  %787 = vst.msk [vmem:[#allocation4] sm:$0xff] %vm134, %v785
  %788 = vst.msk [vmem:[#allocation4 + $0x8] sm:$0xff] %vm134, %v786
  %v789 = vpack.c.bf16 %v708, %v707
  %v791 = vunpack.c.l.b16 %v789
  %v792 = vunpack.c.h.b16 %v789
  %v793 = vpack.c.b16 %v791, %v791
  %v794 = vpack.c.b16 %v792, %v792
  %795 = vrot.lane.b32.xlu0 %v793, 32
  %v796 = vpop.permute.xlu0 %795
  %797 = vrot.lane.b32.xlu0 %v794, 32
  %v798 = vpop.permute.xlu0 %797
  %s801 = scalar_lea.vmem %s4, 8
  %802 = vst.msk [vmem:[%s801] sm:$0xf] %vm569, %v796
  %803 = vst.msk [vmem:[%s801 + $0x4] sm:$0xf] %vm569, %v798
  %v804 = vpack.c.bf16 %v756, %v755
  %v806 = vunpack.c.l.b16 %v804
  %v807 = vunpack.c.h.b16 %v804
  %v808 = vpack.c.b16 %v806, %v806
  %v809 = vpack.c.b16 %v807, %v807
  %810 = vrot.lane.b32.xlu0 %v808, 64
  %v811 = vpop.permute.xlu0 %810
  %812 = vrot.lane.b32.xlu0 %v809, 64
  %v813 = vpop.permute.xlu0 %812
  %s816 = scalar_lea.vmem %s4, 48
  %817 = vst.msk [vmem:[%s816] sm:$0xf] %vm585, %v811
  %818 = vst.msk [vmem:[%s816 + $0x4] sm:$0xf] %vm585, %v813
  %v819 = vld [vmem:[#allocation3] sm:$0xff]
  %v821 = vsel %vm134, %v819, 0
  %823 = vmatprep.subr.bf16.mxu0 %v341
  %824 = vmatpush1.bf16.msra.mxu0 %v340
  %825 = vmatprep.subr.bf16.mxu0 %v343
  %826 = vmatpush1.bf16.msra.mxu0 %v342
  %827 = vmatprep.subr.bf16.mxu0 %v345
  %828 = vmatpush1.bf16.msra.mxu0 %v344
  %829 = vmatprep.subr.bf16.mxu0 %v347
  %830 = vmatpush1.bf16.msra.mxu0 %v346
  %831 = vmatprep.subr.bf16.mxu0 0
  %832 = vmatpush1.bf16.msra.mxu0 0
  %833 = vmatprep.subr.bf16.mxu0 0
  %834 = vmatpush1.bf16.msra.mxu0 0
  %835 = vmatprep.subr.bf16.mxu0 0
  %836 = vmatpush1.bf16.msra.mxu0 0
  %837 = vmatprep.subr.bf16.mxu0 0
  %838 = vmatpush1.bf16.msra.mxu0 0
  %839 = vmatprep.subr.bf16.mxu0 0
  %840 = vmatpush1.bf16.msra.mxu0 0
  %841 = vmatprep.subr.bf16.mxu0 0
  %842 = vmatpush1.bf16.msra.mxu0 0
  %843 = vmatprep.subr.bf16.mxu0 0
  %844 = vmatpush1.bf16.msra.mxu0 0
  %845 = vmatprep.subr.bf16.mxu0 0
  %846 = vmatpush1.bf16.msra.mxu0 0
  %847 = vmatprep.subr.bf16.mxu0 0
  %848 = vmatpush1.bf16.msra.mxu0 0
  %849 = vmatprep.subr.bf16.mxu0 0
  %850 = vmatpush1.bf16.msra.mxu0 0
  %851 = vmatprep.subr.bf16.mxu0 0
  %852 = vmatpush1.bf16.msra.mxu0 0
  %853 = vmatprep.subr.bf16.mxu0 0
  %854 = vmatpush1.bf16.msra.mxu0 0
  %855 = vmatprep.mubr.bf16.mxu0 0
  %856 = vmatmul.mubr.bf16.gmra.mrb[0].mxu0 %v821
  %v857 = vpop.f32.mrb[0].mxu0
  %v858 = vadd.f32 0.0, %v857
  %v859 = vpop.f32.mrb[0].mxu0
  %v860 = vadd.f32 0.0, %v859
  %v861 = vpop.f32.mrb[0].mxu0
  %v862 = vadd.f32 0.0, %v861
  %v863 = vpop.f32.mrb[0].mxu0
  %v864 = vadd.f32 0.0, %v863
  %865 = vdwg.mxu0
  %s866 = smul.u32 2, 2
  %s867 = smul.addr %s866, 8
  %s868 = scalar_lea.vmem [#allocation2], %s867
  %v869 = vld [vmem:[%s868] sm:$0xff]
  %v870 = vunpack.c.l.bf16 %v869
  %v871 = vunpack.c.h.bf16 %v869
  %v872 = vadd.f32 %v870, %v858
  %v873 = vadd.f32 %v871, %v862
  %s874 = smul.u32 5, 2
  %s875 = smul.addr %s874, 8
  %s876 = scalar_lea.vmem [#allocation2], %s875
  %v877 = vld [vmem:[%s876 + $0x8] sm:$0xff]
  %v878 = vunpack.c.l.bf16 %v877
  %v879 = vunpack.c.h.bf16 %v877
  %v880 = vadd.f32 %v878, %v860
  %v881 = vadd.f32 %v879, %v864
  %v882 = vld [vmem:[#allocation4] sm:$0xff]
  %v883 = vld [vmem:[#allocation4 + $0x8] sm:$0xff]
  %v884 = vxor.u32 %v872, 2147483648
  %v885 = vxor.u32 %v873, 2147483648
  %v886 = vmul.f32 %v884, 1.442695
  %v887 = vpow.pop %v886
  %v888 = vmul.f32 %v885, 1.442695
  %v889 = vpow.pop %v888
  %v890 = vadd.f32 %v887, 1.0
  %v891 = vadd.f32 %v889, 1.0
  %v892 = vrcp.pop %v890
  %v893 = vmul.f32 1.0, %v892
  %v894 = vrcp.pop %v891
  %v895 = vmul.f32 1.0, %v894
  %v896 = vtanh.pop %v872
  %v897 = vtanh.pop %v873
  %900 = vrot.lane.b32.xlu0 %v882, 32
  %v901 = vpop.permute.xlu0 %900
  %902 = vrot.lane.b32.xlu0 %v883, 32
  %v903 = vpop.permute.xlu0 %902
  %v906 = vmul.f32 %v893, %v901
  %v907 = vmul.f32 %v895, %v903
  %910 = vrot.lane.b32.xlu0 %v896, 64
  %v911 = vpop.permute.xlu0 %910
  %912 = vrot.lane.b32.xlu0 %v897, 64
  %v913 = vpop.permute.xlu0 %912
  %v916 = vmul.f32 %v893, %v911
  %v917 = vmul.f32 %v895, %v913
  %920 = vrot.lane.b32.xlu0 %v916, 32
  %v921 = vpop.permute.xlu0 %920
  %922 = vrot.lane.b32.xlu0 %v917, 32
  %v923 = vpop.permute.xlu0 %922
  %v926 = vadd.f32 %v906, %v921
  %v927 = vadd.f32 %v907, %v923
  %v928 = vtanh.pop %v926
  %v929 = vtanh.pop %v927
  %932 = vrot.lane.b32.xlu0 %v928, 64
  %v933 = vpop.permute.xlu0 %932
  %934 = vrot.lane.b32.xlu0 %v929, 64
  %v935 = vpop.permute.xlu0 %934
  %v938 = vmul.f32 %v893, %v933
  %v939 = vmul.f32 %v895, %v935
  %v940 = vxor.u32 %v880, 2147483648
  %v941 = vxor.u32 %v881, 2147483648
  %v942 = vmul.f32 %v940, 1.442695
  %v943 = vpow.pop %v942
  %v944 = vmul.f32 %v941, 1.442695
  %v945 = vpow.pop %v944
  %v946 = vadd.f32 %v943, 1.0
  %v947 = vadd.f32 %v945, 1.0
  %v948 = vrcp.pop %v946
  %v949 = vmul.f32 1.0, %v948
  %v950 = vrcp.pop %v947
  %v951 = vmul.f32 1.0, %v950
  %v952 = vtanh.pop %v880
  %v953 = vtanh.pop %v881
  %v954 = vmul.f32 %v949, %v882
  %v955 = vmul.f32 %v951, %v883
  %958 = vrot.lane.b32.xlu0 %v952, 64
  %v959 = vpop.permute.xlu0 %958
  %960 = vrot.lane.b32.xlu0 %v953, 64
  %v961 = vpop.permute.xlu0 %960
  %v964 = vmul.f32 %v949, %v959
  %v965 = vmul.f32 %v951, %v961
  %968 = vrot.lane.b32.xlu0 %v964, 32
  %v969 = vpop.permute.xlu0 %968
  %970 = vrot.lane.b32.xlu0 %v965, 32
  %v971 = vpop.permute.xlu0 %970
  %v974 = vadd.f32 %v954, %v969
  %v975 = vadd.f32 %v955, %v971
  %v976 = vtanh.pop %v974
  %v977 = vtanh.pop %v975
  %980 = vrot.lane.b32.xlu0 %v976, 64
  %v981 = vpop.permute.xlu0 %980
  %982 = vrot.lane.b32.xlu0 %v977, 64
  %v983 = vpop.permute.xlu0 %982
  %v986 = vmul.f32 %v949, %v981
  %v987 = vmul.f32 %v951, %v983
  %990 = vrot.lane.b32.xlu0 %v938, 32
  %v991 = vpop.permute.xlu0 %990
  %992 = vrot.lane.b32.xlu0 %v939, 32
  %v993 = vpop.permute.xlu0 %992
  %998 = vrot.lane.b32.xlu0 %v986, 64
  %v999 = vpop.permute.xlu0 %998
  %1000 = vrot.lane.b32.xlu0 %v987, 64
  %v1001 = vpop.permute.xlu0 %1000
  %v1004 = vsel %vm540, %v991, %v999
  %v1005 = vsel %vm540, %v993, %v1001
  %v1006 = vpack.c.bf16 %v1005, %v1004
  %1007 = vst.msk [vmem:[#allocation3] sm:$0xff] %vm134, %v1006
  %1010 = vrot.lane.b32.xlu0 %v926, 96
  %v1011 = vpop.permute.xlu0 %1010
  %1012 = vrot.lane.b32.xlu0 %v927, 96
  %v1013 = vpop.permute.xlu0 %1012
  %v1016 = vsel %vm540, %v1011, %v974
  %v1017 = vsel %vm540, %v1013, %v975
  %1018 = vst.msk [vmem:[#allocation4] sm:$0xff] %vm134, %v1016
  %1019 = vst.msk [vmem:[#allocation4 + $0x8] sm:$0xff] %vm134, %v1017
  %v1020 = vpack.c.bf16 %v939, %v938
  %v1022 = vunpack.c.l.b16 %v1020
  %v1023 = vunpack.c.h.b16 %v1020
  %v1024 = vpack.c.b16 %v1022, %v1022
  %v1025 = vpack.c.b16 %v1023, %v1023
  %1026 = vrot.lane.b32.xlu0 %v1024, 32
  %v1027 = vpop.permute.xlu0 %1026
  %1028 = vrot.lane.b32.xlu0 %v1025, 32
  %v1029 = vpop.permute.xlu0 %1028
  %s1032 = scalar_lea.vmem %s4, 16
  %1033 = vst.msk [vmem:[%s1032] sm:$0xf] %vm569, %v1027
  %1034 = vst.msk [vmem:[%s1032 + $0x4] sm:$0xf] %vm569, %v1029
  %v1035 = vpack.c.bf16 %v987, %v986
  %v1037 = vunpack.c.l.b16 %v1035
  %v1038 = vunpack.c.h.b16 %v1035
  %v1039 = vpack.c.b16 %v1037, %v1037
  %v1040 = vpack.c.b16 %v1038, %v1038
  %1041 = vrot.lane.b32.xlu0 %v1039, 64
  %v1042 = vpop.permute.xlu0 %1041
  %1043 = vrot.lane.b32.xlu0 %v1040, 64
  %v1044 = vpop.permute.xlu0 %1043
  %s1047 = scalar_lea.vmem %s4, 40
  %1048 = vst.msk [vmem:[%s1047] sm:$0xf] %vm585, %v1042
  %1049 = vst.msk [vmem:[%s1047 + $0x4] sm:$0xf] %vm585, %v1044
  %v1050 = vld [vmem:[#allocation3] sm:$0xff]
  %v1052 = vsel %vm134, %v1050, 0
  %1054 = vmatprep.subr.bf16.mxu0 %v341
  %1055 = vmatpush1.bf16.msra.mxu0 %v340
  %1056 = vmatprep.subr.bf16.mxu0 %v343
  %1057 = vmatpush1.bf16.msra.mxu0 %v342
  %1058 = vmatprep.subr.bf16.mxu0 %v345
  %1059 = vmatpush1.bf16.msra.mxu0 %v344
  %1060 = vmatprep.subr.bf16.mxu0 %v347
  %1061 = vmatpush1.bf16.msra.mxu0 %v346
  %1062 = vmatprep.subr.bf16.mxu0 0
  %1063 = vmatpush1.bf16.msra.mxu0 0
  %1064 = vmatprep.subr.bf16.mxu0 0
  %1065 = vmatpush1.bf16.msra.mxu0 0
  %1066 = vmatprep.subr.bf16.mxu0 0
  %1067 = vmatpush1.bf16.msra.mxu0 0
  %1068 = vmatprep.subr.bf16.mxu0 0
  %1069 = vmatpush1.bf16.msra.mxu0 0
  %1070 = vmatprep.subr.bf16.mxu0 0
  %1071 = vmatpush1.bf16.msra.mxu0 0
  %1072 = vmatprep.subr.bf16.mxu0 0
  %1073 = vmatpush1.bf16.msra.mxu0 0
  %1074 = vmatprep.subr.bf16.mxu0 0
  %1075 = vmatpush1.bf16.msra.mxu0 0
  %1076 = vmatprep.subr.bf16.mxu0 0
  %1077 = vmatpush1.bf16.msra.mxu0 0
  %1078 = vmatprep.subr.bf16.mxu0 0
  %1079 = vmatpush1.bf16.msra.mxu0 0
  %1080 = vmatprep.subr.bf16.mxu0 0
  %1081 = vmatpush1.bf16.msra.mxu0 0
  %1082 = vmatprep.subr.bf16.mxu0 0
  %1083 = vmatpush1.bf16.msra.mxu0 0
  %1084 = vmatprep.subr.bf16.mxu0 0
  %1085 = vmatpush1.bf16.msra.mxu0 0
  %1086 = vmatprep.mubr.bf16.mxu0 0
  %1087 = vmatmul.mubr.bf16.gmra.mrb[0].mxu0 %v1052
  %v1088 = vpop.f32.mrb[0].mxu0
  %v1089 = vadd.f32 0.0, %v1088
  %v1090 = vpop.f32.mrb[0].mxu0
  %v1091 = vadd.f32 0.0, %v1090
  %v1092 = vpop.f32.mrb[0].mxu0
  %v1093 = vadd.f32 0.0, %v1092
  %v1094 = vpop.f32.mrb[0].mxu0
  %v1095 = vadd.f32 0.0, %v1094
  %1096 = vdwg.mxu0
  %s1097 = smul.u32 3, 2
  %s1098 = smul.addr %s1097, 8
  %s1099 = scalar_lea.vmem [#allocation2], %s1098
  %v1100 = vld [vmem:[%s1099] sm:$0xff]
  %v1101 = vunpack.c.l.bf16 %v1100
  %v1102 = vunpack.c.h.bf16 %v1100
  %v1103 = vadd.f32 %v1101, %v1089
  %v1104 = vadd.f32 %v1102, %v1093
  %s1105 = smul.u32 4, 2
  %s1106 = smul.addr %s1105, 8
  %s1107 = scalar_lea.vmem [#allocation2], %s1106
  %v1108 = vld [vmem:[%s1107 + $0x8] sm:$0xff]
  %v1109 = vunpack.c.l.bf16 %v1108
  %v1110 = vunpack.c.h.bf16 %v1108
  %v1111 = vadd.f32 %v1109, %v1091
  %v1112 = vadd.f32 %v1110, %v1095
  %v1113 = vld [vmem:[#allocation4] sm:$0xff]
  %v1114 = vld [vmem:[#allocation4 + $0x8] sm:$0xff]
  %v1115 = vxor.u32 %v1103, 2147483648
  %v1116 = vxor.u32 %v1104, 2147483648
  %v1117 = vmul.f32 %v1115, 1.442695
  %v1118 = vpow.pop %v1117
  %v1119 = vmul.f32 %v1116, 1.442695
  %v1120 = vpow.pop %v1119
  %v1121 = vadd.f32 %v1118, 1.0
  %v1122 = vadd.f32 %v1120, 1.0
  %v1123 = vrcp.pop %v1121
  %v1124 = vmul.f32 1.0, %v1123
  %v1125 = vrcp.pop %v1122
  %v1126 = vmul.f32 1.0, %v1125
  %v1127 = vtanh.pop %v1103
  %v1128 = vtanh.pop %v1104
  %1131 = vrot.lane.b32.xlu0 %v1113, 32
  %v1132 = vpop.permute.xlu0 %1131
  %1133 = vrot.lane.b32.xlu0 %v1114, 32
  %v1134 = vpop.permute.xlu0 %1133
  %v1137 = vmul.f32 %v1124, %v1132
  %v1138 = vmul.f32 %v1126, %v1134
  %1141 = vrot.lane.b32.xlu0 %v1127, 64
  %v1142 = vpop.permute.xlu0 %1141
  %1143 = vrot.lane.b32.xlu0 %v1128, 64
  %v1144 = vpop.permute.xlu0 %1143
  %v1147 = vmul.f32 %v1124, %v1142
  %v1148 = vmul.f32 %v1126, %v1144
  %1151 = vrot.lane.b32.xlu0 %v1147, 32
  %v1152 = vpop.permute.xlu0 %1151
  %1153 = vrot.lane.b32.xlu0 %v1148, 32
  %v1154 = vpop.permute.xlu0 %1153
  %v1157 = vadd.f32 %v1137, %v1152
  %v1158 = vadd.f32 %v1138, %v1154
  %v1159 = vtanh.pop %v1157
  %v1160 = vtanh.pop %v1158
  %1163 = vrot.lane.b32.xlu0 %v1159, 64
  %v1164 = vpop.permute.xlu0 %1163
  %1165 = vrot.lane.b32.xlu0 %v1160, 64
  %v1166 = vpop.permute.xlu0 %1165
  %v1169 = vmul.f32 %v1124, %v1164
  %v1170 = vmul.f32 %v1126, %v1166
  %v1171 = vxor.u32 %v1111, 2147483648
  %v1172 = vxor.u32 %v1112, 2147483648
  %v1173 = vmul.f32 %v1171, 1.442695
  %v1174 = vpow.pop %v1173
  %v1175 = vmul.f32 %v1172, 1.442695
  %v1176 = vpow.pop %v1175
  %v1177 = vadd.f32 %v1174, 1.0
  %v1178 = vadd.f32 %v1176, 1.0
  %v1179 = vrcp.pop %v1177
  %v1180 = vmul.f32 1.0, %v1179
  %v1181 = vrcp.pop %v1178
  %v1182 = vmul.f32 1.0, %v1181
  %v1183 = vtanh.pop %v1111
  %v1184 = vtanh.pop %v1112
  %v1185 = vmul.f32 %v1180, %v1113
  %v1186 = vmul.f32 %v1182, %v1114
  %1189 = vrot.lane.b32.xlu0 %v1183, 64
  %v1190 = vpop.permute.xlu0 %1189
  %1191 = vrot.lane.b32.xlu0 %v1184, 64
  %v1192 = vpop.permute.xlu0 %1191
  %v1195 = vmul.f32 %v1180, %v1190
  %v1196 = vmul.f32 %v1182, %v1192
  %1199 = vrot.lane.b32.xlu0 %v1195, 32
  %v1200 = vpop.permute.xlu0 %1199
  %1201 = vrot.lane.b32.xlu0 %v1196, 32
  %v1202 = vpop.permute.xlu0 %1201
  %v1205 = vadd.f32 %v1185, %v1200
  %v1206 = vadd.f32 %v1186, %v1202
  %v1207 = vtanh.pop %v1205
  %v1208 = vtanh.pop %v1206
  %1211 = vrot.lane.b32.xlu0 %v1207, 64
  %v1212 = vpop.permute.xlu0 %1211
  %1213 = vrot.lane.b32.xlu0 %v1208, 64
  %v1214 = vpop.permute.xlu0 %1213
  %v1217 = vmul.f32 %v1180, %v1212
  %v1218 = vmul.f32 %v1182, %v1214
  %1221 = vrot.lane.b32.xlu0 %v1169, 32
  %v1222 = vpop.permute.xlu0 %1221
  %1223 = vrot.lane.b32.xlu0 %v1170, 32
  %v1224 = vpop.permute.xlu0 %1223
  %1229 = vrot.lane.b32.xlu0 %v1217, 64
  %v1230 = vpop.permute.xlu0 %1229
  %1231 = vrot.lane.b32.xlu0 %v1218, 64
  %v1232 = vpop.permute.xlu0 %1231
  %v1235 = vsel %vm540, %v1222, %v1230
  %v1236 = vsel %vm540, %v1224, %v1232
  %v1237 = vpack.c.bf16 %v1236, %v1235
  %1238 = vst.msk [vmem:[#allocation3] sm:$0xff] %vm134, %v1237
  %1241 = vrot.lane.b32.xlu0 %v1157, 96
  %v1242 = vpop.permute.xlu0 %1241
  %1243 = vrot.lane.b32.xlu0 %v1158, 96
  %v1244 = vpop.permute.xlu0 %1243
  %v1247 = vsel %vm540, %v1242, %v1205
  %v1248 = vsel %vm540, %v1244, %v1206
  %1249 = vst.msk [vmem:[#allocation4] sm:$0xff] %vm134, %v1247
  %1250 = vst.msk [vmem:[#allocation4 + $0x8] sm:$0xff] %vm134, %v1248
  %v1251 = vpack.c.bf16 %v1170, %v1169
  %v1253 = vunpack.c.l.b16 %v1251
  %v1254 = vunpack.c.h.b16 %v1251
  %v1255 = vpack.c.b16 %v1253, %v1253
  %v1256 = vpack.c.b16 %v1254, %v1254
  %1257 = vrot.lane.b32.xlu0 %v1255, 32
  %v1258 = vpop.permute.xlu0 %1257
  %1259 = vrot.lane.b32.xlu0 %v1256, 32
  %v1260 = vpop.permute.xlu0 %1259
  %s1263 = scalar_lea.vmem %s4, 24
  %1264 = vst.msk [vmem:[%s1263] sm:$0xf] %vm569, %v1258
  %1265 = vst.msk [vmem:[%s1263 + $0x4] sm:$0xf] %vm569, %v1260
  %v1266 = vpack.c.bf16 %v1218, %v1217
  %v1268 = vunpack.c.l.b16 %v1266
  %v1269 = vunpack.c.h.b16 %v1266
  %v1270 = vpack.c.b16 %v1268, %v1268
  %v1271 = vpack.c.b16 %v1269, %v1269
  %1272 = vrot.lane.b32.xlu0 %v1270, 64
  %v1273 = vpop.permute.xlu0 %1272
  %1274 = vrot.lane.b32.xlu0 %v1271, 64
  %v1275 = vpop.permute.xlu0 %1274
  %s1278 = scalar_lea.vmem %s4, 32
  %1279 = vst.msk [vmem:[%s1278] sm:$0xf] %vm585, %v1273
  %1280 = vst.msk [vmem:[%s1278 + $0x4] sm:$0xf] %vm585, %v1275
  %v1281 = vld [vmem:[#allocation3] sm:$0xff]
  %v1283 = vsel %vm134, %v1281, 0
  %1285 = vmatprep.subr.bf16.mxu0 %v341
  %1286 = vmatpush1.bf16.msra.mxu0 %v340
  %1287 = vmatprep.subr.bf16.mxu0 %v343
  %1288 = vmatpush1.bf16.msra.mxu0 %v342
  %1289 = vmatprep.subr.bf16.mxu0 %v345
  %1290 = vmatpush1.bf16.msra.mxu0 %v344
  %1291 = vmatprep.subr.bf16.mxu0 %v347
  %1292 = vmatpush1.bf16.msra.mxu0 %v346
  %1293 = vmatprep.subr.bf16.mxu0 0
  %1294 = vmatpush1.bf16.msra.mxu0 0
  %1295 = vmatprep.subr.bf16.mxu0 0
  %1296 = vmatpush1.bf16.msra.mxu0 0
  %1297 = vmatprep.subr.bf16.mxu0 0
  %1298 = vmatpush1.bf16.msra.mxu0 0
  %1299 = vmatprep.subr.bf16.mxu0 0
  %1300 = vmatpush1.bf16.msra.mxu0 0
  %1301 = vmatprep.subr.bf16.mxu0 0
  %1302 = vmatpush1.bf16.msra.mxu0 0
  %1303 = vmatprep.subr.bf16.mxu0 0
  %1304 = vmatpush1.bf16.msra.mxu0 0
  %1305 = vmatprep.subr.bf16.mxu0 0
  %1306 = vmatpush1.bf16.msra.mxu0 0
  %1307 = vmatprep.subr.bf16.mxu0 0
  %1308 = vmatpush1.bf16.msra.mxu0 0
  %1309 = vmatprep.subr.bf16.mxu0 0
  %1310 = vmatpush1.bf16.msra.mxu0 0
  %1311 = vmatprep.subr.bf16.mxu0 0
  %1312 = vmatpush1.bf16.msra.mxu0 0
  %1313 = vmatprep.subr.bf16.mxu0 0
  %1314 = vmatpush1.bf16.msra.mxu0 0
  %1315 = vmatprep.subr.bf16.mxu0 0
  %1316 = vmatpush1.bf16.msra.mxu0 0
  %1317 = vmatprep.mubr.bf16.mxu0 0
  %1318 = vmatmul.mubr.bf16.gmra.mrb[0].mxu0 %v1283
  %v1319 = vpop.f32.mrb[0].mxu0
  %v1320 = vadd.f32 0.0, %v1319
  %v1321 = vpop.f32.mrb[0].mxu0
  %v1322 = vadd.f32 0.0, %v1321
  %v1323 = vpop.f32.mrb[0].mxu0
  %v1324 = vadd.f32 0.0, %v1323
  %v1325 = vpop.f32.mrb[0].mxu0
  %v1326 = vadd.f32 0.0, %v1325
  %1327 = vdwg.mxu0
  %v1328 = vld [vmem:[%s1107] sm:$0xff]
  %v1329 = vunpack.c.l.bf16 %v1328
  %v1330 = vunpack.c.h.bf16 %v1328
  %v1331 = vadd.f32 %v1329, %v1320
  %v1332 = vadd.f32 %v1330, %v1324
  %v1333 = vld [vmem:[%s1099 + $0x8] sm:$0xff]
  %v1334 = vunpack.c.l.bf16 %v1333
  %v1335 = vunpack.c.h.bf16 %v1333
  %v1336 = vadd.f32 %v1334, %v1322
  %v1337 = vadd.f32 %v1335, %v1326
  %v1338 = vld [vmem:[#allocation4] sm:$0xff]
  %v1339 = vld [vmem:[#allocation4 + $0x8] sm:$0xff]
  %v1340 = vxor.u32 %v1331, 2147483648
  %v1341 = vxor.u32 %v1332, 2147483648
  %v1342 = vmul.f32 %v1340, 1.442695
  %v1343 = vpow.pop %v1342
  %v1344 = vmul.f32 %v1341, 1.442695
  %v1345 = vpow.pop %v1344
  %v1346 = vadd.f32 %v1343, 1.0
  %v1347 = vadd.f32 %v1345, 1.0
  %v1348 = vrcp.pop %v1346
  %v1349 = vmul.f32 1.0, %v1348
  %v1350 = vrcp.pop %v1347
  %v1351 = vmul.f32 1.0, %v1350
  %v1352 = vtanh.pop %v1331
  %v1353 = vtanh.pop %v1332
  %1356 = vrot.lane.b32.xlu0 %v1338, 32
  %v1357 = vpop.permute.xlu0 %1356
  %1358 = vrot.lane.b32.xlu0 %v1339, 32
  %v1359 = vpop.permute.xlu0 %1358
  %v1362 = vmul.f32 %v1349, %v1357
  %v1363 = vmul.f32 %v1351, %v1359
  %1366 = vrot.lane.b32.xlu0 %v1352, 64
  %v1367 = vpop.permute.xlu0 %1366
  %1368 = vrot.lane.b32.xlu0 %v1353, 64
  %v1369 = vpop.permute.xlu0 %1368
  %v1372 = vmul.f32 %v1349, %v1367
  %v1373 = vmul.f32 %v1351, %v1369
  %1376 = vrot.lane.b32.xlu0 %v1372, 32
  %v1377 = vpop.permute.xlu0 %1376
  %1378 = vrot.lane.b32.xlu0 %v1373, 32
  %v1379 = vpop.permute.xlu0 %1378
  %v1382 = vadd.f32 %v1362, %v1377
  %v1383 = vadd.f32 %v1363, %v1379
  %v1384 = vtanh.pop %v1382
  %v1385 = vtanh.pop %v1383
  %1388 = vrot.lane.b32.xlu0 %v1384, 64
  %v1389 = vpop.permute.xlu0 %1388
  %1390 = vrot.lane.b32.xlu0 %v1385, 64
  %v1391 = vpop.permute.xlu0 %1390
  %v1394 = vmul.f32 %v1349, %v1389
  %v1395 = vmul.f32 %v1351, %v1391
  %v1396 = vxor.u32 %v1336, 2147483648
  %v1397 = vxor.u32 %v1337, 2147483648
  %v1398 = vmul.f32 %v1396, 1.442695
  %v1399 = vpow.pop %v1398
  %v1400 = vmul.f32 %v1397, 1.442695
  %v1401 = vpow.pop %v1400
  %v1402 = vadd.f32 %v1399, 1.0
  %v1403 = vadd.f32 %v1401, 1.0
  %v1404 = vrcp.pop %v1402
  %v1405 = vmul.f32 1.0, %v1404
  %v1406 = vrcp.pop %v1403
  %v1407 = vmul.f32 1.0, %v1406
  %v1408 = vtanh.pop %v1336
  %v1409 = vtanh.pop %v1337
  %v1410 = vmul.f32 %v1405, %v1338
  %v1411 = vmul.f32 %v1407, %v1339
  %1414 = vrot.lane.b32.xlu0 %v1408, 64
  %v1415 = vpop.permute.xlu0 %1414
  %1416 = vrot.lane.b32.xlu0 %v1409, 64
  %v1417 = vpop.permute.xlu0 %1416
  %v1420 = vmul.f32 %v1405, %v1415
  %v1421 = vmul.f32 %v1407, %v1417
  %1424 = vrot.lane.b32.xlu0 %v1420, 32
  %v1425 = vpop.permute.xlu0 %1424
  %1426 = vrot.lane.b32.xlu0 %v1421, 32
  %v1427 = vpop.permute.xlu0 %1426
  %v1430 = vadd.f32 %v1410, %v1425
  %v1431 = vadd.f32 %v1411, %v1427
  %v1432 = vtanh.pop %v1430
  %v1433 = vtanh.pop %v1431
  %1436 = vrot.lane.b32.xlu0 %v1432, 64
  %v1437 = vpop.permute.xlu0 %1436
  %1438 = vrot.lane.b32.xlu0 %v1433, 64
  %v1439 = vpop.permute.xlu0 %1438
  %v1442 = vmul.f32 %v1405, %v1437
  %v1443 = vmul.f32 %v1407, %v1439
  %1446 = vrot.lane.b32.xlu0 %v1394, 32
  %v1447 = vpop.permute.xlu0 %1446
  %1448 = vrot.lane.b32.xlu0 %v1395, 32
  %v1449 = vpop.permute.xlu0 %1448
  %1454 = vrot.lane.b32.xlu0 %v1442, 64
  %v1455 = vpop.permute.xlu0 %1454
  %1456 = vrot.lane.b32.xlu0 %v1443, 64
  %v1457 = vpop.permute.xlu0 %1456
  %v1460 = vsel %vm540, %v1447, %v1455
  %v1461 = vsel %vm540, %v1449, %v1457
  %v1462 = vpack.c.bf16 %v1461, %v1460
  %1463 = vst.msk [vmem:[#allocation3] sm:$0xff] %vm134, %v1462
  %1466 = vrot.lane.b32.xlu0 %v1382, 96
  %v1467 = vpop.permute.xlu0 %1466
  %1468 = vrot.lane.b32.xlu0 %v1383, 96
  %v1469 = vpop.permute.xlu0 %1468
  %v1472 = vsel %vm540, %v1467, %v1430
  %v1473 = vsel %vm540, %v1469, %v1431
  %1474 = vst.msk [vmem:[#allocation4] sm:$0xff] %vm134, %v1472
  %1475 = vst.msk [vmem:[#allocation4 + $0x8] sm:$0xff] %vm134, %v1473
  %v1476 = vpack.c.bf16 %v1395, %v1394
  %v1478 = vunpack.c.l.b16 %v1476
  %v1479 = vunpack.c.h.b16 %v1476
  %v1480 = vpack.c.b16 %v1478, %v1478
  %v1481 = vpack.c.b16 %v1479, %v1479
  %1482 = vrot.lane.b32.xlu0 %v1480, 32
  %v1483 = vpop.permute.xlu0 %1482
  %1484 = vrot.lane.b32.xlu0 %v1481, 32
  %v1485 = vpop.permute.xlu0 %1484
  %1488 = vst.msk [vmem:[%s1278] sm:$0xf] %vm569, %v1483
  %1489 = vst.msk [vmem:[%s1278 + $0x4] sm:$0xf] %vm569, %v1485
  %v1490 = vpack.c.bf16 %v1443, %v1442
  %v1492 = vunpack.c.l.b16 %v1490
  %v1493 = vunpack.c.h.b16 %v1490
  %v1494 = vpack.c.b16 %v1492, %v1492
  %v1495 = vpack.c.b16 %v1493, %v1493
  %1496 = vrot.lane.b32.xlu0 %v1494, 64
  %v1497 = vpop.permute.xlu0 %1496
  %1498 = vrot.lane.b32.xlu0 %v1495, 64
  %v1499 = vpop.permute.xlu0 %1498
  %1502 = vst.msk [vmem:[%s1263] sm:$0xf] %vm585, %v1497
  %1503 = vst.msk [vmem:[%s1263 + $0x4] sm:$0xf] %vm585, %v1499
  %v1504 = vld [vmem:[#allocation3] sm:$0xff]
  %v1506 = vsel %vm134, %v1504, 0
  %1508 = vmatprep.subr.bf16.mxu0 %v341
  %1509 = vmatpush1.bf16.msra.mxu0 %v340
  %1510 = vmatprep.subr.bf16.mxu0 %v343
  %1511 = vmatpush1.bf16.msra.mxu0 %v342
  %1512 = vmatprep.subr.bf16.mxu0 %v345
  %1513 = vmatpush1.bf16.msra.mxu0 %v344
  %1514 = vmatprep.subr.bf16.mxu0 %v347
  %1515 = vmatpush1.bf16.msra.mxu0 %v346
  %1516 = vmatprep.subr.bf16.mxu0 0
  %1517 = vmatpush1.bf16.msra.mxu0 0
  %1518 = vmatprep.subr.bf16.mxu0 0
  %1519 = vmatpush1.bf16.msra.mxu0 0
  %1520 = vmatprep.subr.bf16.mxu0 0
  %1521 = vmatpush1.bf16.msra.mxu0 0
  %1522 = vmatprep.subr.bf16.mxu0 0
  %1523 = vmatpush1.bf16.msra.mxu0 0
  %1524 = vmatprep.subr.bf16.mxu0 0
  %1525 = vmatpush1.bf16.msra.mxu0 0
  %1526 = vmatprep.subr.bf16.mxu0 0
  %1527 = vmatpush1.bf16.msra.mxu0 0
  %1528 = vmatprep.subr.bf16.mxu0 0
  %1529 = vmatpush1.bf16.msra.mxu0 0
  %1530 = vmatprep.subr.bf16.mxu0 0
  %1531 = vmatpush1.bf16.msra.mxu0 0
  %1532 = vmatprep.subr.bf16.mxu0 0
  %1533 = vmatpush1.bf16.msra.mxu0 0
  %1534 = vmatprep.subr.bf16.mxu0 0
  %1535 = vmatpush1.bf16.msra.mxu0 0
  %1536 = vmatprep.subr.bf16.mxu0 0
  %1537 = vmatpush1.bf16.msra.mxu0 0
  %1538 = vmatprep.subr.bf16.mxu0 0
  %1539 = vmatpush1.bf16.msra.mxu0 0
  %1540 = vmatprep.mubr.bf16.mxu0 0
  %1541 = vmatmul.mubr.bf16.gmra.mrb[0].mxu0 %v1506
  %v1542 = vpop.f32.mrb[0].mxu0
  %v1543 = vadd.f32 0.0, %v1542
  %v1544 = vpop.f32.mrb[0].mxu0
  %v1545 = vadd.f32 0.0, %v1544
  %v1546 = vpop.f32.mrb[0].mxu0
  %v1547 = vadd.f32 0.0, %v1546
  %v1548 = vpop.f32.mrb[0].mxu0
  %v1549 = vadd.f32 0.0, %v1548
  %1550 = vdwg.mxu0
  %v1551 = vld [vmem:[%s876] sm:$0xff]
  %v1552 = vunpack.c.l.bf16 %v1551
  %v1553 = vunpack.c.h.bf16 %v1551
  %v1554 = vadd.f32 %v1552, %v1543
  %v1555 = vadd.f32 %v1553, %v1547
  %v1556 = vld [vmem:[%s868 + $0x8] sm:$0xff]
  %v1557 = vunpack.c.l.bf16 %v1556
  %v1558 = vunpack.c.h.bf16 %v1556
  %v1559 = vadd.f32 %v1557, %v1545
  %v1560 = vadd.f32 %v1558, %v1549
  %v1561 = vld [vmem:[#allocation4] sm:$0xff]
  %v1562 = vld [vmem:[#allocation4 + $0x8] sm:$0xff]
  %v1563 = vxor.u32 %v1554, 2147483648
  %v1564 = vxor.u32 %v1555, 2147483648
  %v1565 = vmul.f32 %v1563, 1.442695
  %v1566 = vpow.pop %v1565
  %v1567 = vmul.f32 %v1564, 1.442695
  %v1568 = vpow.pop %v1567
  %v1569 = vadd.f32 %v1566, 1.0
  %v1570 = vadd.f32 %v1568, 1.0
  %v1571 = vrcp.pop %v1569
  %v1572 = vmul.f32 1.0, %v1571
  %v1573 = vrcp.pop %v1570
  %v1574 = vmul.f32 1.0, %v1573
  %v1575 = vtanh.pop %v1554
  %v1576 = vtanh.pop %v1555
  %1579 = vrot.lane.b32.xlu0 %v1561, 32
  %v1580 = vpop.permute.xlu0 %1579
  %1581 = vrot.lane.b32.xlu0 %v1562, 32
  %v1582 = vpop.permute.xlu0 %1581
  %v1585 = vmul.f32 %v1572, %v1580
  %v1586 = vmul.f32 %v1574, %v1582
  %1589 = vrot.lane.b32.xlu0 %v1575, 64
  %v1590 = vpop.permute.xlu0 %1589
  %1591 = vrot.lane.b32.xlu0 %v1576, 64
  %v1592 = vpop.permute.xlu0 %1591
  %v1595 = vmul.f32 %v1572, %v1590
  %v1596 = vmul.f32 %v1574, %v1592
  %1599 = vrot.lane.b32.xlu0 %v1595, 32
  %v1600 = vpop.permute.xlu0 %1599
  %1601 = vrot.lane.b32.xlu0 %v1596, 32
  %v1602 = vpop.permute.xlu0 %1601
  %v1605 = vadd.f32 %v1585, %v1600
  %v1606 = vadd.f32 %v1586, %v1602
  %v1607 = vtanh.pop %v1605
  %v1608 = vtanh.pop %v1606
  %1611 = vrot.lane.b32.xlu0 %v1607, 64
  %v1612 = vpop.permute.xlu0 %1611
  %1613 = vrot.lane.b32.xlu0 %v1608, 64
  %v1614 = vpop.permute.xlu0 %1613
  %v1617 = vmul.f32 %v1572, %v1612
  %v1618 = vmul.f32 %v1574, %v1614
  %v1619 = vxor.u32 %v1559, 2147483648
  %v1620 = vxor.u32 %v1560, 2147483648
  %v1621 = vmul.f32 %v1619, 1.442695
  %v1622 = vpow.pop %v1621
  %v1623 = vmul.f32 %v1620, 1.442695
  %v1624 = vpow.pop %v1623
  %v1625 = vadd.f32 %v1622, 1.0
  %v1626 = vadd.f32 %v1624, 1.0
  %v1627 = vrcp.pop %v1625
  %v1628 = vmul.f32 1.0, %v1627
  %v1629 = vrcp.pop %v1626
  %v1630 = vmul.f32 1.0, %v1629
  %v1631 = vtanh.pop %v1559
  %v1632 = vtanh.pop %v1560
  %v1633 = vmul.f32 %v1628, %v1561
  %v1634 = vmul.f32 %v1630, %v1562
  %1637 = vrot.lane.b32.xlu0 %v1631, 64
  %v1638 = vpop.permute.xlu0 %1637
  %1639 = vrot.lane.b32.xlu0 %v1632, 64
  %v1640 = vpop.permute.xlu0 %1639
  %v1643 = vmul.f32 %v1628, %v1638
  %v1644 = vmul.f32 %v1630, %v1640
  %1647 = vrot.lane.b32.xlu0 %v1643, 32
  %v1648 = vpop.permute.xlu0 %1647
  %1649 = vrot.lane.b32.xlu0 %v1644, 32
  %v1650 = vpop.permute.xlu0 %1649
  %v1653 = vadd.f32 %v1633, %v1648
  %v1654 = vadd.f32 %v1634, %v1650
  %v1655 = vtanh.pop %v1653
  %v1656 = vtanh.pop %v1654
  %1659 = vrot.lane.b32.xlu0 %v1655, 64
  %v1660 = vpop.permute.xlu0 %1659
  %1661 = vrot.lane.b32.xlu0 %v1656, 64
  %v1662 = vpop.permute.xlu0 %1661
  %v1665 = vmul.f32 %v1628, %v1660
  %v1666 = vmul.f32 %v1630, %v1662
  %1669 = vrot.lane.b32.xlu0 %v1617, 32
  %v1670 = vpop.permute.xlu0 %1669
  %1671 = vrot.lane.b32.xlu0 %v1618, 32
  %v1672 = vpop.permute.xlu0 %1671
  %1677 = vrot.lane.b32.xlu0 %v1665, 64
  %v1678 = vpop.permute.xlu0 %1677
  %1679 = vrot.lane.b32.xlu0 %v1666, 64
  %v1680 = vpop.permute.xlu0 %1679
  %v1683 = vsel %vm540, %v1670, %v1678
  %v1684 = vsel %vm540, %v1672, %v1680
  %v1685 = vpack.c.bf16 %v1684, %v1683
  %1686 = vst.msk [vmem:[#allocation3] sm:$0xff] %vm134, %v1685
  %1689 = vrot.lane.b32.xlu0 %v1605, 96
  %v1690 = vpop.permute.xlu0 %1689
  %1691 = vrot.lane.b32.xlu0 %v1606, 96
  %v1692 = vpop.permute.xlu0 %1691
  %v1695 = vsel %vm540, %v1690, %v1653
  %v1696 = vsel %vm540, %v1692, %v1654
  %1697 = vst.msk [vmem:[#allocation4] sm:$0xff] %vm134, %v1695
  %1698 = vst.msk [vmem:[#allocation4 + $0x8] sm:$0xff] %vm134, %v1696
  %v1699 = vpack.c.bf16 %v1618, %v1617
  %v1701 = vunpack.c.l.b16 %v1699
  %v1702 = vunpack.c.h.b16 %v1699
  %v1703 = vpack.c.b16 %v1701, %v1701
  %v1704 = vpack.c.b16 %v1702, %v1702
  %1705 = vrot.lane.b32.xlu0 %v1703, 32
  %v1706 = vpop.permute.xlu0 %1705
  %1707 = vrot.lane.b32.xlu0 %v1704, 32
  %v1708 = vpop.permute.xlu0 %1707
  %1711 = vst.msk [vmem:[%s1047] sm:$0xf] %vm569, %v1706
  %1712 = vst.msk [vmem:[%s1047 + $0x4] sm:$0xf] %vm569, %v1708
  %v1713 = vpack.c.bf16 %v1666, %v1665
  %v1715 = vunpack.c.l.b16 %v1713
  %v1716 = vunpack.c.h.b16 %v1713
  %v1717 = vpack.c.b16 %v1715, %v1715
  %v1718 = vpack.c.b16 %v1716, %v1716
  %1719 = vrot.lane.b32.xlu0 %v1717, 64
  %v1720 = vpop.permute.xlu0 %1719
  %1721 = vrot.lane.b32.xlu0 %v1718, 64
  %v1722 = vpop.permute.xlu0 %1721
  %1725 = vst.msk [vmem:[%s1032] sm:$0xf] %vm585, %v1720
  %1726 = vst.msk [vmem:[%s1032 + $0x4] sm:$0xf] %vm585, %v1722
  %v1727 = vld [vmem:[#allocation3] sm:$0xff]
  %v1729 = vsel %vm134, %v1727, 0
  %1731 = vmatprep.subr.bf16.mxu0 %v341
  %1732 = vmatpush1.bf16.msra.mxu0 %v340
  %1733 = vmatprep.subr.bf16.mxu0 %v343
  %1734 = vmatpush1.bf16.msra.mxu0 %v342
  %1735 = vmatprep.subr.bf16.mxu0 %v345
  %1736 = vmatpush1.bf16.msra.mxu0 %v344
  %1737 = vmatprep.subr.bf16.mxu0 %v347
  %1738 = vmatpush1.bf16.msra.mxu0 %v346
  %1739 = vmatprep.subr.bf16.mxu0 0
  %1740 = vmatpush1.bf16.msra.mxu0 0
  %1741 = vmatprep.subr.bf16.mxu0 0
  %1742 = vmatpush1.bf16.msra.mxu0 0
  %1743 = vmatprep.subr.bf16.mxu0 0
  %1744 = vmatpush1.bf16.msra.mxu0 0
  %1745 = vmatprep.subr.bf16.mxu0 0
  %1746 = vmatpush1.bf16.msra.mxu0 0
  %1747 = vmatprep.subr.bf16.mxu0 0
  %1748 = vmatpush1.bf16.msra.mxu0 0
  %1749 = vmatprep.subr.bf16.mxu0 0
  %1750 = vmatpush1.bf16.msra.mxu0 0
  %1751 = vmatprep.subr.bf16.mxu0 0
  %1752 = vmatpush1.bf16.msra.mxu0 0
  %1753 = vmatprep.subr.bf16.mxu0 0
  %1754 = vmatpush1.bf16.msra.mxu0 0
  %1755 = vmatprep.subr.bf16.mxu0 0
  %1756 = vmatpush1.bf16.msra.mxu0 0
  %1757 = vmatprep.subr.bf16.mxu0 0
  %1758 = vmatpush1.bf16.msra.mxu0 0
  %1759 = vmatprep.subr.bf16.mxu0 0
  %1760 = vmatpush1.bf16.msra.mxu0 0
  %1761 = vmatprep.subr.bf16.mxu0 0
  %1762 = vmatpush1.bf16.msra.mxu0 0
  %1763 = vmatprep.mubr.bf16.mxu0 0
  %1764 = vmatmul.mubr.bf16.gmra.mrb[0].mxu0 %v1729
  %v1765 = vpop.f32.mrb[0].mxu0
  %v1766 = vadd.f32 0.0, %v1765
  %v1767 = vpop.f32.mrb[0].mxu0
  %v1768 = vadd.f32 0.0, %v1767
  %v1769 = vpop.f32.mrb[0].mxu0
  %v1770 = vadd.f32 0.0, %v1769
  %v1771 = vpop.f32.mrb[0].mxu0
  %v1772 = vadd.f32 0.0, %v1771
  %1773 = vdwg.mxu0
  %v1774 = vld [vmem:[%s645] sm:$0xff]
  %v1775 = vunpack.c.l.bf16 %v1774
  %v1776 = vunpack.c.h.bf16 %v1774
  %v1777 = vadd.f32 %v1775, %v1766
  %v1778 = vadd.f32 %v1776, %v1770
  %v1779 = vld [vmem:[%s637 + $0x8] sm:$0xff]
  %v1780 = vunpack.c.l.bf16 %v1779
  %v1781 = vunpack.c.h.bf16 %v1779
  %v1782 = vadd.f32 %v1780, %v1768
  %v1783 = vadd.f32 %v1781, %v1772
  %v1784 = vld [vmem:[#allocation4] sm:$0xff]
  %v1785 = vld [vmem:[#allocation4 + $0x8] sm:$0xff]
  %v1786 = vxor.u32 %v1777, 2147483648
  %v1787 = vxor.u32 %v1778, 2147483648
  %v1788 = vmul.f32 %v1786, 1.442695
  %v1789 = vpow.pop %v1788
  %v1790 = vmul.f32 %v1787, 1.442695
  %v1791 = vpow.pop %v1790
  %v1792 = vadd.f32 %v1789, 1.0
  %v1793 = vadd.f32 %v1791, 1.0
  %v1794 = vrcp.pop %v1792
  %v1795 = vmul.f32 1.0, %v1794
  %v1796 = vrcp.pop %v1793
  %v1797 = vmul.f32 1.0, %v1796
  %v1798 = vtanh.pop %v1777
  %v1799 = vtanh.pop %v1778
  %1802 = vrot.lane.b32.xlu0 %v1784, 32
  %v1803 = vpop.permute.xlu0 %1802
  %1804 = vrot.lane.b32.xlu0 %v1785, 32
  %v1805 = vpop.permute.xlu0 %1804
  %v1808 = vmul.f32 %v1795, %v1803
  %v1809 = vmul.f32 %v1797, %v1805
  %1812 = vrot.lane.b32.xlu0 %v1798, 64
  %v1813 = vpop.permute.xlu0 %1812
  %1814 = vrot.lane.b32.xlu0 %v1799, 64
  %v1815 = vpop.permute.xlu0 %1814
  %v1818 = vmul.f32 %v1795, %v1813
  %v1819 = vmul.f32 %v1797, %v1815
  %1822 = vrot.lane.b32.xlu0 %v1818, 32
  %v1823 = vpop.permute.xlu0 %1822
  %1824 = vrot.lane.b32.xlu0 %v1819, 32
  %v1825 = vpop.permute.xlu0 %1824
  %v1828 = vadd.f32 %v1808, %v1823
  %v1829 = vadd.f32 %v1809, %v1825
  %v1830 = vtanh.pop %v1828
  %v1831 = vtanh.pop %v1829
  %1834 = vrot.lane.b32.xlu0 %v1830, 64
  %v1835 = vpop.permute.xlu0 %1834
  %1836 = vrot.lane.b32.xlu0 %v1831, 64
  %v1837 = vpop.permute.xlu0 %1836
  %v1840 = vmul.f32 %v1795, %v1835
  %v1841 = vmul.f32 %v1797, %v1837
  %v1842 = vxor.u32 %v1782, 2147483648
  %v1843 = vxor.u32 %v1783, 2147483648
  %v1844 = vmul.f32 %v1842, 1.442695
  %v1845 = vpow.pop %v1844
  %v1846 = vmul.f32 %v1843, 1.442695
  %v1847 = vpow.pop %v1846
  %v1848 = vadd.f32 %v1845, 1.0
  %v1849 = vadd.f32 %v1847, 1.0
  %v1850 = vrcp.pop %v1848
  %v1851 = vmul.f32 1.0, %v1850
  %v1852 = vrcp.pop %v1849
  %v1853 = vmul.f32 1.0, %v1852
  %v1854 = vtanh.pop %v1782
  %v1855 = vtanh.pop %v1783
  %v1856 = vmul.f32 %v1851, %v1784
  %v1857 = vmul.f32 %v1853, %v1785
  %1860 = vrot.lane.b32.xlu0 %v1854, 64
  %v1861 = vpop.permute.xlu0 %1860
  %1862 = vrot.lane.b32.xlu0 %v1855, 64
  %v1863 = vpop.permute.xlu0 %1862
  %v1866 = vmul.f32 %v1851, %v1861
  %v1867 = vmul.f32 %v1853, %v1863
  %1870 = vrot.lane.b32.xlu0 %v1866, 32
  %v1871 = vpop.permute.xlu0 %1870
  %1872 = vrot.lane.b32.xlu0 %v1867, 32
  %v1873 = vpop.permute.xlu0 %1872
  %v1876 = vadd.f32 %v1856, %v1871
  %v1877 = vadd.f32 %v1857, %v1873
  %v1878 = vtanh.pop %v1876
  %v1879 = vtanh.pop %v1877
  %1882 = vrot.lane.b32.xlu0 %v1878, 64
  %v1883 = vpop.permute.xlu0 %1882
  %1884 = vrot.lane.b32.xlu0 %v1879, 64
  %v1885 = vpop.permute.xlu0 %1884
  %v1888 = vmul.f32 %v1851, %v1883
  %v1889 = vmul.f32 %v1853, %v1885
  %1892 = vrot.lane.b32.xlu0 %v1840, 32
  %v1893 = vpop.permute.xlu0 %1892
  %1894 = vrot.lane.b32.xlu0 %v1841, 32
  %v1895 = vpop.permute.xlu0 %1894
  %1900 = vrot.lane.b32.xlu0 %v1888, 64
  %v1901 = vpop.permute.xlu0 %1900
  %1902 = vrot.lane.b32.xlu0 %v1889, 64
  %v1903 = vpop.permute.xlu0 %1902
  %v1906 = vsel %vm540, %v1893, %v1901
  %v1907 = vsel %vm540, %v1895, %v1903
  %v1908 = vpack.c.bf16 %v1907, %v1906
  %1909 = vst.msk [vmem:[#allocation3] sm:$0xff] %vm134, %v1908
  %1912 = vrot.lane.b32.xlu0 %v1828, 96
  %v1913 = vpop.permute.xlu0 %1912
  %1914 = vrot.lane.b32.xlu0 %v1829, 96
  %v1915 = vpop.permute.xlu0 %1914
  %v1918 = vsel %vm540, %v1913, %v1876
  %v1919 = vsel %vm540, %v1915, %v1877
  %1920 = vst.msk [vmem:[#allocation4] sm:$0xff] %vm134, %v1918
  %1921 = vst.msk [vmem:[#allocation4 + $0x8] sm:$0xff] %vm134, %v1919
  %v1922 = vpack.c.bf16 %v1841, %v1840
  %v1924 = vunpack.c.l.b16 %v1922
  %v1925 = vunpack.c.h.b16 %v1922
  %v1926 = vpack.c.b16 %v1924, %v1924
  %v1927 = vpack.c.b16 %v1925, %v1925
  %1928 = vrot.lane.b32.xlu0 %v1926, 32
  %v1929 = vpop.permute.xlu0 %1928
  %1930 = vrot.lane.b32.xlu0 %v1927, 32
  %v1931 = vpop.permute.xlu0 %1930
  %1934 = vst.msk [vmem:[%s816] sm:$0xf] %vm569, %v1929
  %1935 = vst.msk [vmem:[%s816 + $0x4] sm:$0xf] %vm569, %v1931
  %v1936 = vpack.c.bf16 %v1889, %v1888
  %v1938 = vunpack.c.l.b16 %v1936
  %v1939 = vunpack.c.h.b16 %v1936
  %v1940 = vpack.c.b16 %v1938, %v1938
  %v1941 = vpack.c.b16 %v1939, %v1939
  %1942 = vrot.lane.b32.xlu0 %v1940, 64
  %v1943 = vpop.permute.xlu0 %1942
  %1944 = vrot.lane.b32.xlu0 %v1941, 64
  %v1945 = vpop.permute.xlu0 %1944
  %1948 = vst.msk [vmem:[%s801] sm:$0xf] %vm585, %v1943
  %1949 = vst.msk [vmem:[%s801 + $0x4] sm:$0xf] %vm585, %v1945
  %v1950 = vld [vmem:[#allocation3] sm:$0xff]
  %v1952 = vsel %vm134, %v1950, 0
  %1954 = vmatprep.subr.bf16.mxu0 %v341
  %1955 = vmatpush1.bf16.msra.mxu0 %v340
  %1956 = vmatprep.subr.bf16.mxu0 %v343
  %1957 = vmatpush1.bf16.msra.mxu0 %v342
  %1958 = vmatprep.subr.bf16.mxu0 %v345
  %1959 = vmatpush1.bf16.msra.mxu0 %v344
  %1960 = vmatprep.subr.bf16.mxu0 %v347
  %1961 = vmatpush1.bf16.msra.mxu0 %v346
  %1962 = vmatprep.subr.bf16.mxu0 0
  %1963 = vmatpush1.bf16.msra.mxu0 0
  %1964 = vmatprep.subr.bf16.mxu0 0
  %1965 = vmatpush1.bf16.msra.mxu0 0
  %1966 = vmatprep.subr.bf16.mxu0 0
  %1967 = vmatpush1.bf16.msra.mxu0 0
  %1968 = vmatprep.subr.bf16.mxu0 0
  %1969 = vmatpush1.bf16.msra.mxu0 0
  %1970 = vmatprep.subr.bf16.mxu0 0
  %1971 = vmatpush1.bf16.msra.mxu0 0
  %1972 = vmatprep.subr.bf16.mxu0 0
  %1973 = vmatpush1.bf16.msra.mxu0 0
  %1974 = vmatprep.subr.bf16.mxu0 0
  %1975 = vmatpush1.bf16.msra.mxu0 0
  %1976 = vmatprep.subr.bf16.mxu0 0
  %1977 = vmatpush1.bf16.msra.mxu0 0
  %1978 = vmatprep.subr.bf16.mxu0 0
  %1979 = vmatpush1.bf16.msra.mxu0 0
  %1980 = vmatprep.subr.bf16.mxu0 0
  %1981 = vmatpush1.bf16.msra.mxu0 0
  %1982 = vmatprep.subr.bf16.mxu0 0
  %1983 = vmatpush1.bf16.msra.mxu0 0
  %1984 = vmatprep.subr.bf16.mxu0 0
  %1985 = vmatpush1.bf16.msra.mxu0 0
  %1986 = vmatprep.mubr.bf16.mxu0 0
  %1987 = vmatmul.mubr.bf16.gmra.mrb[0].mxu0 %v1952
  %v1988 = vpop.f32.mrb[0].mxu0
  %v1989 = vadd.f32 0.0, %v1988
  %v1990 = vpop.f32.mrb[0].mxu0
  %v1991 = vadd.f32 0.0, %v1990
  %v1992 = vpop.f32.mrb[0].mxu0
  %v1993 = vadd.f32 0.0, %v1992
  %v1994 = vpop.f32.mrb[0].mxu0
  %v1995 = vadd.f32 0.0, %v1994
  %1996 = vdwg.mxu0
  %v1997 = vld [vmem:[%s412] sm:$0xff]
  %v1998 = vunpack.c.l.bf16 %v1997
  %v1999 = vunpack.c.h.bf16 %v1997
  %v2000 = vadd.f32 %v1998, %v1989
  %v2001 = vadd.f32 %v1999, %v1993
  %v2002 = vld [vmem:[%s404 + $0x8] sm:$0xff]
  %v2003 = vunpack.c.l.bf16 %v2002
  %v2004 = vunpack.c.h.bf16 %v2002
  %v2005 = vadd.f32 %v2003, %v1991
  %v2006 = vadd.f32 %v2004, %v1995
  %v2007 = vld [vmem:[#allocation4] sm:$0xff]
  %v2008 = vld [vmem:[#allocation4 + $0x8] sm:$0xff]
  %v2009 = vxor.u32 %v2000, 2147483648
  %v2010 = vxor.u32 %v2001, 2147483648
  %v2011 = vmul.f32 %v2009, 1.442695
  %v2012 = vpow.pop %v2011
  %v2013 = vmul.f32 %v2010, 1.442695
  %v2014 = vpow.pop %v2013
  %v2015 = vadd.f32 %v2012, 1.0
  %v2016 = vadd.f32 %v2014, 1.0
  %v2017 = vrcp.pop %v2015
  %v2018 = vmul.f32 1.0, %v2017
  %v2019 = vrcp.pop %v2016
  %v2020 = vmul.f32 1.0, %v2019
  %v2021 = vtanh.pop %v2000
  %v2022 = vtanh.pop %v2001
  %2025 = vrot.lane.b32.xlu0 %v2007, 32
  %v2026 = vpop.permute.xlu0 %2025
  %2027 = vrot.lane.b32.xlu0 %v2008, 32
  %v2028 = vpop.permute.xlu0 %2027
  %v2031 = vmul.f32 %v2018, %v2026
  %v2032 = vmul.f32 %v2020, %v2028
  %2035 = vrot.lane.b32.xlu0 %v2021, 64
  %v2036 = vpop.permute.xlu0 %2035
  %2037 = vrot.lane.b32.xlu0 %v2022, 64
  %v2038 = vpop.permute.xlu0 %2037
  %v2041 = vmul.f32 %v2018, %v2036
  %v2042 = vmul.f32 %v2020, %v2038
  %2045 = vrot.lane.b32.xlu0 %v2041, 32
  %v2046 = vpop.permute.xlu0 %2045
  %2047 = vrot.lane.b32.xlu0 %v2042, 32
  %v2048 = vpop.permute.xlu0 %2047
  %v2051 = vadd.f32 %v2031, %v2046
  %v2052 = vadd.f32 %v2032, %v2048
  %v2053 = vtanh.pop %v2051
  %v2054 = vtanh.pop %v2052
  %2057 = vrot.lane.b32.xlu0 %v2053, 64
  %v2058 = vpop.permute.xlu0 %2057
  %2059 = vrot.lane.b32.xlu0 %v2054, 64
  %v2060 = vpop.permute.xlu0 %2059
  %v2063 = vmul.f32 %v2018, %v2058
  %v2064 = vmul.f32 %v2020, %v2060
  %v2065 = vxor.u32 %v2005, 2147483648
  %v2066 = vxor.u32 %v2006, 2147483648
  %v2067 = vmul.f32 %v2065, 1.442695
  %v2068 = vpow.pop %v2067
  %v2069 = vmul.f32 %v2066, 1.442695
  %v2070 = vpow.pop %v2069
  %v2071 = vadd.f32 %v2068, 1.0
  %v2072 = vadd.f32 %v2070, 1.0
  %v2073 = vrcp.pop %v2071
  %v2074 = vmul.f32 1.0, %v2073
  %v2075 = vrcp.pop %v2072
  %v2076 = vmul.f32 1.0, %v2075
  %v2077 = vtanh.pop %v2005
  %v2078 = vtanh.pop %v2006
  %v2079 = vmul.f32 %v2074, %v2007
  %v2080 = vmul.f32 %v2076, %v2008
  %2083 = vrot.lane.b32.xlu0 %v2077, 64
  %v2084 = vpop.permute.xlu0 %2083
  %2085 = vrot.lane.b32.xlu0 %v2078, 64
  %v2086 = vpop.permute.xlu0 %2085
  %v2089 = vmul.f32 %v2074, %v2084
  %v2090 = vmul.f32 %v2076, %v2086
  %2093 = vrot.lane.b32.xlu0 %v2089, 32
  %v2094 = vpop.permute.xlu0 %2093
  %2095 = vrot.lane.b32.xlu0 %v2090, 32
  %v2096 = vpop.permute.xlu0 %2095
  %v2099 = vadd.f32 %v2079, %v2094
  %v2100 = vadd.f32 %v2080, %v2096
  %v2101 = vtanh.pop %v2099
  %v2102 = vtanh.pop %v2100
  %2105 = vrot.lane.b32.xlu0 %v2101, 64
  %v2106 = vpop.permute.xlu0 %2105
  %2107 = vrot.lane.b32.xlu0 %v2102, 64
  %v2108 = vpop.permute.xlu0 %2107
  %v2111 = vmul.f32 %v2074, %v2106
  %v2112 = vmul.f32 %v2076, %v2108
  %2115 = vrot.lane.b32.xlu0 %v2063, 32
  %v2116 = vpop.permute.xlu0 %2115
  %2117 = vrot.lane.b32.xlu0 %v2064, 32
  %v2118 = vpop.permute.xlu0 %2117
  %2123 = vrot.lane.b32.xlu0 %v2111, 64
  %v2124 = vpop.permute.xlu0 %2123
  %2125 = vrot.lane.b32.xlu0 %v2112, 64
  %v2126 = vpop.permute.xlu0 %2125
  %v2129 = vsel %vm540, %v2116, %v2124
  %v2130 = vsel %vm540, %v2118, %v2126
  %v2131 = vpack.c.bf16 %v2130, %v2129
  %2132 = vst.msk [vmem:[#allocation3] sm:$0xff] %vm134, %v2131
  %2135 = vrot.lane.b32.xlu0 %v2051, 96
  %v2136 = vpop.permute.xlu0 %2135
  %2137 = vrot.lane.b32.xlu0 %v2052, 96
  %v2138 = vpop.permute.xlu0 %2137
  %v2141 = vsel %vm540, %v2136, %v2099
  %v2142 = vsel %vm540, %v2138, %v2100
  %2143 = vst.msk [vmem:[#allocation4] sm:$0xff] %vm134, %v2141
  %2144 = vst.msk [vmem:[#allocation4 + $0x8] sm:$0xff] %vm134, %v2142
  %v2145 = vpack.c.bf16 %v2064, %v2063
  %v2147 = vunpack.c.l.b16 %v2145
  %v2148 = vunpack.c.h.b16 %v2145
  %v2149 = vpack.c.b16 %v2147, %v2147
  %v2150 = vpack.c.b16 %v2148, %v2148
  %2151 = vrot.lane.b32.xlu0 %v2149, 32
  %v2152 = vpop.permute.xlu0 %2151
  %2153 = vrot.lane.b32.xlu0 %v2150, 32
  %v2154 = vpop.permute.xlu0 %2153
  %2157 = vst.msk [vmem:[%s584] sm:$0xf] %vm569, %v2152
  %2158 = vst.msk [vmem:[%s584 + $0x4] sm:$0xf] %vm569, %v2154
  %v2159 = vpack.c.bf16 %v2112, %v2111
  %v2161 = vunpack.c.l.b16 %v2159
  %v2162 = vunpack.c.h.b16 %v2159
  %v2163 = vpack.c.b16 %v2161, %v2161
  %v2164 = vpack.c.b16 %v2162, %v2162
  %2165 = vrot.lane.b32.xlu0 %v2163, 64
  %v2166 = vpop.permute.xlu0 %2165
  %2167 = vrot.lane.b32.xlu0 %v2164, 64
  %v2168 = vpop.permute.xlu0 %2167
  %2171 = vst.msk [vmem:[%s4] sm:$0xf] %vm585, %v2166
  %2172 = vst.msk [vmem:[%s4 + $0x4] sm:$0xf] %vm585, %v2168
  // Predicated region
  $region18: #{slot_tags_forward.8} parent=0 // pred_check
    _
  $region19: #{slot_tags_forward.8} parent=0 // pred_check_branch
    %2174 = sbr.rel (0) target = $region21
  $region20: #{slot_tags_forward.8} parent=0 // pred_region
    _
  $region21: #{slot_tags_forward.8} parent=0 // pred_fallthru
    _
  // Predicated region
  $region22: #{slot_tags_forward.8} parent=0 // pred_check
    _
  $region23: #{slot_tags_forward.8} parent=0 // pred_check_branch
    %2176 = sbr.rel (0) target = $region25
  $region24: #{slot_tags_forward.8} parent=0 // pred_region
    _
  $region25: #{slot_tags_forward.8} parent=0 // pred_fallthru
    _

</llo_original>
